<compile_context>
chip_gen: v7x
topology: tpu7x:2x2x1
jax: 0.10.0
libtpu: 0.0.40
codegen_flags: <defaults>
</compile_context>

<pallas_src>
import functools

import jax
import jax.numpy as jnp
from jax.experimental import pallas as pl
from jax.experimental.pallas import tpu as pltpu

BN_EPS = 1e-5


def _gmm_resnet_kernel(xa_ref, w_gmm_ref, stem_w_ref, stem_s_ref, stem_b_ref,
                       conv_w_ref, bn_s_ref, bn_b_ref, out_ref, *, seg_len, n_seg):
    # xa_ref: (n_seg * seg_len, 2D+1) augmented frames [x, x^2, 1] for n_seg batch elems.
    xa = xa_ref[...]

    # ---- DiagGMMLayer fused into a single MXU pass: llh = [x, x^2, 1] @ W_gmm
    llh = jnp.dot(xa, w_gmm_ref[...], preferred_element_type=jnp.float32)    # (R, G)

    # ---- stem: 1x1 conv (matmul) + folded BN + ReLU
    h = jnp.dot(llh.astype(jnp.bfloat16), stem_w_ref[...],
                preferred_element_type=jnp.float32)
    h = jnp.maximum(h * stem_s_ref[...] + stem_b_ref[...], 0.0)              # (R, C)

    rows, C = h.shape

    # Segment-boundary masks, hoisted once and reused by all 12 convolutions.
    row = jax.lax.broadcasted_iota(jnp.int32, (rows, C), 0)
    t_in_seg = row % seg_len
    first_mask = t_in_seg == 0                # first frame of each batch element
    last_mask = t_in_seg == seg_len - 1       # last frame of each batch element

    def conv3(inp, w_packed):
        # Conv1d(k=3, pad=1) as ONE matmul: [x_{t-1}, x_t, x_{t+1}] @ (3C, C).
        prev = jnp.where(first_mask, 0.0, jnp.roll(inp, 1, axis=0))
        nxt = jnp.where(last_mask, 0.0, jnp.roll(inp, -1, axis=0))
        slab = jnp.concatenate([prev, inp, nxt], axis=-1).astype(jnp.bfloat16)
        return jnp.dot(slab, w_packed, preferred_element_type=jnp.float32)

    # ---- 6 ResNet blocks (statically unrolled); weights read per use from the refs.
    for blk in range(6):
        identity = h
        o = conv3(h, conv_w_ref[blk, 0])
        o = jnp.maximum(o * bn_s_ref[blk, 0] + bn_b_ref[blk, 0], 0.0)
        o = conv3(o, conv_w_ref[blk, 1])
        o = o * bn_s_ref[blk, 1] + bn_b_ref[blk, 1] + identity
        h = jnp.maximum(o, 0.0)

    # ---- AdaptiveMaxPool1d(1): per-segment max over time -> (n_seg, C)
    pooled = [jnp.max(h[i * seg_len:(i + 1) * seg_len, :], axis=0, keepdims=True)
              for i in range(n_seg)]
    out_ref[...] = jnp.concatenate(pooled, axis=0)


def gmm_resnet_path(x, params, block_batch=8):
    """x: (B, T, D) feature frames -> (B, C) pooled embedding."""
    B, T, D = x.shape
    G = params["w_gmm"].shape[1]
    C = params["stem_w"].shape[1]
    Bt = block_batch
    assert Bt % 8 == 0, "block_batch must be a multiple of 8 (sublane tiling)"

    # Pad batch to a multiple of Bt (padded rows are sliced off at the end).
    B_pad = ((B + Bt - 1) // Bt) * Bt
    if B_pad != B:
        x = jnp.pad(x, ((0, B_pad - B), (0, 0), (0, 0)))
    n_steps = B_pad // Bt
    rows = Bt * T

    # Augmented frames for the fused GMM matmul: [x, x^2, 1] -> (B_pad*T, 2D+1).
    xa = jnp.concatenate(
        [x, x * x, jnp.ones((B_pad, T, 1), x.dtype)], axis=-1
    ).reshape(B_pad * T, 2 * D + 1).astype(jnp.float32)

    full = lambda a: pl.BlockSpec(a.shape, lambda b, _n=a.ndim: (0,) * _n)

    weights = (params["w_gmm"], params["stem_w"], params["stem_s"], params["stem_b"],
               params["conv_w"], params["bn_s"], params["bn_b"])

    flops = int(2 * B_pad * T * ((2 * D + 1) * G + G * C + 12 * 3 * C * C))
    bytes_accessed = int(xa.size * xa.dtype.itemsize
                         + sum(int(p.size) * p.dtype.itemsize for p in weights)
                         + B_pad * C * 4)

    out = pl.pallas_call(
        functools.partial(_gmm_resnet_kernel, seg_len=T, n_seg=Bt),
        out_shape=jax.ShapeDtypeStruct((B_pad, C), jnp.float32),
        grid_spec=pltpu.PrefetchScalarGridSpec(
            num_scalar_prefetch=0,
            grid=(n_steps,),
            in_specs=[pl.BlockSpec((rows, 2 * D + 1), lambda b: (b, 0))]  # frames
                     + [full(w) for w in weights],                        # weights
            out_specs=pl.BlockSpec((Bt, C), lambda b: (b, 0)),
        ),
        compiler_params=pltpu.CompilerParams(
            dimension_semantics=("parallel",),   # batch axis carries no accumulator
            vmem_limit_bytes=32 * 1024 * 1024,
        ),
        cost_estimate=pl.CostEstimate(flops=flops, transcendentals=0,
                                      bytes_accessed=bytes_accessed),
    )(xa, *weights)
    return out[:B]


def _fold_bn(gamma, beta, mean, var):
    scale = gamma / jnp.sqrt(var + BN_EPS)
    shift = beta - mean * scale
    return scale, shift


def make_params(key, gmm_size, feat_dim):
    """Deterministic synthetic parameters matching the PyTorch module's shapes."""
    G, C, D = gmm_size, gmm_size, feat_dim
    keys = iter(jax.random.split(key, 96))   # 68 keys needed; split plenty

    # --- GMM (means (G,D), diag vars (G,D), mixture weights (G,)) packed for the
    #     fused matmul:  W_gmm = [(mu/var)^T ; -0.5*(1/var)^T ; const]  of shape (2D+1, G)
    means = jax.random.normal(next(keys), (G, D), jnp.float32)
    var = jax.random.uniform(next(keys), (G, D), jnp.float32, 0.5, 1.5)
    logits = jax.random.normal(next(keys), (G,), jnp.float32)
    w = jax.nn.softmax(logits)
    const = (jnp.log(w)
             - 0.5 * jnp.sum(jnp.log(2.0 * jnp.pi * var), axis=1)
             - 0.5 * jnp.sum(means * means / var, axis=1))
    w_gmm = jnp.concatenate([(means / var).T, (-0.5 / var).T, const.reshape(1, G)],
                            axis=0)                                    # (2D+1, G) f32

    # --- stem: Conv1d(G->C, k=1, bias=False) + BN
    stem_w_pt = jax.random.normal(next(keys), (C, G, 1), jnp.float32) * (1.0 / jnp.sqrt(G))
    stem_w = stem_w_pt[:, :, 0].T.astype(jnp.bfloat16)                 # (G, C) bf16
    g = jax.random.uniform(next(keys), (C,), jnp.float32, 0.8, 1.2)
    b = jax.random.normal(next(keys), (C,), jnp.float32) * 0.1
    m = jax.random.normal(next(keys), (C,), jnp.float32) * 0.1
    v = jax.random.uniform(next(keys), (C,), jnp.float32, 0.5, 1.5)
    s, sh = _fold_bn(g, b, m, v)
    stem_s, stem_b = s.reshape(1, C), sh.reshape(1, C)

    # --- 6 ResNet blocks: 2x [Conv1d(C->C, k=3, bias=False) + BN], k=3 taps packed
    #     into a single (3C, C) weight:  out = [x_{t-1}, x_t, x_{t+1}] @ [W0^T;W1^T;W2^T]
    conv_w, bn_s, bn_b = [], [], []
    for _blk in range(6):
        cw_b, bs_b, bb_b = [], [], []
        for _cv in range(2):
            w_pt = jax.random.normal(next(keys), (C, C, 3), jnp.float32) * jnp.sqrt(2.0 / (3 * C))
            w_packed = jnp.concatenate([w_pt[:, :, k].T for k in range(3)], axis=0)  # (3C, C)
            cw_b.append(w_packed.astype(jnp.bfloat16))
            g = jax.random.uniform(next(keys), (C,), jnp.float32, 0.8, 1.2)
            b = jax.random.normal(next(keys), (C,), jnp.float32) * 0.1
            m = jax.random.normal(next(keys), (C,), jnp.float32) * 0.1
            v = jax.random.uniform(next(keys), (C,), jnp.float32, 0.5, 1.5)
            s, sh = _fold_bn(g, b, m, v)
            bs_b.append(s.reshape(1, C))
            bb_b.append(sh.reshape(1, C))
        conv_w.append(jnp.stack(cw_b))
        bn_s.append(jnp.stack(bs_b))
        bn_b.append(jnp.stack(bb_b))

    return {
        "w_gmm": w_gmm,                       # (2D+1, G) f32
        "stem_w": stem_w,                     # (G, C)    bf16
        "stem_s": stem_s, "stem_b": stem_b,   # (1, C)    f32
        "conv_w": jnp.stack(conv_w),          # (6, 2, 3C, C) bf16
        "bn_s": jnp.stack(bn_s),              # (6, 2, 1, C)  f32
        "bn_b": jnp.stack(bn_b),              # (6, 2, 1, C)  f32
    }


if __name__ == "__main__":
    key = jax.random.PRNGKey(0)
    k_params, k_x = jax.random.split(key)

    B, T, D = 16, 16, 8         # batch, frames, feature dim  (Bt=8 -> 2 steps of 128 rows)
    GMM_SIZE = 32               # number of GMM components == channel width

    params = make_params(k_params, GMM_SIZE, D)
    x = jax.random.normal(k_x, (B, T, D), jnp.float32)

    fn = jax.jit(functools.partial(gmm_resnet_path, params=params))
    out = fn(x)
    jax.block_until_ready(out)

    assert out.shape == (B, GMM_SIZE), out.shape
    assert bool(jnp.all(jnp.isfinite(out)))
    print("KERNEL_OK")
</pallas_src>

<mosaic_0001>
module attributes {stable_mosaic.version = 11 : i64} {
  func.func @_gmm_resnet_kernel(%arg0: i32, %arg1: memref<128x17xf32, #tpu.memory_space<vmem>>, %arg2: memref<17x32xf32, #tpu.memory_space<vmem>>, %arg3: memref<32x32xbf16, #tpu.memory_space<vmem>>, %arg4: memref<1x32xf32, #tpu.memory_space<vmem>>, %arg5: memref<1x32xf32, #tpu.memory_space<vmem>>, %arg6: memref<6x2x96x32xbf16, #tpu.memory_space<vmem>>, %arg7: memref<6x2x1x32xf32, #tpu.memory_space<vmem>>, %arg8: memref<6x2x1x32xf32, #tpu.memory_space<vmem>>, %arg9: memref<8x32xf32, #tpu.memory_space<vmem>>) attributes {dimension_semantics = [#tpu.dimension_semantics<parallel>], iteration_bounds = array<i64: 2>, scalar_prefetch = 0 : i64, scratch_operands = 0 : i64, tpu.core_type = #tpu.core_type<tc>, window_params = [{transform_indices = @transform_0, window_bounds = array<i64: 128, 17>}, {pipeline_mode = #tpu.pipeline_mode<synchronous>, transform_indices = @transform_1, window_bounds = array<i64: 17, 32>}, {pipeline_mode = #tpu.pipeline_mode<synchronous>, transform_indices = @transform_2, window_bounds = array<i64: 32, 32>}, {pipeline_mode = #tpu.pipeline_mode<synchronous>, transform_indices = @transform_3, window_bounds = array<i64: 1, 32>}, {pipeline_mode = #tpu.pipeline_mode<synchronous>, transform_indices = @transform_4, window_bounds = array<i64: 1, 32>}, {pipeline_mode = #tpu.pipeline_mode<synchronous>, transform_indices = @transform_5, window_bounds = array<i64: 6, 2, 96, 32>}, {pipeline_mode = #tpu.pipeline_mode<synchronous>, transform_indices = @transform_6, window_bounds = array<i64: 6, 2, 1, 32>}, {pipeline_mode = #tpu.pipeline_mode<synchronous>, transform_indices = @transform_7, window_bounds = array<i64: 6, 2, 1, 32>}, {transform_indices = @transform_8, window_bounds = array<i64: 8, 32>}]} {
    %c0 = arith.constant 0 : index
    %c0_0 = arith.constant 0 : index
    %0 = vector.load %arg1[%c0, %c0_0] : memref<128x17xf32, #tpu.memory_space<vmem>>, vector<128x17xf32>
    %c0_1 = arith.constant 0 : index
    %c0_2 = arith.constant 0 : index
    %1 = vector.load %arg2[%c0_1, %c0_2] : memref<17x32xf32, #tpu.memory_space<vmem>>, vector<17x32xf32>
    %cst = arith.constant dense<0.000000e+00> : vector<128x32xf32>
    %2 = tpu.matmul %0, %1, %cst {dimension_numbers = #tpu.dot_dimension_numbers<[1], [0], [0], [1], [0, 0, 1, 1], [], []>} : vector<128x17xf32>, vector<17x32xf32>, vector<128x32xf32> -> vector<128x32xf32>
    %3 = arith.truncf %2 : vector<128x32xf32> to vector<128x32xbf16>
    %c0_3 = arith.constant 0 : index
    %c0_4 = arith.constant 0 : index
    %4 = vector.load %arg3[%c0_3, %c0_4] : memref<32x32xbf16, #tpu.memory_space<vmem>>, vector<32x32xbf16>
    %cst_5 = arith.constant dense<0.000000e+00> : vector<128x32xf32>
    %5 = tpu.matmul %3, %4, %cst_5 {dimension_numbers = #tpu.dot_dimension_numbers<[1], [0], [0], [1], [0, 0, 1, 1], [], []>} : vector<128x32xbf16>, vector<32x32xbf16>, vector<128x32xf32> -> vector<128x32xf32>
    %c0_6 = arith.constant 0 : index
    %c0_7 = arith.constant 0 : index
    %6 = vector.load %arg4[%c0_6, %c0_7] : memref<1x32xf32, #tpu.memory_space<vmem>>, vector<1x32xf32>
    %7 = vector.broadcast %6 : vector<1x32xf32> to vector<128x32xf32>
    %8 = arith.mulf %5, %7 : vector<128x32xf32>
    %c0_8 = arith.constant 0 : index
    %c0_9 = arith.constant 0 : index
    %9 = vector.load %arg5[%c0_8, %c0_9] : memref<1x32xf32, #tpu.memory_space<vmem>>, vector<1x32xf32>
    %10 = vector.broadcast %9 : vector<1x32xf32> to vector<128x32xf32>
    %11 = arith.addf %8, %10 : vector<128x32xf32>
    %cst_10 = arith.constant 0.000000e+00 : f32
    %12 = vector.broadcast %cst_10 : f32 to vector<128x32xf32>
    %13 = arith.maximumf %11, %12 : vector<128x32xf32>
    %14 = tpu.iota {dimensions = array<i32: 0>} : vector<128x32xi32>
    %c16_i32 = arith.constant 16 : i32
    %c0_i32 = arith.constant 0 : i32
    %15 = arith.cmpi eq, %c16_i32, %c0_i32 : i32
    %c1_i32 = arith.constant 1 : i32
    %16 = arith.select %15, %c1_i32, %c16_i32 : i32
    %17 = vector.broadcast %16 : i32 to vector<128x32xi32>
    %18 = arith.remsi %14, %17 : vector<128x32xi32>
    %c0_i32_11 = arith.constant 0 : i32
    %19 = vector.broadcast %c0_i32_11 : i32 to vector<128x32xi32>
    %20 = arith.cmpi ne, %18, %19 : vector<128x32xi32>
    %c0_i32_12 = arith.constant 0 : i32
    %21 = vector.broadcast %c0_i32_12 : i32 to vector<128x32xi32>
    %22 = arith.cmpi slt, %18, %21 : vector<128x32xi32>
    %c0_i32_13 = arith.constant 0 : i32
    %23 = arith.cmpi slt, %16, %c0_i32_13 : i32
    %24 = vector.broadcast %23 : i1 to vector<128x32xi1>
    %25 = vector.broadcast %24 : vector<128x32xi1> to vector<128x32xi1>
    %26 = arith.xori %22, %25 : vector<128x32xi1>
    %27 = arith.andi %26, %20 : vector<128x32xi1>
    %28 = vector.broadcast %16 : i32 to vector<128x32xi32>
    %29 = arith.addi %18, %28 : vector<128x32xi32>
    %30 = arith.select %27, %29, %18 : vector<128x32xi1>, vector<128x32xi32>
    %c0_i32_14 = arith.constant 0 : i32
    %31 = vector.broadcast %c0_i32_14 : i32 to vector<128x32xi32>
    %32 = arith.cmpi eq, %30, %31 : vector<128x32xi32>
    %c15_i32 = arith.constant 15 : i32
    %33 = vector.broadcast %c15_i32 : i32 to vector<128x32xi32>
    %34 = arith.cmpi eq, %30, %33 : vector<128x32xi32>
    %c0_15 = arith.constant 0 : index
    %c0_16 = arith.constant 0 : index
    %c0_17 = arith.constant 0 : index
    %c0_18 = arith.constant 0 : index
    %35 = vector.load %arg6[%c0_15, %c0_16, %c0_17, %c0_18] : memref<6x2x96x32xbf16, #tpu.memory_space<vmem>>, vector<1x1x96x32xbf16>
    %36 = vector.shape_cast %35 : vector<1x1x96x32xbf16> to vector<96x32xbf16>
    %37 = vector.extract_strided_slice %13 {offsets = [127, 0], sizes = [1, 32], strides = [1, 1]} : vector<128x32xf32> to vector<1x32xf32>
    %38 = vector.extract_strided_slice %13 {offsets = [0, 0], sizes = [127, 32], strides = [1, 1]} : vector<128x32xf32> to vector<127x32xf32>
    %39 = tpu.concatenate %37, %38 in 0 : vector<1x32xf32>, vector<127x32xf32> -> vector<128x32xf32>
    %cst_19 = arith.constant 0.000000e+00 : f32
    %40 = vector.broadcast %cst_19 : f32 to vector<128x32xf32>
    %41 = arith.select %32, %40, %39 : vector<128x32xi1>, vector<128x32xf32>
    %42 = vector.extract_strided_slice %13 {offsets = [1, 0], sizes = [127, 32], strides = [1, 1]} : vector<128x32xf32> to vector<127x32xf32>
    %43 = vector.extract_strided_slice %13 {offsets = [0, 0], sizes = [1, 32], strides = [1, 1]} : vector<128x32xf32> to vector<1x32xf32>
    %44 = tpu.concatenate %42, %43 in 0 : vector<127x32xf32>, vector<1x32xf32> -> vector<128x32xf32>
    %cst_20 = arith.constant 0.000000e+00 : f32
    %45 = vector.broadcast %cst_20 : f32 to vector<128x32xf32>
    %46 = arith.select %34, %45, %44 : vector<128x32xi1>, vector<128x32xf32>
    %47 = tpu.concatenate %41, %13, %46 in 1 : vector<128x32xf32>, vector<128x32xf32>, vector<128x32xf32> -> vector<128x96xf32>
    %48 = arith.truncf %47 : vector<128x96xf32> to vector<128x96xbf16>
    %cst_21 = arith.constant dense<0.000000e+00> : vector<128x32xf32>
    %49 = tpu.matmul %48, %36, %cst_21 {dimension_numbers = #tpu.dot_dimension_numbers<[1], [0], [0], [1], [0, 0, 1, 1], [], []>} : vector<128x96xbf16>, vector<96x32xbf16>, vector<128x32xf32> -> vector<128x32xf32>
    %c0_22 = arith.constant 0 : index
    %c0_23 = arith.constant 0 : index
    %c0_24 = arith.constant 0 : index
    %c0_25 = arith.constant 0 : index
    %50 = vector.load %arg7[%c0_22, %c0_23, %c0_24, %c0_25] : memref<6x2x1x32xf32, #tpu.memory_space<vmem>>, vector<1x1x1x32xf32>
    %51 = vector.shape_cast %50 : vector<1x1x1x32xf32> to vector<1x32xf32>
    %52 = vector.broadcast %51 : vector<1x32xf32> to vector<128x32xf32>
    %53 = arith.mulf %49, %52 : vector<128x32xf32>
    %c0_26 = arith.constant 0 : index
    %c0_27 = arith.constant 0 : index
    %c0_28 = arith.constant 0 : index
    %c0_29 = arith.constant 0 : index
    %54 = vector.load %arg8[%c0_26, %c0_27, %c0_28, %c0_29] : memref<6x2x1x32xf32, #tpu.memory_space<vmem>>, vector<1x1x1x32xf32>
    %55 = vector.shape_cast %54 : vector<1x1x1x32xf32> to vector<1x32xf32>
    %56 = vector.broadcast %55 : vector<1x32xf32> to vector<128x32xf32>
    %57 = arith.addf %53, %56 : vector<128x32xf32>
    %cst_30 = arith.constant 0.000000e+00 : f32
    %58 = vector.broadcast %cst_30 : f32 to vector<128x32xf32>
    %59 = arith.maximumf %57, %58 : vector<128x32xf32>
    %c0_31 = arith.constant 0 : index
    %c1 = arith.constant 1 : index
    %c0_32 = arith.constant 0 : index
    %c0_33 = arith.constant 0 : index
    %60 = vector.load %arg6[%c0_31, %c1, %c0_32, %c0_33] : memref<6x2x96x32xbf16, #tpu.memory_space<vmem>>, vector<1x1x96x32xbf16>
    %61 = vector.shape_cast %60 : vector<1x1x96x32xbf16> to vector<96x32xbf16>
    %62 = vector.extract_strided_slice %59 {offsets = [127, 0], sizes = [1, 32], strides = [1, 1]} : vector<128x32xf32> to vector<1x32xf32>
    %63 = vector.extract_strided_slice %59 {offsets = [0, 0], sizes = [127, 32], strides = [1, 1]} : vector<128x32xf32> to vector<127x32xf32>
    %64 = tpu.concatenate %62, %63 in 0 : vector<1x32xf32>, vector<127x32xf32> -> vector<128x32xf32>
    %cst_34 = arith.constant 0.000000e+00 : f32
    %65 = vector.broadcast %cst_34 : f32 to vector<128x32xf32>
    %66 = arith.select %32, %65, %64 : vector<128x32xi1>, vector<128x32xf32>
    %67 = vector.extract_strided_slice %59 {offsets = [1, 0], sizes = [127, 32], strides = [1, 1]} : vector<128x32xf32> to vector<127x32xf32>
    %68 = vector.extract_strided_slice %59 {offsets = [0, 0], sizes = [1, 32], strides = [1, 1]} : vector<128x32xf32> to vector<1x32xf32>
    %69 = tpu.concatenate %67, %68 in 0 : vector<127x32xf32>, vector<1x32xf32> -> vector<128x32xf32>
    %cst_35 = arith.constant 0.000000e+00 : f32
    %70 = vector.broadcast %cst_35 : f32 to vector<128x32xf32>
    %71 = arith.select %34, %70, %69 : vector<128x32xi1>, vector<128x32xf32>
    %72 = tpu.concatenate %66, %59, %71 in 1 : vector<128x32xf32>, vector<128x32xf32>, vector<128x32xf32> -> vector<128x96xf32>
    %73 = arith.truncf %72 : vector<128x96xf32> to vector<128x96xbf16>
    %cst_36 = arith.constant dense<0.000000e+00> : vector<128x32xf32>
    %74 = tpu.matmul %73, %61, %cst_36 {dimension_numbers = #tpu.dot_dimension_numbers<[1], [0], [0], [1], [0, 0, 1, 1], [], []>} : vector<128x96xbf16>, vector<96x32xbf16>, vector<128x32xf32> -> vector<128x32xf32>
    %c0_37 = arith.constant 0 : index
    %c1_38 = arith.constant 1 : index
    %c0_39 = arith.constant 0 : index
    %c0_40 = arith.constant 0 : index
    %75 = vector.load %arg7[%c0_37, %c1_38, %c0_39, %c0_40] : memref<6x2x1x32xf32, #tpu.memory_space<vmem>>, vector<1x1x1x32xf32>
    %76 = vector.shape_cast %75 : vector<1x1x1x32xf32> to vector<1x32xf32>
    %77 = vector.broadcast %76 : vector<1x32xf32> to vector<128x32xf32>
    %78 = arith.mulf %74, %77 : vector<128x32xf32>
    %c0_41 = arith.constant 0 : index
    %c1_42 = arith.constant 1 : index
    %c0_43 = arith.constant 0 : index
    %c0_44 = arith.constant 0 : index
    %79 = vector.load %arg8[%c0_41, %c1_42, %c0_43, %c0_44] : memref<6x2x1x32xf32, #tpu.memory_space<vmem>>, vector<1x1x1x32xf32>
    %80 = vector.shape_cast %79 : vector<1x1x1x32xf32> to vector<1x32xf32>
    %81 = vector.broadcast %80 : vector<1x32xf32> to vector<128x32xf32>
    %82 = arith.addf %78, %81 : vector<128x32xf32>
    %83 = arith.addf %82, %13 : vector<128x32xf32>
    %cst_45 = arith.constant 0.000000e+00 : f32
    %84 = vector.broadcast %cst_45 : f32 to vector<128x32xf32>
    %85 = arith.maximumf %83, %84 : vector<128x32xf32>
    %c1_46 = arith.constant 1 : index
    %c0_47 = arith.constant 0 : index
    %c0_48 = arith.constant 0 : index
    %c0_49 = arith.constant 0 : index
    %86 = vector.load %arg6[%c1_46, %c0_47, %c0_48, %c0_49] : memref<6x2x96x32xbf16, #tpu.memory_space<vmem>>, vector<1x1x96x32xbf16>
    %87 = vector.shape_cast %86 : vector<1x1x96x32xbf16> to vector<96x32xbf16>
    %88 = vector.extract_strided_slice %85 {offsets = [127, 0], sizes = [1, 32], strides = [1, 1]} : vector<128x32xf32> to vector<1x32xf32>
    %89 = vector.extract_strided_slice %85 {offsets = [0, 0], sizes = [127, 32], strides = [1, 1]} : vector<128x32xf32> to vector<127x32xf32>
    %90 = tpu.concatenate %88, %89 in 0 : vector<1x32xf32>, vector<127x32xf32> -> vector<128x32xf32>
    %cst_50 = arith.constant 0.000000e+00 : f32
    %91 = vector.broadcast %cst_50 : f32 to vector<128x32xf32>
    %92 = arith.select %32, %91, %90 : vector<128x32xi1>, vector<128x32xf32>
    %93 = vector.extract_strided_slice %85 {offsets = [1, 0], sizes = [127, 32], strides = [1, 1]} : vector<128x32xf32> to vector<127x32xf32>
    %94 = vector.extract_strided_slice %85 {offsets = [0, 0], sizes = [1, 32], strides = [1, 1]} : vector<128x32xf32> to vector<1x32xf32>
    %95 = tpu.concatenate %93, %94 in 0 : vector<127x32xf32>, vector<1x32xf32> -> vector<128x32xf32>
    %cst_51 = arith.constant 0.000000e+00 : f32
    %96 = vector.broadcast %cst_51 : f32 to vector<128x32xf32>
    %97 = arith.select %34, %96, %95 : vector<128x32xi1>, vector<128x32xf32>
    %98 = tpu.concatenate %92, %85, %97 in 1 : vector<128x32xf32>, vector<128x32xf32>, vector<128x32xf32> -> vector<128x96xf32>
    %99 = arith.truncf %98 : vector<128x96xf32> to vector<128x96xbf16>
    %cst_52 = arith.constant dense<0.000000e+00> : vector<128x32xf32>
    %100 = tpu.matmul %99, %87, %cst_52 {dimension_numbers = #tpu.dot_dimension_numbers<[1], [0], [0], [1], [0, 0, 1, 1], [], []>} : vector<128x96xbf16>, vector<96x32xbf16>, vector<128x32xf32> -> vector<128x32xf32>
    %c1_53 = arith.constant 1 : index
    %c0_54 = arith.constant 0 : index
    %c0_55 = arith.constant 0 : index
    %c0_56 = arith.constant 0 : index
    %101 = vector.load %arg7[%c1_53, %c0_54, %c0_55, %c0_56] : memref<6x2x1x32xf32, #tpu.memory_space<vmem>>, vector<1x1x1x32xf32>
    %102 = vector.shape_cast %101 : vector<1x1x1x32xf32> to vector<1x32xf32>
    %103 = vector.broadcast %102 : vector<1x32xf32> to vector<128x32xf32>
    %104 = arith.mulf %100, %103 : vector<128x32xf32>
    %c1_57 = arith.constant 1 : index
    %c0_58 = arith.constant 0 : index
    %c0_59 = arith.constant 0 : index
    %c0_60 = arith.constant 0 : index
    %105 = vector.load %arg8[%c1_57, %c0_58, %c0_59, %c0_60] : memref<6x2x1x32xf32, #tpu.memory_space<vmem>>, vector<1x1x1x32xf32>
    %106 = vector.shape_cast %105 : vector<1x1x1x32xf32> to vector<1x32xf32>
    %107 = vector.broadcast %106 : vector<1x32xf32> to vector<128x32xf32>
    %108 = arith.addf %104, %107 : vector<128x32xf32>
    %cst_61 = arith.constant 0.000000e+00 : f32
    %109 = vector.broadcast %cst_61 : f32 to vector<128x32xf32>
    %110 = arith.maximumf %108, %109 : vector<128x32xf32>
    %c1_62 = arith.constant 1 : index
    %c1_63 = arith.constant 1 : index
    %c0_64 = arith.constant 0 : index
    %c0_65 = arith.constant 0 : index
    %111 = vector.load %arg6[%c1_62, %c1_63, %c0_64, %c0_65] : memref<6x2x96x32xbf16, #tpu.memory_space<vmem>>, vector<1x1x96x32xbf16>
    %112 = vector.shape_cast %111 : vector<1x1x96x32xbf16> to vector<96x32xbf16>
    %113 = vector.extract_strided_slice %110 {offsets = [127, 0], sizes = [1, 32], strides = [1, 1]} : vector<128x32xf32> to vector<1x32xf32>
    %114 = vector.extract_strided_slice %110 {offsets = [0, 0], sizes = [127, 32], strides = [1, 1]} : vector<128x32xf32> to vector<127x32xf32>
    %115 = tpu.concatenate %113, %114 in 0 : vector<1x32xf32>, vector<127x32xf32> -> vector<128x32xf32>
    %cst_66 = arith.constant 0.000000e+00 : f32
    %116 = vector.broadcast %cst_66 : f32 to vector<128x32xf32>
    %117 = arith.select %32, %116, %115 : vector<128x32xi1>, vector<128x32xf32>
    %118 = vector.extract_strided_slice %110 {offsets = [1, 0], sizes = [127, 32], strides = [1, 1]} : vector<128x32xf32> to vector<127x32xf32>
    %119 = vector.extract_strided_slice %110 {offsets = [0, 0], sizes = [1, 32], strides = [1, 1]} : vector<128x32xf32> to vector<1x32xf32>
    %120 = tpu.concatenate %118, %119 in 0 : vector<127x32xf32>, vector<1x32xf32> -> vector<128x32xf32>
    %cst_67 = arith.constant 0.000000e+00 : f32
    %121 = vector.broadcast %cst_67 : f32 to vector<128x32xf32>
    %122 = arith.select %34, %121, %120 : vector<128x32xi1>, vector<128x32xf32>
    %123 = tpu.concatenate %117, %110, %122 in 1 : vector<128x32xf32>, vector<128x32xf32>, vector<128x32xf32> -> vector<128x96xf32>
    %124 = arith.truncf %123 : vector<128x96xf32> to vector<128x96xbf16>
    %cst_68 = arith.constant dense<0.000000e+00> : vector<128x32xf32>
    %125 = tpu.matmul %124, %112, %cst_68 {dimension_numbers = #tpu.dot_dimension_numbers<[1], [0], [0], [1], [0, 0, 1, 1], [], []>} : vector<128x96xbf16>, vector<96x32xbf16>, vector<128x32xf32> -> vector<128x32xf32>
    %c1_69 = arith.constant 1 : index
    %c1_70 = arith.constant 1 : index
    %c0_71 = arith.constant 0 : index
    %c0_72 = arith.constant 0 : index
    %126 = vector.load %arg7[%c1_69, %c1_70, %c0_71, %c0_72] : memref<6x2x1x32xf32, #tpu.memory_space<vmem>>, vector<1x1x1x32xf32>
    %127 = vector.shape_cast %126 : vector<1x1x1x32xf32> to vector<1x32xf32>
    %128 = vector.broadcast %127 : vector<1x32xf32> to vector<128x32xf32>
    %129 = arith.mulf %125, %128 : vector<128x32xf32>
    %c1_73 = arith.constant 1 : index
    %c1_74 = arith.constant 1 : index
    %c0_75 = arith.constant 0 : index
    %c0_76 = arith.constant 0 : index
    %130 = vector.load %arg8[%c1_73, %c1_74, %c0_75, %c0_76] : memref<6x2x1x32xf32, #tpu.memory_space<vmem>>, vector<1x1x1x32xf32>
    %131 = vector.shape_cast %130 : vector<1x1x1x32xf32> to vector<1x32xf32>
    %132 = vector.broadcast %131 : vector<1x32xf32> to vector<128x32xf32>
    %133 = arith.addf %129, %132 : vector<128x32xf32>
    %134 = arith.addf %133, %85 : vector<128x32xf32>
    %cst_77 = arith.constant 0.000000e+00 : f32
    %135 = vector.broadcast %cst_77 : f32 to vector<128x32xf32>
    %136 = arith.maximumf %134, %135 : vector<128x32xf32>
    %c2 = arith.constant 2 : index
    %c0_78 = arith.constant 0 : index
    %c0_79 = arith.constant 0 : index
    %c0_80 = arith.constant 0 : index
    %137 = vector.load %arg6[%c2, %c0_78, %c0_79, %c0_80] : memref<6x2x96x32xbf16, #tpu.memory_space<vmem>>, vector<1x1x96x32xbf16>
    %138 = vector.shape_cast %137 : vector<1x1x96x32xbf16> to vector<96x32xbf16>
    %139 = vector.extract_strided_slice %136 {offsets = [127, 0], sizes = [1, 32], strides = [1, 1]} : vector<128x32xf32> to vector<1x32xf32>
    %140 = vector.extract_strided_slice %136 {offsets = [0, 0], sizes = [127, 32], strides = [1, 1]} : vector<128x32xf32> to vector<127x32xf32>
    %141 = tpu.concatenate %139, %140 in 0 : vector<1x32xf32>, vector<127x32xf32> -> vector<128x32xf32>
    %cst_81 = arith.constant 0.000000e+00 : f32
    %142 = vector.broadcast %cst_81 : f32 to vector<128x32xf32>
    %143 = arith.select %32, %142, %141 : vector<128x32xi1>, vector<128x32xf32>
    %144 = vector.extract_strided_slice %136 {offsets = [1, 0], sizes = [127, 32], strides = [1, 1]} : vector<128x32xf32> to vector<127x32xf32>
    %145 = vector.extract_strided_slice %136 {offsets = [0, 0], sizes = [1, 32], strides = [1, 1]} : vector<128x32xf32> to vector<1x32xf32>
    %146 = tpu.concatenate %144, %145 in 0 : vector<127x32xf32>, vector<1x32xf32> -> vector<128x32xf32>
    %cst_82 = arith.constant 0.000000e+00 : f32
    %147 = vector.broadcast %cst_82 : f32 to vector<128x32xf32>
    %148 = arith.select %34, %147, %146 : vector<128x32xi1>, vector<128x32xf32>
    %149 = tpu.concatenate %143, %136, %148 in 1 : vector<128x32xf32>, vector<128x32xf32>, vector<128x32xf32> -> vector<128x96xf32>
    %150 = arith.truncf %149 : vector<128x96xf32> to vector<128x96xbf16>
    %cst_83 = arith.constant dense<0.000000e+00> : vector<128x32xf32>
    %151 = tpu.matmul %150, %138, %cst_83 {dimension_numbers = #tpu.dot_dimension_numbers<[1], [0], [0], [1], [0, 0, 1, 1], [], []>} : vector<128x96xbf16>, vector<96x32xbf16>, vector<128x32xf32> -> vector<128x32xf32>
    %c2_84 = arith.constant 2 : index
    %c0_85 = arith.constant 0 : index
    %c0_86 = arith.constant 0 : index
    %c0_87 = arith.constant 0 : index
    %152 = vector.load %arg7[%c2_84, %c0_85, %c0_86, %c0_87] : memref<6x2x1x32xf32, #tpu.memory_space<vmem>>, vector<1x1x1x32xf32>
    %153 = vector.shape_cast %152 : vector<1x1x1x32xf32> to vector<1x32xf32>
    %154 = vector.broadcast %153 : vector<1x32xf32> to vector<128x32xf32>
    %155 = arith.mulf %151, %154 : vector<128x32xf32>
    %c2_88 = arith.constant 2 : index
    %c0_89 = arith.constant 0 : index
    %c0_90 = arith.constant 0 : index
    %c0_91 = arith.constant 0 : index
    %156 = vector.load %arg8[%c2_88, %c0_89, %c0_90, %c0_91] : memref<6x2x1x32xf32, #tpu.memory_space<vmem>>, vector<1x1x1x32xf32>
    %157 = vector.shape_cast %156 : vector<1x1x1x32xf32> to vector<1x32xf32>
    %158 = vector.broadcast %157 : vector<1x32xf32> to vector<128x32xf32>
    %159 = arith.addf %155, %158 : vector<128x32xf32>
    %cst_92 = arith.constant 0.000000e+00 : f32
    %160 = vector.broadcast %cst_92 : f32 to vector<128x32xf32>
    %161 = arith.maximumf %159, %160 : vector<128x32xf32>
    %c2_93 = arith.constant 2 : index
    %c1_94 = arith.constant 1 : index
    %c0_95 = arith.constant 0 : index
    %c0_96 = arith.constant 0 : index
    %162 = vector.load %arg6[%c2_93, %c1_94, %c0_95, %c0_96] : memref<6x2x96x32xbf16, #tpu.memory_space<vmem>>, vector<1x1x96x32xbf16>
    %163 = vector.shape_cast %162 : vector<1x1x96x32xbf16> to vector<96x32xbf16>
    %164 = vector.extract_strided_slice %161 {offsets = [127, 0], sizes = [1, 32], strides = [1, 1]} : vector<128x32xf32> to vector<1x32xf32>
    %165 = vector.extract_strided_slice %161 {offsets = [0, 0], sizes = [127, 32], strides = [1, 1]} : vector<128x32xf32> to vector<127x32xf32>
    %166 = tpu.concatenate %164, %165 in 0 : vector<1x32xf32>, vector<127x32xf32> -> vector<128x32xf32>
    %cst_97 = arith.constant 0.000000e+00 : f32
    %167 = vector.broadcast %cst_97 : f32 to vector<128x32xf32>
    %168 = arith.select %32, %167, %166 : vector<128x32xi1>, vector<128x32xf32>
    %169 = vector.extract_strided_slice %161 {offsets = [1, 0], sizes = [127, 32], strides = [1, 1]} : vector<128x32xf32> to vector<127x32xf32>
    %170 = vector.extract_strided_slice %161 {offsets = [0, 0], sizes = [1, 32], strides = [1, 1]} : vector<128x32xf32> to vector<1x32xf32>
    %171 = tpu.concatenate %169, %170 in 0 : vector<127x32xf32>, vector<1x32xf32> -> vector<128x32xf32>
    %cst_98 = arith.constant 0.000000e+00 : f32
    %172 = vector.broadcast %cst_98 : f32 to vector<128x32xf32>
    %173 = arith.select %34, %172, %171 : vector<128x32xi1>, vector<128x32xf32>
    %174 = tpu.concatenate %168, %161, %173 in 1 : vector<128x32xf32>, vector<128x32xf32>, vector<128x32xf32> -> vector<128x96xf32>
    %175 = arith.truncf %174 : vector<128x96xf32> to vector<128x96xbf16>
    %cst_99 = arith.constant dense<0.000000e+00> : vector<128x32xf32>
    %176 = tpu.matmul %175, %163, %cst_99 {dimension_numbers = #tpu.dot_dimension_numbers<[1], [0], [0], [1], [0, 0, 1, 1], [], []>} : vector<128x96xbf16>, vector<96x32xbf16>, vector<128x32xf32> -> vector<128x32xf32>
    %c2_100 = arith.constant 2 : index
    %c1_101 = arith.constant 1 : index
    %c0_102 = arith.constant 0 : index
    %c0_103 = arith.constant 0 : index
    %177 = vector.load %arg7[%c2_100, %c1_101, %c0_102, %c0_103] : memref<6x2x1x32xf32, #tpu.memory_space<vmem>>, vector<1x1x1x32xf32>
    %178 = vector.shape_cast %177 : vector<1x1x1x32xf32> to vector<1x32xf32>
    %179 = vector.broadcast %178 : vector<1x32xf32> to vector<128x32xf32>
    %180 = arith.mulf %176, %179 : vector<128x32xf32>
    %c2_104 = arith.constant 2 : index
    %c1_105 = arith.constant 1 : index
    %c0_106 = arith.constant 0 : index
    %c0_107 = arith.constant 0 : index
    %181 = vector.load %arg8[%c2_104, %c1_105, %c0_106, %c0_107] : memref<6x2x1x32xf32, #tpu.memory_space<vmem>>, vector<1x1x1x32xf32>
    %182 = vector.shape_cast %181 : vector<1x1x1x32xf32> to vector<1x32xf32>
    %183 = vector.broadcast %182 : vector<1x32xf32> to vector<128x32xf32>
    %184 = arith.addf %180, %183 : vector<128x32xf32>
    %185 = arith.addf %184, %136 : vector<128x32xf32>
    %cst_108 = arith.constant 0.000000e+00 : f32
    %186 = vector.broadcast %cst_108 : f32 to vector<128x32xf32>
    %187 = arith.maximumf %185, %186 : vector<128x32xf32>
    %c3 = arith.constant 3 : index
    %c0_109 = arith.constant 0 : index
    %c0_110 = arith.constant 0 : index
    %c0_111 = arith.constant 0 : index
    %188 = vector.load %arg6[%c3, %c0_109, %c0_110, %c0_111] : memref<6x2x96x32xbf16, #tpu.memory_space<vmem>>, vector<1x1x96x32xbf16>
    %189 = vector.shape_cast %188 : vector<1x1x96x32xbf16> to vector<96x32xbf16>
    %190 = vector.extract_strided_slice %187 {offsets = [127, 0], sizes = [1, 32], strides = [1, 1]} : vector<128x32xf32> to vector<1x32xf32>
    %191 = vector.extract_strided_slice %187 {offsets = [0, 0], sizes = [127, 32], strides = [1, 1]} : vector<128x32xf32> to vector<127x32xf32>
    %192 = tpu.concatenate %190, %191 in 0 : vector<1x32xf32>, vector<127x32xf32> -> vector<128x32xf32>
    %cst_112 = arith.constant 0.000000e+00 : f32
    %193 = vector.broadcast %cst_112 : f32 to vector<128x32xf32>
    %194 = arith.select %32, %193, %192 : vector<128x32xi1>, vector<128x32xf32>
    %195 = vector.extract_strided_slice %187 {offsets = [1, 0], sizes = [127, 32], strides = [1, 1]} : vector<128x32xf32> to vector<127x32xf32>
    %196 = vector.extract_strided_slice %187 {offsets = [0, 0], sizes = [1, 32], strides = [1, 1]} : vector<128x32xf32> to vector<1x32xf32>
    %197 = tpu.concatenate %195, %196 in 0 : vector<127x32xf32>, vector<1x32xf32> -> vector<128x32xf32>
    %cst_113 = arith.constant 0.000000e+00 : f32
    %198 = vector.broadcast %cst_113 : f32 to vector<128x32xf32>
    %199 = arith.select %34, %198, %197 : vector<128x32xi1>, vector<128x32xf32>
    %200 = tpu.concatenate %194, %187, %199 in 1 : vector<128x32xf32>, vector<128x32xf32>, vector<128x32xf32> -> vector<128x96xf32>
    %201 = arith.truncf %200 : vector<128x96xf32> to vector<128x96xbf16>
    %cst_114 = arith.constant dense<0.000000e+00> : vector<128x32xf32>
    %202 = tpu.matmul %201, %189, %cst_114 {dimension_numbers = #tpu.dot_dimension_numbers<[1], [0], [0], [1], [0, 0, 1, 1], [], []>} : vector<128x96xbf16>, vector<96x32xbf16>, vector<128x32xf32> -> vector<128x32xf32>
    %c3_115 = arith.constant 3 : index
    %c0_116 = arith.constant 0 : index
    %c0_117 = arith.constant 0 : index
    %c0_118 = arith.constant 0 : index
    %203 = vector.load %arg7[%c3_115, %c0_116, %c0_117, %c0_118] : memref<6x2x1x32xf32, #tpu.memory_space<vmem>>, vector<1x1x1x32xf32>
    %204 = vector.shape_cast %203 : vector<1x1x1x32xf32> to vector<1x32xf32>
    %205 = vector.broadcast %204 : vector<1x32xf32> to vector<128x32xf32>
    %206 = arith.mulf %202, %205 : vector<128x32xf32>
    %c3_119 = arith.constant 3 : index
    %c0_120 = arith.constant 0 : index
    %c0_121 = arith.constant 0 : index
    %c0_122 = arith.constant 0 : index
    %207 = vector.load %arg8[%c3_119, %c0_120, %c0_121, %c0_122] : memref<6x2x1x32xf32, #tpu.memory_space<vmem>>, vector<1x1x1x32xf32>
    %208 = vector.shape_cast %207 : vector<1x1x1x32xf32> to vector<1x32xf32>
    %209 = vector.broadcast %208 : vector<1x32xf32> to vector<128x32xf32>
    %210 = arith.addf %206, %209 : vector<128x32xf32>
    %cst_123 = arith.constant 0.000000e+00 : f32
    %211 = vector.broadcast %cst_123 : f32 to vector<128x32xf32>
    %212 = arith.maximumf %210, %211 : vector<128x32xf32>
    %c3_124 = arith.constant 3 : index
    %c1_125 = arith.constant 1 : index
    %c0_126 = arith.constant 0 : index
    %c0_127 = arith.constant 0 : index
    %213 = vector.load %arg6[%c3_124, %c1_125, %c0_126, %c0_127] : memref<6x2x96x32xbf16, #tpu.memory_space<vmem>>, vector<1x1x96x32xbf16>
    %214 = vector.shape_cast %213 : vector<1x1x96x32xbf16> to vector<96x32xbf16>
    %215 = vector.extract_strided_slice %212 {offsets = [127, 0], sizes = [1, 32], strides = [1, 1]} : vector<128x32xf32> to vector<1x32xf32>
    %216 = vector.extract_strided_slice %212 {offsets = [0, 0], sizes = [127, 32], strides = [1, 1]} : vector<128x32xf32> to vector<127x32xf32>
    %217 = tpu.concatenate %215, %216 in 0 : vector<1x32xf32>, vector<127x32xf32> -> vector<128x32xf32>
    %cst_128 = arith.constant 0.000000e+00 : f32
    %218 = vector.broadcast %cst_128 : f32 to vector<128x32xf32>
    %219 = arith.select %32, %218, %217 : vector<128x32xi1>, vector<128x32xf32>
    %220 = vector.extract_strided_slice %212 {offsets = [1, 0], sizes = [127, 32], strides = [1, 1]} : vector<128x32xf32> to vector<127x32xf32>
    %221 = vector.extract_strided_slice %212 {offsets = [0, 0], sizes = [1, 32], strides = [1, 1]} : vector<128x32xf32> to vector<1x32xf32>
    %222 = tpu.concatenate %220, %221 in 0 : vector<127x32xf32>, vector<1x32xf32> -> vector<128x32xf32>
    %cst_129 = arith.constant 0.000000e+00 : f32
    %223 = vector.broadcast %cst_129 : f32 to vector<128x32xf32>
    %224 = arith.select %34, %223, %222 : vector<128x32xi1>, vector<128x32xf32>
    %225 = tpu.concatenate %219, %212, %224 in 1 : vector<128x32xf32>, vector<128x32xf32>, vector<128x32xf32> -> vector<128x96xf32>
    %226 = arith.truncf %225 : vector<128x96xf32> to vector<128x96xbf16>
    %cst_130 = arith.constant dense<0.000000e+00> : vector<128x32xf32>
    %227 = tpu.matmul %226, %214, %cst_130 {dimension_numbers = #tpu.dot_dimension_numbers<[1], [0], [0], [1], [0, 0, 1, 1], [], []>} : vector<128x96xbf16>, vector<96x32xbf16>, vector<128x32xf32> -> vector<128x32xf32>
    %c3_131 = arith.constant 3 : index
    %c1_132 = arith.constant 1 : index
    %c0_133 = arith.constant 0 : index
    %c0_134 = arith.constant 0 : index
    %228 = vector.load %arg7[%c3_131, %c1_132, %c0_133, %c0_134] : memref<6x2x1x32xf32, #tpu.memory_space<vmem>>, vector<1x1x1x32xf32>
    %229 = vector.shape_cast %228 : vector<1x1x1x32xf32> to vector<1x32xf32>
    %230 = vector.broadcast %229 : vector<1x32xf32> to vector<128x32xf32>
    %231 = arith.mulf %227, %230 : vector<128x32xf32>
    %c3_135 = arith.constant 3 : index
    %c1_136 = arith.constant 1 : index
    %c0_137 = arith.constant 0 : index
    %c0_138 = arith.constant 0 : index
    %232 = vector.load %arg8[%c3_135, %c1_136, %c0_137, %c0_138] : memref<6x2x1x32xf32, #tpu.memory_space<vmem>>, vector<1x1x1x32xf32>
    %233 = vector.shape_cast %232 : vector<1x1x1x32xf32> to vector<1x32xf32>
    %234 = vector.broadcast %233 : vector<1x32xf32> to vector<128x32xf32>
    %235 = arith.addf %231, %234 : vector<128x32xf32>
    %236 = arith.addf %235, %187 : vector<128x32xf32>
    %cst_139 = arith.constant 0.000000e+00 : f32
    %237 = vector.broadcast %cst_139 : f32 to vector<128x32xf32>
    %238 = arith.maximumf %236, %237 : vector<128x32xf32>
    %c4 = arith.constant 4 : index
    %c0_140 = arith.constant 0 : index
    %c0_141 = arith.constant 0 : index
    %c0_142 = arith.constant 0 : index
    %239 = vector.load %arg6[%c4, %c0_140, %c0_141, %c0_142] : memref<6x2x96x32xbf16, #tpu.memory_space<vmem>>, vector<1x1x96x32xbf16>
    %240 = vector.shape_cast %239 : vector<1x1x96x32xbf16> to vector<96x32xbf16>
    %241 = vector.extract_strided_slice %238 {offsets = [127, 0], sizes = [1, 32], strides = [1, 1]} : vector<128x32xf32> to vector<1x32xf32>
    %242 = vector.extract_strided_slice %238 {offsets = [0, 0], sizes = [127, 32], strides = [1, 1]} : vector<128x32xf32> to vector<127x32xf32>
    %243 = tpu.concatenate %241, %242 in 0 : vector<1x32xf32>, vector<127x32xf32> -> vector<128x32xf32>
    %cst_143 = arith.constant 0.000000e+00 : f32
    %244 = vector.broadcast %cst_143 : f32 to vector<128x32xf32>
    %245 = arith.select %32, %244, %243 : vector<128x32xi1>, vector<128x32xf32>
    %246 = vector.extract_strided_slice %238 {offsets = [1, 0], sizes = [127, 32], strides = [1, 1]} : vector<128x32xf32> to vector<127x32xf32>
    %247 = vector.extract_strided_slice %238 {offsets = [0, 0], sizes = [1, 32], strides = [1, 1]} : vector<128x32xf32> to vector<1x32xf32>
    %248 = tpu.concatenate %246, %247 in 0 : vector<127x32xf32>, vector<1x32xf32> -> vector<128x32xf32>
    %cst_144 = arith.constant 0.000000e+00 : f32
    %249 = vector.broadcast %cst_144 : f32 to vector<128x32xf32>
    %250 = arith.select %34, %249, %248 : vector<128x32xi1>, vector<128x32xf32>
    %251 = tpu.concatenate %245, %238, %250 in 1 : vector<128x32xf32>, vector<128x32xf32>, vector<128x32xf32> -> vector<128x96xf32>
    %252 = arith.truncf %251 : vector<128x96xf32> to vector<128x96xbf16>
    %cst_145 = arith.constant dense<0.000000e+00> : vector<128x32xf32>
    %253 = tpu.matmul %252, %240, %cst_145 {dimension_numbers = #tpu.dot_dimension_numbers<[1], [0], [0], [1], [0, 0, 1, 1], [], []>} : vector<128x96xbf16>, vector<96x32xbf16>, vector<128x32xf32> -> vector<128x32xf32>
    %c4_146 = arith.constant 4 : index
    %c0_147 = arith.constant 0 : index
    %c0_148 = arith.constant 0 : index
    %c0_149 = arith.constant 0 : index
    %254 = vector.load %arg7[%c4_146, %c0_147, %c0_148, %c0_149] : memref<6x2x1x32xf32, #tpu.memory_space<vmem>>, vector<1x1x1x32xf32>
    %255 = vector.shape_cast %254 : vector<1x1x1x32xf32> to vector<1x32xf32>
    %256 = vector.broadcast %255 : vector<1x32xf32> to vector<128x32xf32>
    %257 = arith.mulf %253, %256 : vector<128x32xf32>
    %c4_150 = arith.constant 4 : index
    %c0_151 = arith.constant 0 : index
    %c0_152 = arith.constant 0 : index
    %c0_153 = arith.constant 0 : index
    %258 = vector.load %arg8[%c4_150, %c0_151, %c0_152, %c0_153] : memref<6x2x1x32xf32, #tpu.memory_space<vmem>>, vector<1x1x1x32xf32>
    %259 = vector.shape_cast %258 : vector<1x1x1x32xf32> to vector<1x32xf32>
    %260 = vector.broadcast %259 : vector<1x32xf32> to vector<128x32xf32>
    %261 = arith.addf %257, %260 : vector<128x32xf32>
    %cst_154 = arith.constant 0.000000e+00 : f32
    %262 = vector.broadcast %cst_154 : f32 to vector<128x32xf32>
    %263 = arith.maximumf %261, %262 : vector<128x32xf32>
    %c4_155 = arith.constant 4 : index
    %c1_156 = arith.constant 1 : index
    %c0_157 = arith.constant 0 : index
    %c0_158 = arith.constant 0 : index
    %264 = vector.load %arg6[%c4_155, %c1_156, %c0_157, %c0_158] : memref<6x2x96x32xbf16, #tpu.memory_space<vmem>>, vector<1x1x96x32xbf16>
    %265 = vector.shape_cast %264 : vector<1x1x96x32xbf16> to vector<96x32xbf16>
    %266 = vector.extract_strided_slice %263 {offsets = [127, 0], sizes = [1, 32], strides = [1, 1]} : vector<128x32xf32> to vector<1x32xf32>
    %267 = vector.extract_strided_slice %263 {offsets = [0, 0], sizes = [127, 32], strides = [1, 1]} : vector<128x32xf32> to vector<127x32xf32>
    %268 = tpu.concatenate %266, %267 in 0 : vector<1x32xf32>, vector<127x32xf32> -> vector<128x32xf32>
    %cst_159 = arith.constant 0.000000e+00 : f32
    %269 = vector.broadcast %cst_159 : f32 to vector<128x32xf32>
    %270 = arith.select %32, %269, %268 : vector<128x32xi1>, vector<128x32xf32>
    %271 = vector.extract_strided_slice %263 {offsets = [1, 0], sizes = [127, 32], strides = [1, 1]} : vector<128x32xf32> to vector<127x32xf32>
    %272 = vector.extract_strided_slice %263 {offsets = [0, 0], sizes = [1, 32], strides = [1, 1]} : vector<128x32xf32> to vector<1x32xf32>
    %273 = tpu.concatenate %271, %272 in 0 : vector<127x32xf32>, vector<1x32xf32> -> vector<128x32xf32>
    %cst_160 = arith.constant 0.000000e+00 : f32
    %274 = vector.broadcast %cst_160 : f32 to vector<128x32xf32>
    %275 = arith.select %34, %274, %273 : vector<128x32xi1>, vector<128x32xf32>
    %276 = tpu.concatenate %270, %263, %275 in 1 : vector<128x32xf32>, vector<128x32xf32>, vector<128x32xf32> -> vector<128x96xf32>
    %277 = arith.truncf %276 : vector<128x96xf32> to vector<128x96xbf16>
    %cst_161 = arith.constant dense<0.000000e+00> : vector<128x32xf32>
    %278 = tpu.matmul %277, %265, %cst_161 {dimension_numbers = #tpu.dot_dimension_numbers<[1], [0], [0], [1], [0, 0, 1, 1], [], []>} : vector<128x96xbf16>, vector<96x32xbf16>, vector<128x32xf32> -> vector<128x32xf32>
    %c4_162 = arith.constant 4 : index
    %c1_163 = arith.constant 1 : index
    %c0_164 = arith.constant 0 : index
    %c0_165 = arith.constant 0 : index
    %279 = vector.load %arg7[%c4_162, %c1_163, %c0_164, %c0_165] : memref<6x2x1x32xf32, #tpu.memory_space<vmem>>, vector<1x1x1x32xf32>
    %280 = vector.shape_cast %279 : vector<1x1x1x32xf32> to vector<1x32xf32>
    %281 = vector.broadcast %280 : vector<1x32xf32> to vector<128x32xf32>
    %282 = arith.mulf %278, %281 : vector<128x32xf32>
    %c4_166 = arith.constant 4 : index
    %c1_167 = arith.constant 1 : index
    %c0_168 = arith.constant 0 : index
    %c0_169 = arith.constant 0 : index
    %283 = vector.load %arg8[%c4_166, %c1_167, %c0_168, %c0_169] : memref<6x2x1x32xf32, #tpu.memory_space<vmem>>, vector<1x1x1x32xf32>
    %284 = vector.shape_cast %283 : vector<1x1x1x32xf32> to vector<1x32xf32>
    %285 = vector.broadcast %284 : vector<1x32xf32> to vector<128x32xf32>
    %286 = arith.addf %282, %285 : vector<128x32xf32>
    %287 = arith.addf %286, %238 : vector<128x32xf32>
    %cst_170 = arith.constant 0.000000e+00 : f32
    %288 = vector.broadcast %cst_170 : f32 to vector<128x32xf32>
    %289 = arith.maximumf %287, %288 : vector<128x32xf32>
    %c5 = arith.constant 5 : index
    %c0_171 = arith.constant 0 : index
    %c0_172 = arith.constant 0 : index
    %c0_173 = arith.constant 0 : index
    %290 = vector.load %arg6[%c5, %c0_171, %c0_172, %c0_173] : memref<6x2x96x32xbf16, #tpu.memory_space<vmem>>, vector<1x1x96x32xbf16>
    %291 = vector.shape_cast %290 : vector<1x1x96x32xbf16> to vector<96x32xbf16>
    %292 = vector.extract_strided_slice %289 {offsets = [127, 0], sizes = [1, 32], strides = [1, 1]} : vector<128x32xf32> to vector<1x32xf32>
    %293 = vector.extract_strided_slice %289 {offsets = [0, 0], sizes = [127, 32], strides = [1, 1]} : vector<128x32xf32> to vector<127x32xf32>
    %294 = tpu.concatenate %292, %293 in 0 : vector<1x32xf32>, vector<127x32xf32> -> vector<128x32xf32>
    %cst_174 = arith.constant 0.000000e+00 : f32
    %295 = vector.broadcast %cst_174 : f32 to vector<128x32xf32>
    %296 = arith.select %32, %295, %294 : vector<128x32xi1>, vector<128x32xf32>
    %297 = vector.extract_strided_slice %289 {offsets = [1, 0], sizes = [127, 32], strides = [1, 1]} : vector<128x32xf32> to vector<127x32xf32>
    %298 = vector.extract_strided_slice %289 {offsets = [0, 0], sizes = [1, 32], strides = [1, 1]} : vector<128x32xf32> to vector<1x32xf32>
    %299 = tpu.concatenate %297, %298 in 0 : vector<127x32xf32>, vector<1x32xf32> -> vector<128x32xf32>
    %cst_175 = arith.constant 0.000000e+00 : f32
    %300 = vector.broadcast %cst_175 : f32 to vector<128x32xf32>
    %301 = arith.select %34, %300, %299 : vector<128x32xi1>, vector<128x32xf32>
    %302 = tpu.concatenate %296, %289, %301 in 1 : vector<128x32xf32>, vector<128x32xf32>, vector<128x32xf32> -> vector<128x96xf32>
    %303 = arith.truncf %302 : vector<128x96xf32> to vector<128x96xbf16>
    %cst_176 = arith.constant dense<0.000000e+00> : vector<128x32xf32>
    %304 = tpu.matmul %303, %291, %cst_176 {dimension_numbers = #tpu.dot_dimension_numbers<[1], [0], [0], [1], [0, 0, 1, 1], [], []>} : vector<128x96xbf16>, vector<96x32xbf16>, vector<128x32xf32> -> vector<128x32xf32>
    %c5_177 = arith.constant 5 : index
    %c0_178 = arith.constant 0 : index
    %c0_179 = arith.constant 0 : index
    %c0_180 = arith.constant 0 : index
    %305 = vector.load %arg7[%c5_177, %c0_178, %c0_179, %c0_180] : memref<6x2x1x32xf32, #tpu.memory_space<vmem>>, vector<1x1x1x32xf32>
    %306 = vector.shape_cast %305 : vector<1x1x1x32xf32> to vector<1x32xf32>
    %307 = vector.broadcast %306 : vector<1x32xf32> to vector<128x32xf32>
    %308 = arith.mulf %304, %307 : vector<128x32xf32>
    %c5_181 = arith.constant 5 : index
    %c0_182 = arith.constant 0 : index
    %c0_183 = arith.constant 0 : index
    %c0_184 = arith.constant 0 : index
    %309 = vector.load %arg8[%c5_181, %c0_182, %c0_183, %c0_184] : memref<6x2x1x32xf32, #tpu.memory_space<vmem>>, vector<1x1x1x32xf32>
    %310 = vector.shape_cast %309 : vector<1x1x1x32xf32> to vector<1x32xf32>
    %311 = vector.broadcast %310 : vector<1x32xf32> to vector<128x32xf32>
    %312 = arith.addf %308, %311 : vector<128x32xf32>
    %cst_185 = arith.constant 0.000000e+00 : f32
    %313 = vector.broadcast %cst_185 : f32 to vector<128x32xf32>
    %314 = arith.maximumf %312, %313 : vector<128x32xf32>
    %c5_186 = arith.constant 5 : index
    %c1_187 = arith.constant 1 : index
    %c0_188 = arith.constant 0 : index
    %c0_189 = arith.constant 0 : index
    %315 = vector.load %arg6[%c5_186, %c1_187, %c0_188, %c0_189] : memref<6x2x96x32xbf16, #tpu.memory_space<vmem>>, vector<1x1x96x32xbf16>
    %316 = vector.shape_cast %315 : vector<1x1x96x32xbf16> to vector<96x32xbf16>
    %317 = vector.extract_strided_slice %314 {offsets = [127, 0], sizes = [1, 32], strides = [1, 1]} : vector<128x32xf32> to vector<1x32xf32>
    %318 = vector.extract_strided_slice %314 {offsets = [0, 0], sizes = [127, 32], strides = [1, 1]} : vector<128x32xf32> to vector<127x32xf32>
    %319 = tpu.concatenate %317, %318 in 0 : vector<1x32xf32>, vector<127x32xf32> -> vector<128x32xf32>
    %cst_190 = arith.constant 0.000000e+00 : f32
    %320 = vector.broadcast %cst_190 : f32 to vector<128x32xf32>
    %321 = arith.select %32, %320, %319 : vector<128x32xi1>, vector<128x32xf32>
    %322 = vector.extract_strided_slice %314 {offsets = [1, 0], sizes = [127, 32], strides = [1, 1]} : vector<128x32xf32> to vector<127x32xf32>
    %323 = vector.extract_strided_slice %314 {offsets = [0, 0], sizes = [1, 32], strides = [1, 1]} : vector<128x32xf32> to vector<1x32xf32>
    %324 = tpu.concatenate %322, %323 in 0 : vector<127x32xf32>, vector<1x32xf32> -> vector<128x32xf32>
    %cst_191 = arith.constant 0.000000e+00 : f32
    %325 = vector.broadcast %cst_191 : f32 to vector<128x32xf32>
    %326 = arith.select %34, %325, %324 : vector<128x32xi1>, vector<128x32xf32>
    %327 = tpu.concatenate %321, %314, %326 in 1 : vector<128x32xf32>, vector<128x32xf32>, vector<128x32xf32> -> vector<128x96xf32>
    %328 = arith.truncf %327 : vector<128x96xf32> to vector<128x96xbf16>
    %cst_192 = arith.constant dense<0.000000e+00> : vector<128x32xf32>
    %329 = tpu.matmul %328, %316, %cst_192 {dimension_numbers = #tpu.dot_dimension_numbers<[1], [0], [0], [1], [0, 0, 1, 1], [], []>} : vector<128x96xbf16>, vector<96x32xbf16>, vector<128x32xf32> -> vector<128x32xf32>
    %c5_193 = arith.constant 5 : index
    %c1_194 = arith.constant 1 : index
    %c0_195 = arith.constant 0 : index
    %c0_196 = arith.constant 0 : index
    %330 = vector.load %arg7[%c5_193, %c1_194, %c0_195, %c0_196] : memref<6x2x1x32xf32, #tpu.memory_space<vmem>>, vector<1x1x1x32xf32>
    %331 = vector.shape_cast %330 : vector<1x1x1x32xf32> to vector<1x32xf32>
    %332 = vector.broadcast %331 : vector<1x32xf32> to vector<128x32xf32>
    %333 = arith.mulf %329, %332 : vector<128x32xf32>
    %c5_197 = arith.constant 5 : index
    %c1_198 = arith.constant 1 : index
    %c0_199 = arith.constant 0 : index
    %c0_200 = arith.constant 0 : index
    %334 = vector.load %arg8[%c5_197, %c1_198, %c0_199, %c0_200] : memref<6x2x1x32xf32, #tpu.memory_space<vmem>>, vector<1x1x1x32xf32>
    %335 = vector.shape_cast %334 : vector<1x1x1x32xf32> to vector<1x32xf32>
    %336 = vector.broadcast %335 : vector<1x32xf32> to vector<128x32xf32>
    %337 = arith.addf %333, %336 : vector<128x32xf32>
    %338 = arith.addf %337, %289 : vector<128x32xf32>
    %cst_201 = arith.constant 0.000000e+00 : f32
    %339 = vector.broadcast %cst_201 : f32 to vector<128x32xf32>
    %340 = arith.maximumf %338, %339 : vector<128x32xf32>
    %341 = vector.extract_strided_slice %340 {offsets = [0, 0], sizes = [16, 32], strides = [1, 1]} : vector<128x32xf32> to vector<16x32xf32>
    %cst_202 = arith.constant dense<0xFF800000> : vector<32xf32>
    %342 = vector.multi_reduction <maximumf>, %341, %cst_202 [0] : vector<16x32xf32> to vector<32xf32>
    %343 = vector.shape_cast %342 : vector<32xf32> to vector<1x32xf32>
    %344 = vector.extract_strided_slice %340 {offsets = [16, 0], sizes = [16, 32], strides = [1, 1]} : vector<128x32xf32> to vector<16x32xf32>
    %cst_203 = arith.constant dense<0xFF800000> : vector<32xf32>
    %345 = vector.multi_reduction <maximumf>, %344, %cst_203 [0] : vector<16x32xf32> to vector<32xf32>
    %346 = vector.shape_cast %345 : vector<32xf32> to vector<1x32xf32>
    %347 = vector.extract_strided_slice %340 {offsets = [32, 0], sizes = [16, 32], strides = [1, 1]} : vector<128x32xf32> to vector<16x32xf32>
    %cst_204 = arith.constant dense<0xFF800000> : vector<32xf32>
    %348 = vector.multi_reduction <maximumf>, %347, %cst_204 [0] : vector<16x32xf32> to vector<32xf32>
    %349 = vector.shape_cast %348 : vector<32xf32> to vector<1x32xf32>
    %350 = vector.extract_strided_slice %340 {offsets = [48, 0], sizes = [16, 32], strides = [1, 1]} : vector<128x32xf32> to vector<16x32xf32>
    %cst_205 = arith.constant dense<0xFF800000> : vector<32xf32>
    %351 = vector.multi_reduction <maximumf>, %350, %cst_205 [0] : vector<16x32xf32> to vector<32xf32>
    %352 = vector.shape_cast %351 : vector<32xf32> to vector<1x32xf32>
    %353 = vector.extract_strided_slice %340 {offsets = [64, 0], sizes = [16, 32], strides = [1, 1]} : vector<128x32xf32> to vector<16x32xf32>
    %cst_206 = arith.constant dense<0xFF800000> : vector<32xf32>
    %354 = vector.multi_reduction <maximumf>, %353, %cst_206 [0] : vector<16x32xf32> to vector<32xf32>
    %355 = vector.shape_cast %354 : vector<32xf32> to vector<1x32xf32>
    %356 = vector.extract_strided_slice %340 {offsets = [80, 0], sizes = [16, 32], strides = [1, 1]} : vector<128x32xf32> to vector<16x32xf32>
    %cst_207 = arith.constant dense<0xFF800000> : vector<32xf32>
    %357 = vector.multi_reduction <maximumf>, %356, %cst_207 [0] : vector<16x32xf32> to vector<32xf32>
    %358 = vector.shape_cast %357 : vector<32xf32> to vector<1x32xf32>
    %359 = vector.extract_strided_slice %340 {offsets = [96, 0], sizes = [16, 32], strides = [1, 1]} : vector<128x32xf32> to vector<16x32xf32>
    %cst_208 = arith.constant dense<0xFF800000> : vector<32xf32>
    %360 = vector.multi_reduction <maximumf>, %359, %cst_208 [0] : vector<16x32xf32> to vector<32xf32>
    %361 = vector.shape_cast %360 : vector<32xf32> to vector<1x32xf32>
    %362 = vector.extract_strided_slice %340 {offsets = [112, 0], sizes = [16, 32], strides = [1, 1]} : vector<128x32xf32> to vector<16x32xf32>
    %cst_209 = arith.constant dense<0xFF800000> : vector<32xf32>
    %363 = vector.multi_reduction <maximumf>, %362, %cst_209 [0] : vector<16x32xf32> to vector<32xf32>
    %364 = vector.shape_cast %363 : vector<32xf32> to vector<1x32xf32>
    %365 = tpu.concatenate %343, %346, %349, %352, %355, %358, %361, %364 in 0 : vector<1x32xf32>, vector<1x32xf32>, vector<1x32xf32>, vector<1x32xf32>, vector<1x32xf32>, vector<1x32xf32>, vector<1x32xf32>, vector<1x32xf32> -> vector<8x32xf32>
    %c0_210 = arith.constant 0 : index
    %c0_211 = arith.constant 0 : index
    %366 = vector.load %arg9[%c0_210, %c0_211] : memref<8x32xf32, #tpu.memory_space<vmem>>, vector<8x32xf32>
    tpu.vector_store %arg9[%c0_210, %c0_211], %365 {strides = array<i32>} : memref<8x32xf32, #tpu.memory_space<vmem>>, vector<8x32xf32>,
    return
  }
  func.func @transform_0(%arg0: i32) -> (i32, i32) {
    %c0_i32 = arith.constant 0 : i32
    %c0_i32_0 = arith.constant 0 : i32
    return %arg0, %c0_i32 : i32, i32
  }
  func.func @transform_1(%arg0: i32) -> (i32, i32) {
    %c0_i32 = arith.constant 0 : i32
    %c0_i32_0 = arith.constant 0 : i32
    %c0_i32_1 = arith.constant 0 : i32
    return %c0_i32, %c0_i32_0 : i32, i32
  }
  func.func @transform_2(%arg0: i32) -> (i32, i32) {
    %c0_i32 = arith.constant 0 : i32
    %c0_i32_0 = arith.constant 0 : i32
    %c0_i32_1 = arith.constant 0 : i32
    return %c0_i32, %c0_i32_0 : i32, i32
  }
  func.func @transform_3(%arg0: i32) -> (i32, i32) {
    %c0_i32 = arith.constant 0 : i32
    %c0_i32_0 = arith.constant 0 : i32
    %c0_i32_1 = arith.constant 0 : i32
    return %c0_i32, %c0_i32_0 : i32, i32
  }
  func.func @transform_4(%arg0: i32) -> (i32, i32) {
    %c0_i32 = arith.constant 0 : i32
    %c0_i32_0 = arith.constant 0 : i32
    %c0_i32_1 = arith.constant 0 : i32
    return %c0_i32, %c0_i32_0 : i32, i32
  }
  func.func @transform_5(%arg0: i32) -> (i32, i32, i32, i32) {
    %c0_i32 = arith.constant 0 : i32
    %c0_i32_0 = arith.constant 0 : i32
    %c0_i32_1 = arith.constant 0 : i32
    %c0_i32_2 = arith.constant 0 : i32
    %c0_i32_3 = arith.constant 0 : i32
    return %c0_i32, %c0_i32_0, %c0_i32_1, %c0_i32_2 : i32, i32, i32, i32
  }
  func.func @transform_6(%arg0: i32) -> (i32, i32, i32, i32) {
    %c0_i32 = arith.constant 0 : i32
    %c0_i32_0 = arith.constant 0 : i32
    %c0_i32_1 = arith.constant 0 : i32
    %c0_i32_2 = arith.constant 0 : i32
    %c0_i32_3 = arith.constant 0 : i32
    return %c0_i32, %c0_i32_0, %c0_i32_1, %c0_i32_2 : i32, i32, i32, i32
  }
  func.func @transform_7(%arg0: i32) -> (i32, i32, i32, i32) {
    %c0_i32 = arith.constant 0 : i32
    %c0_i32_0 = arith.constant 0 : i32
    %c0_i32_1 = arith.constant 0 : i32
    %c0_i32_2 = arith.constant 0 : i32
    %c0_i32_3 = arith.constant 0 : i32
    return %c0_i32, %c0_i32_0, %c0_i32_1, %c0_i32_2 : i32, i32, i32, i32
  }
  func.func @transform_8(%arg0: i32) -> (i32, i32) {
    %c0_i32 = arith.constant 0 : i32
    %c0_i32_0 = arith.constant 0 : i32
    return %arg0, %c0_i32 : i32, i32
  }
}

</mosaic_0001>

<llo_original>
// kernel: mul.1
$region0: #{mul.1}
  #allocation4 [shape = 's32[1]{0}', space=sflag, size = 0x4, scoped, tag = 'scoped memory for mul.1']
  %s0 = inlined_call_operand.hbm [shape: f32[16,16,8], index: 0, kind: input, shape index: {}, may-alias: {0,1}]
  %s1 = inlined_call_operand.hbm [shape: f32[16,16,8], index: 1, kind: input, shape index: {}, may-alias: {0,1}]
  %s2 = inlined_call_operand.vmem [shape: f32[16,16,8], index: 2, kind: output, shape index: {}]
  $region1: #{mul.1} parent=0
    #allocation0 [shape = 'u8[65536]{0}', space=vmem, size = 0x10000, scoped, tag = 'operand span for operand 0, may alias with: [0, 1]']
    #allocation1 [shape = 's32[1]{0}', space=sflag, size = 0x4, scoped, tag = 'scoped memory for mul.1']
    #allocation2 [shape = 'u8[65536]{0}', space=vmem, size = 0x10000, scoped, tag = 'operand span for operand 1, may alias with: [0, 1]']
    #allocation3 [shape = 's32[1]{0}', space=sflag, size = 0x4, scoped, tag = 'scoped memory for mul.1']
    %3 = vsyncpa [#allocation1], 0
    %4 = vsyncpa [#allocation3], 0
    %s6 = ssub.s32 2048, 2048
    %7 = vsyncadd [#allocation1], %s6
    %s8 = sshll.u32 [#allocation0], 4
    %s9 = int_to_ptr.vmem [resolvable:$true] %s8
    %14 = dma.hbm_to_vmem [thread:$0]  %s0, 2048, %s9, [#allocation1], 128, 128, 8
    %s16 = ssub.s32 2048, 2048
    %17 = vsyncadd [#allocation3], %s16
    %s18 = sshll.u32 [#allocation2], 4
    %s19 = int_to_ptr.vmem [resolvable:$true] %s18
    %24 = dma.hbm_to_vmem [thread:$0]  %s1, 2048, %s19, [#allocation3], 128, 128, 8
    %25 = dma.done [#allocation1], 2048
    %26 = dma.done [#allocation3], 2048
    %v27 = vld [vmem:[#allocation0] sm:$0xff]
    %v28 = vld [vmem:[#allocation2] sm:$0xff]
    %29 = xla_tuple %v27, %v28
    %30 = xla_tuple %29
    %v31 = vmul.f32 %v27, %v28
    %32 = xla_tuple %v31
    %33 = vst [vmem:[%s2] sm:$0xff] %v31
    %s34 = scalar_lea.vmem [#allocation0], 8
    %v35 = vld [vmem:[%s34] sm:$0xff]
    %s36 = scalar_lea.vmem [#allocation2], 8
    %v37 = vld [vmem:[%s36] sm:$0xff]
    %38 = xla_tuple %v35, %v37
    %39 = xla_tuple %38
    %v40 = vmul.f32 %v35, %v37
    %41 = xla_tuple %v40
    %s42 = scalar_lea.vmem %s2, 8
    %43 = vst [vmem:[%s42] sm:$0xff] %v40
    %s44 = scalar_lea.vmem [#allocation0], 16
    %v45 = vld [vmem:[%s44] sm:$0xff]
    %s46 = scalar_lea.vmem [#allocation2], 16
    %v47 = vld [vmem:[%s46] sm:$0xff]
    %48 = xla_tuple %v45, %v47
    %49 = xla_tuple %48
    %v50 = vmul.f32 %v45, %v47
    %51 = xla_tuple %v50
    %s52 = scalar_lea.vmem %s2, 16
    %53 = vst [vmem:[%s52] sm:$0xff] %v50
    %s54 = scalar_lea.vmem [#allocation0], 24
    %v55 = vld [vmem:[%s54] sm:$0xff]
    %s56 = scalar_lea.vmem [#allocation2], 24
    %v57 = vld [vmem:[%s56] sm:$0xff]
    %58 = xla_tuple %v55, %v57
    %59 = xla_tuple %58
    %v60 = vmul.f32 %v55, %v57
    %61 = xla_tuple %v60
    %s62 = scalar_lea.vmem %s2, 24
    %63 = vst [vmem:[%s62] sm:$0xff] %v60
    %s64 = scalar_lea.vmem [#allocation0], 32
    %v65 = vld [vmem:[%s64] sm:$0xff]
    %s66 = scalar_lea.vmem [#allocation2], 32
    %v67 = vld [vmem:[%s66] sm:$0xff]
    %68 = xla_tuple %v65, %v67
    %69 = xla_tuple %68
    %v70 = vmul.f32 %v65, %v67
    %71 = xla_tuple %v70
    %s72 = scalar_lea.vmem %s2, 32
    %73 = vst [vmem:[%s72] sm:$0xff] %v70
    %s74 = scalar_lea.vmem [#allocation0], 40
    %v75 = vld [vmem:[%s74] sm:$0xff]
    %s76 = scalar_lea.vmem [#allocation2], 40
    %v77 = vld [vmem:[%s76] sm:$0xff]
    %78 = xla_tuple %v75, %v77
    %79 = xla_tuple %78
    %v80 = vmul.f32 %v75, %v77
    %81 = xla_tuple %v80
    %s82 = scalar_lea.vmem %s2, 40
    %83 = vst [vmem:[%s82] sm:$0xff] %v80
    %s84 = scalar_lea.vmem [#allocation0], 48
    %v85 = vld [vmem:[%s84] sm:$0xff]
    %s86 = scalar_lea.vmem [#allocation2], 48
    %v87 = vld [vmem:[%s86] sm:$0xff]
    %88 = xla_tuple %v85, %v87
    %89 = xla_tuple %88
    %v90 = vmul.f32 %v85, %v87
    %91 = xla_tuple %v90
    %s92 = scalar_lea.vmem %s2, 48
    %93 = vst [vmem:[%s92] sm:$0xff] %v90
    %s94 = scalar_lea.vmem [#allocation0], 56
    %v95 = vld [vmem:[%s94] sm:$0xff]
    %s96 = scalar_lea.vmem [#allocation2], 56
    %v97 = vld [vmem:[%s96] sm:$0xff]
    %98 = xla_tuple %v95, %v97
    %99 = xla_tuple %98
    %v100 = vmul.f32 %v95, %v97
    %101 = xla_tuple %v100
    %s102 = scalar_lea.vmem %s2, 56
    %103 = vst [vmem:[%s102] sm:$0xff] %v100
    %s104 = scalar_lea.vmem [#allocation0], 64
    %v105 = vld [vmem:[%s104] sm:$0xff]
    %s106 = scalar_lea.vmem [#allocation2], 64
    %v107 = vld [vmem:[%s106] sm:$0xff]
    %108 = xla_tuple %v105, %v107
    %109 = xla_tuple %108
    %v110 = vmul.f32 %v105, %v107
    %111 = xla_tuple %v110
    %s112 = scalar_lea.vmem %s2, 64
    %113 = vst [vmem:[%s112] sm:$0xff] %v110
    %s114 = scalar_lea.vmem [#allocation0], 72
    %v115 = vld [vmem:[%s114] sm:$0xff]
    %s116 = scalar_lea.vmem [#allocation2], 72
    %v117 = vld [vmem:[%s116] sm:$0xff]
    %118 = xla_tuple %v115, %v117
    %119 = xla_tuple %118
    %v120 = vmul.f32 %v115, %v117
    %121 = xla_tuple %v120
    %s122 = scalar_lea.vmem %s2, 72
    %123 = vst [vmem:[%s122] sm:$0xff] %v120
    %s124 = scalar_lea.vmem [#allocation0], 80
    %v125 = vld [vmem:[%s124] sm:$0xff]
    %s126 = scalar_lea.vmem [#allocation2], 80
    %v127 = vld [vmem:[%s126] sm:$0xff]
    %128 = xla_tuple %v125, %v127
    %129 = xla_tuple %128
    %v130 = vmul.f32 %v125, %v127
    %131 = xla_tuple %v130
    %s132 = scalar_lea.vmem %s2, 80
    %133 = vst [vmem:[%s132] sm:$0xff] %v130
    %s134 = scalar_lea.vmem [#allocation0], 88
    %v135 = vld [vmem:[%s134] sm:$0xff]
    %s136 = scalar_lea.vmem [#allocation2], 88
    %v137 = vld [vmem:[%s136] sm:$0xff]
    %138 = xla_tuple %v135, %v137
    %139 = xla_tuple %138
    %v140 = vmul.f32 %v135, %v137
    %141 = xla_tuple %v140
    %s142 = scalar_lea.vmem %s2, 88
    %143 = vst [vmem:[%s142] sm:$0xff] %v140
    %s144 = scalar_lea.vmem [#allocation0], 96
    %v145 = vld [vmem:[%s144] sm:$0xff]
    %s146 = scalar_lea.vmem [#allocation2], 96
    %v147 = vld [vmem:[%s146] sm:$0xff]
    %148 = xla_tuple %v145, %v147
    %149 = xla_tuple %148
    %v150 = vmul.f32 %v145, %v147
    %151 = xla_tuple %v150
    %s152 = scalar_lea.vmem %s2, 96
    %153 = vst [vmem:[%s152] sm:$0xff] %v150
    %s154 = scalar_lea.vmem [#allocation0], 104
    %v155 = vld [vmem:[%s154] sm:$0xff]
    %s156 = scalar_lea.vmem [#allocation2], 104
    %v157 = vld [vmem:[%s156] sm:$0xff]
    %158 = xla_tuple %v155, %v157
    %159 = xla_tuple %158
    %v160 = vmul.f32 %v155, %v157
    %161 = xla_tuple %v160
    %s162 = scalar_lea.vmem %s2, 104
    %163 = vst [vmem:[%s162] sm:$0xff] %v160
    %s164 = scalar_lea.vmem [#allocation0], 112
    %v165 = vld [vmem:[%s164] sm:$0xff]
    %s166 = scalar_lea.vmem [#allocation2], 112
    %v167 = vld [vmem:[%s166] sm:$0xff]
    %168 = xla_tuple %v165, %v167
    %169 = xla_tuple %168
    %v170 = vmul.f32 %v165, %v167
    %171 = xla_tuple %v170
    %s172 = scalar_lea.vmem %s2, 112
    %173 = vst [vmem:[%s172] sm:$0xff] %v170
    %s174 = scalar_lea.vmem [#allocation0], 120
    %v175 = vld [vmem:[%s174] sm:$0xff]
    %s176 = scalar_lea.vmem [#allocation2], 120
    %v177 = vld [vmem:[%s176] sm:$0xff]
    %178 = xla_tuple %v175, %v177
    %179 = xla_tuple %178
    %v180 = vmul.f32 %v175, %v177
    %181 = xla_tuple %v180
    %s182 = scalar_lea.vmem %s2, 120
    %183 = vst [vmem:[%s182] sm:$0xff] %v180
    %184 = vsyncpa [#allocation1], 1
    %185 = vsyncpa [#allocation3], 1

// kernel: gmm_resnet_path.1
$region0: #{gmm_resnet_path.1}
  #allocation0 [shape = 'u32[]', space=smem, size = 0x4, offset = 0x4, fixed_abs, tag = 'smem constant byte address 0x4 - core index']
  #allocation1 [shape = 'u32[144,128]{1,0:T(1,128)}', space=vmem, size = 0x12000, scoped, tag = 'internal scratch']
  %s0 = inlined_call_operand.vmem [shape: f32[256,17], index: 0, kind: input, shape index: {}]
  %s1 = inlined_call_operand.vmem [shape: f32[17,32], index: 1, kind: input, shape index: {}]
  %s2 = inlined_call_operand.vmem [shape: bf16[32,32], index: 2, kind: input, shape index: {}]
  %s3 = inlined_call_operand.vmem [shape: f32[1,32], index: 3, kind: input, shape index: {}]
  %s4 = inlined_call_operand.vmem [shape: f32[1,32], index: 4, kind: input, shape index: {}]
  %s5 = inlined_call_operand.vmem [shape: bf16[6,2,96,32], index: 5, kind: input, shape index: {}]
  %s6 = inlined_call_operand.vmem [shape: f32[6,2,1,32], index: 6, kind: input, shape index: {}]
  %s7 = inlined_call_operand.vmem [shape: f32[6,2,1,32], index: 7, kind: input, shape index: {}]
  %s8 = inlined_call_operand.hbm [shape: f32[16,32], index: 8, kind: output, shape index: {}]
  %s9 = sld [smem:[#allocation0]]
  $region65: #{gmm_resnet_path.1} parent=0
    _
  %s11 = ssub.s32 1, %s9
  %s12 = scalar_select 0, %s11, %s9
  $region1: #{gmm_resnet_path.1} parent=0
    #allocation2 [shape = 'u8[8192]{0}', space=vmem, size = 0x2000, scoped, tag = 'output window, operand 0']
    #allocation3 [shape = 's32[2]{0}', space=sflag, size = 0x8, scoped, tag = 'scoped memory for gmm_resnet_path.1']
    %13 = vsyncpa [#allocation3], 0
    %s14 = scalar_lea.sflag [#allocation3], 1
    %15 = vsyncpa %s14, 0
    loop: start=0, step=1, limit=4
    $region2: #{gmm_resnet_path.1} parent=1 // loop_pre_header
      _
    $region3: #{gmm_resnet_path.1} parent=1 // loop_header
      %s17 = sphi 0, %s21
      %p18 = scmp.ge.s32.totalorder %s17, 4
      %s27 = sphi 0, %s29
      %s30 = sphi 0, %s27
      %s31 = sphi 0, %s30
      %s47 = sphi 0, %s31
      %s51 = sphi 0, %s51
      %s53 = sphi 0, %s51
      %s54 = sphi 0, %s53
      %s68 = sphi 0, %s54
      %s72 = sphi 0, %s72
      %s74 = sphi 0, %s72
      %s75 = sphi 0, %s74
      %s89 = sphi 0, %s75
      %s93 = sphi 0, %s93
      %s95 = sphi 0, %s93
      %s96 = sphi 0, %s95
      %s110 = sphi 0, %s96
      %s114 = sphi 0, %s114
      %s116 = sphi 0, %s114
      %s117 = sphi 0, %s116
      %s131 = sphi 0, %s117
      %s135 = sphi 0, %s135
      %s137 = sphi 0, %s135
      %s138 = sphi 0, %s137
      %s152 = sphi 0, %s138
      %s156 = sphi 0, %s156
      %s158 = sphi 0, %s156
      %s159 = sphi 0, %s158
      %s173 = sphi 0, %s159
      %s177 = sphi 0, %s177
      %s179 = sphi 0, %s177
      %s180 = sphi 0, %s179
      %s194 = sphi 0, %s180
      %s200 = sphi 0, %s202
      %s203 = sphi 0, %s200
      %s204 = sphi 0, %s203
      %s220 = sphi 0, %s204
    $region4: #{gmm_resnet_path.1} parent=1 // loop_header_branch
      %20 = sbr.rel (%p18) target = $region8
    $region5: #{gmm_resnet_path.1} parent=1 // loop_body
      %s22 = ssub.s32 %s17, 1
      %s23 = ssub.s32 %s17, 2
      %s24 = sadd.s32 %s17, 1
      %s25 = ssub.s32 %s17, %s24
      %p26 = scmp.eq.s32.totalorder %s25, 0
      %s28 = sadd.s32 %s27, 1
      %s29 = scalar_select %p26, %s27, %s28
      %p32 = pneg %p26
      %p33 = scmp.eq.s32.totalorder %s17, 1
      %p34 = por %p32, %p33
      %p35 = scmp.ne.s32.totalorder %s27, %s30
      %p36 = scmp.eq.s32.totalorder %s17, 0
      %p37 = por %p35, %p36
      %p38 = scmp.ne.s32.totalorder %s27, %s30
      %p39 = scmp.eq.s32.totalorder %s22, 1
      %p40 = por %p38, %p39
      %p41 = scmp.ne.s32.totalorder %s30, %s31
      %p42 = scmp.eq.s32.totalorder %s22, 0
      %p43 = por %p41, %p42
      %p44 = scmp.ne.s32.totalorder %s30, %s31
      %p45 = scmp.eq.s32.totalorder %s23, 1
      %p46 = por %p44, %p45
      %p48 = scmp.ne.s32.totalorder %s31, %s47
      %p49 = scmp.eq.s32.totalorder %s23, 0
      %p50 = por %p48, %p49
      %s52 = sadd.s32 %s51, 1
      %p55 = scmp.eq.s32.totalorder %s17, 1
      %p56 = scmp.ne.s32.totalorder %s51, %s53
      %p57 = scmp.eq.s32.totalorder %s17, 0
      %p58 = por %p56, %p57
      %p59 = scmp.ne.s32.totalorder %s51, %s53
      %p60 = scmp.eq.s32.totalorder %s22, 1
      %p61 = por %p59, %p60
      %p62 = scmp.ne.s32.totalorder %s53, %s54
      %p63 = scmp.eq.s32.totalorder %s22, 0
      %p64 = por %p62, %p63
      %p65 = scmp.ne.s32.totalorder %s53, %s54
      %p66 = scmp.eq.s32.totalorder %s23, 1
      %p67 = por %p65, %p66
      %p69 = scmp.ne.s32.totalorder %s54, %s68
      %p70 = scmp.eq.s32.totalorder %s23, 0
      %p71 = por %p69, %p70
      %s73 = sadd.s32 %s72, 1
      %p76 = scmp.eq.s32.totalorder %s17, 1
      %p77 = scmp.ne.s32.totalorder %s72, %s74
      %p78 = scmp.eq.s32.totalorder %s17, 0
      %p79 = por %p77, %p78
      %p80 = scmp.ne.s32.totalorder %s72, %s74
      %p81 = scmp.eq.s32.totalorder %s22, 1
      %p82 = por %p80, %p81
      %p83 = scmp.ne.s32.totalorder %s74, %s75
      %p84 = scmp.eq.s32.totalorder %s22, 0
      %p85 = por %p83, %p84
      %p86 = scmp.ne.s32.totalorder %s74, %s75
      %p87 = scmp.eq.s32.totalorder %s23, 1
      %p88 = por %p86, %p87
      %p90 = scmp.ne.s32.totalorder %s75, %s89
      %p91 = scmp.eq.s32.totalorder %s23, 0
      %p92 = por %p90, %p91
      %s94 = sadd.s32 %s93, 1
      %p97 = scmp.eq.s32.totalorder %s17, 1
      %p98 = scmp.ne.s32.totalorder %s93, %s95
      %p99 = scmp.eq.s32.totalorder %s17, 0
      %p100 = por %p98, %p99
      %p101 = scmp.ne.s32.totalorder %s93, %s95
      %p102 = scmp.eq.s32.totalorder %s22, 1
      %p103 = por %p101, %p102
      %p104 = scmp.ne.s32.totalorder %s95, %s96
      %p105 = scmp.eq.s32.totalorder %s22, 0
      %p106 = por %p104, %p105
      %p107 = scmp.ne.s32.totalorder %s95, %s96
      %p108 = scmp.eq.s32.totalorder %s23, 1
      %p109 = por %p107, %p108
      %p111 = scmp.ne.s32.totalorder %s96, %s110
      %p112 = scmp.eq.s32.totalorder %s23, 0
      %p113 = por %p111, %p112
      %s115 = sadd.s32 %s114, 1
      %p118 = scmp.eq.s32.totalorder %s17, 1
      %p119 = scmp.ne.s32.totalorder %s114, %s116
      %p120 = scmp.eq.s32.totalorder %s17, 0
      %p121 = por %p119, %p120
      %p122 = scmp.ne.s32.totalorder %s114, %s116
      %p123 = scmp.eq.s32.totalorder %s22, 1
      %p124 = por %p122, %p123
      %p125 = scmp.ne.s32.totalorder %s116, %s117
      %p126 = scmp.eq.s32.totalorder %s22, 0
      %p127 = por %p125, %p126
      %p128 = scmp.ne.s32.totalorder %s116, %s117
      %p129 = scmp.eq.s32.totalorder %s23, 1
      %p130 = por %p128, %p129
      %p132 = scmp.ne.s32.totalorder %s117, %s131
      %p133 = scmp.eq.s32.totalorder %s23, 0
      %p134 = por %p132, %p133
      %s136 = sadd.s32 %s135, 1
      %p139 = scmp.eq.s32.totalorder %s17, 1
      %p140 = scmp.ne.s32.totalorder %s135, %s137
      %p141 = scmp.eq.s32.totalorder %s17, 0
      %p142 = por %p140, %p141
      %p143 = scmp.ne.s32.totalorder %s135, %s137
      %p144 = scmp.eq.s32.totalorder %s22, 1
      %p145 = por %p143, %p144
      %p146 = scmp.ne.s32.totalorder %s137, %s138
      %p147 = scmp.eq.s32.totalorder %s22, 0
      %p148 = por %p146, %p147
      %p149 = scmp.ne.s32.totalorder %s137, %s138
      %p150 = scmp.eq.s32.totalorder %s23, 1
      %p151 = por %p149, %p150
      %p153 = scmp.ne.s32.totalorder %s138, %s152
      %p154 = scmp.eq.s32.totalorder %s23, 0
      %p155 = por %p153, %p154
      %s157 = sadd.s32 %s156, 1
      %p160 = scmp.eq.s32.totalorder %s17, 1
      %p161 = scmp.ne.s32.totalorder %s156, %s158
      %p162 = scmp.eq.s32.totalorder %s17, 0
      %p163 = por %p161, %p162
      %p164 = scmp.ne.s32.totalorder %s156, %s158
      %p165 = scmp.eq.s32.totalorder %s22, 1
      %p166 = por %p164, %p165
      %p167 = scmp.ne.s32.totalorder %s158, %s159
      %p168 = scmp.eq.s32.totalorder %s22, 0
      %p169 = por %p167, %p168
      %p170 = scmp.ne.s32.totalorder %s158, %s159
      %p171 = scmp.eq.s32.totalorder %s23, 1
      %p172 = por %p170, %p171
      %p174 = scmp.ne.s32.totalorder %s159, %s173
      %p175 = scmp.eq.s32.totalorder %s23, 0
      %p176 = por %p174, %p175
      %s178 = sadd.s32 %s177, 1
      %p181 = scmp.eq.s32.totalorder %s17, 1
      %p182 = scmp.ne.s32.totalorder %s177, %s179
      %p183 = scmp.eq.s32.totalorder %s17, 0
      %p184 = por %p182, %p183
      %p185 = scmp.ne.s32.totalorder %s177, %s179
      %p186 = scmp.eq.s32.totalorder %s22, 1
      %p187 = por %p185, %p186
      %p188 = scmp.ne.s32.totalorder %s179, %s180
      %p189 = scmp.eq.s32.totalorder %s22, 0
      %p190 = por %p188, %p189
      %p191 = scmp.ne.s32.totalorder %s179, %s180
      %p192 = scmp.eq.s32.totalorder %s23, 1
      %p193 = por %p191, %p192
      %p195 = scmp.ne.s32.totalorder %s180, %s194
      %p196 = scmp.eq.s32.totalorder %s23, 0
      %p197 = por %p195, %p196
      %s198 = ssub.s32 %s17, %s24
      %p199 = scmp.eq.s32.totalorder %s198, 0
      %s201 = sadd.s32 %s200, 1
      %s202 = scalar_select %p199, %s200, %s201
      %p205 = pneg %p199
      %p206 = scmp.eq.s32.totalorder %s17, 1
      %p207 = por %p205, %p206
      %p208 = scmp.ne.s32.totalorder %s200, %s203
      %p209 = scmp.eq.s32.totalorder %s17, 0
      %p210 = por %p208, %p209
      %p211 = scmp.ne.s32.totalorder %s200, %s203
      %p212 = scmp.eq.s32.totalorder %s22, 1
      %p213 = por %p211, %p212
      %p214 = scmp.ne.s32.totalorder %s203, %s204
      %p215 = scmp.eq.s32.totalorder %s22, 0
      %p216 = por %p214, %p215
      %p217 = scmp.ne.s32.totalorder %s203, %s204
      %p218 = scmp.eq.s32.totalorder %s23, 1
      %p219 = por %p217, %p218
      %p221 = scmp.ne.s32.totalorder %s204, %s220
      %p222 = scmp.eq.s32.totalorder %s23, 0
      %p223 = por %p221, %p222
      %p224 = scmp.le.s32.totalorder 1, %s17
      %p225 = scmp.lt.s32.totalorder %s17, 3
      %p226 = pnand %p224, %p225
      %p227 = pneg %p226
      // Predicated region
      $region9: #{gmm_resnet_path.1} parent=5 // pred_check
        _
      $region10: #{gmm_resnet_path.1} parent=5 // pred_check_branch
        %229 = sbr.rel (%p226) target = $region12
      $region11: #{gmm_resnet_path.1} parent=5 // pred_region
        %s230 = ssub.s32 %s17, 1
        // Predicated region
        $region13: #{gmm_resnet_path.1} parent=11 // pred_check
          %p231 = pneg %p64
        $region14: #{gmm_resnet_path.1} parent=11 // pred_check_branch
          %233 = sbr.rel (%p231) target = $region16
        $region15: #{gmm_resnet_path.1} parent=11 // pred_region
          _
        $region16: #{gmm_resnet_path.1} parent=11 // pred_fallthru
          _
        // Predicated region
        $region17: #{gmm_resnet_path.1} parent=11 // pred_check
          %p234 = pneg %p85
        $region18: #{gmm_resnet_path.1} parent=11 // pred_check_branch
          %236 = sbr.rel (%p234) target = $region20
        $region19: #{gmm_resnet_path.1} parent=11 // pred_region
          _
        $region20: #{gmm_resnet_path.1} parent=11 // pred_fallthru
          _
        // Predicated region
        $region21: #{gmm_resnet_path.1} parent=11 // pred_check
          %p237 = pneg %p106
        $region22: #{gmm_resnet_path.1} parent=11 // pred_check_branch
          %239 = sbr.rel (%p237) target = $region24
        $region23: #{gmm_resnet_path.1} parent=11 // pred_region
          _
        $region24: #{gmm_resnet_path.1} parent=11 // pred_fallthru
          _
        // Predicated region
        $region25: #{gmm_resnet_path.1} parent=11 // pred_check
          %p240 = pneg %p127
        $region26: #{gmm_resnet_path.1} parent=11 // pred_check_branch
          %242 = sbr.rel (%p240) target = $region28
        $region27: #{gmm_resnet_path.1} parent=11 // pred_region
          _
        $region28: #{gmm_resnet_path.1} parent=11 // pred_fallthru
          _
        // Predicated region
        $region29: #{gmm_resnet_path.1} parent=11 // pred_check
          %p243 = pneg %p148
        $region30: #{gmm_resnet_path.1} parent=11 // pred_check_branch
          %245 = sbr.rel (%p243) target = $region32
        $region31: #{gmm_resnet_path.1} parent=11 // pred_region
          _
        $region32: #{gmm_resnet_path.1} parent=11 // pred_fallthru
          _
        // Predicated region
        $region33: #{gmm_resnet_path.1} parent=11 // pred_check
          %p246 = pneg %p169
        $region34: #{gmm_resnet_path.1} parent=11 // pred_check_branch
          %248 = sbr.rel (%p246) target = $region36
        $region35: #{gmm_resnet_path.1} parent=11 // pred_region
          _
        $region36: #{gmm_resnet_path.1} parent=11 // pred_fallthru
          _
        // Predicated region
        $region37: #{gmm_resnet_path.1} parent=11 // pred_check
          %p249 = pneg %p190
        $region38: #{gmm_resnet_path.1} parent=11 // pred_check_branch
          %251 = sbr.rel (%p249) target = $region40
        $region39: #{gmm_resnet_path.1} parent=11 // pred_region
          _
        $region40: #{gmm_resnet_path.1} parent=11 // pred_fallthru
          _
      $region12: #{gmm_resnet_path.1} parent=5 // pred_fallthru
        _
      %p252 = scmp.lt.s32.totalorder %s17, 2
      // Predicated region
      $region41: #{gmm_resnet_path.1} parent=5 // pred_check
        %p253 = pneg %p252
      $region42: #{gmm_resnet_path.1} parent=5 // pred_check_branch
        %255 = sbr.rel (%p253) target = $region44
      $region43: #{gmm_resnet_path.1} parent=5 // pred_region
        // Predicated region
        $region45: #{gmm_resnet_path.1} parent=43 // pred_check
          %p256 = pneg %p37
        $region46: #{gmm_resnet_path.1} parent=43 // pred_check_branch
          %258 = sbr.rel (%p256) target = $region48
        $region47: #{gmm_resnet_path.1} parent=43 // pred_region
          %s259 = smul.u32 16, %s17
          %p260 = scmp.lt.s32.totalorder %s259, 31
          %s261 = scalar_select %p260, %s259, 31
          %s262 = smul.addr %s261, 8
          %s263 = scalar_lea.vmem %s0, %s262
          %s264 = smul.u32 16, %s17
        $region48: #{gmm_resnet_path.1} parent=43 // pred_fallthru
          _
      $region44: #{gmm_resnet_path.1} parent=5 // pred_fallthru
        _
      %p265 = scmp.le.s32.totalorder 1, %s17
      %p266 = scmp.lt.s32.totalorder %s17, 3
      %p267 = pnand %p265, %p266
      %p268 = pneg %p267
      // Predicated region
      $region49: #{gmm_resnet_path.1} parent=5 // pred_check
        _
      $region50: #{gmm_resnet_path.1} parent=5 // pred_check_branch
        %270 = sbr.rel (%p267) target = $region52
      $region51: #{gmm_resnet_path.1} parent=5 // pred_region
        %s271 = ssub.s32 %s17, 1
        %s272 = smul.u32 16, %s22
        %p273 = scmp.lt.s32.totalorder %s272, 31
        %s274 = scalar_select %p273, %s272, 31
        %s275 = smul.addr %s274, 8
        %s276 = scalar_lea.vmem %s0, %s275
        %p277 = pneg %p43
        %p278 = pneg %p40
        %p279 = pneg %p64
        %p280 = pneg %p61
        %p281 = pneg %p85
        %p282 = pneg %p82
        %p283 = pneg %p106
        %p284 = pneg %p103
        %p285 = pneg %p127
        %p286 = pneg %p124
        %p287 = pneg %p148
        %p288 = pneg %p145
        %p289 = pneg %p169
        %p290 = pneg %p166
        %p291 = pneg %p190
        %p292 = pneg %p187
        %p293 = pneg %p216
        %p294 = pneg %p213
        %s295 = sand.u32 %s203, 1
        %s296 = scalar_lea.sflag [#allocation3], %s295
        %s297 = sand.u32 %s203, 1
        %s298 = smul.addr %s297, 8
        %s299 = scalar_lea.vmem [#allocation2], %s298
        %s300 = smul.u32 16, %s22
        %p301 = scmp.lt.s32.totalorder %s300, 31
        %s302 = scalar_select %p301, %s300, 31
        %s303 = smul.addr %s302, 8
        %s304 = scalar_lea.vmem %s0, %s303
        %s305 = smul.u32 16, %s22
        %v307 = vld [vmem:[%s304] sm:$0xff]
        %v308 = vld [vmem:[%s304 + $0x8] sm:$0xff]
        %v309 = vld [vmem:[%s304 + $0x10] sm:$0xff]
        %v310 = vld [vmem:[%s304 + $0x18] sm:$0xff]
        %v311 = vld [vmem:[%s304 + $0x20] sm:$0xff]
        %v312 = vld [vmem:[%s304 + $0x28] sm:$0xff]
        %v313 = vld [vmem:[%s304 + $0x30] sm:$0xff]
        %v314 = vld [vmem:[%s304 + $0x38] sm:$0xff]
        %v315 = vld [vmem:[%s304 + $0x40] sm:$0xff]
        %v316 = vld [vmem:[%s304 + $0x48] sm:$0xff]
        %v317 = vld [vmem:[%s304 + $0x50] sm:$0xff]
        %v318 = vld [vmem:[%s304 + $0x58] sm:$0xff]
        %v319 = vld [vmem:[%s304 + $0x60] sm:$0xff]
        %v320 = vld [vmem:[%s304 + $0x68] sm:$0xff]
        %v321 = vld [vmem:[%s304 + $0x70] sm:$0xff]
        %v322 = vld [vmem:[%s304 + $0x78] sm:$0xff]
        %v323 = vld [vmem:[%s1] sm:$0xff]
        %v324 = vld [vmem:[%s1 + $0x8] sm:$0xff]
        %v325 = vld [vmem:[%s1 + $0x10] sm:$0x1]
        %vm326 = vcmask 138240
        %v328 = vsel %vm326, %v307, 0
        %v331 = vsel %vm326, %v308, 0
        %v334 = vsel %vm326, %v309, 0
        %v337 = vsel %vm326, %v310, 0
        %v340 = vsel %vm326, %v311, 0
        %v343 = vsel %vm326, %v312, 0
        %v346 = vsel %vm326, %v313, 0
        %v349 = vsel %vm326, %v314, 0
        %v352 = vsel %vm326, %v315, 0
        %v355 = vsel %vm326, %v316, 0
        %v358 = vsel %vm326, %v317, 0
        %v361 = vsel %vm326, %v318, 0
        %v364 = vsel %vm326, %v319, 0
        %v367 = vsel %vm326, %v320, 0
        %v370 = vsel %vm326, %v321, 0
        %v373 = vsel %vm326, %v322, 0
        %vm375 = vcmask 1040384
        %v377 = vsel %vm375, %v325, 0
        %379 = vmatprep.subr.mxu0 0.0
        %380 = vmatpush1.msra.mxu0 %v323
        %381 = vmatprep.subr.mxu0 0.0
        %382 = vmatpush1.msra.mxu0 %v324
        %383 = vmatprep.subr.mxu0 0.0
        %384 = vmatpush1.msra.mxu0 %v377
        %385 = vmatprep.subr.mxu0 0.0
        %386 = vmatpush1.msra.mxu0 0.0
        %387 = vmatprep.subr.mxu0 0.0
        %388 = vmatpush1.msra.mxu0 0.0
        %389 = vmatprep.subr.mxu0 0.0
        %390 = vmatpush1.msra.mxu0 0.0
        %391 = vmatprep.subr.mxu0 0.0
        %392 = vmatpush1.msra.mxu0 0.0
        %393 = vmatprep.subr.mxu0 0.0
        %394 = vmatpush1.msra.mxu0 0.0
        %395 = vmatprep.subr.mxu0 0.0
        %396 = vmatpush1.msra.mxu0 0.0
        %397 = vmatprep.subr.mxu0 0.0
        %398 = vmatpush1.msra.mxu0 0.0
        %399 = vmatprep.subr.mxu0 0.0
        %400 = vmatpush1.msra.mxu0 0.0
        %401 = vmatprep.subr.mxu0 0.0
        %402 = vmatpush1.msra.mxu0 0.0
        %403 = vmatprep.subr.mxu0 0.0
        %404 = vmatpush1.msra.mxu0 0.0
        %405 = vmatprep.subr.mxu0 0.0
        %406 = vmatpush1.msra.mxu0 0.0
        %407 = vmatprep.subr.mxu0 0.0
        %408 = vmatpush1.msra.mxu0 0.0
        %409 = vmatprep.subr.mxu0 0.0
        %410 = vmatpush1.msra.mxu0 0.0
        %411 = vmatprep.subr.mxu0 0.0
        %412 = vmatpush1.msra.mxu0 0.0
        %413 = vmatprep.subr.mxu0 0.0
        %414 = vmatpush1.msra.mxu0 0.0
        %415 = vmatprep.subr.mxu0 0.0
        %416 = vmatpush1.msra.mxu0 0.0
        %417 = vmatprep.subr.mxu0 0.0
        %418 = vmatpush1.msra.mxu0 0.0
        %419 = vmatprep.subr.mxu0 0.0
        %420 = vmatpush1.msra.mxu0 0.0
        %421 = vmatprep.subr.mxu0 0.0
        %422 = vmatpush1.msra.mxu0 0.0
        %423 = vmatprep.subr.mxu0 0.0
        %424 = vmatpush1.msra.mxu0 0.0
        %425 = vmatprep.subr.mxu0 0.0
        %426 = vmatpush1.msra.mxu0 0.0
        %427 = vmatprep.subr.mxu0 0.0
        %428 = vmatpush1.msra.mxu0 0.0
        %429 = vmatprep.subr.mxu0 0.0
        %430 = vmatpush1.msra.mxu0 0.0
        %431 = vmatprep.subr.mxu0 0.0
        %432 = vmatpush1.msra.mxu0 0.0
        %433 = vmatprep.subr.mxu0 0.0
        %434 = vmatpush1.msra.mxu0 0.0
        %435 = vmatprep.subr.mxu0 0.0
        %436 = vmatpush1.msra.mxu0 0.0
        %437 = vmatprep.subr.mxu0 0.0
        %438 = vmatpush1.msra.mxu0 0.0
        %439 = vmatprep.subr.mxu0 0.0
        %440 = vmatpush1.msra.mxu0 0.0
        %441 = vmatprep.subr.mxu0 0.0
        %442 = vmatpush1.msra.mxu0 0.0
        %443 = vmatprep.mubr.f32.mxu0 0.0
        %444 = vmatmul.mubr.f32.gmra.mrb[0].mxu0 %v328
        %v445 = vpop.f32.mrb[0].mxu0
        %v446 = vadd.f32 0.0, %v445
        %v447 = vpop.f32.mrb[0].mxu0
        %448 = vmatprep.mubr.f32.mxu0 0.0
        %449 = vmatmul.mubr.f32.gmra.mrb[0].mxu0 %v331
        %v450 = vpop.f32.mrb[0].mxu0
        %v451 = vadd.f32 0.0, %v450
        %v452 = vpop.f32.mrb[0].mxu0
        %453 = vmatprep.mubr.f32.mxu0 0.0
        %454 = vmatmul.mubr.f32.gmra.mrb[0].mxu0 %v334
        %v455 = vpop.f32.mrb[0].mxu0
        %v456 = vadd.f32 0.0, %v455
        %v457 = vpop.f32.mrb[0].mxu0
        %458 = vmatprep.mubr.f32.mxu0 0.0
        %459 = vmatmul.mubr.f32.gmra.mrb[0].mxu0 %v337
        %v460 = vpop.f32.mrb[0].mxu0
        %v461 = vadd.f32 0.0, %v460
        %v462 = vpop.f32.mrb[0].mxu0
        %463 = vmatprep.mubr.f32.mxu0 0.0
        %464 = vmatmul.mubr.f32.gmra.mrb[0].mxu0 %v340
        %v465 = vpop.f32.mrb[0].mxu0
        %v466 = vadd.f32 0.0, %v465
        %v467 = vpop.f32.mrb[0].mxu0
        %468 = vmatprep.mubr.f32.mxu0 0.0
        %469 = vmatmul.mubr.f32.gmra.mrb[0].mxu0 %v343
        %v470 = vpop.f32.mrb[0].mxu0
        %v471 = vadd.f32 0.0, %v470
        %v472 = vpop.f32.mrb[0].mxu0
        %473 = vmatprep.mubr.f32.mxu0 0.0
        %474 = vmatmul.mubr.f32.gmra.mrb[0].mxu0 %v346
        %v475 = vpop.f32.mrb[0].mxu0
        %v476 = vadd.f32 0.0, %v475
        %v477 = vpop.f32.mrb[0].mxu0
        %478 = vmatprep.mubr.f32.mxu0 0.0
        %479 = vmatmul.mubr.f32.gmra.mrb[0].mxu0 %v349
        %v480 = vpop.f32.mrb[0].mxu0
        %v481 = vadd.f32 0.0, %v480
        %v482 = vpop.f32.mrb[0].mxu0
        %483 = vmatprep.mubr.f32.mxu0 0.0
        %484 = vmatmul.mubr.f32.gmra.mrb[0].mxu0 %v352
        %v485 = vpop.f32.mrb[0].mxu0
        %v486 = vadd.f32 0.0, %v485
        %v487 = vpop.f32.mrb[0].mxu0
        %488 = vmatprep.mubr.f32.mxu0 0.0
        %489 = vmatmul.mubr.f32.gmra.mrb[0].mxu0 %v355
        %v490 = vpop.f32.mrb[0].mxu0
        %v491 = vadd.f32 0.0, %v490
        %v492 = vpop.f32.mrb[0].mxu0
        %493 = vmatprep.mubr.f32.mxu0 0.0
        %494 = vmatmul.mubr.f32.gmra.mrb[0].mxu0 %v358
        %v495 = vpop.f32.mrb[0].mxu0
        %v496 = vadd.f32 0.0, %v495
        %v497 = vpop.f32.mrb[0].mxu0
        %498 = vmatprep.mubr.f32.mxu0 0.0
        %499 = vmatmul.mubr.f32.gmra.mrb[0].mxu0 %v361
        %v500 = vpop.f32.mrb[0].mxu0
        %v501 = vadd.f32 0.0, %v500
        %v502 = vpop.f32.mrb[0].mxu0
        %503 = vmatprep.mubr.f32.mxu0 0.0
        %504 = vmatmul.mubr.f32.gmra.mrb[0].mxu0 %v364
        %v505 = vpop.f32.mrb[0].mxu0
        %v506 = vadd.f32 0.0, %v505
        %v507 = vpop.f32.mrb[0].mxu0
        %508 = vmatprep.mubr.f32.mxu0 0.0
        %509 = vmatmul.mubr.f32.gmra.mrb[0].mxu0 %v367
        %v510 = vpop.f32.mrb[0].mxu0
        %v511 = vadd.f32 0.0, %v510
        %v512 = vpop.f32.mrb[0].mxu0
        %513 = vmatprep.mubr.f32.mxu0 0.0
        %514 = vmatmul.mubr.f32.gmra.mrb[0].mxu0 %v370
        %v515 = vpop.f32.mrb[0].mxu0
        %v516 = vadd.f32 0.0, %v515
        %v517 = vpop.f32.mrb[0].mxu0
        %518 = vmatprep.mubr.f32.mxu0 0.0
        %519 = vmatmul.mubr.f32.gmra.mrb[0].mxu0 %v373
        %v520 = vpop.f32.mrb[0].mxu0
        %v521 = vadd.f32 0.0, %v520
        %v522 = vpop.f32.mrb[0].mxu0
        %523 = vdwg.mxu0
        %v524 = vpack.c.bf16 %v451, %v446
        %v525 = vpack.c.bf16 %v461, %v456
        %v526 = vpack.c.bf16 %v471, %v466
        %v527 = vpack.c.bf16 %v481, %v476
        %v528 = vpack.c.bf16 %v491, %v486
        %v529 = vpack.c.bf16 %v501, %v496
        %v530 = vpack.c.bf16 %v511, %v506
        %v531 = vpack.c.bf16 %v521, %v516
        %v532 = vld [vmem:[%s2] sm:$0xf]
        %v533 = vld [vmem:[%s2 + $0x4] sm:$0xf]
        %v534 = vld [vmem:[%s2 + $0x8] sm:$0xf]
        %v535 = vld [vmem:[%s2 + $0xc] sm:$0xf]
        %v540 = vunpack.c.l.b16 %v532
        %v541 = vunpack.c.l.b16 %v533
        %v542 = vunpack.c.l.b16 %v534
        %v543 = vunpack.c.l.b16 %v535
        %v544 = vpack.c.b16 %v541, %v540
        %v545 = vpack.c.b16 %v543, %v542
        %vm548 = vcmask 261120
        %v550 = vsel %vm548, %v524, 0
        %v553 = vsel %vm548, %v525, 0
        %v556 = vsel %vm548, %v526, 0
        %v559 = vsel %vm548, %v527, 0
        %v562 = vsel %vm548, %v528, 0
        %v565 = vsel %vm548, %v529, 0
        %v568 = vsel %vm548, %v530, 0
        %v571 = vsel %vm548, %v531, 0
        %573 = vmatprep.subr.bf16.mxu0 0
        %574 = vmatpush1.bf16.msra.mxu0 %v544
        %575 = vmatprep.subr.bf16.mxu0 0
        %576 = vmatpush1.bf16.msra.mxu0 %v545
        %577 = vmatprep.subr.bf16.mxu0 0
        %578 = vmatpush1.bf16.msra.mxu0 0
        %579 = vmatprep.subr.bf16.mxu0 0
        %580 = vmatpush1.bf16.msra.mxu0 0
        %581 = vmatprep.subr.bf16.mxu0 0
        %582 = vmatpush1.bf16.msra.mxu0 0
        %583 = vmatprep.subr.bf16.mxu0 0
        %584 = vmatpush1.bf16.msra.mxu0 0
        %585 = vmatprep.subr.bf16.mxu0 0
        %586 = vmatpush1.bf16.msra.mxu0 0
        %587 = vmatprep.subr.bf16.mxu0 0
        %588 = vmatpush1.bf16.msra.mxu0 0
        %589 = vmatprep.subr.bf16.mxu0 0
        %590 = vmatpush1.bf16.msra.mxu0 0
        %591 = vmatprep.subr.bf16.mxu0 0
        %592 = vmatpush1.bf16.msra.mxu0 0
        %593 = vmatprep.subr.bf16.mxu0 0
        %594 = vmatpush1.bf16.msra.mxu0 0
        %595 = vmatprep.subr.bf16.mxu0 0
        %596 = vmatpush1.bf16.msra.mxu0 0
        %597 = vmatprep.subr.bf16.mxu0 0
        %598 = vmatpush1.bf16.msra.mxu0 0
        %599 = vmatprep.subr.bf16.mxu0 0
        %600 = vmatpush1.bf16.msra.mxu0 0
        %601 = vmatprep.subr.bf16.mxu0 0
        %602 = vmatpush1.bf16.msra.mxu0 0
        %603 = vmatprep.subr.bf16.mxu0 0
        %604 = vmatpush1.bf16.msra.mxu0 0
        %605 = vmatprep.mubr.bf16.mxu0 0
        %606 = vmatmul.mubr.bf16.gmra.mrb[0].mxu0 %v550
        %v607 = vpop.f32.mrb[0].mxu0
        %v608 = vadd.f32 0.0, %v607
        %v609 = vpop.f32.mrb[0].mxu0
        %v610 = vpop.f32.mrb[0].mxu0
        %v611 = vadd.f32 0.0, %v610
        %v612 = vpop.f32.mrb[0].mxu0
        %613 = vmatprep.mubr.bf16.mxu0 0
        %614 = vmatmul.mubr.bf16.gmra.mrb[0].mxu0 %v553
        %v615 = vpop.f32.mrb[0].mxu0
        %v616 = vadd.f32 0.0, %v615
        %v617 = vpop.f32.mrb[0].mxu0
        %v618 = vpop.f32.mrb[0].mxu0
        %v619 = vadd.f32 0.0, %v618
        %v620 = vpop.f32.mrb[0].mxu0
        %621 = vmatprep.mubr.bf16.mxu0 0
        %622 = vmatmul.mubr.bf16.gmra.mrb[0].mxu0 %v556
        %v623 = vpop.f32.mrb[0].mxu0
        %v624 = vadd.f32 0.0, %v623
        %v625 = vpop.f32.mrb[0].mxu0
        %v626 = vpop.f32.mrb[0].mxu0
        %v627 = vadd.f32 0.0, %v626
        %v628 = vpop.f32.mrb[0].mxu0
        %629 = vmatprep.mubr.bf16.mxu0 0
        %630 = vmatmul.mubr.bf16.gmra.mrb[0].mxu0 %v559
        %v631 = vpop.f32.mrb[0].mxu0
        %v632 = vadd.f32 0.0, %v631
        %v633 = vpop.f32.mrb[0].mxu0
        %v634 = vpop.f32.mrb[0].mxu0
        %v635 = vadd.f32 0.0, %v634
        %v636 = vpop.f32.mrb[0].mxu0
        %637 = vmatprep.mubr.bf16.mxu0 0
        %638 = vmatmul.mubr.bf16.gmra.mrb[0].mxu0 %v562
        %v639 = vpop.f32.mrb[0].mxu0
        %v640 = vadd.f32 0.0, %v639
        %v641 = vpop.f32.mrb[0].mxu0
        %v642 = vpop.f32.mrb[0].mxu0
        %v643 = vadd.f32 0.0, %v642
        %v644 = vpop.f32.mrb[0].mxu0
        %645 = vmatprep.mubr.bf16.mxu0 0
        %646 = vmatmul.mubr.bf16.gmra.mrb[0].mxu0 %v565
        %v647 = vpop.f32.mrb[0].mxu0
        %v648 = vadd.f32 0.0, %v647
        %v649 = vpop.f32.mrb[0].mxu0
        %v650 = vpop.f32.mrb[0].mxu0
        %v651 = vadd.f32 0.0, %v650
        %v652 = vpop.f32.mrb[0].mxu0
        %653 = vmatprep.mubr.bf16.mxu0 0
        %654 = vmatmul.mubr.bf16.gmra.mrb[0].mxu0 %v568
        %v655 = vpop.f32.mrb[0].mxu0
        %v656 = vadd.f32 0.0, %v655
        %v657 = vpop.f32.mrb[0].mxu0
        %v658 = vpop.f32.mrb[0].mxu0
        %v659 = vadd.f32 0.0, %v658
        %v660 = vpop.f32.mrb[0].mxu0
        %661 = vmatprep.mubr.bf16.mxu0 0
        %662 = vmatmul.mubr.bf16.gmra.mrb[0].mxu0 %v571
        %v663 = vpop.f32.mrb[0].mxu0
        %v664 = vadd.f32 0.0, %v663
        %v665 = vpop.f32.mrb[0].mxu0
        %v666 = vpop.f32.mrb[0].mxu0
        %v667 = vadd.f32 0.0, %v666
        %v668 = vpop.f32.mrb[0].mxu0
        %669 = vdwg.mxu0
        %v670 = vld [vmem:[%s3] sm:$0x1]
        %v672 = vlaneseq
        %v673 = vshrl.u32 %v672, 7
        %v674 = vsub.s32 0, %v673
        %v675 = vrot.slane %v670, %v674
        %v677 = vmul.f32 %v608, %v675
        %v678 = vmul.f32 %v611, %v675
        %v679 = vmul.f32 %v616, %v675
        %v680 = vmul.f32 %v619, %v675
        %v681 = vmul.f32 %v624, %v675
        %v682 = vmul.f32 %v627, %v675
        %v683 = vmul.f32 %v632, %v675
        %v684 = vmul.f32 %v635, %v675
        %v685 = vmul.f32 %v640, %v675
        %v686 = vmul.f32 %v643, %v675
        %v687 = vmul.f32 %v648, %v675
        %v688 = vmul.f32 %v651, %v675
        %v689 = vmul.f32 %v656, %v675
        %v690 = vmul.f32 %v659, %v675
        %v691 = vmul.f32 %v664, %v675
        %v692 = vmul.f32 %v667, %v675
        %v693 = vld [vmem:[%s4] sm:$0x1]
        %v695 = vlaneseq
        %v696 = vshrl.u32 %v695, 7
        %v697 = vsub.s32 0, %v696
        %v698 = vrot.slane %v693, %v697
        %v700 = vadd.f32 %v677, %v698
        %v701 = vadd.f32 %v678, %v698
        %v702 = vadd.f32 %v679, %v698
        %v703 = vadd.f32 %v680, %v698
        %v704 = vadd.f32 %v681, %v698
        %v705 = vadd.f32 %v682, %v698
        %v706 = vadd.f32 %v683, %v698
        %v707 = vadd.f32 %v684, %v698
        %v708 = vadd.f32 %v685, %v698
        %v709 = vadd.f32 %v686, %v698
        %v710 = vadd.f32 %v687, %v698
        %v711 = vadd.f32 %v688, %v698
        %v712 = vadd.f32 %v689, %v698
        %v713 = vadd.f32 %v690, %v698
        %v714 = vadd.f32 %v691, %v698
        %v715 = vadd.f32 %v692, %v698
        %v716 = vmax.f32 %v700, 0.0
        %v717 = vmax.f32 %v701, 0.0
        %v718 = vmax.f32 %v702, 0.0
        %v719 = vmax.f32 %v703, 0.0
        %v720 = vmax.f32 %v704, 0.0
        %v721 = vmax.f32 %v705, 0.0
        %v722 = vmax.f32 %v706, 0.0
        %v723 = vmax.f32 %v707, 0.0
        %v724 = vmax.f32 %v708, 0.0
        %v725 = vmax.f32 %v709, 0.0
        %v726 = vmax.f32 %v710, 0.0
        %v727 = vmax.f32 %v711, 0.0
        %v728 = vmax.f32 %v712, 0.0
        %v729 = vmax.f32 %v713, 0.0
        %v730 = vmax.f32 %v714, 0.0
        %v731 = vmax.f32 %v715, 0.0
        %v732 = vlaneseq
        %v733 = vshrl.u32 %v732, 7
        %v734 = vadd.s32 %v733, 8
        %v735 = vadd.s32 %v733, 16
        %v736 = vadd.s32 %v733, 24
        %v737 = vadd.s32 %v733, 32
        %v738 = vadd.s32 %v733, 40
        %v739 = vadd.s32 %v733, 48
        %v740 = vadd.s32 %v733, 56
        %v741 = vadd.s32 %v733, 64
        %v742 = vadd.s32 %v733, 72
        %v743 = vadd.s32 %v733, 80
        %v744 = vadd.s32 %v733, 88
        %v745 = vadd.s32 %v733, 96
        %v746 = vadd.s32 %v733, 104
        %v747 = vadd.s32 %v733, 112
        %v748 = vadd.s32 %v733, 120
        %vm749 = vcmp.lt.s32.totalorder %v733, 0
        %v750 = vsub.s32 0, %v733
        %v751 = vsel %vm749, %v750, %v733
        %v752 = vshrl.u32 %v751, 4
        %v753 = vand.u32 %v751, 15
        %v754 = vsub.s32 0, %v753
        %v755 = vsel %vm749, %v754, %v753
        %vm756 = vcmp.lt.s32.totalorder %v734, 0
        %v757 = vsub.s32 0, %v734
        %v758 = vsel %vm756, %v757, %v734
        %v759 = vshrl.u32 %v758, 4
        %v760 = vand.u32 %v758, 15
        %v761 = vsub.s32 0, %v760
        %v762 = vsel %vm756, %v761, %v760
        %vm763 = vcmp.lt.s32.totalorder %v735, 0
        %v764 = vsub.s32 0, %v735
        %v765 = vsel %vm763, %v764, %v735
        %v766 = vshrl.u32 %v765, 4
        %v767 = vand.u32 %v765, 15
        %v768 = vsub.s32 0, %v767
        %v769 = vsel %vm763, %v768, %v767
        %vm770 = vcmp.lt.s32.totalorder %v736, 0
        %v771 = vsub.s32 0, %v736
        %v772 = vsel %vm770, %v771, %v736
        %v773 = vshrl.u32 %v772, 4
        %v774 = vand.u32 %v772, 15
        %v775 = vsub.s32 0, %v774
        %v776 = vsel %vm770, %v775, %v774
        %vm777 = vcmp.lt.s32.totalorder %v737, 0
        %v778 = vsub.s32 0, %v737
        %v779 = vsel %vm777, %v778, %v737
        %v780 = vshrl.u32 %v779, 4
        %v781 = vand.u32 %v779, 15
        %v782 = vsub.s32 0, %v781
        %v783 = vsel %vm777, %v782, %v781
        %vm784 = vcmp.lt.s32.totalorder %v738, 0
        %v785 = vsub.s32 0, %v738
        %v786 = vsel %vm784, %v785, %v738
        %v787 = vshrl.u32 %v786, 4
        %v788 = vand.u32 %v786, 15
        %v789 = vsub.s32 0, %v788
        %v790 = vsel %vm784, %v789, %v788
        %vm791 = vcmp.lt.s32.totalorder %v739, 0
        %v792 = vsub.s32 0, %v739
        %v793 = vsel %vm791, %v792, %v739
        %v794 = vshrl.u32 %v793, 4
        %v795 = vand.u32 %v793, 15
        %v796 = vsub.s32 0, %v795
        %v797 = vsel %vm791, %v796, %v795
        %vm798 = vcmp.lt.s32.totalorder %v740, 0
        %v799 = vsub.s32 0, %v740
        %v800 = vsel %vm798, %v799, %v740
        %v801 = vshrl.u32 %v800, 4
        %v802 = vand.u32 %v800, 15
        %v803 = vsub.s32 0, %v802
        %v804 = vsel %vm798, %v803, %v802
        %vm805 = vcmp.lt.s32.totalorder %v741, 0
        %v806 = vsub.s32 0, %v741
        %v807 = vsel %vm805, %v806, %v741
        %v808 = vshrl.u32 %v807, 4
        %v809 = vand.u32 %v807, 15
        %v810 = vsub.s32 0, %v809
        %v811 = vsel %vm805, %v810, %v809
        %vm812 = vcmp.lt.s32.totalorder %v742, 0
        %v813 = vsub.s32 0, %v742
        %v814 = vsel %vm812, %v813, %v742
        %v815 = vshrl.u32 %v814, 4
        %v816 = vand.u32 %v814, 15
        %v817 = vsub.s32 0, %v816
        %v818 = vsel %vm812, %v817, %v816
        %vm819 = vcmp.lt.s32.totalorder %v743, 0
        %v820 = vsub.s32 0, %v743
        %v821 = vsel %vm819, %v820, %v743
        %v822 = vshrl.u32 %v821, 4
        %v823 = vand.u32 %v821, 15
        %v824 = vsub.s32 0, %v823
        %v825 = vsel %vm819, %v824, %v823
        %vm826 = vcmp.lt.s32.totalorder %v744, 0
        %v827 = vsub.s32 0, %v744
        %v828 = vsel %vm826, %v827, %v744
        %v829 = vshrl.u32 %v828, 4
        %v830 = vand.u32 %v828, 15
        %v831 = vsub.s32 0, %v830
        %v832 = vsel %vm826, %v831, %v830
        %vm833 = vcmp.lt.s32.totalorder %v745, 0
        %v834 = vsub.s32 0, %v745
        %v835 = vsel %vm833, %v834, %v745
        %v836 = vshrl.u32 %v835, 4
        %v837 = vand.u32 %v835, 15
        %v838 = vsub.s32 0, %v837
        %v839 = vsel %vm833, %v838, %v837
        %vm840 = vcmp.lt.s32.totalorder %v746, 0
        %v841 = vsub.s32 0, %v746
        %v842 = vsel %vm840, %v841, %v746
        %v843 = vshrl.u32 %v842, 4
        %v844 = vand.u32 %v842, 15
        %v845 = vsub.s32 0, %v844
        %v846 = vsel %vm840, %v845, %v844
        %vm847 = vcmp.lt.s32.totalorder %v747, 0
        %v848 = vsub.s32 0, %v747
        %v849 = vsel %vm847, %v848, %v747
        %v850 = vshrl.u32 %v849, 4
        %v851 = vand.u32 %v849, 15
        %v852 = vsub.s32 0, %v851
        %v853 = vsel %vm847, %v852, %v851
        %vm854 = vcmp.lt.s32.totalorder %v748, 0
        %v855 = vsub.s32 0, %v748
        %v856 = vsel %vm854, %v855, %v748
        %v857 = vshrl.u32 %v856, 4
        %v858 = vand.u32 %v856, 15
        %v859 = vsub.s32 0, %v858
        %v860 = vsel %vm854, %v859, %v858
        %vm861 = vcmp.ne.s32.totalorder %v755, 0
        %vm862 = vcmp.ne.s32.totalorder %v762, 0
        %vm863 = vcmp.ne.s32.totalorder %v769, 0
        %vm864 = vcmp.ne.s32.totalorder %v776, 0
        %vm865 = vcmp.ne.s32.totalorder %v783, 0
        %vm866 = vcmp.ne.s32.totalorder %v790, 0
        %vm867 = vcmp.ne.s32.totalorder %v797, 0
        %vm868 = vcmp.ne.s32.totalorder %v804, 0
        %vm869 = vcmp.ne.s32.totalorder %v811, 0
        %vm870 = vcmp.ne.s32.totalorder %v818, 0
        %vm871 = vcmp.ne.s32.totalorder %v825, 0
        %vm872 = vcmp.ne.s32.totalorder %v832, 0
        %vm873 = vcmp.ne.s32.totalorder %v839, 0
        %vm874 = vcmp.ne.s32.totalorder %v846, 0
        %vm875 = vcmp.ne.s32.totalorder %v853, 0
        %vm876 = vcmp.ne.s32.totalorder %v860, 0
        %vm877 = vcmp.lt.s32.totalorder %v755, 0
        %vm878 = vcmp.lt.s32.totalorder %v762, 0
        %vm879 = vcmp.lt.s32.totalorder %v769, 0
        %vm880 = vcmp.lt.s32.totalorder %v776, 0
        %vm881 = vcmp.lt.s32.totalorder %v783, 0
        %vm882 = vcmp.lt.s32.totalorder %v790, 0
        %vm883 = vcmp.lt.s32.totalorder %v797, 0
        %vm884 = vcmp.lt.s32.totalorder %v804, 0
        %vm885 = vcmp.lt.s32.totalorder %v811, 0
        %vm886 = vcmp.lt.s32.totalorder %v818, 0
        %vm887 = vcmp.lt.s32.totalorder %v825, 0
        %vm888 = vcmp.lt.s32.totalorder %v832, 0
        %vm889 = vcmp.lt.s32.totalorder %v839, 0
        %vm890 = vcmp.lt.s32.totalorder %v846, 0
        %vm891 = vcmp.lt.s32.totalorder %v853, 0
        %vm892 = vcmp.lt.s32.totalorder %v860, 0
        %vm893 = vmand %vm877, %vm861
        %vm894 = vmand %vm878, %vm862
        %vm895 = vmand %vm879, %vm863
        %vm896 = vmand %vm880, %vm864
        %vm897 = vmand %vm881, %vm865
        %vm898 = vmand %vm882, %vm866
        %vm899 = vmand %vm883, %vm867
        %vm900 = vmand %vm884, %vm868
        %vm901 = vmand %vm885, %vm869
        %vm902 = vmand %vm886, %vm870
        %vm903 = vmand %vm887, %vm871
        %vm904 = vmand %vm888, %vm872
        %vm905 = vmand %vm889, %vm873
        %vm906 = vmand %vm890, %vm874
        %vm907 = vmand %vm891, %vm875
        %vm908 = vmand %vm892, %vm876
        %v909 = vadd.s32 %v755, 16
        %v910 = vadd.s32 %v762, 16
        %v911 = vadd.s32 %v769, 16
        %v912 = vadd.s32 %v776, 16
        %v913 = vadd.s32 %v783, 16
        %v914 = vadd.s32 %v790, 16
        %v915 = vadd.s32 %v797, 16
        %v916 = vadd.s32 %v804, 16
        %v917 = vadd.s32 %v811, 16
        %v918 = vadd.s32 %v818, 16
        %v919 = vadd.s32 %v825, 16
        %v920 = vadd.s32 %v832, 16
        %v921 = vadd.s32 %v839, 16
        %v922 = vadd.s32 %v846, 16
        %v923 = vadd.s32 %v853, 16
        %v924 = vadd.s32 %v860, 16
        %v925 = vsel %vm893, %v909, %v755
        %v926 = vsel %vm894, %v910, %v762
        %v927 = vsel %vm895, %v911, %v769
        %v928 = vsel %vm896, %v912, %v776
        %v929 = vsel %vm897, %v913, %v783
        %v930 = vsel %vm898, %v914, %v790
        %v931 = vsel %vm899, %v915, %v797
        %v932 = vsel %vm900, %v916, %v804
        %v933 = vsel %vm901, %v917, %v811
        %v934 = vsel %vm902, %v918, %v818
        %v935 = vsel %vm903, %v919, %v825
        %v936 = vsel %vm904, %v920, %v832
        %v937 = vsel %vm905, %v921, %v839
        %v938 = vsel %vm906, %v922, %v846
        %v939 = vsel %vm907, %v923, %v853
        %v940 = vsel %vm908, %v924, %v860
        %vm941 = vcmp.eq.s32.totalorder %v925, 0
        %vm942 = vcmp.eq.s32.totalorder %v926, 0
        %vm943 = vcmp.eq.s32.totalorder %v927, 0
        %vm944 = vcmp.eq.s32.totalorder %v928, 0
        %vm945 = vcmp.eq.s32.totalorder %v929, 0
        %vm946 = vcmp.eq.s32.totalorder %v930, 0
        %vm947 = vcmp.eq.s32.totalorder %v931, 0
        %vm948 = vcmp.eq.s32.totalorder %v932, 0
        %vm949 = vcmp.eq.s32.totalorder %v933, 0
        %vm950 = vcmp.eq.s32.totalorder %v934, 0
        %vm951 = vcmp.eq.s32.totalorder %v935, 0
        %vm952 = vcmp.eq.s32.totalorder %v936, 0
        %vm953 = vcmp.eq.s32.totalorder %v937, 0
        %vm954 = vcmp.eq.s32.totalorder %v938, 0
        %vm955 = vcmp.eq.s32.totalorder %v939, 0
        %vm956 = vcmp.eq.s32.totalorder %v940, 0
        %vm957 = vcmp.eq.s32.totalorder %v925, 15
        %vm958 = vcmp.eq.s32.totalorder %v926, 15
        %vm959 = vcmp.eq.s32.totalorder %v927, 15
        %vm960 = vcmp.eq.s32.totalorder %v928, 15
        %vm961 = vcmp.eq.s32.totalorder %v929, 15
        %vm962 = vcmp.eq.s32.totalorder %v930, 15
        %vm963 = vcmp.eq.s32.totalorder %v931, 15
        %vm964 = vcmp.eq.s32.totalorder %v932, 15
        %vm965 = vcmp.eq.s32.totalorder %v933, 15
        %vm966 = vcmp.eq.s32.totalorder %v934, 15
        %vm967 = vcmp.eq.s32.totalorder %v935, 15
        %vm968 = vcmp.eq.s32.totalorder %v936, 15
        %vm969 = vcmp.eq.s32.totalorder %v937, 15
        %vm970 = vcmp.eq.s32.totalorder %v938, 15
        %vm971 = vcmp.eq.s32.totalorder %v939, 15
        %vm972 = vcmp.eq.s32.totalorder %v940, 15
        %v973 = vld [vmem:[%s5] sm:$0xf]
        %v974 = vld [vmem:[%s5 + $0x4] sm:$0xf]
        %v975 = vld [vmem:[%s5 + $0x8] sm:$0xf]
        %v976 = vld [vmem:[%s5 + $0xc] sm:$0xf]
        %v977 = vld [vmem:[%s5 + $0x10] sm:$0xf]
        %v978 = vld [vmem:[%s5 + $0x14] sm:$0xf]
        %v979 = vld [vmem:[%s5 + $0x18] sm:$0xf]
        %v980 = vld [vmem:[%s5 + $0x1c] sm:$0xf]
        %v981 = vld [vmem:[%s5 + $0x20] sm:$0xf]
        %v982 = vld [vmem:[%s5 + $0x24] sm:$0xf]
        %v983 = vld [vmem:[%s5 + $0x28] sm:$0xf]
        %v984 = vld [vmem:[%s5 + $0x2c] sm:$0xf]
        %v986 = vrot.slane %v731, 7
        %v1003 = vrot.slane %v716, 7
        %v1004 = vrot.slane %v717, 7
        %v1005 = vsel %vm375, %v1003, %v1004
        %v1006 = vrot.slane %v718, 7
        %v1007 = vsel %vm375, %v1004, %v1006
        %v1008 = vrot.slane %v719, 7
        %v1009 = vsel %vm375, %v1006, %v1008
        %v1010 = vrot.slane %v720, 7
        %v1011 = vsel %vm375, %v1008, %v1010
        %v1012 = vrot.slane %v721, 7
        %v1013 = vsel %vm375, %v1010, %v1012
        %v1014 = vrot.slane %v722, 7
        %v1015 = vsel %vm375, %v1012, %v1014
        %v1016 = vrot.slane %v723, 7
        %v1017 = vsel %vm375, %v1014, %v1016
        %v1018 = vrot.slane %v724, 7
        %v1019 = vsel %vm375, %v1016, %v1018
        %v1020 = vrot.slane %v725, 7
        %v1021 = vsel %vm375, %v1018, %v1020
        %v1022 = vrot.slane %v726, 7
        %v1023 = vsel %vm375, %v1020, %v1022
        %v1024 = vrot.slane %v727, 7
        %v1025 = vsel %vm375, %v1022, %v1024
        %v1026 = vrot.slane %v728, 7
        %v1027 = vsel %vm375, %v1024, %v1026
        %v1028 = vrot.slane %v729, 7
        %v1029 = vsel %vm375, %v1026, %v1028
        %v1030 = vrot.slane %v730, 7
        %v1031 = vsel %vm375, %v1028, %v1030
        %v1032 = vsel %vm375, %v1030, %v986
        %v1049 = vsel %vm375, %v986, %v1003
        %v1050 = vsel %vm941, 0.0, %v1049
        %v1051 = vsel %vm942, 0.0, %v1005
        %v1052 = vsel %vm943, 0.0, %v1007
        %v1053 = vsel %vm944, 0.0, %v1009
        %v1054 = vsel %vm945, 0.0, %v1011
        %v1055 = vsel %vm946, 0.0, %v1013
        %v1056 = vsel %vm947, 0.0, %v1015
        %v1057 = vsel %vm948, 0.0, %v1017
        %v1058 = vsel %vm949, 0.0, %v1019
        %v1059 = vsel %vm950, 0.0, %v1021
        %v1060 = vsel %vm951, 0.0, %v1023
        %v1061 = vsel %vm952, 0.0, %v1025
        %v1062 = vsel %vm953, 0.0, %v1027
        %v1063 = vsel %vm954, 0.0, %v1029
        %v1064 = vsel %vm955, 0.0, %v1031
        %v1065 = vsel %vm956, 0.0, %v1032
        %vm1066 = vcmask 1046528
        %v1067 = vrot.slane %v716, 1
        %v1068 = vrot.slane %v717, 1
        %v1069 = vsel %vm1066, %v1067, %v1068
        %v1070 = vrot.slane %v718, 1
        %v1071 = vsel %vm1066, %v1068, %v1070
        %v1072 = vrot.slane %v719, 1
        %v1073 = vsel %vm1066, %v1070, %v1072
        %v1074 = vrot.slane %v720, 1
        %v1075 = vsel %vm1066, %v1072, %v1074
        %v1076 = vrot.slane %v721, 1
        %v1077 = vsel %vm1066, %v1074, %v1076
        %v1078 = vrot.slane %v722, 1
        %v1079 = vsel %vm1066, %v1076, %v1078
        %v1080 = vrot.slane %v723, 1
        %v1081 = vsel %vm1066, %v1078, %v1080
        %v1082 = vrot.slane %v724, 1
        %v1083 = vsel %vm1066, %v1080, %v1082
        %v1084 = vrot.slane %v725, 1
        %v1085 = vsel %vm1066, %v1082, %v1084
        %v1086 = vrot.slane %v726, 1
        %v1087 = vsel %vm1066, %v1084, %v1086
        %v1088 = vrot.slane %v727, 1
        %v1089 = vsel %vm1066, %v1086, %v1088
        %v1090 = vrot.slane %v728, 1
        %v1091 = vsel %vm1066, %v1088, %v1090
        %v1092 = vrot.slane %v729, 1
        %v1093 = vsel %vm1066, %v1090, %v1092
        %v1094 = vrot.slane %v730, 1
        %v1095 = vsel %vm1066, %v1092, %v1094
        %v1096 = vrot.slane %v731, 1
        %v1097 = vsel %vm1066, %v1094, %v1096
        %v1115 = vsel %vm1066, %v1096, %v1067
        %v1116 = vsel %vm957, 0.0, %v1069
        %v1117 = vsel %vm958, 0.0, %v1071
        %v1118 = vsel %vm959, 0.0, %v1073
        %v1119 = vsel %vm960, 0.0, %v1075
        %v1120 = vsel %vm961, 0.0, %v1077
        %v1121 = vsel %vm962, 0.0, %v1079
        %v1122 = vsel %vm963, 0.0, %v1081
        %v1123 = vsel %vm964, 0.0, %v1083
        %v1124 = vsel %vm965, 0.0, %v1085
        %v1125 = vsel %vm966, 0.0, %v1087
        %v1126 = vsel %vm967, 0.0, %v1089
        %v1127 = vsel %vm968, 0.0, %v1091
        %v1128 = vsel %vm969, 0.0, %v1093
        %v1129 = vsel %vm970, 0.0, %v1095
        %v1130 = vsel %vm971, 0.0, %v1097
        %v1131 = vsel %vm972, 0.0, %v1115
        %1132 = vrot.lane.b32.xlu0 %v716, 32
        %v1133 = vpop.permute.xlu0 %1132
        %1134 = vrot.lane.b32.xlu0 %v717, 32
        %v1135 = vpop.permute.xlu0 %1134
        %1136 = vrot.lane.b32.xlu0 %v718, 32
        %v1137 = vpop.permute.xlu0 %1136
        %1138 = vrot.lane.b32.xlu0 %v719, 32
        %v1139 = vpop.permute.xlu0 %1138
        %1140 = vrot.lane.b32.xlu0 %v720, 32
        %v1141 = vpop.permute.xlu0 %1140
        %1142 = vrot.lane.b32.xlu0 %v721, 32
        %v1143 = vpop.permute.xlu0 %1142
        %1144 = vrot.lane.b32.xlu0 %v722, 32
        %v1145 = vpop.permute.xlu0 %1144
        %1146 = vrot.lane.b32.xlu0 %v723, 32
        %v1147 = vpop.permute.xlu0 %1146
        %1148 = vrot.lane.b32.xlu0 %v724, 32
        %v1149 = vpop.permute.xlu0 %1148
        %1150 = vrot.lane.b32.xlu0 %v725, 32
        %v1151 = vpop.permute.xlu0 %1150
        %1152 = vrot.lane.b32.xlu0 %v726, 32
        %v1153 = vpop.permute.xlu0 %1152
        %1154 = vrot.lane.b32.xlu0 %v727, 32
        %v1155 = vpop.permute.xlu0 %1154
        %1156 = vrot.lane.b32.xlu0 %v728, 32
        %v1157 = vpop.permute.xlu0 %1156
        %1158 = vrot.lane.b32.xlu0 %v729, 32
        %v1159 = vpop.permute.xlu0 %1158
        %1160 = vrot.lane.b32.xlu0 %v730, 32
        %v1161 = vpop.permute.xlu0 %1160
        %1162 = vrot.lane.b32.xlu0 %v731, 32
        %v1163 = vpop.permute.xlu0 %1162
        %1196 = vrot.lane.b32.xlu0 %v1116, 64
        %v1197 = vpop.permute.xlu0 %1196
        %1198 = vrot.lane.b32.xlu0 %v1117, 64
        %v1199 = vpop.permute.xlu0 %1198
        %1200 = vrot.lane.b32.xlu0 %v1118, 64
        %v1201 = vpop.permute.xlu0 %1200
        %1202 = vrot.lane.b32.xlu0 %v1119, 64
        %v1203 = vpop.permute.xlu0 %1202
        %1204 = vrot.lane.b32.xlu0 %v1120, 64
        %v1205 = vpop.permute.xlu0 %1204
        %1206 = vrot.lane.b32.xlu0 %v1121, 64
        %v1207 = vpop.permute.xlu0 %1206
        %1208 = vrot.lane.b32.xlu0 %v1122, 64
        %v1209 = vpop.permute.xlu0 %1208
        %1210 = vrot.lane.b32.xlu0 %v1123, 64
        %v1211 = vpop.permute.xlu0 %1210
        %1212 = vrot.lane.b32.xlu0 %v1124, 64
        %v1213 = vpop.permute.xlu0 %1212
        %1214 = vrot.lane.b32.xlu0 %v1125, 64
        %v1215 = vpop.permute.xlu0 %1214
        %1216 = vrot.lane.b32.xlu0 %v1126, 64
        %v1217 = vpop.permute.xlu0 %1216
        %1218 = vrot.lane.b32.xlu0 %v1127, 64
        %v1219 = vpop.permute.xlu0 %1218
        %1220 = vrot.lane.b32.xlu0 %v1128, 64
        %v1221 = vpop.permute.xlu0 %1220
        %1222 = vrot.lane.b32.xlu0 %v1129, 64
        %v1223 = vpop.permute.xlu0 %1222
        %1224 = vrot.lane.b32.xlu0 %v1130, 64
        %v1225 = vpop.permute.xlu0 %1224
        %1226 = vrot.lane.b32.xlu0 %v1131, 64
        %v1227 = vpop.permute.xlu0 %1226
        %v1244 = vsel %vm548, %v1050, %v1133
        %v1245 = vsel %vm548, %v1051, %v1135
        %v1246 = vsel %vm548, %v1052, %v1137
        %v1247 = vsel %vm548, %v1053, %v1139
        %v1248 = vsel %vm548, %v1054, %v1141
        %v1249 = vsel %vm548, %v1055, %v1143
        %v1250 = vsel %vm548, %v1056, %v1145
        %v1251 = vsel %vm548, %v1057, %v1147
        %v1252 = vsel %vm548, %v1058, %v1149
        %v1253 = vsel %vm548, %v1059, %v1151
        %v1254 = vsel %vm548, %v1060, %v1153
        %v1255 = vsel %vm548, %v1061, %v1155
        %v1256 = vsel %vm548, %v1062, %v1157
        %v1257 = vsel %vm548, %v1063, %v1159
        %v1258 = vsel %vm548, %v1064, %v1161
        %v1259 = vsel %vm548, %v1065, %v1163
        %vm1260 = vcmask 523264
        %v1261 = vsel %vm1260, %v1244, %v1197
        %v1262 = vsel %vm1260, %v1245, %v1199
        %v1263 = vsel %vm1260, %v1246, %v1201
        %v1264 = vsel %vm1260, %v1247, %v1203
        %v1265 = vsel %vm1260, %v1248, %v1205
        %v1266 = vsel %vm1260, %v1249, %v1207
        %v1267 = vsel %vm1260, %v1250, %v1209
        %v1268 = vsel %vm1260, %v1251, %v1211
        %v1269 = vsel %vm1260, %v1252, %v1213
        %v1270 = vsel %vm1260, %v1253, %v1215
        %v1271 = vsel %vm1260, %v1254, %v1217
        %v1272 = vsel %vm1260, %v1255, %v1219
        %v1273 = vsel %vm1260, %v1256, %v1221
        %v1274 = vsel %vm1260, %v1257, %v1223
        %v1275 = vsel %vm1260, %v1258, %v1225
        %v1276 = vsel %vm1260, %v1259, %v1227
        %v1277 = vpack.c.bf16 %v1262, %v1261
        %v1278 = vpack.c.bf16 %v1264, %v1263
        %v1279 = vpack.c.bf16 %v1266, %v1265
        %v1280 = vpack.c.bf16 %v1268, %v1267
        %v1281 = vpack.c.bf16 %v1270, %v1269
        %v1282 = vpack.c.bf16 %v1272, %v1271
        %v1283 = vpack.c.bf16 %v1274, %v1273
        %v1284 = vpack.c.bf16 %v1276, %v1275
        %v1297 = vunpack.c.l.b16 %v973
        %v1298 = vunpack.c.l.b16 %v974
        %v1299 = vunpack.c.l.b16 %v975
        %v1300 = vunpack.c.l.b16 %v976
        %v1301 = vunpack.c.l.b16 %v977
        %v1302 = vunpack.c.l.b16 %v978
        %v1303 = vunpack.c.l.b16 %v979
        %v1304 = vunpack.c.l.b16 %v980
        %v1305 = vunpack.c.l.b16 %v981
        %v1306 = vunpack.c.l.b16 %v982
        %v1307 = vunpack.c.l.b16 %v983
        %v1308 = vunpack.c.l.b16 %v984
        %v1309 = vpack.c.b16 %v1298, %v1297
        %v1310 = vpack.c.b16 %v1300, %v1299
        %v1311 = vpack.c.b16 %v1302, %v1301
        %v1312 = vpack.c.b16 %v1304, %v1303
        %v1313 = vpack.c.b16 %v1306, %v1305
        %v1314 = vpack.c.b16 %v1308, %v1307
        %vm1321 = vcmask 785408
        %v1323 = vsel %vm1321, %v1277, 0
        %v1326 = vsel %vm1321, %v1278, 0
        %v1329 = vsel %vm1321, %v1279, 0
        %v1332 = vsel %vm1321, %v1280, 0
        %v1335 = vsel %vm1321, %v1281, 0
        %v1338 = vsel %vm1321, %v1282, 0
        %v1341 = vsel %vm1321, %v1283, 0
        %v1344 = vsel %vm1321, %v1284, 0
        %1346 = vmatprep.subr.bf16.mxu0 0
        %1347 = vmatpush1.bf16.msra.mxu0 %v1309
        %1348 = vmatprep.subr.bf16.mxu0 0
        %1349 = vmatpush1.bf16.msra.mxu0 %v1310
        %1350 = vmatprep.subr.bf16.mxu0 0
        %1351 = vmatpush1.bf16.msra.mxu0 %v1311
        %1352 = vmatprep.subr.bf16.mxu0 0
        %1353 = vmatpush1.bf16.msra.mxu0 %v1312
        %1354 = vmatprep.subr.bf16.mxu0 0
        %1355 = vmatpush1.bf16.msra.mxu0 %v1313
        %1356 = vmatprep.subr.bf16.mxu0 0
        %1357 = vmatpush1.bf16.msra.mxu0 %v1314
        %1358 = vmatprep.subr.bf16.mxu0 0
        %1359 = vmatpush1.bf16.msra.mxu0 0
        %1360 = vmatprep.subr.bf16.mxu0 0
        %1361 = vmatpush1.bf16.msra.mxu0 0
        %1362 = vmatprep.subr.bf16.mxu0 0
        %1363 = vmatpush1.bf16.msra.mxu0 0
        %1364 = vmatprep.subr.bf16.mxu0 0
        %1365 = vmatpush1.bf16.msra.mxu0 0
        %1366 = vmatprep.subr.bf16.mxu0 0
        %1367 = vmatpush1.bf16.msra.mxu0 0
        %1368 = vmatprep.subr.bf16.mxu0 0
        %1369 = vmatpush1.bf16.msra.mxu0 0
        %1370 = vmatprep.subr.bf16.mxu0 0
        %1371 = vmatpush1.bf16.msra.mxu0 0
        %1372 = vmatprep.subr.bf16.mxu0 0
        %1373 = vmatpush1.bf16.msra.mxu0 0
        %1374 = vmatprep.subr.bf16.mxu0 0
        %1375 = vmatpush1.bf16.msra.mxu0 0
        %1376 = vmatprep.subr.bf16.mxu0 0
        %1377 = vmatpush1.bf16.msra.mxu0 0
        %1378 = vmatprep.mubr.bf16.mxu0 0
        %1379 = vmatmul.mubr.bf16.gmra.mrb[0].mxu0 %v1323
        %v1380 = vpop.f32.mrb[0].mxu0
        %v1381 = vadd.f32 0.0, %v1380
        %v1382 = vpop.f32.mrb[0].mxu0
        %v1383 = vpop.f32.mrb[0].mxu0
        %v1384 = vadd.f32 0.0, %v1383
        %v1385 = vpop.f32.mrb[0].mxu0
        %1386 = vmatprep.mubr.bf16.mxu0 0
        %1387 = vmatmul.mubr.bf16.gmra.mrb[0].mxu0 %v1326
        %v1388 = vpop.f32.mrb[0].mxu0
        %v1389 = vadd.f32 0.0, %v1388
        %v1390 = vpop.f32.mrb[0].mxu0
        %v1391 = vpop.f32.mrb[0].mxu0
        %v1392 = vadd.f32 0.0, %v1391
        %v1393 = vpop.f32.mrb[0].mxu0
        %1394 = vmatprep.mubr.bf16.mxu0 0
        %1395 = vmatmul.mubr.bf16.gmra.mrb[0].mxu0 %v1329
        %v1396 = vpop.f32.mrb[0].mxu0
        %v1397 = vadd.f32 0.0, %v1396
        %v1398 = vpop.f32.mrb[0].mxu0
        %v1399 = vpop.f32.mrb[0].mxu0
        %v1400 = vadd.f32 0.0, %v1399
        %v1401 = vpop.f32.mrb[0].mxu0
        %1402 = vmatprep.mubr.bf16.mxu0 0
        %1403 = vmatmul.mubr.bf16.gmra.mrb[0].mxu0 %v1332
        %v1404 = vpop.f32.mrb[0].mxu0
        %v1405 = vadd.f32 0.0, %v1404
        %v1406 = vpop.f32.mrb[0].mxu0
        %v1407 = vpop.f32.mrb[0].mxu0
        %v1408 = vadd.f32 0.0, %v1407
        %v1409 = vpop.f32.mrb[0].mxu0
        %1410 = vmatprep.mubr.bf16.mxu0 0
        %1411 = vmatmul.mubr.bf16.gmra.mrb[0].mxu0 %v1335
        %v1412 = vpop.f32.mrb[0].mxu0
        %v1413 = vadd.f32 0.0, %v1412
        %v1414 = vpop.f32.mrb[0].mxu0
        %v1415 = vpop.f32.mrb[0].mxu0
        %v1416 = vadd.f32 0.0, %v1415
        %v1417 = vpop.f32.mrb[0].mxu0
        %1418 = vmatprep.mubr.bf16.mxu0 0
        %1419 = vmatmul.mubr.bf16.gmra.mrb[0].mxu0 %v1338
        %v1420 = vpop.f32.mrb[0].mxu0
        %v1421 = vadd.f32 0.0, %v1420
        %v1422 = vpop.f32.mrb[0].mxu0
        %v1423 = vpop.f32.mrb[0].mxu0
        %v1424 = vadd.f32 0.0, %v1423
        %v1425 = vpop.f32.mrb[0].mxu0
        %1426 = vmatprep.mubr.bf16.mxu0 0
        %1427 = vmatmul.mubr.bf16.gmra.mrb[0].mxu0 %v1341
        %v1428 = vpop.f32.mrb[0].mxu0
        %v1429 = vadd.f32 0.0, %v1428
        %v1430 = vpop.f32.mrb[0].mxu0
        %v1431 = vpop.f32.mrb[0].mxu0
        %v1432 = vadd.f32 0.0, %v1431
        %v1433 = vpop.f32.mrb[0].mxu0
        %1434 = vmatprep.mubr.bf16.mxu0 0
        %1435 = vmatmul.mubr.bf16.gmra.mrb[0].mxu0 %v1344
        %v1436 = vpop.f32.mrb[0].mxu0
        %v1437 = vadd.f32 0.0, %v1436
        %v1438 = vpop.f32.mrb[0].mxu0
        %v1439 = vpop.f32.mrb[0].mxu0
        %v1440 = vadd.f32 0.0, %v1439
        %v1441 = vpop.f32.mrb[0].mxu0
        %1442 = vdwg.mxu0
        %v1443 = vld [vmem:[%s6] sm:$0x1]
        %v1445 = vlaneseq
        %v1446 = vshrl.u32 %v1445, 7
        %v1447 = vsub.s32 0, %v1446
        %v1448 = vrot.slane %v1443, %v1447
        %v1450 = vmul.f32 %v1381, %v1448
        %v1451 = vmul.f32 %v1384, %v1448
        %v1452 = vmul.f32 %v1389, %v1448
        %v1453 = vmul.f32 %v1392, %v1448
        %v1454 = vmul.f32 %v1397, %v1448
        %v1455 = vmul.f32 %v1400, %v1448
        %v1456 = vmul.f32 %v1405, %v1448
        %v1457 = vmul.f32 %v1408, %v1448
        %v1458 = vmul.f32 %v1413, %v1448
        %v1459 = vmul.f32 %v1416, %v1448
        %v1460 = vmul.f32 %v1421, %v1448
        %v1461 = vmul.f32 %v1424, %v1448
        %v1462 = vmul.f32 %v1429, %v1448
        %v1463 = vmul.f32 %v1432, %v1448
        %v1464 = vmul.f32 %v1437, %v1448
        %v1465 = vmul.f32 %v1440, %v1448
        %v1466 = vld [vmem:[%s7] sm:$0x1]
        %v1468 = vlaneseq
        %v1469 = vshrl.u32 %v1468, 7
        %v1470 = vsub.s32 0, %v1469
        %v1471 = vrot.slane %v1466, %v1470
        %v1473 = vadd.f32 %v1450, %v1471
        %v1474 = vadd.f32 %v1451, %v1471
        %v1475 = vadd.f32 %v1452, %v1471
        %v1476 = vadd.f32 %v1453, %v1471
        %v1477 = vadd.f32 %v1454, %v1471
        %v1478 = vadd.f32 %v1455, %v1471
        %v1479 = vadd.f32 %v1456, %v1471
        %v1480 = vadd.f32 %v1457, %v1471
        %v1481 = vadd.f32 %v1458, %v1471
        %v1482 = vadd.f32 %v1459, %v1471
        %v1483 = vadd.f32 %v1460, %v1471
        %v1484 = vadd.f32 %v1461, %v1471
        %v1485 = vadd.f32 %v1462, %v1471
        %v1486 = vadd.f32 %v1463, %v1471
        %v1487 = vadd.f32 %v1464, %v1471
        %v1488 = vadd.f32 %v1465, %v1471
        %v1489 = vmax.f32 %v1473, 0.0
        %v1490 = vmax.f32 %v1474, 0.0
        %v1491 = vmax.f32 %v1475, 0.0
        %v1492 = vmax.f32 %v1476, 0.0
        %v1493 = vmax.f32 %v1477, 0.0
        %v1494 = vmax.f32 %v1478, 0.0
        %v1495 = vmax.f32 %v1479, 0.0
        %v1496 = vmax.f32 %v1480, 0.0
        %v1497 = vmax.f32 %v1481, 0.0
        %v1498 = vmax.f32 %v1482, 0.0
        %v1499 = vmax.f32 %v1483, 0.0
        %v1500 = vmax.f32 %v1484, 0.0
        %v1501 = vmax.f32 %v1485, 0.0
        %v1502 = vmax.f32 %v1486, 0.0
        %v1503 = vmax.f32 %v1487, 0.0
        %v1504 = vmax.f32 %v1488, 0.0
        %s1505 = scalar_lea.vmem %s5, 48
        %v1506 = vld [vmem:[%s1505] sm:$0xf]
        %v1507 = vld [vmem:[%s1505 + $0x4] sm:$0xf]
        %v1508 = vld [vmem:[%s1505 + $0x8] sm:$0xf]
        %v1509 = vld [vmem:[%s1505 + $0xc] sm:$0xf]
        %v1510 = vld [vmem:[%s1505 + $0x10] sm:$0xf]
        %v1511 = vld [vmem:[%s1505 + $0x14] sm:$0xf]
        %v1512 = vld [vmem:[%s1505 + $0x18] sm:$0xf]
        %v1513 = vld [vmem:[%s1505 + $0x1c] sm:$0xf]
        %v1514 = vld [vmem:[%s1505 + $0x20] sm:$0xf]
        %v1515 = vld [vmem:[%s1505 + $0x24] sm:$0xf]
        %v1516 = vld [vmem:[%s1505 + $0x28] sm:$0xf]
        %v1517 = vld [vmem:[%s1505 + $0x2c] sm:$0xf]
        %v1519 = vrot.slane %v1504, 7
        %v1536 = vrot.slane %v1489, 7
        %v1537 = vrot.slane %v1490, 7
        %v1538 = vsel %vm375, %v1536, %v1537
        %v1539 = vrot.slane %v1491, 7
        %v1540 = vsel %vm375, %v1537, %v1539
        %v1541 = vrot.slane %v1492, 7
        %v1542 = vsel %vm375, %v1539, %v1541
        %v1543 = vrot.slane %v1493, 7
        %v1544 = vsel %vm375, %v1541, %v1543
        %v1545 = vrot.slane %v1494, 7
        %v1546 = vsel %vm375, %v1543, %v1545
        %v1547 = vrot.slane %v1495, 7
        %v1548 = vsel %vm375, %v1545, %v1547
        %v1549 = vrot.slane %v1496, 7
        %v1550 = vsel %vm375, %v1547, %v1549
        %v1551 = vrot.slane %v1497, 7
        %v1552 = vsel %vm375, %v1549, %v1551
        %v1553 = vrot.slane %v1498, 7
        %v1554 = vsel %vm375, %v1551, %v1553
        %v1555 = vrot.slane %v1499, 7
        %v1556 = vsel %vm375, %v1553, %v1555
        %v1557 = vrot.slane %v1500, 7
        %v1558 = vsel %vm375, %v1555, %v1557
        %v1559 = vrot.slane %v1501, 7
        %v1560 = vsel %vm375, %v1557, %v1559
        %v1561 = vrot.slane %v1502, 7
        %v1562 = vsel %vm375, %v1559, %v1561
        %v1563 = vrot.slane %v1503, 7
        %v1564 = vsel %vm375, %v1561, %v1563
        %v1565 = vsel %vm375, %v1563, %v1519
        %v1582 = vsel %vm375, %v1519, %v1536
        %v1583 = vsel %vm941, 0.0, %v1582
        %v1584 = vsel %vm942, 0.0, %v1538
        %v1585 = vsel %vm943, 0.0, %v1540
        %v1586 = vsel %vm944, 0.0, %v1542
        %v1587 = vsel %vm945, 0.0, %v1544
        %v1588 = vsel %vm946, 0.0, %v1546
        %v1589 = vsel %vm947, 0.0, %v1548
        %v1590 = vsel %vm948, 0.0, %v1550
        %v1591 = vsel %vm949, 0.0, %v1552
        %v1592 = vsel %vm950, 0.0, %v1554
        %v1593 = vsel %vm951, 0.0, %v1556
        %v1594 = vsel %vm952, 0.0, %v1558
        %v1595 = vsel %vm953, 0.0, %v1560
        %v1596 = vsel %vm954, 0.0, %v1562
        %v1597 = vsel %vm955, 0.0, %v1564
        %v1598 = vsel %vm956, 0.0, %v1565
        %v1599 = vrot.slane %v1489, 1
        %v1600 = vrot.slane %v1490, 1
        %v1601 = vsel %vm1066, %v1599, %v1600
        %v1602 = vrot.slane %v1491, 1
        %v1603 = vsel %vm1066, %v1600, %v1602
        %v1604 = vrot.slane %v1492, 1
        %v1605 = vsel %vm1066, %v1602, %v1604
        %v1606 = vrot.slane %v1493, 1
        %v1607 = vsel %vm1066, %v1604, %v1606
        %v1608 = vrot.slane %v1494, 1
        %v1609 = vsel %vm1066, %v1606, %v1608
        %v1610 = vrot.slane %v1495, 1
        %v1611 = vsel %vm1066, %v1608, %v1610
        %v1612 = vrot.slane %v1496, 1
        %v1613 = vsel %vm1066, %v1610, %v1612
        %v1614 = vrot.slane %v1497, 1
        %v1615 = vsel %vm1066, %v1612, %v1614
        %v1616 = vrot.slane %v1498, 1
        %v1617 = vsel %vm1066, %v1614, %v1616
        %v1618 = vrot.slane %v1499, 1
        %v1619 = vsel %vm1066, %v1616, %v1618
        %v1620 = vrot.slane %v1500, 1
        %v1621 = vsel %vm1066, %v1618, %v1620
        %v1622 = vrot.slane %v1501, 1
        %v1623 = vsel %vm1066, %v1620, %v1622
        %v1624 = vrot.slane %v1502, 1
        %v1625 = vsel %vm1066, %v1622, %v1624
        %v1626 = vrot.slane %v1503, 1
        %v1627 = vsel %vm1066, %v1624, %v1626
        %v1628 = vrot.slane %v1504, 1
        %v1629 = vsel %vm1066, %v1626, %v1628
        %v1647 = vsel %vm1066, %v1628, %v1599
        %v1648 = vsel %vm957, 0.0, %v1601
        %v1649 = vsel %vm958, 0.0, %v1603
        %v1650 = vsel %vm959, 0.0, %v1605
        %v1651 = vsel %vm960, 0.0, %v1607
        %v1652 = vsel %vm961, 0.0, %v1609
        %v1653 = vsel %vm962, 0.0, %v1611
        %v1654 = vsel %vm963, 0.0, %v1613
        %v1655 = vsel %vm964, 0.0, %v1615
        %v1656 = vsel %vm965, 0.0, %v1617
        %v1657 = vsel %vm966, 0.0, %v1619
        %v1658 = vsel %vm967, 0.0, %v1621
        %v1659 = vsel %vm968, 0.0, %v1623
        %v1660 = vsel %vm969, 0.0, %v1625
        %v1661 = vsel %vm970, 0.0, %v1627
        %v1662 = vsel %vm971, 0.0, %v1629
        %v1663 = vsel %vm972, 0.0, %v1647
        %1664 = vrot.lane.b32.xlu0 %v1489, 32
        %v1665 = vpop.permute.xlu0 %1664
        %1666 = vrot.lane.b32.xlu0 %v1490, 32
        %v1667 = vpop.permute.xlu0 %1666
        %1668 = vrot.lane.b32.xlu0 %v1491, 32
        %v1669 = vpop.permute.xlu0 %1668
        %1670 = vrot.lane.b32.xlu0 %v1492, 32
        %v1671 = vpop.permute.xlu0 %1670
        %1672 = vrot.lane.b32.xlu0 %v1493, 32
        %v1673 = vpop.permute.xlu0 %1672
        %1674 = vrot.lane.b32.xlu0 %v1494, 32
        %v1675 = vpop.permute.xlu0 %1674
        %1676 = vrot.lane.b32.xlu0 %v1495, 32
        %v1677 = vpop.permute.xlu0 %1676
        %1678 = vrot.lane.b32.xlu0 %v1496, 32
        %v1679 = vpop.permute.xlu0 %1678
        %1680 = vrot.lane.b32.xlu0 %v1497, 32
        %v1681 = vpop.permute.xlu0 %1680
        %1682 = vrot.lane.b32.xlu0 %v1498, 32
        %v1683 = vpop.permute.xlu0 %1682
        %1684 = vrot.lane.b32.xlu0 %v1499, 32
        %v1685 = vpop.permute.xlu0 %1684
        %1686 = vrot.lane.b32.xlu0 %v1500, 32
        %v1687 = vpop.permute.xlu0 %1686
        %1688 = vrot.lane.b32.xlu0 %v1501, 32
        %v1689 = vpop.permute.xlu0 %1688
        %1690 = vrot.lane.b32.xlu0 %v1502, 32
        %v1691 = vpop.permute.xlu0 %1690
        %1692 = vrot.lane.b32.xlu0 %v1503, 32
        %v1693 = vpop.permute.xlu0 %1692
        %1694 = vrot.lane.b32.xlu0 %v1504, 32
        %v1695 = vpop.permute.xlu0 %1694
        %1728 = vrot.lane.b32.xlu0 %v1648, 64
        %v1729 = vpop.permute.xlu0 %1728
        %1730 = vrot.lane.b32.xlu0 %v1649, 64
        %v1731 = vpop.permute.xlu0 %1730
        %1732 = vrot.lane.b32.xlu0 %v1650, 64
        %v1733 = vpop.permute.xlu0 %1732
        %1734 = vrot.lane.b32.xlu0 %v1651, 64
        %v1735 = vpop.permute.xlu0 %1734
        %1736 = vrot.lane.b32.xlu0 %v1652, 64
        %v1737 = vpop.permute.xlu0 %1736
        %1738 = vrot.lane.b32.xlu0 %v1653, 64
        %v1739 = vpop.permute.xlu0 %1738
        %1740 = vrot.lane.b32.xlu0 %v1654, 64
        %v1741 = vpop.permute.xlu0 %1740
        %1742 = vrot.lane.b32.xlu0 %v1655, 64
        %v1743 = vpop.permute.xlu0 %1742
        %1744 = vrot.lane.b32.xlu0 %v1656, 64
        %v1745 = vpop.permute.xlu0 %1744
        %1746 = vrot.lane.b32.xlu0 %v1657, 64
        %v1747 = vpop.permute.xlu0 %1746
        %1748 = vrot.lane.b32.xlu0 %v1658, 64
        %v1749 = vpop.permute.xlu0 %1748
        %1750 = vrot.lane.b32.xlu0 %v1659, 64
        %v1751 = vpop.permute.xlu0 %1750
        %1752 = vrot.lane.b32.xlu0 %v1660, 64
        %v1753 = vpop.permute.xlu0 %1752
        %1754 = vrot.lane.b32.xlu0 %v1661, 64
        %v1755 = vpop.permute.xlu0 %1754
        %1756 = vrot.lane.b32.xlu0 %v1662, 64
        %v1757 = vpop.permute.xlu0 %1756
        %1758 = vrot.lane.b32.xlu0 %v1663, 64
        %v1759 = vpop.permute.xlu0 %1758
        %v1776 = vsel %vm548, %v1583, %v1665
        %v1777 = vsel %vm548, %v1584, %v1667
        %v1778 = vsel %vm548, %v1585, %v1669
        %v1779 = vsel %vm548, %v1586, %v1671
        %v1780 = vsel %vm548, %v1587, %v1673
        %v1781 = vsel %vm548, %v1588, %v1675
        %v1782 = vsel %vm548, %v1589, %v1677
        %v1783 = vsel %vm548, %v1590, %v1679
        %v1784 = vsel %vm548, %v1591, %v1681
        %v1785 = vsel %vm548, %v1592, %v1683
        %v1786 = vsel %vm548, %v1593, %v1685
        %v1787 = vsel %vm548, %v1594, %v1687
        %v1788 = vsel %vm548, %v1595, %v1689
        %v1789 = vsel %vm548, %v1596, %v1691
        %v1790 = vsel %vm548, %v1597, %v1693
        %v1791 = vsel %vm548, %v1598, %v1695
        %v1792 = vsel %vm1260, %v1776, %v1729
        %v1793 = vsel %vm1260, %v1777, %v1731
        %v1794 = vsel %vm1260, %v1778, %v1733
        %v1795 = vsel %vm1260, %v1779, %v1735
        %v1796 = vsel %vm1260, %v1780, %v1737
        %v1797 = vsel %vm1260, %v1781, %v1739
        %v1798 = vsel %vm1260, %v1782, %v1741
        %v1799 = vsel %vm1260, %v1783, %v1743
        %v1800 = vsel %vm1260, %v1784, %v1745
        %v1801 = vsel %vm1260, %v1785, %v1747
        %v1802 = vsel %vm1260, %v1786, %v1749
        %v1803 = vsel %vm1260, %v1787, %v1751
        %v1804 = vsel %vm1260, %v1788, %v1753
        %v1805 = vsel %vm1260, %v1789, %v1755
        %v1806 = vsel %vm1260, %v1790, %v1757
        %v1807 = vsel %vm1260, %v1791, %v1759
        %v1808 = vpack.c.bf16 %v1793, %v1792
        %v1809 = vpack.c.bf16 %v1795, %v1794
        %v1810 = vpack.c.bf16 %v1797, %v1796
        %v1811 = vpack.c.bf16 %v1799, %v1798
        %v1812 = vpack.c.bf16 %v1801, %v1800
        %v1813 = vpack.c.bf16 %v1803, %v1802
        %v1814 = vpack.c.bf16 %v1805, %v1804
        %v1815 = vpack.c.bf16 %v1807, %v1806
        %v1828 = vunpack.c.l.b16 %v1506
        %v1829 = vunpack.c.l.b16 %v1507
        %v1830 = vunpack.c.l.b16 %v1508
        %v1831 = vunpack.c.l.b16 %v1509
        %v1832 = vunpack.c.l.b16 %v1510
        %v1833 = vunpack.c.l.b16 %v1511
        %v1834 = vunpack.c.l.b16 %v1512
        %v1835 = vunpack.c.l.b16 %v1513
        %v1836 = vunpack.c.l.b16 %v1514
        %v1837 = vunpack.c.l.b16 %v1515
        %v1838 = vunpack.c.l.b16 %v1516
        %v1839 = vunpack.c.l.b16 %v1517
        %v1840 = vpack.c.b16 %v1829, %v1828
        %v1841 = vpack.c.b16 %v1831, %v1830
        %v1842 = vpack.c.b16 %v1833, %v1832
        %v1843 = vpack.c.b16 %v1835, %v1834
        %v1844 = vpack.c.b16 %v1837, %v1836
        %v1845 = vpack.c.b16 %v1839, %v1838
        %v1853 = vsel %vm1321, %v1808, 0
        %v1856 = vsel %vm1321, %v1809, 0
        %v1859 = vsel %vm1321, %v1810, 0
        %v1862 = vsel %vm1321, %v1811, 0
        %v1865 = vsel %vm1321, %v1812, 0
        %v1868 = vsel %vm1321, %v1813, 0
        %v1871 = vsel %vm1321, %v1814, 0
        %v1874 = vsel %vm1321, %v1815, 0
        %1876 = vmatprep.subr.bf16.mxu0 0
        %1877 = vmatpush1.bf16.msra.mxu0 %v1840
        %1878 = vmatprep.subr.bf16.mxu0 0
        %1879 = vmatpush1.bf16.msra.mxu0 %v1841
        %1880 = vmatprep.subr.bf16.mxu0 0
        %1881 = vmatpush1.bf16.msra.mxu0 %v1842
        %1882 = vmatprep.subr.bf16.mxu0 0
        %1883 = vmatpush1.bf16.msra.mxu0 %v1843
        %1884 = vmatprep.subr.bf16.mxu0 0
        %1885 = vmatpush1.bf16.msra.mxu0 %v1844
        %1886 = vmatprep.subr.bf16.mxu0 0
        %1887 = vmatpush1.bf16.msra.mxu0 %v1845
        %1888 = vmatprep.subr.bf16.mxu0 0
        %1889 = vmatpush1.bf16.msra.mxu0 0
        %1890 = vmatprep.subr.bf16.mxu0 0
        %1891 = vmatpush1.bf16.msra.mxu0 0
        %1892 = vmatprep.subr.bf16.mxu0 0
        %1893 = vmatpush1.bf16.msra.mxu0 0
        %1894 = vmatprep.subr.bf16.mxu0 0
        %1895 = vmatpush1.bf16.msra.mxu0 0
        %1896 = vmatprep.subr.bf16.mxu0 0
        %1897 = vmatpush1.bf16.msra.mxu0 0
        %1898 = vmatprep.subr.bf16.mxu0 0
        %1899 = vmatpush1.bf16.msra.mxu0 0
        %1900 = vmatprep.subr.bf16.mxu0 0
        %1901 = vmatpush1.bf16.msra.mxu0 0
        %1902 = vmatprep.subr.bf16.mxu0 0
        %1903 = vmatpush1.bf16.msra.mxu0 0
        %1904 = vmatprep.subr.bf16.mxu0 0
        %1905 = vmatpush1.bf16.msra.mxu0 0
        %1906 = vmatprep.subr.bf16.mxu0 0
        %1907 = vmatpush1.bf16.msra.mxu0 0
        %1908 = vmatprep.mubr.bf16.mxu0 0
        %1909 = vmatmul.mubr.bf16.gmra.mrb[0].mxu0 %v1853
        %v1910 = vpop.f32.mrb[0].mxu0
        %v1911 = vadd.f32 0.0, %v1910
        %v1912 = vpop.f32.mrb[0].mxu0
        %v1913 = vpop.f32.mrb[0].mxu0
        %v1914 = vadd.f32 0.0, %v1913
        %v1915 = vpop.f32.mrb[0].mxu0
        %1916 = vmatprep.mubr.bf16.mxu0 0
        %1917 = vmatmul.mubr.bf16.gmra.mrb[0].mxu0 %v1856
        %v1918 = vpop.f32.mrb[0].mxu0
        %v1919 = vadd.f32 0.0, %v1918
        %v1920 = vpop.f32.mrb[0].mxu0
        %v1921 = vpop.f32.mrb[0].mxu0
        %v1922 = vadd.f32 0.0, %v1921
        %v1923 = vpop.f32.mrb[0].mxu0
        %1924 = vmatprep.mubr.bf16.mxu0 0
        %1925 = vmatmul.mubr.bf16.gmra.mrb[0].mxu0 %v1859
        %v1926 = vpop.f32.mrb[0].mxu0
        %v1927 = vadd.f32 0.0, %v1926
        %v1928 = vpop.f32.mrb[0].mxu0
        %v1929 = vpop.f32.mrb[0].mxu0
        %v1930 = vadd.f32 0.0, %v1929
        %v1931 = vpop.f32.mrb[0].mxu0
        %1932 = vmatprep.mubr.bf16.mxu0 0
        %1933 = vmatmul.mubr.bf16.gmra.mrb[0].mxu0 %v1862
        %v1934 = vpop.f32.mrb[0].mxu0
        %v1935 = vadd.f32 0.0, %v1934
        %v1936 = vpop.f32.mrb[0].mxu0
        %v1937 = vpop.f32.mrb[0].mxu0
        %v1938 = vadd.f32 0.0, %v1937
        %v1939 = vpop.f32.mrb[0].mxu0
        %1940 = vmatprep.mubr.bf16.mxu0 0
        %1941 = vmatmul.mubr.bf16.gmra.mrb[0].mxu0 %v1865
        %v1942 = vpop.f32.mrb[0].mxu0
        %v1943 = vadd.f32 0.0, %v1942
        %v1944 = vpop.f32.mrb[0].mxu0
        %v1945 = vpop.f32.mrb[0].mxu0
        %v1946 = vadd.f32 0.0, %v1945
        %v1947 = vpop.f32.mrb[0].mxu0
        %1948 = vmatprep.mubr.bf16.mxu0 0
        %1949 = vmatmul.mubr.bf16.gmra.mrb[0].mxu0 %v1868
        %v1950 = vpop.f32.mrb[0].mxu0
        %v1951 = vadd.f32 0.0, %v1950
        %v1952 = vpop.f32.mrb[0].mxu0
        %v1953 = vpop.f32.mrb[0].mxu0
        %v1954 = vadd.f32 0.0, %v1953
        %v1955 = vpop.f32.mrb[0].mxu0
        %1956 = vmatprep.mubr.bf16.mxu0 0
        %1957 = vmatmul.mubr.bf16.gmra.mrb[0].mxu0 %v1871
        %v1958 = vpop.f32.mrb[0].mxu0
        %v1959 = vadd.f32 0.0, %v1958
        %v1960 = vpop.f32.mrb[0].mxu0
        %v1961 = vpop.f32.mrb[0].mxu0
        %v1962 = vadd.f32 0.0, %v1961
        %v1963 = vpop.f32.mrb[0].mxu0
        %1964 = vmatprep.mubr.bf16.mxu0 0
        %1965 = vmatmul.mubr.bf16.gmra.mrb[0].mxu0 %v1874
        %v1966 = vpop.f32.mrb[0].mxu0
        %v1967 = vadd.f32 0.0, %v1966
        %v1968 = vpop.f32.mrb[0].mxu0
        %v1969 = vpop.f32.mrb[0].mxu0
        %v1970 = vadd.f32 0.0, %v1969
        %v1971 = vpop.f32.mrb[0].mxu0
        %1972 = vdwg.mxu0
        %s1973 = scalar_lea.vmem %s6, 1
        %v1974 = vld [vmem:[%s1973] sm:$0x1]
        %v1976 = vlaneseq
        %v1977 = vshrl.u32 %v1976, 7
        %v1978 = vsub.s32 0, %v1977
        %v1979 = vrot.slane %v1974, %v1978
        %v1981 = vmul.f32 %v1911, %v1979
        %v1982 = vmul.f32 %v1914, %v1979
        %v1983 = vmul.f32 %v1919, %v1979
        %v1984 = vmul.f32 %v1922, %v1979
        %v1985 = vmul.f32 %v1927, %v1979
        %v1986 = vmul.f32 %v1930, %v1979
        %v1987 = vmul.f32 %v1935, %v1979
        %v1988 = vmul.f32 %v1938, %v1979
        %v1989 = vmul.f32 %v1943, %v1979
        %v1990 = vmul.f32 %v1946, %v1979
        %v1991 = vmul.f32 %v1951, %v1979
        %v1992 = vmul.f32 %v1954, %v1979
        %v1993 = vmul.f32 %v1959, %v1979
        %v1994 = vmul.f32 %v1962, %v1979
        %v1995 = vmul.f32 %v1967, %v1979
        %v1996 = vmul.f32 %v1970, %v1979
        %s1997 = scalar_lea.vmem %s7, 1
        %v1998 = vld [vmem:[%s1997] sm:$0x1]
        %v2000 = vlaneseq
        %v2001 = vshrl.u32 %v2000, 7
        %v2002 = vsub.s32 0, %v2001
        %v2003 = vrot.slane %v1998, %v2002
        %v2005 = vadd.f32 %v1981, %v2003
        %v2006 = vadd.f32 %v1982, %v2003
        %v2007 = vadd.f32 %v1983, %v2003
        %v2008 = vadd.f32 %v1984, %v2003
        %v2009 = vadd.f32 %v1985, %v2003
        %v2010 = vadd.f32 %v1986, %v2003
        %v2011 = vadd.f32 %v1987, %v2003
        %v2012 = vadd.f32 %v1988, %v2003
        %v2013 = vadd.f32 %v1989, %v2003
        %v2014 = vadd.f32 %v1990, %v2003
        %v2015 = vadd.f32 %v1991, %v2003
        %v2016 = vadd.f32 %v1992, %v2003
        %v2017 = vadd.f32 %v1993, %v2003
        %v2018 = vadd.f32 %v1994, %v2003
        %v2019 = vadd.f32 %v1995, %v2003
        %v2020 = vadd.f32 %v1996, %v2003
        %v2021 = vadd.f32 %v2005, %v716
        %v2022 = vadd.f32 %v2006, %v717
        %v2023 = vadd.f32 %v2007, %v718
        %v2024 = vadd.f32 %v2008, %v719
        %v2025 = vadd.f32 %v2009, %v720
        %v2026 = vadd.f32 %v2010, %v721
        %v2027 = vadd.f32 %v2011, %v722
        %v2028 = vadd.f32 %v2012, %v723
        %v2029 = vadd.f32 %v2013, %v724
        %v2030 = vadd.f32 %v2014, %v725
        %v2031 = vadd.f32 %v2015, %v726
        %v2032 = vadd.f32 %v2016, %v727
        %v2033 = vadd.f32 %v2017, %v728
        %v2034 = vadd.f32 %v2018, %v729
        %v2035 = vadd.f32 %v2019, %v730
        %v2036 = vadd.f32 %v2020, %v731
        %v2037 = vmax.f32 %v2021, 0.0
        %v2038 = vmax.f32 %v2022, 0.0
        %v2039 = vmax.f32 %v2023, 0.0
        %v2040 = vmax.f32 %v2024, 0.0
        %v2041 = vmax.f32 %v2025, 0.0
        %v2042 = vmax.f32 %v2026, 0.0
        %v2043 = vmax.f32 %v2027, 0.0
        %v2044 = vmax.f32 %v2028, 0.0
        %v2045 = vmax.f32 %v2029, 0.0
        %v2046 = vmax.f32 %v2030, 0.0
        %v2047 = vmax.f32 %v2031, 0.0
        %v2048 = vmax.f32 %v2032, 0.0
        %v2049 = vmax.f32 %v2033, 0.0
        %v2050 = vmax.f32 %v2034, 0.0
        %v2051 = vmax.f32 %v2035, 0.0
        %v2052 = vmax.f32 %v2036, 0.0
        %s2053 = scalar_lea.vmem %s5, 96
        %v2054 = vld [vmem:[%s2053] sm:$0xf]
        %v2055 = vld [vmem:[%s2053 + $0x4] sm:$0xf]
        %v2056 = vld [vmem:[%s2053 + $0x8] sm:$0xf]
        %v2057 = vld [vmem:[%s2053 + $0xc] sm:$0xf]
        %v2058 = vld [vmem:[%s2053 + $0x10] sm:$0xf]
        %v2059 = vld [vmem:[%s2053 + $0x14] sm:$0xf]
        %v2060 = vld [vmem:[%s2053 + $0x18] sm:$0xf]
        %v2061 = vld [vmem:[%s2053 + $0x1c] sm:$0xf]
        %v2062 = vld [vmem:[%s2053 + $0x20] sm:$0xf]
        %v2063 = vld [vmem:[%s2053 + $0x24] sm:$0xf]
        %v2064 = vld [vmem:[%s2053 + $0x28] sm:$0xf]
        %v2065 = vld [vmem:[%s2053 + $0x2c] sm:$0xf]
        %v2067 = vrot.slane %v2052, 7
        %v2084 = vrot.slane %v2037, 7
        %v2085 = vrot.slane %v2038, 7
        %v2086 = vsel %vm375, %v2084, %v2085
        %v2087 = vrot.slane %v2039, 7
        %v2088 = vsel %vm375, %v2085, %v2087
        %v2089 = vrot.slane %v2040, 7
        %v2090 = vsel %vm375, %v2087, %v2089
        %v2091 = vrot.slane %v2041, 7
        %v2092 = vsel %vm375, %v2089, %v2091
        %v2093 = vrot.slane %v2042, 7
        %v2094 = vsel %vm375, %v2091, %v2093
        %v2095 = vrot.slane %v2043, 7
        %v2096 = vsel %vm375, %v2093, %v2095
        %v2097 = vrot.slane %v2044, 7
        %v2098 = vsel %vm375, %v2095, %v2097
        %v2099 = vrot.slane %v2045, 7
        %v2100 = vsel %vm375, %v2097, %v2099
        %v2101 = vrot.slane %v2046, 7
        %v2102 = vsel %vm375, %v2099, %v2101
        %v2103 = vrot.slane %v2047, 7
        %v2104 = vsel %vm375, %v2101, %v2103
        %v2105 = vrot.slane %v2048, 7
        %v2106 = vsel %vm375, %v2103, %v2105
        %v2107 = vrot.slane %v2049, 7
        %v2108 = vsel %vm375, %v2105, %v2107
        %v2109 = vrot.slane %v2050, 7
        %v2110 = vsel %vm375, %v2107, %v2109
        %v2111 = vrot.slane %v2051, 7
        %v2112 = vsel %vm375, %v2109, %v2111
        %v2113 = vsel %vm375, %v2111, %v2067
        %v2130 = vsel %vm375, %v2067, %v2084
        %v2131 = vsel %vm941, 0.0, %v2130
        %v2132 = vsel %vm942, 0.0, %v2086
        %v2133 = vsel %vm943, 0.0, %v2088
        %v2134 = vsel %vm944, 0.0, %v2090
        %v2135 = vsel %vm945, 0.0, %v2092
        %v2136 = vsel %vm946, 0.0, %v2094
        %v2137 = vsel %vm947, 0.0, %v2096
        %v2138 = vsel %vm948, 0.0, %v2098
        %v2139 = vsel %vm949, 0.0, %v2100
        %v2140 = vsel %vm950, 0.0, %v2102
        %v2141 = vsel %vm951, 0.0, %v2104
        %v2142 = vsel %vm952, 0.0, %v2106
        %v2143 = vsel %vm953, 0.0, %v2108
        %v2144 = vsel %vm954, 0.0, %v2110
        %v2145 = vsel %vm955, 0.0, %v2112
        %v2146 = vsel %vm956, 0.0, %v2113
        %v2147 = vrot.slane %v2037, 1
        %v2148 = vrot.slane %v2038, 1
        %v2149 = vsel %vm1066, %v2147, %v2148
        %v2150 = vrot.slane %v2039, 1
        %v2151 = vsel %vm1066, %v2148, %v2150
        %v2152 = vrot.slane %v2040, 1
        %v2153 = vsel %vm1066, %v2150, %v2152
        %v2154 = vrot.slane %v2041, 1
        %v2155 = vsel %vm1066, %v2152, %v2154
        %v2156 = vrot.slane %v2042, 1
        %v2157 = vsel %vm1066, %v2154, %v2156
        %v2158 = vrot.slane %v2043, 1
        %v2159 = vsel %vm1066, %v2156, %v2158
        %v2160 = vrot.slane %v2044, 1
        %v2161 = vsel %vm1066, %v2158, %v2160
        %v2162 = vrot.slane %v2045, 1
        %v2163 = vsel %vm1066, %v2160, %v2162
        %v2164 = vrot.slane %v2046, 1
        %v2165 = vsel %vm1066, %v2162, %v2164
        %v2166 = vrot.slane %v2047, 1
        %v2167 = vsel %vm1066, %v2164, %v2166
        %v2168 = vrot.slane %v2048, 1
        %v2169 = vsel %vm1066, %v2166, %v2168
        %v2170 = vrot.slane %v2049, 1
        %v2171 = vsel %vm1066, %v2168, %v2170
        %v2172 = vrot.slane %v2050, 1
        %v2173 = vsel %vm1066, %v2170, %v2172
        %v2174 = vrot.slane %v2051, 1
        %v2175 = vsel %vm1066, %v2172, %v2174
        %v2176 = vrot.slane %v2052, 1
        %v2177 = vsel %vm1066, %v2174, %v2176
        %v2195 = vsel %vm1066, %v2176, %v2147
        %v2196 = vsel %vm957, 0.0, %v2149
        %v2197 = vsel %vm958, 0.0, %v2151
        %v2198 = vsel %vm959, 0.0, %v2153
        %v2199 = vsel %vm960, 0.0, %v2155
        %v2200 = vsel %vm961, 0.0, %v2157
        %v2201 = vsel %vm962, 0.0, %v2159
        %v2202 = vsel %vm963, 0.0, %v2161
        %v2203 = vsel %vm964, 0.0, %v2163
        %v2204 = vsel %vm965, 0.0, %v2165
        %v2205 = vsel %vm966, 0.0, %v2167
        %v2206 = vsel %vm967, 0.0, %v2169
        %v2207 = vsel %vm968, 0.0, %v2171
        %v2208 = vsel %vm969, 0.0, %v2173
        %v2209 = vsel %vm970, 0.0, %v2175
        %v2210 = vsel %vm971, 0.0, %v2177
        %v2211 = vsel %vm972, 0.0, %v2195
        %2212 = vrot.lane.b32.xlu0 %v2037, 32
        %v2213 = vpop.permute.xlu0 %2212
        %2214 = vrot.lane.b32.xlu0 %v2038, 32
        %v2215 = vpop.permute.xlu0 %2214
        %2216 = vrot.lane.b32.xlu0 %v2039, 32
        %v2217 = vpop.permute.xlu0 %2216
        %2218 = vrot.lane.b32.xlu0 %v2040, 32
        %v2219 = vpop.permute.xlu0 %2218
        %2220 = vrot.lane.b32.xlu0 %v2041, 32
        %v2221 = vpop.permute.xlu0 %2220
        %2222 = vrot.lane.b32.xlu0 %v2042, 32
        %v2223 = vpop.permute.xlu0 %2222
        %2224 = vrot.lane.b32.xlu0 %v2043, 32
        %v2225 = vpop.permute.xlu0 %2224
        %2226 = vrot.lane.b32.xlu0 %v2044, 32
        %v2227 = vpop.permute.xlu0 %2226
        %2228 = vrot.lane.b32.xlu0 %v2045, 32
        %v2229 = vpop.permute.xlu0 %2228
        %2230 = vrot.lane.b32.xlu0 %v2046, 32
        %v2231 = vpop.permute.xlu0 %2230
        %2232 = vrot.lane.b32.xlu0 %v2047, 32
        %v2233 = vpop.permute.xlu0 %2232
        %2234 = vrot.lane.b32.xlu0 %v2048, 32
        %v2235 = vpop.permute.xlu0 %2234
        %2236 = vrot.lane.b32.xlu0 %v2049, 32
        %v2237 = vpop.permute.xlu0 %2236
        %2238 = vrot.lane.b32.xlu0 %v2050, 32
        %v2239 = vpop.permute.xlu0 %2238
        %2240 = vrot.lane.b32.xlu0 %v2051, 32
        %v2241 = vpop.permute.xlu0 %2240
        %2242 = vrot.lane.b32.xlu0 %v2052, 32
        %v2243 = vpop.permute.xlu0 %2242
        %2276 = vrot.lane.b32.xlu0 %v2196, 64
        %v2277 = vpop.permute.xlu0 %2276
        %2278 = vrot.lane.b32.xlu0 %v2197, 64
        %v2279 = vpop.permute.xlu0 %2278
        %2280 = vrot.lane.b32.xlu0 %v2198, 64
        %v2281 = vpop.permute.xlu0 %2280
        %2282 = vrot.lane.b32.xlu0 %v2199, 64
        %v2283 = vpop.permute.xlu0 %2282
        %2284 = vrot.lane.b32.xlu0 %v2200, 64
        %v2285 = vpop.permute.xlu0 %2284
        %2286 = vrot.lane.b32.xlu0 %v2201, 64
        %v2287 = vpop.permute.xlu0 %2286
        %2288 = vrot.lane.b32.xlu0 %v2202, 64
        %v2289 = vpop.permute.xlu0 %2288
        %2290 = vrot.lane.b32.xlu0 %v2203, 64
        %v2291 = vpop.permute.xlu0 %2290
        %2292 = vrot.lane.b32.xlu0 %v2204, 64
        %v2293 = vpop.permute.xlu0 %2292
        %2294 = vrot.lane.b32.xlu0 %v2205, 64
        %v2295 = vpop.permute.xlu0 %2294
        %2296 = vrot.lane.b32.xlu0 %v2206, 64
        %v2297 = vpop.permute.xlu0 %2296
        %2298 = vrot.lane.b32.xlu0 %v2207, 64
        %v2299 = vpop.permute.xlu0 %2298
        %2300 = vrot.lane.b32.xlu0 %v2208, 64
        %v2301 = vpop.permute.xlu0 %2300
        %2302 = vrot.lane.b32.xlu0 %v2209, 64
        %v2303 = vpop.permute.xlu0 %2302
        %2304 = vrot.lane.b32.xlu0 %v2210, 64
        %v2305 = vpop.permute.xlu0 %2304
        %2306 = vrot.lane.b32.xlu0 %v2211, 64
        %v2307 = vpop.permute.xlu0 %2306
        %v2324 = vsel %vm548, %v2131, %v2213
        %v2325 = vsel %vm548, %v2132, %v2215
        %v2326 = vsel %vm548, %v2133, %v2217
        %v2327 = vsel %vm548, %v2134, %v2219
        %v2328 = vsel %vm548, %v2135, %v2221
        %v2329 = vsel %vm548, %v2136, %v2223
        %v2330 = vsel %vm548, %v2137, %v2225
        %v2331 = vsel %vm548, %v2138, %v2227
        %v2332 = vsel %vm548, %v2139, %v2229
        %v2333 = vsel %vm548, %v2140, %v2231
        %v2334 = vsel %vm548, %v2141, %v2233
        %v2335 = vsel %vm548, %v2142, %v2235
        %v2336 = vsel %vm548, %v2143, %v2237
        %v2337 = vsel %vm548, %v2144, %v2239
        %v2338 = vsel %vm548, %v2145, %v2241
        %v2339 = vsel %vm548, %v2146, %v2243
        %v2340 = vsel %vm1260, %v2324, %v2277
        %v2341 = vsel %vm1260, %v2325, %v2279
        %v2342 = vsel %vm1260, %v2326, %v2281
        %v2343 = vsel %vm1260, %v2327, %v2283
        %v2344 = vsel %vm1260, %v2328, %v2285
        %v2345 = vsel %vm1260, %v2329, %v2287
        %v2346 = vsel %vm1260, %v2330, %v2289
        %v2347 = vsel %vm1260, %v2331, %v2291
        %v2348 = vsel %vm1260, %v2332, %v2293
        %v2349 = vsel %vm1260, %v2333, %v2295
        %v2350 = vsel %vm1260, %v2334, %v2297
        %v2351 = vsel %vm1260, %v2335, %v2299
        %v2352 = vsel %vm1260, %v2336, %v2301
        %v2353 = vsel %vm1260, %v2337, %v2303
        %v2354 = vsel %vm1260, %v2338, %v2305
        %v2355 = vsel %vm1260, %v2339, %v2307
        %v2356 = vpack.c.bf16 %v2341, %v2340
        %v2357 = vpack.c.bf16 %v2343, %v2342
        %v2358 = vpack.c.bf16 %v2345, %v2344
        %v2359 = vpack.c.bf16 %v2347, %v2346
        %v2360 = vpack.c.bf16 %v2349, %v2348
        %v2361 = vpack.c.bf16 %v2351, %v2350
        %v2362 = vpack.c.bf16 %v2353, %v2352
        %v2363 = vpack.c.bf16 %v2355, %v2354
        %v2376 = vunpack.c.l.b16 %v2054
        %v2377 = vunpack.c.l.b16 %v2055
        %v2378 = vunpack.c.l.b16 %v2056
        %v2379 = vunpack.c.l.b16 %v2057
        %v2380 = vunpack.c.l.b16 %v2058
        %v2381 = vunpack.c.l.b16 %v2059
        %v2382 = vunpack.c.l.b16 %v2060
        %v2383 = vunpack.c.l.b16 %v2061
        %v2384 = vunpack.c.l.b16 %v2062
        %v2385 = vunpack.c.l.b16 %v2063
        %v2386 = vunpack.c.l.b16 %v2064
        %v2387 = vunpack.c.l.b16 %v2065
        %v2388 = vpack.c.b16 %v2377, %v2376
        %v2389 = vpack.c.b16 %v2379, %v2378
        %v2390 = vpack.c.b16 %v2381, %v2380
        %v2391 = vpack.c.b16 %v2383, %v2382
        %v2392 = vpack.c.b16 %v2385, %v2384
        %v2393 = vpack.c.b16 %v2387, %v2386
        %v2401 = vsel %vm1321, %v2356, 0
        %v2404 = vsel %vm1321, %v2357, 0
        %v2407 = vsel %vm1321, %v2358, 0
        %v2410 = vsel %vm1321, %v2359, 0
        %v2413 = vsel %vm1321, %v2360, 0
        %v2416 = vsel %vm1321, %v2361, 0
        %v2419 = vsel %vm1321, %v2362, 0
        %v2422 = vsel %vm1321, %v2363, 0
        %2424 = vmatprep.subr.bf16.mxu0 0
        %2425 = vmatpush1.bf16.msra.mxu0 %v2388
        %2426 = vmatprep.subr.bf16.mxu0 0
        %2427 = vmatpush1.bf16.msra.mxu0 %v2389
        %2428 = vmatprep.subr.bf16.mxu0 0
        %2429 = vmatpush1.bf16.msra.mxu0 %v2390
        %2430 = vmatprep.subr.bf16.mxu0 0
        %2431 = vmatpush1.bf16.msra.mxu0 %v2391
        %2432 = vmatprep.subr.bf16.mxu0 0
        %2433 = vmatpush1.bf16.msra.mxu0 %v2392
        %2434 = vmatprep.subr.bf16.mxu0 0
        %2435 = vmatpush1.bf16.msra.mxu0 %v2393
        %2436 = vmatprep.subr.bf16.mxu0 0
        %2437 = vmatpush1.bf16.msra.mxu0 0
        %2438 = vmatprep.subr.bf16.mxu0 0
        %2439 = vmatpush1.bf16.msra.mxu0 0
        %2440 = vmatprep.subr.bf16.mxu0 0
        %2441 = vmatpush1.bf16.msra.mxu0 0
        %2442 = vmatprep.subr.bf16.mxu0 0
        %2443 = vmatpush1.bf16.msra.mxu0 0
        %2444 = vmatprep.subr.bf16.mxu0 0
        %2445 = vmatpush1.bf16.msra.mxu0 0
        %2446 = vmatprep.subr.bf16.mxu0 0
        %2447 = vmatpush1.bf16.msra.mxu0 0
        %2448 = vmatprep.subr.bf16.mxu0 0
        %2449 = vmatpush1.bf16.msra.mxu0 0
        %2450 = vmatprep.subr.bf16.mxu0 0
        %2451 = vmatpush1.bf16.msra.mxu0 0
        %2452 = vmatprep.subr.bf16.mxu0 0
        %2453 = vmatpush1.bf16.msra.mxu0 0
        %2454 = vmatprep.subr.bf16.mxu0 0
        %2455 = vmatpush1.bf16.msra.mxu0 0
        %2456 = vmatprep.mubr.bf16.mxu0 0
        %2457 = vmatmul.mubr.bf16.gmra.mrb[0].mxu0 %v2401
        %v2458 = vpop.f32.mrb[0].mxu0
        %v2459 = vadd.f32 0.0, %v2458
        %v2460 = vpop.f32.mrb[0].mxu0
        %v2461 = vpop.f32.mrb[0].mxu0
        %v2462 = vadd.f32 0.0, %v2461
        %v2463 = vpop.f32.mrb[0].mxu0
        %2464 = vmatprep.mubr.bf16.mxu0 0
        %2465 = vmatmul.mubr.bf16.gmra.mrb[0].mxu0 %v2404
        %v2466 = vpop.f32.mrb[0].mxu0
        %v2467 = vadd.f32 0.0, %v2466
        %v2468 = vpop.f32.mrb[0].mxu0
        %v2469 = vpop.f32.mrb[0].mxu0
        %v2470 = vadd.f32 0.0, %v2469
        %v2471 = vpop.f32.mrb[0].mxu0
        %2472 = vmatprep.mubr.bf16.mxu0 0
        %2473 = vmatmul.mubr.bf16.gmra.mrb[0].mxu0 %v2407
        %v2474 = vpop.f32.mrb[0].mxu0
        %v2475 = vadd.f32 0.0, %v2474
        %v2476 = vpop.f32.mrb[0].mxu0
        %v2477 = vpop.f32.mrb[0].mxu0
        %v2478 = vadd.f32 0.0, %v2477
        %v2479 = vpop.f32.mrb[0].mxu0
        %2480 = vmatprep.mubr.bf16.mxu0 0
        %2481 = vmatmul.mubr.bf16.gmra.mrb[0].mxu0 %v2410
        %v2482 = vpop.f32.mrb[0].mxu0
        %v2483 = vadd.f32 0.0, %v2482
        %v2484 = vpop.f32.mrb[0].mxu0
        %v2485 = vpop.f32.mrb[0].mxu0
        %v2486 = vadd.f32 0.0, %v2485
        %v2487 = vpop.f32.mrb[0].mxu0
        %2488 = vmatprep.mubr.bf16.mxu0 0
        %2489 = vmatmul.mubr.bf16.gmra.mrb[0].mxu0 %v2413
        %v2490 = vpop.f32.mrb[0].mxu0
        %v2491 = vadd.f32 0.0, %v2490
        %v2492 = vpop.f32.mrb[0].mxu0
        %v2493 = vpop.f32.mrb[0].mxu0
        %v2494 = vadd.f32 0.0, %v2493
        %v2495 = vpop.f32.mrb[0].mxu0
        %2496 = vmatprep.mubr.bf16.mxu0 0
        %2497 = vmatmul.mubr.bf16.gmra.mrb[0].mxu0 %v2416
        %v2498 = vpop.f32.mrb[0].mxu0
        %v2499 = vadd.f32 0.0, %v2498
        %v2500 = vpop.f32.mrb[0].mxu0
        %v2501 = vpop.f32.mrb[0].mxu0
        %v2502 = vadd.f32 0.0, %v2501
        %v2503 = vpop.f32.mrb[0].mxu0
        %2504 = vmatprep.mubr.bf16.mxu0 0
        %2505 = vmatmul.mubr.bf16.gmra.mrb[0].mxu0 %v2419
        %v2506 = vpop.f32.mrb[0].mxu0
        %v2507 = vadd.f32 0.0, %v2506
        %v2508 = vpop.f32.mrb[0].mxu0
        %v2509 = vpop.f32.mrb[0].mxu0
        %v2510 = vadd.f32 0.0, %v2509
        %v2511 = vpop.f32.mrb[0].mxu0
        %2512 = vmatprep.mubr.bf16.mxu0 0
        %2513 = vmatmul.mubr.bf16.gmra.mrb[0].mxu0 %v2422
        %v2514 = vpop.f32.mrb[0].mxu0
        %v2515 = vadd.f32 0.0, %v2514
        %v2516 = vpop.f32.mrb[0].mxu0
        %v2517 = vpop.f32.mrb[0].mxu0
        %v2518 = vadd.f32 0.0, %v2517
        %v2519 = vpop.f32.mrb[0].mxu0
        %2520 = vdwg.mxu0
        %s2521 = scalar_lea.vmem %s6, 2
        %v2522 = vld [vmem:[%s2521] sm:$0x1]
        %v2524 = vlaneseq
        %v2525 = vshrl.u32 %v2524, 7
        %v2526 = vsub.s32 0, %v2525
        %v2527 = vrot.slane %v2522, %v2526
        %v2529 = vmul.f32 %v2459, %v2527
        %v2530 = vmul.f32 %v2462, %v2527
        %v2531 = vmul.f32 %v2467, %v2527
        %v2532 = vmul.f32 %v2470, %v2527
        %v2533 = vmul.f32 %v2475, %v2527
        %v2534 = vmul.f32 %v2478, %v2527
        %v2535 = vmul.f32 %v2483, %v2527
        %v2536 = vmul.f32 %v2486, %v2527
        %v2537 = vmul.f32 %v2491, %v2527
        %v2538 = vmul.f32 %v2494, %v2527
        %v2539 = vmul.f32 %v2499, %v2527
        %v2540 = vmul.f32 %v2502, %v2527
        %v2541 = vmul.f32 %v2507, %v2527
        %v2542 = vmul.f32 %v2510, %v2527
        %v2543 = vmul.f32 %v2515, %v2527
        %v2544 = vmul.f32 %v2518, %v2527
        %s2545 = scalar_lea.vmem %s7, 2
        %v2546 = vld [vmem:[%s2545] sm:$0x1]
        %v2548 = vlaneseq
        %v2549 = vshrl.u32 %v2548, 7
        %v2550 = vsub.s32 0, %v2549
        %v2551 = vrot.slane %v2546, %v2550
        %v2553 = vadd.f32 %v2529, %v2551
        %v2554 = vadd.f32 %v2530, %v2551
        %v2555 = vadd.f32 %v2531, %v2551
        %v2556 = vadd.f32 %v2532, %v2551
        %v2557 = vadd.f32 %v2533, %v2551
        %v2558 = vadd.f32 %v2534, %v2551
        %v2559 = vadd.f32 %v2535, %v2551
        %v2560 = vadd.f32 %v2536, %v2551
        %v2561 = vadd.f32 %v2537, %v2551
        %v2562 = vadd.f32 %v2538, %v2551
        %v2563 = vadd.f32 %v2539, %v2551
        %v2564 = vadd.f32 %v2540, %v2551
        %v2565 = vadd.f32 %v2541, %v2551
        %v2566 = vadd.f32 %v2542, %v2551
        %v2567 = vadd.f32 %v2543, %v2551
        %v2568 = vadd.f32 %v2544, %v2551
        %v2569 = vmax.f32 %v2553, 0.0
        %v2570 = vmax.f32 %v2554, 0.0
        %v2571 = vmax.f32 %v2555, 0.0
        %v2572 = vmax.f32 %v2556, 0.0
        %v2573 = vmax.f32 %v2557, 0.0
        %v2574 = vmax.f32 %v2558, 0.0
        %v2575 = vmax.f32 %v2559, 0.0
        %v2576 = vmax.f32 %v2560, 0.0
        %v2577 = vmax.f32 %v2561, 0.0
        %v2578 = vmax.f32 %v2562, 0.0
        %v2579 = vmax.f32 %v2563, 0.0
        %v2580 = vmax.f32 %v2564, 0.0
        %v2581 = vmax.f32 %v2565, 0.0
        %v2582 = vmax.f32 %v2566, 0.0
        %v2583 = vmax.f32 %v2567, 0.0
        %v2584 = vmax.f32 %v2568, 0.0
        %s2585 = scalar_lea.vmem %s5, 144
        %v2586 = vld [vmem:[%s2585] sm:$0xf]
        %v2587 = vld [vmem:[%s2585 + $0x4] sm:$0xf]
        %v2588 = vld [vmem:[%s2585 + $0x8] sm:$0xf]
        %v2589 = vld [vmem:[%s2585 + $0xc] sm:$0xf]
        %v2590 = vld [vmem:[%s2585 + $0x10] sm:$0xf]
        %v2591 = vld [vmem:[%s2585 + $0x14] sm:$0xf]
        %v2592 = vld [vmem:[%s2585 + $0x18] sm:$0xf]
        %v2593 = vld [vmem:[%s2585 + $0x1c] sm:$0xf]
        %v2594 = vld [vmem:[%s2585 + $0x20] sm:$0xf]
        %v2595 = vld [vmem:[%s2585 + $0x24] sm:$0xf]
        %v2596 = vld [vmem:[%s2585 + $0x28] sm:$0xf]
        %v2597 = vld [vmem:[%s2585 + $0x2c] sm:$0xf]
        %v2599 = vrot.slane %v2584, 7
        %v2616 = vrot.slane %v2569, 7
        %v2617 = vrot.slane %v2570, 7
        %v2618 = vsel %vm375, %v2616, %v2617
        %v2619 = vrot.slane %v2571, 7
        %v2620 = vsel %vm375, %v2617, %v2619
        %v2621 = vrot.slane %v2572, 7
        %v2622 = vsel %vm375, %v2619, %v2621
        %v2623 = vrot.slane %v2573, 7
        %v2624 = vsel %vm375, %v2621, %v2623
        %v2625 = vrot.slane %v2574, 7
        %v2626 = vsel %vm375, %v2623, %v2625
        %v2627 = vrot.slane %v2575, 7
        %v2628 = vsel %vm375, %v2625, %v2627
        %v2629 = vrot.slane %v2576, 7
        %v2630 = vsel %vm375, %v2627, %v2629
        %v2631 = vrot.slane %v2577, 7
        %v2632 = vsel %vm375, %v2629, %v2631
        %v2633 = vrot.slane %v2578, 7
        %v2634 = vsel %vm375, %v2631, %v2633
        %v2635 = vrot.slane %v2579, 7
        %v2636 = vsel %vm375, %v2633, %v2635
        %v2637 = vrot.slane %v2580, 7
        %v2638 = vsel %vm375, %v2635, %v2637
        %v2639 = vrot.slane %v2581, 7
        %v2640 = vsel %vm375, %v2637, %v2639
        %v2641 = vrot.slane %v2582, 7
        %v2642 = vsel %vm375, %v2639, %v2641
        %v2643 = vrot.slane %v2583, 7
        %v2644 = vsel %vm375, %v2641, %v2643
        %v2645 = vsel %vm375, %v2643, %v2599
        %v2662 = vsel %vm375, %v2599, %v2616
        %v2663 = vsel %vm941, 0.0, %v2662
        %v2664 = vsel %vm942, 0.0, %v2618
        %v2665 = vsel %vm943, 0.0, %v2620
        %v2666 = vsel %vm944, 0.0, %v2622
        %v2667 = vsel %vm945, 0.0, %v2624
        %v2668 = vsel %vm946, 0.0, %v2626
        %v2669 = vsel %vm947, 0.0, %v2628
        %v2670 = vsel %vm948, 0.0, %v2630
        %v2671 = vsel %vm949, 0.0, %v2632
        %v2672 = vsel %vm950, 0.0, %v2634
        %v2673 = vsel %vm951, 0.0, %v2636
        %v2674 = vsel %vm952, 0.0, %v2638
        %v2675 = vsel %vm953, 0.0, %v2640
        %v2676 = vsel %vm954, 0.0, %v2642
        %v2677 = vsel %vm955, 0.0, %v2644
        %v2678 = vsel %vm956, 0.0, %v2645
        %v2679 = vrot.slane %v2569, 1
        %v2680 = vrot.slane %v2570, 1
        %v2681 = vsel %vm1066, %v2679, %v2680
        %v2682 = vrot.slane %v2571, 1
        %v2683 = vsel %vm1066, %v2680, %v2682
        %v2684 = vrot.slane %v2572, 1
        %v2685 = vsel %vm1066, %v2682, %v2684
        %v2686 = vrot.slane %v2573, 1
        %v2687 = vsel %vm1066, %v2684, %v2686
        %v2688 = vrot.slane %v2574, 1
        %v2689 = vsel %vm1066, %v2686, %v2688
        %v2690 = vrot.slane %v2575, 1
        %v2691 = vsel %vm1066, %v2688, %v2690
        %v2692 = vrot.slane %v2576, 1
        %v2693 = vsel %vm1066, %v2690, %v2692
        %v2694 = vrot.slane %v2577, 1
        %v2695 = vsel %vm1066, %v2692, %v2694
        %v2696 = vrot.slane %v2578, 1
        %v2697 = vsel %vm1066, %v2694, %v2696
        %v2698 = vrot.slane %v2579, 1
        %v2699 = vsel %vm1066, %v2696, %v2698
        %v2700 = vrot.slane %v2580, 1
        %v2701 = vsel %vm1066, %v2698, %v2700
        %v2702 = vrot.slane %v2581, 1
        %v2703 = vsel %vm1066, %v2700, %v2702
        %v2704 = vrot.slane %v2582, 1
        %v2705 = vsel %vm1066, %v2702, %v2704
        %v2706 = vrot.slane %v2583, 1
        %v2707 = vsel %vm1066, %v2704, %v2706
        %v2708 = vrot.slane %v2584, 1
        %v2709 = vsel %vm1066, %v2706, %v2708
        %v2727 = vsel %vm1066, %v2708, %v2679
        %v2728 = vsel %vm957, 0.0, %v2681
        %v2729 = vsel %vm958, 0.0, %v2683
        %v2730 = vsel %vm959, 0.0, %v2685
        %v2731 = vsel %vm960, 0.0, %v2687
        %v2732 = vsel %vm961, 0.0, %v2689
        %v2733 = vsel %vm962, 0.0, %v2691
        %v2734 = vsel %vm963, 0.0, %v2693
        %v2735 = vsel %vm964, 0.0, %v2695
        %v2736 = vsel %vm965, 0.0, %v2697
        %v2737 = vsel %vm966, 0.0, %v2699
        %v2738 = vsel %vm967, 0.0, %v2701
        %v2739 = vsel %vm968, 0.0, %v2703
        %v2740 = vsel %vm969, 0.0, %v2705
        %v2741 = vsel %vm970, 0.0, %v2707
        %v2742 = vsel %vm971, 0.0, %v2709
        %v2743 = vsel %vm972, 0.0, %v2727
        %2744 = vrot.lane.b32.xlu0 %v2569, 32
        %v2745 = vpop.permute.xlu0 %2744
        %2746 = vrot.lane.b32.xlu0 %v2570, 32
        %v2747 = vpop.permute.xlu0 %2746
        %2748 = vrot.lane.b32.xlu0 %v2571, 32
        %v2749 = vpop.permute.xlu0 %2748
        %2750 = vrot.lane.b32.xlu0 %v2572, 32
        %v2751 = vpop.permute.xlu0 %2750
        %2752 = vrot.lane.b32.xlu0 %v2573, 32
        %v2753 = vpop.permute.xlu0 %2752
        %2754 = vrot.lane.b32.xlu0 %v2574, 32
        %v2755 = vpop.permute.xlu0 %2754
        %2756 = vrot.lane.b32.xlu0 %v2575, 32
        %v2757 = vpop.permute.xlu0 %2756
        %2758 = vrot.lane.b32.xlu0 %v2576, 32
        %v2759 = vpop.permute.xlu0 %2758
        %2760 = vrot.lane.b32.xlu0 %v2577, 32
        %v2761 = vpop.permute.xlu0 %2760
        %2762 = vrot.lane.b32.xlu0 %v2578, 32
        %v2763 = vpop.permute.xlu0 %2762
        %2764 = vrot.lane.b32.xlu0 %v2579, 32
        %v2765 = vpop.permute.xlu0 %2764
        %2766 = vrot.lane.b32.xlu0 %v2580, 32
        %v2767 = vpop.permute.xlu0 %2766
        %2768 = vrot.lane.b32.xlu0 %v2581, 32
        %v2769 = vpop.permute.xlu0 %2768
        %2770 = vrot.lane.b32.xlu0 %v2582, 32
        %v2771 = vpop.permute.xlu0 %2770
        %2772 = vrot.lane.b32.xlu0 %v2583, 32
        %v2773 = vpop.permute.xlu0 %2772
        %2774 = vrot.lane.b32.xlu0 %v2584, 32
        %v2775 = vpop.permute.xlu0 %2774
        %2808 = vrot.lane.b32.xlu0 %v2728, 64
        %v2809 = vpop.permute.xlu0 %2808
        %2810 = vrot.lane.b32.xlu0 %v2729, 64
        %v2811 = vpop.permute.xlu0 %2810
        %2812 = vrot.lane.b32.xlu0 %v2730, 64
        %v2813 = vpop.permute.xlu0 %2812
        %2814 = vrot.lane.b32.xlu0 %v2731, 64
        %v2815 = vpop.permute.xlu0 %2814
        %2816 = vrot.lane.b32.xlu0 %v2732, 64
        %v2817 = vpop.permute.xlu0 %2816
        %2818 = vrot.lane.b32.xlu0 %v2733, 64
        %v2819 = vpop.permute.xlu0 %2818
        %2820 = vrot.lane.b32.xlu0 %v2734, 64
        %v2821 = vpop.permute.xlu0 %2820
        %2822 = vrot.lane.b32.xlu0 %v2735, 64
        %v2823 = vpop.permute.xlu0 %2822
        %2824 = vrot.lane.b32.xlu0 %v2736, 64
        %v2825 = vpop.permute.xlu0 %2824
        %2826 = vrot.lane.b32.xlu0 %v2737, 64
        %v2827 = vpop.permute.xlu0 %2826
        %2828 = vrot.lane.b32.xlu0 %v2738, 64
        %v2829 = vpop.permute.xlu0 %2828
        %2830 = vrot.lane.b32.xlu0 %v2739, 64
        %v2831 = vpop.permute.xlu0 %2830
        %2832 = vrot.lane.b32.xlu0 %v2740, 64
        %v2833 = vpop.permute.xlu0 %2832
        %2834 = vrot.lane.b32.xlu0 %v2741, 64
        %v2835 = vpop.permute.xlu0 %2834
        %2836 = vrot.lane.b32.xlu0 %v2742, 64
        %v2837 = vpop.permute.xlu0 %2836
        %2838 = vrot.lane.b32.xlu0 %v2743, 64
        %v2839 = vpop.permute.xlu0 %2838
        %v2856 = vsel %vm548, %v2663, %v2745
        %v2857 = vsel %vm548, %v2664, %v2747
        %v2858 = vsel %vm548, %v2665, %v2749
        %v2859 = vsel %vm548, %v2666, %v2751
        %v2860 = vsel %vm548, %v2667, %v2753
        %v2861 = vsel %vm548, %v2668, %v2755
        %v2862 = vsel %vm548, %v2669, %v2757
        %v2863 = vsel %vm548, %v2670, %v2759
        %v2864 = vsel %vm548, %v2671, %v2761
        %v2865 = vsel %vm548, %v2672, %v2763
        %v2866 = vsel %vm548, %v2673, %v2765
        %v2867 = vsel %vm548, %v2674, %v2767
        %v2868 = vsel %vm548, %v2675, %v2769
        %v2869 = vsel %vm548, %v2676, %v2771
        %v2870 = vsel %vm548, %v2677, %v2773
        %v2871 = vsel %vm548, %v2678, %v2775
        %v2872 = vsel %vm1260, %v2856, %v2809
        %v2873 = vsel %vm1260, %v2857, %v2811
        %v2874 = vsel %vm1260, %v2858, %v2813
        %v2875 = vsel %vm1260, %v2859, %v2815
        %v2876 = vsel %vm1260, %v2860, %v2817
        %v2877 = vsel %vm1260, %v2861, %v2819
        %v2878 = vsel %vm1260, %v2862, %v2821
        %v2879 = vsel %vm1260, %v2863, %v2823
        %v2880 = vsel %vm1260, %v2864, %v2825
        %v2881 = vsel %vm1260, %v2865, %v2827
        %v2882 = vsel %vm1260, %v2866, %v2829
        %v2883 = vsel %vm1260, %v2867, %v2831
        %v2884 = vsel %vm1260, %v2868, %v2833
        %v2885 = vsel %vm1260, %v2869, %v2835
        %v2886 = vsel %vm1260, %v2870, %v2837
        %v2887 = vsel %vm1260, %v2871, %v2839
        %v2888 = vpack.c.bf16 %v2873, %v2872
        %v2889 = vpack.c.bf16 %v2875, %v2874
        %v2890 = vpack.c.bf16 %v2877, %v2876
        %v2891 = vpack.c.bf16 %v2879, %v2878
        %v2892 = vpack.c.bf16 %v2881, %v2880
        %v2893 = vpack.c.bf16 %v2883, %v2882
        %v2894 = vpack.c.bf16 %v2885, %v2884
        %v2895 = vpack.c.bf16 %v2887, %v2886
        %v2908 = vunpack.c.l.b16 %v2586
        %v2909 = vunpack.c.l.b16 %v2587
        %v2910 = vunpack.c.l.b16 %v2588
        %v2911 = vunpack.c.l.b16 %v2589
        %v2912 = vunpack.c.l.b16 %v2590
        %v2913 = vunpack.c.l.b16 %v2591
        %v2914 = vunpack.c.l.b16 %v2592
        %v2915 = vunpack.c.l.b16 %v2593
        %v2916 = vunpack.c.l.b16 %v2594
        %v2917 = vunpack.c.l.b16 %v2595
        %v2918 = vunpack.c.l.b16 %v2596
        %v2919 = vunpack.c.l.b16 %v2597
        %v2920 = vpack.c.b16 %v2909, %v2908
        %v2921 = vpack.c.b16 %v2911, %v2910
        %v2922 = vpack.c.b16 %v2913, %v2912
        %v2923 = vpack.c.b16 %v2915, %v2914
        %v2924 = vpack.c.b16 %v2917, %v2916
        %v2925 = vpack.c.b16 %v2919, %v2918
        %v2933 = vsel %vm1321, %v2888, 0
        %v2936 = vsel %vm1321, %v2889, 0
        %v2939 = vsel %vm1321, %v2890, 0
        %v2942 = vsel %vm1321, %v2891, 0
        %v2945 = vsel %vm1321, %v2892, 0
        %v2948 = vsel %vm1321, %v2893, 0
        %v2951 = vsel %vm1321, %v2894, 0
        %v2954 = vsel %vm1321, %v2895, 0
        %2956 = vmatprep.subr.bf16.mxu0 0
        %2957 = vmatpush1.bf16.msra.mxu0 %v2920
        %2958 = vmatprep.subr.bf16.mxu0 0
        %2959 = vmatpush1.bf16.msra.mxu0 %v2921
        %2960 = vmatprep.subr.bf16.mxu0 0
        %2961 = vmatpush1.bf16.msra.mxu0 %v2922
        %2962 = vmatprep.subr.bf16.mxu0 0
        %2963 = vmatpush1.bf16.msra.mxu0 %v2923
        %2964 = vmatprep.subr.bf16.mxu0 0
        %2965 = vmatpush1.bf16.msra.mxu0 %v2924
        %2966 = vmatprep.subr.bf16.mxu0 0
        %2967 = vmatpush1.bf16.msra.mxu0 %v2925
        %2968 = vmatprep.subr.bf16.mxu0 0
        %2969 = vmatpush1.bf16.msra.mxu0 0
        %2970 = vmatprep.subr.bf16.mxu0 0
        %2971 = vmatpush1.bf16.msra.mxu0 0
        %2972 = vmatprep.subr.bf16.mxu0 0
        %2973 = vmatpush1.bf16.msra.mxu0 0
        %2974 = vmatprep.subr.bf16.mxu0 0
        %2975 = vmatpush1.bf16.msra.mxu0 0
        %2976 = vmatprep.subr.bf16.mxu0 0
        %2977 = vmatpush1.bf16.msra.mxu0 0
        %2978 = vmatprep.subr.bf16.mxu0 0
        %2979 = vmatpush1.bf16.msra.mxu0 0
        %2980 = vmatprep.subr.bf16.mxu0 0
        %2981 = vmatpush1.bf16.msra.mxu0 0
        %2982 = vmatprep.subr.bf16.mxu0 0
        %2983 = vmatpush1.bf16.msra.mxu0 0
        %2984 = vmatprep.subr.bf16.mxu0 0
        %2985 = vmatpush1.bf16.msra.mxu0 0
        %2986 = vmatprep.subr.bf16.mxu0 0
        %2987 = vmatpush1.bf16.msra.mxu0 0
        %2988 = vmatprep.mubr.bf16.mxu0 0
        %2989 = vmatmul.mubr.bf16.gmra.mrb[0].mxu0 %v2933
        %v2990 = vpop.f32.mrb[0].mxu0
        %v2991 = vadd.f32 0.0, %v2990
        %v2992 = vpop.f32.mrb[0].mxu0
        %v2993 = vpop.f32.mrb[0].mxu0
        %v2994 = vadd.f32 0.0, %v2993
        %v2995 = vpop.f32.mrb[0].mxu0
        %2996 = vmatprep.mubr.bf16.mxu0 0
        %2997 = vmatmul.mubr.bf16.gmra.mrb[0].mxu0 %v2936
        %v2998 = vpop.f32.mrb[0].mxu0
        %v2999 = vadd.f32 0.0, %v2998
        %v3000 = vpop.f32.mrb[0].mxu0
        %v3001 = vpop.f32.mrb[0].mxu0
        %v3002 = vadd.f32 0.0, %v3001
        %v3003 = vpop.f32.mrb[0].mxu0
        %3004 = vmatprep.mubr.bf16.mxu0 0
        %3005 = vmatmul.mubr.bf16.gmra.mrb[0].mxu0 %v2939
        %v3006 = vpop.f32.mrb[0].mxu0
        %v3007 = vadd.f32 0.0, %v3006
        %v3008 = vpop.f32.mrb[0].mxu0
        %v3009 = vpop.f32.mrb[0].mxu0
        %v3010 = vadd.f32 0.0, %v3009
        %v3011 = vpop.f32.mrb[0].mxu0
        %3012 = vmatprep.mubr.bf16.mxu0 0
        %3013 = vmatmul.mubr.bf16.gmra.mrb[0].mxu0 %v2942
        %v3014 = vpop.f32.mrb[0].mxu0
        %v3015 = vadd.f32 0.0, %v3014
        %v3016 = vpop.f32.mrb[0].mxu0
        %v3017 = vpop.f32.mrb[0].mxu0
        %v3018 = vadd.f32 0.0, %v3017
        %v3019 = vpop.f32.mrb[0].mxu0
        %3020 = vmatprep.mubr.bf16.mxu0 0
        %3021 = vmatmul.mubr.bf16.gmra.mrb[0].mxu0 %v2945
        %v3022 = vpop.f32.mrb[0].mxu0
        %v3023 = vadd.f32 0.0, %v3022
        %v3024 = vpop.f32.mrb[0].mxu0
        %v3025 = vpop.f32.mrb[0].mxu0
        %v3026 = vadd.f32 0.0, %v3025
        %v3027 = vpop.f32.mrb[0].mxu0
        %3028 = vmatprep.mubr.bf16.mxu0 0
        %3029 = vmatmul.mubr.bf16.gmra.mrb[0].mxu0 %v2948
        %v3030 = vpop.f32.mrb[0].mxu0
        %v3031 = vadd.f32 0.0, %v3030
        %v3032 = vpop.f32.mrb[0].mxu0
        %v3033 = vpop.f32.mrb[0].mxu0
        %v3034 = vadd.f32 0.0, %v3033
        %v3035 = vpop.f32.mrb[0].mxu0
        %3036 = vmatprep.mubr.bf16.mxu0 0
        %3037 = vmatmul.mubr.bf16.gmra.mrb[0].mxu0 %v2951
        %v3038 = vpop.f32.mrb[0].mxu0
        %v3039 = vadd.f32 0.0, %v3038
        %v3040 = vpop.f32.mrb[0].mxu0
        %v3041 = vpop.f32.mrb[0].mxu0
        %v3042 = vadd.f32 0.0, %v3041
        %v3043 = vpop.f32.mrb[0].mxu0
        %3044 = vmatprep.mubr.bf16.mxu0 0
        %3045 = vmatmul.mubr.bf16.gmra.mrb[0].mxu0 %v2954
        %v3046 = vpop.f32.mrb[0].mxu0
        %v3047 = vadd.f32 0.0, %v3046
        %v3048 = vpop.f32.mrb[0].mxu0
        %v3049 = vpop.f32.mrb[0].mxu0
        %v3050 = vadd.f32 0.0, %v3049
        %v3051 = vpop.f32.mrb[0].mxu0
        %3052 = vdwg.mxu0
        %s3053 = scalar_lea.vmem %s6, 3
        %v3054 = vld [vmem:[%s3053] sm:$0x1]
        %v3056 = vlaneseq
        %v3057 = vshrl.u32 %v3056, 7
        %v3058 = vsub.s32 0, %v3057
        %v3059 = vrot.slane %v3054, %v3058
        %v3061 = vmul.f32 %v2991, %v3059
        %v3062 = vmul.f32 %v2994, %v3059
        %v3063 = vmul.f32 %v2999, %v3059
        %v3064 = vmul.f32 %v3002, %v3059
        %v3065 = vmul.f32 %v3007, %v3059
        %v3066 = vmul.f32 %v3010, %v3059
        %v3067 = vmul.f32 %v3015, %v3059
        %v3068 = vmul.f32 %v3018, %v3059
        %v3069 = vmul.f32 %v3023, %v3059
        %v3070 = vmul.f32 %v3026, %v3059
        %v3071 = vmul.f32 %v3031, %v3059
        %v3072 = vmul.f32 %v3034, %v3059
        %v3073 = vmul.f32 %v3039, %v3059
        %v3074 = vmul.f32 %v3042, %v3059
        %v3075 = vmul.f32 %v3047, %v3059
        %v3076 = vmul.f32 %v3050, %v3059
        %s3077 = scalar_lea.vmem %s7, 3
        %v3078 = vld [vmem:[%s3077] sm:$0x1]
        %v3080 = vlaneseq
        %v3081 = vshrl.u32 %v3080, 7
        %v3082 = vsub.s32 0, %v3081
        %v3083 = vrot.slane %v3078, %v3082
        %v3085 = vadd.f32 %v3061, %v3083
        %v3086 = vadd.f32 %v3062, %v3083
        %v3087 = vadd.f32 %v3063, %v3083
        %v3088 = vadd.f32 %v3064, %v3083
        %v3089 = vadd.f32 %v3065, %v3083
        %v3090 = vadd.f32 %v3066, %v3083
        %v3091 = vadd.f32 %v3067, %v3083
        %v3092 = vadd.f32 %v3068, %v3083
        %v3093 = vadd.f32 %v3069, %v3083
        %v3094 = vadd.f32 %v3070, %v3083
        %v3095 = vadd.f32 %v3071, %v3083
        %v3096 = vadd.f32 %v3072, %v3083
        %v3097 = vadd.f32 %v3073, %v3083
        %v3098 = vadd.f32 %v3074, %v3083
        %v3099 = vadd.f32 %v3075, %v3083
        %v3100 = vadd.f32 %v3076, %v3083
        %v3101 = vadd.f32 %v3085, %v2037
        %v3102 = vadd.f32 %v3086, %v2038
        %v3103 = vadd.f32 %v3087, %v2039
        %v3104 = vadd.f32 %v3088, %v2040
        %v3105 = vadd.f32 %v3089, %v2041
        %v3106 = vadd.f32 %v3090, %v2042
        %v3107 = vadd.f32 %v3091, %v2043
        %v3108 = vadd.f32 %v3092, %v2044
        %v3109 = vadd.f32 %v3093, %v2045
        %v3110 = vadd.f32 %v3094, %v2046
        %v3111 = vadd.f32 %v3095, %v2047
        %v3112 = vadd.f32 %v3096, %v2048
        %v3113 = vadd.f32 %v3097, %v2049
        %v3114 = vadd.f32 %v3098, %v2050
        %v3115 = vadd.f32 %v3099, %v2051
        %v3116 = vadd.f32 %v3100, %v2052
        %v3117 = vmax.f32 %v3101, 0.0
        %v3118 = vmax.f32 %v3102, 0.0
        %v3119 = vmax.f32 %v3103, 0.0
        %v3120 = vmax.f32 %v3104, 0.0
        %v3121 = vmax.f32 %v3105, 0.0
        %v3122 = vmax.f32 %v3106, 0.0
        %v3123 = vmax.f32 %v3107, 0.0
        %v3124 = vmax.f32 %v3108, 0.0
        %v3125 = vmax.f32 %v3109, 0.0
        %v3126 = vmax.f32 %v3110, 0.0
        %v3127 = vmax.f32 %v3111, 0.0
        %v3128 = vmax.f32 %v3112, 0.0
        %v3129 = vmax.f32 %v3113, 0.0
        %v3130 = vmax.f32 %v3114, 0.0
        %v3131 = vmax.f32 %v3115, 0.0
        %v3132 = vmax.f32 %v3116, 0.0
        %s3133 = scalar_lea.vmem %s5, 192
        %v3134 = vld [vmem:[%s3133] sm:$0xf]
        %v3135 = vld [vmem:[%s3133 + $0x4] sm:$0xf]
        %v3136 = vld [vmem:[%s3133 + $0x8] sm:$0xf]
        %v3137 = vld [vmem:[%s3133 + $0xc] sm:$0xf]
        %v3138 = vld [vmem:[%s3133 + $0x10] sm:$0xf]
        %v3139 = vld [vmem:[%s3133 + $0x14] sm:$0xf]
        %v3140 = vld [vmem:[%s3133 + $0x18] sm:$0xf]
        %v3141 = vld [vmem:[%s3133 + $0x1c] sm:$0xf]
        %v3142 = vld [vmem:[%s3133 + $0x20] sm:$0xf]
        %v3143 = vld [vmem:[%s3133 + $0x24] sm:$0xf]
        %v3144 = vld [vmem:[%s3133 + $0x28] sm:$0xf]
        %v3145 = vld [vmem:[%s3133 + $0x2c] sm:$0xf]
        %v3147 = vrot.slane %v3132, 7
        %v3164 = vrot.slane %v3117, 7
        %v3165 = vrot.slane %v3118, 7
        %v3166 = vsel %vm375, %v3164, %v3165
        %v3167 = vrot.slane %v3119, 7
        %v3168 = vsel %vm375, %v3165, %v3167
        %v3169 = vrot.slane %v3120, 7
        %v3170 = vsel %vm375, %v3167, %v3169
        %v3171 = vrot.slane %v3121, 7
        %v3172 = vsel %vm375, %v3169, %v3171
        %v3173 = vrot.slane %v3122, 7
        %v3174 = vsel %vm375, %v3171, %v3173
        %v3175 = vrot.slane %v3123, 7
        %v3176 = vsel %vm375, %v3173, %v3175
        %v3177 = vrot.slane %v3124, 7
        %v3178 = vsel %vm375, %v3175, %v3177
        %v3179 = vrot.slane %v3125, 7
        %v3180 = vsel %vm375, %v3177, %v3179
        %v3181 = vrot.slane %v3126, 7
        %v3182 = vsel %vm375, %v3179, %v3181
        %v3183 = vrot.slane %v3127, 7
        %v3184 = vsel %vm375, %v3181, %v3183
        %v3185 = vrot.slane %v3128, 7
        %v3186 = vsel %vm375, %v3183, %v3185
        %v3187 = vrot.slane %v3129, 7
        %v3188 = vsel %vm375, %v3185, %v3187
        %v3189 = vrot.slane %v3130, 7
        %v3190 = vsel %vm375, %v3187, %v3189
        %v3191 = vrot.slane %v3131, 7
        %v3192 = vsel %vm375, %v3189, %v3191
        %v3193 = vsel %vm375, %v3191, %v3147
        %v3210 = vsel %vm375, %v3147, %v3164
        %v3211 = vsel %vm941, 0.0, %v3210
        %v3212 = vsel %vm942, 0.0, %v3166
        %v3213 = vsel %vm943, 0.0, %v3168
        %v3214 = vsel %vm944, 0.0, %v3170
        %v3215 = vsel %vm945, 0.0, %v3172
        %v3216 = vsel %vm946, 0.0, %v3174
        %v3217 = vsel %vm947, 0.0, %v3176
        %v3218 = vsel %vm948, 0.0, %v3178
        %v3219 = vsel %vm949, 0.0, %v3180
        %v3220 = vsel %vm950, 0.0, %v3182
        %v3221 = vsel %vm951, 0.0, %v3184
        %v3222 = vsel %vm952, 0.0, %v3186
        %v3223 = vsel %vm953, 0.0, %v3188
        %v3224 = vsel %vm954, 0.0, %v3190
        %v3225 = vsel %vm955, 0.0, %v3192
        %v3226 = vsel %vm956, 0.0, %v3193
        %v3227 = vrot.slane %v3117, 1
        %v3228 = vrot.slane %v3118, 1
        %v3229 = vsel %vm1066, %v3227, %v3228
        %v3230 = vrot.slane %v3119, 1
        %v3231 = vsel %vm1066, %v3228, %v3230
        %v3232 = vrot.slane %v3120, 1
        %v3233 = vsel %vm1066, %v3230, %v3232
        %v3234 = vrot.slane %v3121, 1
        %v3235 = vsel %vm1066, %v3232, %v3234
        %v3236 = vrot.slane %v3122, 1
        %v3237 = vsel %vm1066, %v3234, %v3236
        %v3238 = vrot.slane %v3123, 1
        %v3239 = vsel %vm1066, %v3236, %v3238
        %v3240 = vrot.slane %v3124, 1
        %v3241 = vsel %vm1066, %v3238, %v3240
        %v3242 = vrot.slane %v3125, 1
        %v3243 = vsel %vm1066, %v3240, %v3242
        %v3244 = vrot.slane %v3126, 1
        %v3245 = vsel %vm1066, %v3242, %v3244
        %v3246 = vrot.slane %v3127, 1
        %v3247 = vsel %vm1066, %v3244, %v3246
        %v3248 = vrot.slane %v3128, 1
        %v3249 = vsel %vm1066, %v3246, %v3248
        %v3250 = vrot.slane %v3129, 1
        %v3251 = vsel %vm1066, %v3248, %v3250
        %v3252 = vrot.slane %v3130, 1
        %v3253 = vsel %vm1066, %v3250, %v3252
        %v3254 = vrot.slane %v3131, 1
        %v3255 = vsel %vm1066, %v3252, %v3254
        %v3256 = vrot.slane %v3132, 1
        %v3257 = vsel %vm1066, %v3254, %v3256
        %v3275 = vsel %vm1066, %v3256, %v3227
        %v3276 = vsel %vm957, 0.0, %v3229
        %v3277 = vsel %vm958, 0.0, %v3231
        %v3278 = vsel %vm959, 0.0, %v3233
        %v3279 = vsel %vm960, 0.0, %v3235
        %v3280 = vsel %vm961, 0.0, %v3237
        %v3281 = vsel %vm962, 0.0, %v3239
        %v3282 = vsel %vm963, 0.0, %v3241
        %v3283 = vsel %vm964, 0.0, %v3243
        %v3284 = vsel %vm965, 0.0, %v3245
        %v3285 = vsel %vm966, 0.0, %v3247
        %v3286 = vsel %vm967, 0.0, %v3249
        %v3287 = vsel %vm968, 0.0, %v3251
        %v3288 = vsel %vm969, 0.0, %v3253
        %v3289 = vsel %vm970, 0.0, %v3255
        %v3290 = vsel %vm971, 0.0, %v3257
        %v3291 = vsel %vm972, 0.0, %v3275
        %3292 = vrot.lane.b32.xlu0 %v3117, 32
        %v3293 = vpop.permute.xlu0 %3292
        %3294 = vrot.lane.b32.xlu0 %v3118, 32
        %v3295 = vpop.permute.xlu0 %3294
        %3296 = vrot.lane.b32.xlu0 %v3119, 32
        %v3297 = vpop.permute.xlu0 %3296
        %3298 = vrot.lane.b32.xlu0 %v3120, 32
        %v3299 = vpop.permute.xlu0 %3298
        %3300 = vrot.lane.b32.xlu0 %v3121, 32
        %v3301 = vpop.permute.xlu0 %3300
        %3302 = vrot.lane.b32.xlu0 %v3122, 32
        %v3303 = vpop.permute.xlu0 %3302
        %3304 = vrot.lane.b32.xlu0 %v3123, 32
        %v3305 = vpop.permute.xlu0 %3304
        %3306 = vrot.lane.b32.xlu0 %v3124, 32
        %v3307 = vpop.permute.xlu0 %3306
        %3308 = vrot.lane.b32.xlu0 %v3125, 32
        %v3309 = vpop.permute.xlu0 %3308
        %3310 = vrot.lane.b32.xlu0 %v3126, 32
        %v3311 = vpop.permute.xlu0 %3310
        %3312 = vrot.lane.b32.xlu0 %v3127, 32
        %v3313 = vpop.permute.xlu0 %3312
        %3314 = vrot.lane.b32.xlu0 %v3128, 32
        %v3315 = vpop.permute.xlu0 %3314
        %3316 = vrot.lane.b32.xlu0 %v3129, 32
        %v3317 = vpop.permute.xlu0 %3316
        %3318 = vrot.lane.b32.xlu0 %v3130, 32
        %v3319 = vpop.permute.xlu0 %3318
        %3320 = vrot.lane.b32.xlu0 %v3131, 32
        %v3321 = vpop.permute.xlu0 %3320
        %3322 = vrot.lane.b32.xlu0 %v3132, 32
        %v3323 = vpop.permute.xlu0 %3322
        %3356 = vrot.lane.b32.xlu0 %v3276, 64
        %v3357 = vpop.permute.xlu0 %3356
        %3358 = vrot.lane.b32.xlu0 %v3277, 64
        %v3359 = vpop.permute.xlu0 %3358
        %3360 = vrot.lane.b32.xlu0 %v3278, 64
        %v3361 = vpop.permute.xlu0 %3360
        %3362 = vrot.lane.b32.xlu0 %v3279, 64
        %v3363 = vpop.permute.xlu0 %3362
        %3364 = vrot.lane.b32.xlu0 %v3280, 64
        %v3365 = vpop.permute.xlu0 %3364
        %3366 = vrot.lane.b32.xlu0 %v3281, 64
        %v3367 = vpop.permute.xlu0 %3366
        %3368 = vrot.lane.b32.xlu0 %v3282, 64
        %v3369 = vpop.permute.xlu0 %3368
        %3370 = vrot.lane.b32.xlu0 %v3283, 64
        %v3371 = vpop.permute.xlu0 %3370
        %3372 = vrot.lane.b32.xlu0 %v3284, 64
        %v3373 = vpop.permute.xlu0 %3372
        %3374 = vrot.lane.b32.xlu0 %v3285, 64
        %v3375 = vpop.permute.xlu0 %3374
        %3376 = vrot.lane.b32.xlu0 %v3286, 64
        %v3377 = vpop.permute.xlu0 %3376
        %3378 = vrot.lane.b32.xlu0 %v3287, 64
        %v3379 = vpop.permute.xlu0 %3378
        %3380 = vrot.lane.b32.xlu0 %v3288, 64
        %v3381 = vpop.permute.xlu0 %3380
        %3382 = vrot.lane.b32.xlu0 %v3289, 64
        %v3383 = vpop.permute.xlu0 %3382
        %3384 = vrot.lane.b32.xlu0 %v3290, 64
        %v3385 = vpop.permute.xlu0 %3384
        %3386 = vrot.lane.b32.xlu0 %v3291, 64
        %v3387 = vpop.permute.xlu0 %3386
        %v3404 = vsel %vm548, %v3211, %v3293
        %v3405 = vsel %vm548, %v3212, %v3295
        %v3406 = vsel %vm548, %v3213, %v3297
        %v3407 = vsel %vm548, %v3214, %v3299
        %v3408 = vsel %vm548, %v3215, %v3301
        %v3409 = vsel %vm548, %v3216, %v3303
        %v3410 = vsel %vm548, %v3217, %v3305
        %v3411 = vsel %vm548, %v3218, %v3307
        %v3412 = vsel %vm548, %v3219, %v3309
        %v3413 = vsel %vm548, %v3220, %v3311
        %v3414 = vsel %vm548, %v3221, %v3313
        %v3415 = vsel %vm548, %v3222, %v3315
        %v3416 = vsel %vm548, %v3223, %v3317
        %v3417 = vsel %vm548, %v3224, %v3319
        %v3418 = vsel %vm548, %v3225, %v3321
        %v3419 = vsel %vm548, %v3226, %v3323
        %v3420 = vsel %vm1260, %v3404, %v3357
        %v3421 = vsel %vm1260, %v3405, %v3359
        %v3422 = vsel %vm1260, %v3406, %v3361
        %v3423 = vsel %vm1260, %v3407, %v3363
        %v3424 = vsel %vm1260, %v3408, %v3365
        %v3425 = vsel %vm1260, %v3409, %v3367
        %v3426 = vsel %vm1260, %v3410, %v3369
        %v3427 = vsel %vm1260, %v3411, %v3371
        %v3428 = vsel %vm1260, %v3412, %v3373
        %v3429 = vsel %vm1260, %v3413, %v3375
        %v3430 = vsel %vm1260, %v3414, %v3377
        %v3431 = vsel %vm1260, %v3415, %v3379
        %v3432 = vsel %vm1260, %v3416, %v3381
        %v3433 = vsel %vm1260, %v3417, %v3383
        %v3434 = vsel %vm1260, %v3418, %v3385
        %v3435 = vsel %vm1260, %v3419, %v3387
        %v3436 = vpack.c.bf16 %v3421, %v3420
        %v3437 = vpack.c.bf16 %v3423, %v3422
        %v3438 = vpack.c.bf16 %v3425, %v3424
        %v3439 = vpack.c.bf16 %v3427, %v3426
        %v3440 = vpack.c.bf16 %v3429, %v3428
        %v3441 = vpack.c.bf16 %v3431, %v3430
        %v3442 = vpack.c.bf16 %v3433, %v3432
        %v3443 = vpack.c.bf16 %v3435, %v3434
        %v3456 = vunpack.c.l.b16 %v3134
        %v3457 = vunpack.c.l.b16 %v3135
        %v3458 = vunpack.c.l.b16 %v3136
        %v3459 = vunpack.c.l.b16 %v3137
        %v3460 = vunpack.c.l.b16 %v3138
        %v3461 = vunpack.c.l.b16 %v3139
        %v3462 = vunpack.c.l.b16 %v3140
        %v3463 = vunpack.c.l.b16 %v3141
        %v3464 = vunpack.c.l.b16 %v3142
        %v3465 = vunpack.c.l.b16 %v3143
        %v3466 = vunpack.c.l.b16 %v3144
        %v3467 = vunpack.c.l.b16 %v3145
        %v3468 = vpack.c.b16 %v3457, %v3456
        %v3469 = vpack.c.b16 %v3459, %v3458
        %v3470 = vpack.c.b16 %v3461, %v3460
        %v3471 = vpack.c.b16 %v3463, %v3462
        %v3472 = vpack.c.b16 %v3465, %v3464
        %v3473 = vpack.c.b16 %v3467, %v3466
        %v3481 = vsel %vm1321, %v3436, 0
        %v3484 = vsel %vm1321, %v3437, 0
        %v3487 = vsel %vm1321, %v3438, 0
        %v3490 = vsel %vm1321, %v3439, 0
        %v3493 = vsel %vm1321, %v3440, 0
        %v3496 = vsel %vm1321, %v3441, 0
        %v3499 = vsel %vm1321, %v3442, 0
        %v3502 = vsel %vm1321, %v3443, 0
        %3504 = vmatprep.subr.bf16.mxu0 0
        %3505 = vmatpush1.bf16.msra.mxu0 %v3468
        %3506 = vmatprep.subr.bf16.mxu0 0
        %3507 = vmatpush1.bf16.msra.mxu0 %v3469
        %3508 = vmatprep.subr.bf16.mxu0 0
        %3509 = vmatpush1.bf16.msra.mxu0 %v3470
        %3510 = vmatprep.subr.bf16.mxu0 0
        %3511 = vmatpush1.bf16.msra.mxu0 %v3471
        %3512 = vmatprep.subr.bf16.mxu0 0
        %3513 = vmatpush1.bf16.msra.mxu0 %v3472
        %3514 = vmatprep.subr.bf16.mxu0 0
        %3515 = vmatpush1.bf16.msra.mxu0 %v3473
        %3516 = vmatprep.subr.bf16.mxu0 0
        %3517 = vmatpush1.bf16.msra.mxu0 0
        %3518 = vmatprep.subr.bf16.mxu0 0
        %3519 = vmatpush1.bf16.msra.mxu0 0
        %3520 = vmatprep.subr.bf16.mxu0 0
        %3521 = vmatpush1.bf16.msra.mxu0 0
        %3522 = vmatprep.subr.bf16.mxu0 0
        %3523 = vmatpush1.bf16.msra.mxu0 0
        %3524 = vmatprep.subr.bf16.mxu0 0
        %3525 = vmatpush1.bf16.msra.mxu0 0
        %3526 = vmatprep.subr.bf16.mxu0 0
        %3527 = vmatpush1.bf16.msra.mxu0 0
        %3528 = vmatprep.subr.bf16.mxu0 0
        %3529 = vmatpush1.bf16.msra.mxu0 0
        %3530 = vmatprep.subr.bf16.mxu0 0
        %3531 = vmatpush1.bf16.msra.mxu0 0
        %3532 = vmatprep.subr.bf16.mxu0 0
        %3533 = vmatpush1.bf16.msra.mxu0 0
        %3534 = vmatprep.subr.bf16.mxu0 0
        %3535 = vmatpush1.bf16.msra.mxu0 0
        %3536 = vmatprep.mubr.bf16.mxu0 0
        %3537 = vmatmul.mubr.bf16.gmra.mrb[0].mxu0 %v3481
        %v3538 = vpop.f32.mrb[0].mxu0
        %v3539 = vadd.f32 0.0, %v3538
        %v3540 = vpop.f32.mrb[0].mxu0
        %v3541 = vpop.f32.mrb[0].mxu0
        %v3542 = vadd.f32 0.0, %v3541
        %v3543 = vpop.f32.mrb[0].mxu0
        %3544 = vmatprep.mubr.bf16.mxu0 0
        %3545 = vmatmul.mubr.bf16.gmra.mrb[0].mxu0 %v3484
        %v3546 = vpop.f32.mrb[0].mxu0
        %v3547 = vadd.f32 0.0, %v3546
        %v3548 = vpop.f32.mrb[0].mxu0
        %v3549 = vpop.f32.mrb[0].mxu0
        %v3550 = vadd.f32 0.0, %v3549
        %v3551 = vpop.f32.mrb[0].mxu0
        %3552 = vmatprep.mubr.bf16.mxu0 0
        %3553 = vmatmul.mubr.bf16.gmra.mrb[0].mxu0 %v3487
        %v3554 = vpop.f32.mrb[0].mxu0
        %v3555 = vadd.f32 0.0, %v3554
        %v3556 = vpop.f32.mrb[0].mxu0
        %v3557 = vpop.f32.mrb[0].mxu0
        %v3558 = vadd.f32 0.0, %v3557
        %v3559 = vpop.f32.mrb[0].mxu0
        %3560 = vmatprep.mubr.bf16.mxu0 0
        %3561 = vmatmul.mubr.bf16.gmra.mrb[0].mxu0 %v3490
        %v3562 = vpop.f32.mrb[0].mxu0
        %v3563 = vadd.f32 0.0, %v3562
        %v3564 = vpop.f32.mrb[0].mxu0
        %v3565 = vpop.f32.mrb[0].mxu0
        %v3566 = vadd.f32 0.0, %v3565
        %v3567 = vpop.f32.mrb[0].mxu0
        %3568 = vmatprep.mubr.bf16.mxu0 0
        %3569 = vmatmul.mubr.bf16.gmra.mrb[0].mxu0 %v3493
        %v3570 = vpop.f32.mrb[0].mxu0
        %v3571 = vadd.f32 0.0, %v3570
        %v3572 = vpop.f32.mrb[0].mxu0
        %v3573 = vpop.f32.mrb[0].mxu0
        %v3574 = vadd.f32 0.0, %v3573
        %v3575 = vpop.f32.mrb[0].mxu0
        %3576 = vmatprep.mubr.bf16.mxu0 0
        %3577 = vmatmul.mubr.bf16.gmra.mrb[0].mxu0 %v3496
        %v3578 = vpop.f32.mrb[0].mxu0
        %v3579 = vadd.f32 0.0, %v3578
        %v3580 = vpop.f32.mrb[0].mxu0
        %v3581 = vpop.f32.mrb[0].mxu0
        %v3582 = vadd.f32 0.0, %v3581
        %v3583 = vpop.f32.mrb[0].mxu0
        %3584 = vmatprep.mubr.bf16.mxu0 0
        %3585 = vmatmul.mubr.bf16.gmra.mrb[0].mxu0 %v3499
        %v3586 = vpop.f32.mrb[0].mxu0
        %v3587 = vadd.f32 0.0, %v3586
        %v3588 = vpop.f32.mrb[0].mxu0
        %v3589 = vpop.f32.mrb[0].mxu0
        %v3590 = vadd.f32 0.0, %v3589
        %v3591 = vpop.f32.mrb[0].mxu0
        %3592 = vmatprep.mubr.bf16.mxu0 0
        %3593 = vmatmul.mubr.bf16.gmra.mrb[0].mxu0 %v3502
        %v3594 = vpop.f32.mrb[0].mxu0
        %v3595 = vadd.f32 0.0, %v3594
        %v3596 = vpop.f32.mrb[0].mxu0
        %v3597 = vpop.f32.mrb[0].mxu0
        %v3598 = vadd.f32 0.0, %v3597
        %v3599 = vpop.f32.mrb[0].mxu0
        %3600 = vdwg.mxu0
        %s3601 = scalar_lea.vmem %s6, 4
        %v3602 = vld [vmem:[%s3601] sm:$0x1]
        %v3604 = vlaneseq
        %v3605 = vshrl.u32 %v3604, 7
        %v3606 = vsub.s32 0, %v3605
        %v3607 = vrot.slane %v3602, %v3606
        %v3609 = vmul.f32 %v3539, %v3607
        %v3610 = vmul.f32 %v3542, %v3607
        %v3611 = vmul.f32 %v3547, %v3607
        %v3612 = vmul.f32 %v3550, %v3607
        %v3613 = vmul.f32 %v3555, %v3607
        %v3614 = vmul.f32 %v3558, %v3607
        %v3615 = vmul.f32 %v3563, %v3607
        %v3616 = vmul.f32 %v3566, %v3607
        %v3617 = vmul.f32 %v3571, %v3607
        %v3618 = vmul.f32 %v3574, %v3607
        %v3619 = vmul.f32 %v3579, %v3607
        %v3620 = vmul.f32 %v3582, %v3607
        %v3621 = vmul.f32 %v3587, %v3607
        %v3622 = vmul.f32 %v3590, %v3607
        %v3623 = vmul.f32 %v3595, %v3607
        %v3624 = vmul.f32 %v3598, %v3607
        %s3625 = scalar_lea.vmem %s7, 4
        %v3626 = vld [vmem:[%s3625] sm:$0x1]
        %v3628 = vlaneseq
        %v3629 = vshrl.u32 %v3628, 7
        %v3630 = vsub.s32 0, %v3629
        %v3631 = vrot.slane %v3626, %v3630
        %v3633 = vadd.f32 %v3609, %v3631
        %v3634 = vadd.f32 %v3610, %v3631
        %v3635 = vadd.f32 %v3611, %v3631
        %v3636 = vadd.f32 %v3612, %v3631
        %v3637 = vadd.f32 %v3613, %v3631
        %v3638 = vadd.f32 %v3614, %v3631
        %v3639 = vadd.f32 %v3615, %v3631
        %v3640 = vadd.f32 %v3616, %v3631
        %v3641 = vadd.f32 %v3617, %v3631
        %v3642 = vadd.f32 %v3618, %v3631
        %v3643 = vadd.f32 %v3619, %v3631
        %v3644 = vadd.f32 %v3620, %v3631
        %v3645 = vadd.f32 %v3621, %v3631
        %v3646 = vadd.f32 %v3622, %v3631
        %v3647 = vadd.f32 %v3623, %v3631
        %v3648 = vadd.f32 %v3624, %v3631
        %v3649 = vmax.f32 %v3633, 0.0
        %v3650 = vmax.f32 %v3634, 0.0
        %v3651 = vmax.f32 %v3635, 0.0
        %v3652 = vmax.f32 %v3636, 0.0
        %v3653 = vmax.f32 %v3637, 0.0
        %v3654 = vmax.f32 %v3638, 0.0
        %v3655 = vmax.f32 %v3639, 0.0
        %v3656 = vmax.f32 %v3640, 0.0
        %v3657 = vmax.f32 %v3641, 0.0
        %v3658 = vmax.f32 %v3642, 0.0
        %v3659 = vmax.f32 %v3643, 0.0
        %v3660 = vmax.f32 %v3644, 0.0
        %v3661 = vmax.f32 %v3645, 0.0
        %v3662 = vmax.f32 %v3646, 0.0
        %v3663 = vmax.f32 %v3647, 0.0
        %v3664 = vmax.f32 %v3648, 0.0
        %s3665 = scalar_lea.vmem %s5, 240
        %v3666 = vld [vmem:[%s3665] sm:$0xf]
        %v3667 = vld [vmem:[%s3665 + $0x4] sm:$0xf]
        %v3668 = vld [vmem:[%s3665 + $0x8] sm:$0xf]
        %v3669 = vld [vmem:[%s3665 + $0xc] sm:$0xf]
        %v3670 = vld [vmem:[%s3665 + $0x10] sm:$0xf]
        %v3671 = vld [vmem:[%s3665 + $0x14] sm:$0xf]
        %v3672 = vld [vmem:[%s3665 + $0x18] sm:$0xf]
        %v3673 = vld [vmem:[%s3665 + $0x1c] sm:$0xf]
        %v3674 = vld [vmem:[%s3665 + $0x20] sm:$0xf]
        %v3675 = vld [vmem:[%s3665 + $0x24] sm:$0xf]
        %v3676 = vld [vmem:[%s3665 + $0x28] sm:$0xf]
        %v3677 = vld [vmem:[%s3665 + $0x2c] sm:$0xf]
        %v3679 = vrot.slane %v3664, 7
        %v3696 = vrot.slane %v3649, 7
        %v3697 = vrot.slane %v3650, 7
        %v3698 = vsel %vm375, %v3696, %v3697
        %v3699 = vrot.slane %v3651, 7
        %v3700 = vsel %vm375, %v3697, %v3699
        %v3701 = vrot.slane %v3652, 7
        %v3702 = vsel %vm375, %v3699, %v3701
        %v3703 = vrot.slane %v3653, 7
        %v3704 = vsel %vm375, %v3701, %v3703
        %v3705 = vrot.slane %v3654, 7
        %v3706 = vsel %vm375, %v3703, %v3705
        %v3707 = vrot.slane %v3655, 7
        %v3708 = vsel %vm375, %v3705, %v3707
        %v3709 = vrot.slane %v3656, 7
        %v3710 = vsel %vm375, %v3707, %v3709
        %v3711 = vrot.slane %v3657, 7
        %v3712 = vsel %vm375, %v3709, %v3711
        %v3713 = vrot.slane %v3658, 7
        %v3714 = vsel %vm375, %v3711, %v3713
        %v3715 = vrot.slane %v3659, 7
        %v3716 = vsel %vm375, %v3713, %v3715
        %v3717 = vrot.slane %v3660, 7
        %v3718 = vsel %vm375, %v3715, %v3717
        %v3719 = vrot.slane %v3661, 7
        %v3720 = vsel %vm375, %v3717, %v3719
        %v3721 = vrot.slane %v3662, 7
        %v3722 = vsel %vm375, %v3719, %v3721
        %v3723 = vrot.slane %v3663, 7
        %v3724 = vsel %vm375, %v3721, %v3723
        %v3725 = vsel %vm375, %v3723, %v3679
        %v3742 = vsel %vm375, %v3679, %v3696
        %v3743 = vsel %vm941, 0.0, %v3742
        %v3744 = vsel %vm942, 0.0, %v3698
        %v3745 = vsel %vm943, 0.0, %v3700
        %v3746 = vsel %vm944, 0.0, %v3702
        %v3747 = vsel %vm945, 0.0, %v3704
        %v3748 = vsel %vm946, 0.0, %v3706
        %v3749 = vsel %vm947, 0.0, %v3708
        %v3750 = vsel %vm948, 0.0, %v3710
        %v3751 = vsel %vm949, 0.0, %v3712
        %v3752 = vsel %vm950, 0.0, %v3714
        %v3753 = vsel %vm951, 0.0, %v3716
        %v3754 = vsel %vm952, 0.0, %v3718
        %v3755 = vsel %vm953, 0.0, %v3720
        %v3756 = vsel %vm954, 0.0, %v3722
        %v3757 = vsel %vm955, 0.0, %v3724
        %v3758 = vsel %vm956, 0.0, %v3725
        %v3759 = vrot.slane %v3649, 1
        %v3760 = vrot.slane %v3650, 1
        %v3761 = vsel %vm1066, %v3759, %v3760
        %v3762 = vrot.slane %v3651, 1
        %v3763 = vsel %vm1066, %v3760, %v3762
        %v3764 = vrot.slane %v3652, 1
        %v3765 = vsel %vm1066, %v3762, %v3764
        %v3766 = vrot.slane %v3653, 1
        %v3767 = vsel %vm1066, %v3764, %v3766
        %v3768 = vrot.slane %v3654, 1
        %v3769 = vsel %vm1066, %v3766, %v3768
        %v3770 = vrot.slane %v3655, 1
        %v3771 = vsel %vm1066, %v3768, %v3770
        %v3772 = vrot.slane %v3656, 1
        %v3773 = vsel %vm1066, %v3770, %v3772
        %v3774 = vrot.slane %v3657, 1
        %v3775 = vsel %vm1066, %v3772, %v3774
        %v3776 = vrot.slane %v3658, 1
        %v3777 = vsel %vm1066, %v3774, %v3776
        %v3778 = vrot.slane %v3659, 1
        %v3779 = vsel %vm1066, %v3776, %v3778
        %v3780 = vrot.slane %v3660, 1
        %v3781 = vsel %vm1066, %v3778, %v3780
        %v3782 = vrot.slane %v3661, 1
        %v3783 = vsel %vm1066, %v3780, %v3782
        %v3784 = vrot.slane %v3662, 1
        %v3785 = vsel %vm1066, %v3782, %v3784
        %v3786 = vrot.slane %v3663, 1
        %v3787 = vsel %vm1066, %v3784, %v3786
        %v3788 = vrot.slane %v3664, 1
        %v3789 = vsel %vm1066, %v3786, %v3788
        %v3807 = vsel %vm1066, %v3788, %v3759
        %v3808 = vsel %vm957, 0.0, %v3761
        %v3809 = vsel %vm958, 0.0, %v3763
        %v3810 = vsel %vm959, 0.0, %v3765
        %v3811 = vsel %vm960, 0.0, %v3767
        %v3812 = vsel %vm961, 0.0, %v3769
        %v3813 = vsel %vm962, 0.0, %v3771
        %v3814 = vsel %vm963, 0.0, %v3773
        %v3815 = vsel %vm964, 0.0, %v3775
        %v3816 = vsel %vm965, 0.0, %v3777
        %v3817 = vsel %vm966, 0.0, %v3779
        %v3818 = vsel %vm967, 0.0, %v3781
        %v3819 = vsel %vm968, 0.0, %v3783
        %v3820 = vsel %vm969, 0.0, %v3785
        %v3821 = vsel %vm970, 0.0, %v3787
        %v3822 = vsel %vm971, 0.0, %v3789
        %v3823 = vsel %vm972, 0.0, %v3807
        %3824 = vrot.lane.b32.xlu0 %v3649, 32
        %v3825 = vpop.permute.xlu0 %3824
        %3826 = vrot.lane.b32.xlu0 %v3650, 32
        %v3827 = vpop.permute.xlu0 %3826
        %3828 = vrot.lane.b32.xlu0 %v3651, 32
        %v3829 = vpop.permute.xlu0 %3828
        %3830 = vrot.lane.b32.xlu0 %v3652, 32
        %v3831 = vpop.permute.xlu0 %3830
        %3832 = vrot.lane.b32.xlu0 %v3653, 32
        %v3833 = vpop.permute.xlu0 %3832
        %3834 = vrot.lane.b32.xlu0 %v3654, 32
        %v3835 = vpop.permute.xlu0 %3834
        %3836 = vrot.lane.b32.xlu0 %v3655, 32
        %v3837 = vpop.permute.xlu0 %3836
        %3838 = vrot.lane.b32.xlu0 %v3656, 32
        %v3839 = vpop.permute.xlu0 %3838
        %3840 = vrot.lane.b32.xlu0 %v3657, 32
        %v3841 = vpop.permute.xlu0 %3840
        %3842 = vrot.lane.b32.xlu0 %v3658, 32
        %v3843 = vpop.permute.xlu0 %3842
        %3844 = vrot.lane.b32.xlu0 %v3659, 32
        %v3845 = vpop.permute.xlu0 %3844
        %3846 = vrot.lane.b32.xlu0 %v3660, 32
        %v3847 = vpop.permute.xlu0 %3846
        %3848 = vrot.lane.b32.xlu0 %v3661, 32
        %v3849 = vpop.permute.xlu0 %3848
        %3850 = vrot.lane.b32.xlu0 %v3662, 32
        %v3851 = vpop.permute.xlu0 %3850
        %3852 = vrot.lane.b32.xlu0 %v3663, 32
        %v3853 = vpop.permute.xlu0 %3852
        %3854 = vrot.lane.b32.xlu0 %v3664, 32
        %v3855 = vpop.permute.xlu0 %3854
        %3888 = vrot.lane.b32.xlu0 %v3808, 64
        %v3889 = vpop.permute.xlu0 %3888
        %3890 = vrot.lane.b32.xlu0 %v3809, 64
        %v3891 = vpop.permute.xlu0 %3890
        %3892 = vrot.lane.b32.xlu0 %v3810, 64
        %v3893 = vpop.permute.xlu0 %3892
        %3894 = vrot.lane.b32.xlu0 %v3811, 64
        %v3895 = vpop.permute.xlu0 %3894
        %3896 = vrot.lane.b32.xlu0 %v3812, 64
        %v3897 = vpop.permute.xlu0 %3896
        %3898 = vrot.lane.b32.xlu0 %v3813, 64
        %v3899 = vpop.permute.xlu0 %3898
        %3900 = vrot.lane.b32.xlu0 %v3814, 64
        %v3901 = vpop.permute.xlu0 %3900
        %3902 = vrot.lane.b32.xlu0 %v3815, 64
        %v3903 = vpop.permute.xlu0 %3902
        %3904 = vrot.lane.b32.xlu0 %v3816, 64
        %v3905 = vpop.permute.xlu0 %3904
        %3906 = vrot.lane.b32.xlu0 %v3817, 64
        %v3907 = vpop.permute.xlu0 %3906
        %3908 = vrot.lane.b32.xlu0 %v3818, 64
        %v3909 = vpop.permute.xlu0 %3908
        %3910 = vrot.lane.b32.xlu0 %v3819, 64
        %v3911 = vpop.permute.xlu0 %3910
        %3912 = vrot.lane.b32.xlu0 %v3820, 64
        %v3913 = vpop.permute.xlu0 %3912
        %3914 = vrot.lane.b32.xlu0 %v3821, 64
        %v3915 = vpop.permute.xlu0 %3914
        %3916 = vrot.lane.b32.xlu0 %v3822, 64
        %v3917 = vpop.permute.xlu0 %3916
        %3918 = vrot.lane.b32.xlu0 %v3823, 64
        %v3919 = vpop.permute.xlu0 %3918
        %v3936 = vsel %vm548, %v3743, %v3825
        %v3937 = vsel %vm548, %v3744, %v3827
        %v3938 = vsel %vm548, %v3745, %v3829
        %v3939 = vsel %vm548, %v3746, %v3831
        %v3940 = vsel %vm548, %v3747, %v3833
        %v3941 = vsel %vm548, %v3748, %v3835
        %v3942 = vsel %vm548, %v3749, %v3837
        %v3943 = vsel %vm548, %v3750, %v3839
        %v3944 = vsel %vm548, %v3751, %v3841
        %v3945 = vsel %vm548, %v3752, %v3843
        %v3946 = vsel %vm548, %v3753, %v3845
        %v3947 = vsel %vm548, %v3754, %v3847
        %v3948 = vsel %vm548, %v3755, %v3849
        %v3949 = vsel %vm548, %v3756, %v3851
        %v3950 = vsel %vm548, %v3757, %v3853
        %v3951 = vsel %vm548, %v3758, %v3855
        %v3952 = vsel %vm1260, %v3936, %v3889
        %v3953 = vsel %vm1260, %v3937, %v3891
        %v3954 = vsel %vm1260, %v3938, %v3893
        %v3955 = vsel %vm1260, %v3939, %v3895
        %v3956 = vsel %vm1260, %v3940, %v3897
        %v3957 = vsel %vm1260, %v3941, %v3899
        %v3958 = vsel %vm1260, %v3942, %v3901
        %v3959 = vsel %vm1260, %v3943, %v3903
        %v3960 = vsel %vm1260, %v3944, %v3905
        %v3961 = vsel %vm1260, %v3945, %v3907
        %v3962 = vsel %vm1260, %v3946, %v3909
        %v3963 = vsel %vm1260, %v3947, %v3911
        %v3964 = vsel %vm1260, %v3948, %v3913
        %v3965 = vsel %vm1260, %v3949, %v3915
        %v3966 = vsel %vm1260, %v3950, %v3917
        %v3967 = vsel %vm1260, %v3951, %v3919
        %v3968 = vpack.c.bf16 %v3953, %v3952
        %v3969 = vpack.c.bf16 %v3955, %v3954
        %v3970 = vpack.c.bf16 %v3957, %v3956
        %v3971 = vpack.c.bf16 %v3959, %v3958
        %v3972 = vpack.c.bf16 %v3961, %v3960
        %v3973 = vpack.c.bf16 %v3963, %v3962
        %v3974 = vpack.c.bf16 %v3965, %v3964
        %v3975 = vpack.c.bf16 %v3967, %v3966
        %v3988 = vunpack.c.l.b16 %v3666
        %v3989 = vunpack.c.l.b16 %v3667
        %v3990 = vunpack.c.l.b16 %v3668
        %v3991 = vunpack.c.l.b16 %v3669
        %v3992 = vunpack.c.l.b16 %v3670
        %v3993 = vunpack.c.l.b16 %v3671
        %v3994 = vunpack.c.l.b16 %v3672
        %v3995 = vunpack.c.l.b16 %v3673
        %v3996 = vunpack.c.l.b16 %v3674
        %v3997 = vunpack.c.l.b16 %v3675
        %v3998 = vunpack.c.l.b16 %v3676
        %v3999 = vunpack.c.l.b16 %v3677
        %v4000 = vpack.c.b16 %v3989, %v3988
        %v4001 = vpack.c.b16 %v3991, %v3990
        %v4002 = vpack.c.b16 %v3993, %v3992
        %v4003 = vpack.c.b16 %v3995, %v3994
        %v4004 = vpack.c.b16 %v3997, %v3996
        %v4005 = vpack.c.b16 %v3999, %v3998
        %v4013 = vsel %vm1321, %v3968, 0
        %v4016 = vsel %vm1321, %v3969, 0
        %v4019 = vsel %vm1321, %v3970, 0
        %v4022 = vsel %vm1321, %v3971, 0
        %v4025 = vsel %vm1321, %v3972, 0
        %v4028 = vsel %vm1321, %v3973, 0
        %v4031 = vsel %vm1321, %v3974, 0
        %v4034 = vsel %vm1321, %v3975, 0
        %4036 = vmatprep.subr.bf16.mxu0 0
        %4037 = vmatpush1.bf16.msra.mxu0 %v4000
        %4038 = vmatprep.subr.bf16.mxu0 0
        %4039 = vmatpush1.bf16.msra.mxu0 %v4001
        %4040 = vmatprep.subr.bf16.mxu0 0
        %4041 = vmatpush1.bf16.msra.mxu0 %v4002
        %4042 = vmatprep.subr.bf16.mxu0 0
        %4043 = vmatpush1.bf16.msra.mxu0 %v4003
        %4044 = vmatprep.subr.bf16.mxu0 0
        %4045 = vmatpush1.bf16.msra.mxu0 %v4004
        %4046 = vmatprep.subr.bf16.mxu0 0
        %4047 = vmatpush1.bf16.msra.mxu0 %v4005
        %4048 = vmatprep.subr.bf16.mxu0 0
        %4049 = vmatpush1.bf16.msra.mxu0 0
        %4050 = vmatprep.subr.bf16.mxu0 0
        %4051 = vmatpush1.bf16.msra.mxu0 0
        %4052 = vmatprep.subr.bf16.mxu0 0
        %4053 = vmatpush1.bf16.msra.mxu0 0
        %4054 = vmatprep.subr.bf16.mxu0 0
        %4055 = vmatpush1.bf16.msra.mxu0 0
        %4056 = vmatprep.subr.bf16.mxu0 0
        %4057 = vmatpush1.bf16.msra.mxu0 0
        %4058 = vmatprep.subr.bf16.mxu0 0
        %4059 = vmatpush1.bf16.msra.mxu0 0
        %4060 = vmatprep.subr.bf16.mxu0 0
        %4061 = vmatpush1.bf16.msra.mxu0 0
        %4062 = vmatprep.subr.bf16.mxu0 0
        %4063 = vmatpush1.bf16.msra.mxu0 0
        %4064 = vmatprep.subr.bf16.mxu0 0
        %4065 = vmatpush1.bf16.msra.mxu0 0
        %4066 = vmatprep.subr.bf16.mxu0 0
        %4067 = vmatpush1.bf16.msra.mxu0 0
        %4068 = vmatprep.mubr.bf16.mxu0 0
        %4069 = vmatmul.mubr.bf16.gmra.mrb[0].mxu0 %v4013
        %v4070 = vpop.f32.mrb[0].mxu0
        %v4071 = vadd.f32 0.0, %v4070
        %v4072 = vpop.f32.mrb[0].mxu0
        %v4073 = vpop.f32.mrb[0].mxu0
        %v4074 = vadd.f32 0.0, %v4073
        %v4075 = vpop.f32.mrb[0].mxu0
        %4076 = vmatprep.mubr.bf16.mxu0 0
        %4077 = vmatmul.mubr.bf16.gmra.mrb[0].mxu0 %v4016
        %v4078 = vpop.f32.mrb[0].mxu0
        %v4079 = vadd.f32 0.0, %v4078
        %v4080 = vpop.f32.mrb[0].mxu0
        %v4081 = vpop.f32.mrb[0].mxu0
        %v4082 = vadd.f32 0.0, %v4081
        %v4083 = vpop.f32.mrb[0].mxu0
        %4084 = vmatprep.mubr.bf16.mxu0 0
        %4085 = vmatmul.mubr.bf16.gmra.mrb[0].mxu0 %v4019
        %v4086 = vpop.f32.mrb[0].mxu0
        %v4087 = vadd.f32 0.0, %v4086
        %v4088 = vpop.f32.mrb[0].mxu0
        %v4089 = vpop.f32.mrb[0].mxu0
        %v4090 = vadd.f32 0.0, %v4089
        %v4091 = vpop.f32.mrb[0].mxu0
        %4092 = vmatprep.mubr.bf16.mxu0 0
        %4093 = vmatmul.mubr.bf16.gmra.mrb[0].mxu0 %v4022
        %v4094 = vpop.f32.mrb[0].mxu0
        %v4095 = vadd.f32 0.0, %v4094
        %v4096 = vpop.f32.mrb[0].mxu0
        %v4097 = vpop.f32.mrb[0].mxu0
        %v4098 = vadd.f32 0.0, %v4097
        %v4099 = vpop.f32.mrb[0].mxu0
        %4100 = vmatprep.mubr.bf16.mxu0 0
        %4101 = vmatmul.mubr.bf16.gmra.mrb[0].mxu0 %v4025
        %v4102 = vpop.f32.mrb[0].mxu0
        %v4103 = vadd.f32 0.0, %v4102
        %v4104 = vpop.f32.mrb[0].mxu0
        %v4105 = vpop.f32.mrb[0].mxu0
        %v4106 = vadd.f32 0.0, %v4105
        %v4107 = vpop.f32.mrb[0].mxu0
        %4108 = vmatprep.mubr.bf16.mxu0 0
        %4109 = vmatmul.mubr.bf16.gmra.mrb[0].mxu0 %v4028
        %v4110 = vpop.f32.mrb[0].mxu0
        %v4111 = vadd.f32 0.0, %v4110
        %v4112 = vpop.f32.mrb[0].mxu0
        %v4113 = vpop.f32.mrb[0].mxu0
        %v4114 = vadd.f32 0.0, %v4113
        %v4115 = vpop.f32.mrb[0].mxu0
        %4116 = vmatprep.mubr.bf16.mxu0 0
        %4117 = vmatmul.mubr.bf16.gmra.mrb[0].mxu0 %v4031
        %v4118 = vpop.f32.mrb[0].mxu0
        %v4119 = vadd.f32 0.0, %v4118
        %v4120 = vpop.f32.mrb[0].mxu0
        %v4121 = vpop.f32.mrb[0].mxu0
        %v4122 = vadd.f32 0.0, %v4121
        %v4123 = vpop.f32.mrb[0].mxu0
        %4124 = vmatprep.mubr.bf16.mxu0 0
        %4125 = vmatmul.mubr.bf16.gmra.mrb[0].mxu0 %v4034
        %v4126 = vpop.f32.mrb[0].mxu0
        %v4127 = vadd.f32 0.0, %v4126
        %v4128 = vpop.f32.mrb[0].mxu0
        %v4129 = vpop.f32.mrb[0].mxu0
        %v4130 = vadd.f32 0.0, %v4129
        %v4131 = vpop.f32.mrb[0].mxu0
        %4132 = vdwg.mxu0
        %s4133 = scalar_lea.vmem %s6, 5
        %v4134 = vld [vmem:[%s4133] sm:$0x1]
        %v4136 = vlaneseq
        %v4137 = vshrl.u32 %v4136, 7
        %v4138 = vsub.s32 0, %v4137
        %v4139 = vrot.slane %v4134, %v4138
        %v4141 = vmul.f32 %v4071, %v4139
        %v4142 = vmul.f32 %v4074, %v4139
        %v4143 = vmul.f32 %v4079, %v4139
        %v4144 = vmul.f32 %v4082, %v4139
        %v4145 = vmul.f32 %v4087, %v4139
        %v4146 = vmul.f32 %v4090, %v4139
        %v4147 = vmul.f32 %v4095, %v4139
        %v4148 = vmul.f32 %v4098, %v4139
        %v4149 = vmul.f32 %v4103, %v4139
        %v4150 = vmul.f32 %v4106, %v4139
        %v4151 = vmul.f32 %v4111, %v4139
        %v4152 = vmul.f32 %v4114, %v4139
        %v4153 = vmul.f32 %v4119, %v4139
        %v4154 = vmul.f32 %v4122, %v4139
        %v4155 = vmul.f32 %v4127, %v4139
        %v4156 = vmul.f32 %v4130, %v4139
        %s4157 = scalar_lea.vmem %s7, 5
        %v4158 = vld [vmem:[%s4157] sm:$0x1]
        %v4160 = vlaneseq
        %v4161 = vshrl.u32 %v4160, 7
        %v4162 = vsub.s32 0, %v4161
        %v4163 = vrot.slane %v4158, %v4162
        %v4165 = vadd.f32 %v4141, %v4163
        %v4166 = vadd.f32 %v4142, %v4163
        %v4167 = vadd.f32 %v4143, %v4163
        %v4168 = vadd.f32 %v4144, %v4163
        %v4169 = vadd.f32 %v4145, %v4163
        %v4170 = vadd.f32 %v4146, %v4163
        %v4171 = vadd.f32 %v4147, %v4163
        %v4172 = vadd.f32 %v4148, %v4163
        %v4173 = vadd.f32 %v4149, %v4163
        %v4174 = vadd.f32 %v4150, %v4163
        %v4175 = vadd.f32 %v4151, %v4163
        %v4176 = vadd.f32 %v4152, %v4163
        %v4177 = vadd.f32 %v4153, %v4163
        %v4178 = vadd.f32 %v4154, %v4163
        %v4179 = vadd.f32 %v4155, %v4163
        %v4180 = vadd.f32 %v4156, %v4163
        %v4181 = vadd.f32 %v4165, %v3117
        %v4182 = vadd.f32 %v4166, %v3118
        %v4183 = vadd.f32 %v4167, %v3119
        %v4184 = vadd.f32 %v4168, %v3120
        %v4185 = vadd.f32 %v4169, %v3121
        %v4186 = vadd.f32 %v4170, %v3122
        %v4187 = vadd.f32 %v4171, %v3123
        %v4188 = vadd.f32 %v4172, %v3124
        %v4189 = vadd.f32 %v4173, %v3125
        %v4190 = vadd.f32 %v4174, %v3126
        %v4191 = vadd.f32 %v4175, %v3127
        %v4192 = vadd.f32 %v4176, %v3128
        %v4193 = vadd.f32 %v4177, %v3129
        %v4194 = vadd.f32 %v4178, %v3130
        %v4195 = vadd.f32 %v4179, %v3131
        %v4196 = vadd.f32 %v4180, %v3132
        %v4197 = vmax.f32 %v4181, 0.0
        %v4198 = vmax.f32 %v4182, 0.0
        %v4199 = vmax.f32 %v4183, 0.0
        %v4200 = vmax.f32 %v4184, 0.0
        %v4201 = vmax.f32 %v4185, 0.0
        %v4202 = vmax.f32 %v4186, 0.0
        %v4203 = vmax.f32 %v4187, 0.0
        %v4204 = vmax.f32 %v4188, 0.0
        %v4205 = vmax.f32 %v4189, 0.0
        %v4206 = vmax.f32 %v4190, 0.0
        %v4207 = vmax.f32 %v4191, 0.0
        %v4208 = vmax.f32 %v4192, 0.0
        %v4209 = vmax.f32 %v4193, 0.0
        %v4210 = vmax.f32 %v4194, 0.0
        %v4211 = vmax.f32 %v4195, 0.0
        %v4212 = vmax.f32 %v4196, 0.0
        %s4213 = scalar_lea.vmem %s5, 288
        %v4214 = vld [vmem:[%s4213] sm:$0xf]
        %v4215 = vld [vmem:[%s4213 + $0x4] sm:$0xf]
        %v4216 = vld [vmem:[%s4213 + $0x8] sm:$0xf]
        %v4217 = vld [vmem:[%s4213 + $0xc] sm:$0xf]
        %v4218 = vld [vmem:[%s4213 + $0x10] sm:$0xf]
        %v4219 = vld [vmem:[%s4213 + $0x14] sm:$0xf]
        %v4220 = vld [vmem:[%s4213 + $0x18] sm:$0xf]
        %v4221 = vld [vmem:[%s4213 + $0x1c] sm:$0xf]
        %v4222 = vld [vmem:[%s4213 + $0x20] sm:$0xf]
        %v4223 = vld [vmem:[%s4213 + $0x24] sm:$0xf]
        %v4224 = vld [vmem:[%s4213 + $0x28] sm:$0xf]
        %v4225 = vld [vmem:[%s4213 + $0x2c] sm:$0xf]
        %v4227 = vrot.slane %v4212, 7
        %v4244 = vrot.slane %v4197, 7
        %v4245 = vrot.slane %v4198, 7
        %v4246 = vsel %vm375, %v4244, %v4245
        %v4247 = vrot.slane %v4199, 7
        %v4248 = vsel %vm375, %v4245, %v4247
        %v4249 = vrot.slane %v4200, 7
        %v4250 = vsel %vm375, %v4247, %v4249
        %v4251 = vrot.slane %v4201, 7
        %v4252 = vsel %vm375, %v4249, %v4251
        %v4253 = vrot.slane %v4202, 7
        %v4254 = vsel %vm375, %v4251, %v4253
        %v4255 = vrot.slane %v4203, 7
        %v4256 = vsel %vm375, %v4253, %v4255
        %v4257 = vrot.slane %v4204, 7
        %v4258 = vsel %vm375, %v4255, %v4257
        %v4259 = vrot.slane %v4205, 7
        %v4260 = vsel %vm375, %v4257, %v4259
        %v4261 = vrot.slane %v4206, 7
        %v4262 = vsel %vm375, %v4259, %v4261
        %v4263 = vrot.slane %v4207, 7
        %v4264 = vsel %vm375, %v4261, %v4263
        %v4265 = vrot.slane %v4208, 7
        %v4266 = vsel %vm375, %v4263, %v4265
        %v4267 = vrot.slane %v4209, 7
        %v4268 = vsel %vm375, %v4265, %v4267
        %v4269 = vrot.slane %v4210, 7
        %v4270 = vsel %vm375, %v4267, %v4269
        %v4271 = vrot.slane %v4211, 7
        %v4272 = vsel %vm375, %v4269, %v4271
        %v4273 = vsel %vm375, %v4271, %v4227
        %v4290 = vsel %vm375, %v4227, %v4244
        %v4291 = vsel %vm941, 0.0, %v4290
        %v4292 = vsel %vm942, 0.0, %v4246
        %v4293 = vsel %vm943, 0.0, %v4248
        %v4294 = vsel %vm944, 0.0, %v4250
        %v4295 = vsel %vm945, 0.0, %v4252
        %v4296 = vsel %vm946, 0.0, %v4254
        %v4297 = vsel %vm947, 0.0, %v4256
        %v4298 = vsel %vm948, 0.0, %v4258
        %v4299 = vsel %vm949, 0.0, %v4260
        %v4300 = vsel %vm950, 0.0, %v4262
        %v4301 = vsel %vm951, 0.0, %v4264
        %v4302 = vsel %vm952, 0.0, %v4266
        %v4303 = vsel %vm953, 0.0, %v4268
        %v4304 = vsel %vm954, 0.0, %v4270
        %v4305 = vsel %vm955, 0.0, %v4272
        %v4306 = vsel %vm956, 0.0, %v4273
        %v4307 = vrot.slane %v4197, 1
        %v4308 = vrot.slane %v4198, 1
        %v4309 = vsel %vm1066, %v4307, %v4308
        %v4310 = vrot.slane %v4199, 1
        %v4311 = vsel %vm1066, %v4308, %v4310
        %v4312 = vrot.slane %v4200, 1
        %v4313 = vsel %vm1066, %v4310, %v4312
        %v4314 = vrot.slane %v4201, 1
        %v4315 = vsel %vm1066, %v4312, %v4314
        %v4316 = vrot.slane %v4202, 1
        %v4317 = vsel %vm1066, %v4314, %v4316
        %v4318 = vrot.slane %v4203, 1
        %v4319 = vsel %vm1066, %v4316, %v4318
        %v4320 = vrot.slane %v4204, 1
        %v4321 = vsel %vm1066, %v4318, %v4320
        %v4322 = vrot.slane %v4205, 1
        %v4323 = vsel %vm1066, %v4320, %v4322
        %v4324 = vrot.slane %v4206, 1
        %v4325 = vsel %vm1066, %v4322, %v4324
        %v4326 = vrot.slane %v4207, 1
        %v4327 = vsel %vm1066, %v4324, %v4326
        %v4328 = vrot.slane %v4208, 1
        %v4329 = vsel %vm1066, %v4326, %v4328
        %v4330 = vrot.slane %v4209, 1
        %v4331 = vsel %vm1066, %v4328, %v4330
        %v4332 = vrot.slane %v4210, 1
        %v4333 = vsel %vm1066, %v4330, %v4332
        %v4334 = vrot.slane %v4211, 1
        %v4335 = vsel %vm1066, %v4332, %v4334
        %v4336 = vrot.slane %v4212, 1
        %v4337 = vsel %vm1066, %v4334, %v4336
        %v4355 = vsel %vm1066, %v4336, %v4307
        %v4356 = vsel %vm957, 0.0, %v4309
        %v4357 = vsel %vm958, 0.0, %v4311
        %v4358 = vsel %vm959, 0.0, %v4313
        %v4359 = vsel %vm960, 0.0, %v4315
        %v4360 = vsel %vm961, 0.0, %v4317
        %v4361 = vsel %vm962, 0.0, %v4319
        %v4362 = vsel %vm963, 0.0, %v4321
        %v4363 = vsel %vm964, 0.0, %v4323
        %v4364 = vsel %vm965, 0.0, %v4325
        %v4365 = vsel %vm966, 0.0, %v4327
        %v4366 = vsel %vm967, 0.0, %v4329
        %v4367 = vsel %vm968, 0.0, %v4331
        %v4368 = vsel %vm969, 0.0, %v4333
        %v4369 = vsel %vm970, 0.0, %v4335
        %v4370 = vsel %vm971, 0.0, %v4337
        %v4371 = vsel %vm972, 0.0, %v4355
        %4372 = vrot.lane.b32.xlu0 %v4197, 32
        %v4373 = vpop.permute.xlu0 %4372
        %4374 = vrot.lane.b32.xlu0 %v4198, 32
        %v4375 = vpop.permute.xlu0 %4374
        %4376 = vrot.lane.b32.xlu0 %v4199, 32
        %v4377 = vpop.permute.xlu0 %4376
        %4378 = vrot.lane.b32.xlu0 %v4200, 32
        %v4379 = vpop.permute.xlu0 %4378
        %4380 = vrot.lane.b32.xlu0 %v4201, 32
        %v4381 = vpop.permute.xlu0 %4380
        %4382 = vrot.lane.b32.xlu0 %v4202, 32
        %v4383 = vpop.permute.xlu0 %4382
        %4384 = vrot.lane.b32.xlu0 %v4203, 32
        %v4385 = vpop.permute.xlu0 %4384
        %4386 = vrot.lane.b32.xlu0 %v4204, 32
        %v4387 = vpop.permute.xlu0 %4386
        %4388 = vrot.lane.b32.xlu0 %v4205, 32
        %v4389 = vpop.permute.xlu0 %4388
        %4390 = vrot.lane.b32.xlu0 %v4206, 32
        %v4391 = vpop.permute.xlu0 %4390
        %4392 = vrot.lane.b32.xlu0 %v4207, 32
        %v4393 = vpop.permute.xlu0 %4392
        %4394 = vrot.lane.b32.xlu0 %v4208, 32
        %v4395 = vpop.permute.xlu0 %4394
        %4396 = vrot.lane.b32.xlu0 %v4209, 32
        %v4397 = vpop.permute.xlu0 %4396
        %4398 = vrot.lane.b32.xlu0 %v4210, 32
        %v4399 = vpop.permute.xlu0 %4398
        %4400 = vrot.lane.b32.xlu0 %v4211, 32
        %v4401 = vpop.permute.xlu0 %4400
        %4402 = vrot.lane.b32.xlu0 %v4212, 32
        %v4403 = vpop.permute.xlu0 %4402
        %4436 = vrot.lane.b32.xlu0 %v4356, 64
        %v4437 = vpop.permute.xlu0 %4436
        %4438 = vrot.lane.b32.xlu0 %v4357, 64
        %v4439 = vpop.permute.xlu0 %4438
        %4440 = vrot.lane.b32.xlu0 %v4358, 64
        %v4441 = vpop.permute.xlu0 %4440
        %4442 = vrot.lane.b32.xlu0 %v4359, 64
        %v4443 = vpop.permute.xlu0 %4442
        %4444 = vrot.lane.b32.xlu0 %v4360, 64
        %v4445 = vpop.permute.xlu0 %4444
        %4446 = vrot.lane.b32.xlu0 %v4361, 64
        %v4447 = vpop.permute.xlu0 %4446
        %4448 = vrot.lane.b32.xlu0 %v4362, 64
        %v4449 = vpop.permute.xlu0 %4448
        %4450 = vrot.lane.b32.xlu0 %v4363, 64
        %v4451 = vpop.permute.xlu0 %4450
        %4452 = vrot.lane.b32.xlu0 %v4364, 64
        %v4453 = vpop.permute.xlu0 %4452
        %4454 = vrot.lane.b32.xlu0 %v4365, 64
        %v4455 = vpop.permute.xlu0 %4454
        %4456 = vrot.lane.b32.xlu0 %v4366, 64
        %v4457 = vpop.permute.xlu0 %4456
        %4458 = vrot.lane.b32.xlu0 %v4367, 64
        %v4459 = vpop.permute.xlu0 %4458
        %4460 = vrot.lane.b32.xlu0 %v4368, 64
        %v4461 = vpop.permute.xlu0 %4460
        %4462 = vrot.lane.b32.xlu0 %v4369, 64
        %v4463 = vpop.permute.xlu0 %4462
        %4464 = vrot.lane.b32.xlu0 %v4370, 64
        %v4465 = vpop.permute.xlu0 %4464
        %4466 = vrot.lane.b32.xlu0 %v4371, 64
        %v4467 = vpop.permute.xlu0 %4466
        %v4484 = vsel %vm548, %v4291, %v4373
        %v4485 = vsel %vm548, %v4292, %v4375
        %v4486 = vsel %vm548, %v4293, %v4377
        %v4487 = vsel %vm548, %v4294, %v4379
        %v4488 = vsel %vm548, %v4295, %v4381
        %v4489 = vsel %vm548, %v4296, %v4383
        %v4490 = vsel %vm548, %v4297, %v4385
        %v4491 = vsel %vm548, %v4298, %v4387
        %v4492 = vsel %vm548, %v4299, %v4389
        %v4493 = vsel %vm548, %v4300, %v4391
        %v4494 = vsel %vm548, %v4301, %v4393
        %v4495 = vsel %vm548, %v4302, %v4395
        %v4496 = vsel %vm548, %v4303, %v4397
        %v4497 = vsel %vm548, %v4304, %v4399
        %v4498 = vsel %vm548, %v4305, %v4401
        %v4499 = vsel %vm548, %v4306, %v4403
        %v4500 = vsel %vm1260, %v4484, %v4437
        %v4501 = vsel %vm1260, %v4485, %v4439
        %v4502 = vsel %vm1260, %v4486, %v4441
        %v4503 = vsel %vm1260, %v4487, %v4443
        %v4504 = vsel %vm1260, %v4488, %v4445
        %v4505 = vsel %vm1260, %v4489, %v4447
        %v4506 = vsel %vm1260, %v4490, %v4449
        %v4507 = vsel %vm1260, %v4491, %v4451
        %v4508 = vsel %vm1260, %v4492, %v4453
        %v4509 = vsel %vm1260, %v4493, %v4455
        %v4510 = vsel %vm1260, %v4494, %v4457
        %v4511 = vsel %vm1260, %v4495, %v4459
        %v4512 = vsel %vm1260, %v4496, %v4461
        %v4513 = vsel %vm1260, %v4497, %v4463
        %v4514 = vsel %vm1260, %v4498, %v4465
        %v4515 = vsel %vm1260, %v4499, %v4467
        %v4516 = vpack.c.bf16 %v4501, %v4500
        %v4517 = vpack.c.bf16 %v4503, %v4502
        %v4518 = vpack.c.bf16 %v4505, %v4504
        %v4519 = vpack.c.bf16 %v4507, %v4506
        %v4520 = vpack.c.bf16 %v4509, %v4508
        %v4521 = vpack.c.bf16 %v4511, %v4510
        %v4522 = vpack.c.bf16 %v4513, %v4512
        %v4523 = vpack.c.bf16 %v4515, %v4514
        %v4536 = vunpack.c.l.b16 %v4214
        %v4537 = vunpack.c.l.b16 %v4215
        %v4538 = vunpack.c.l.b16 %v4216
        %v4539 = vunpack.c.l.b16 %v4217
        %v4540 = vunpack.c.l.b16 %v4218
        %v4541 = vunpack.c.l.b16 %v4219
        %v4542 = vunpack.c.l.b16 %v4220
        %v4543 = vunpack.c.l.b16 %v4221
        %v4544 = vunpack.c.l.b16 %v4222
        %v4545 = vunpack.c.l.b16 %v4223
        %v4546 = vunpack.c.l.b16 %v4224
        %v4547 = vunpack.c.l.b16 %v4225
        %v4548 = vpack.c.b16 %v4537, %v4536
        %v4549 = vpack.c.b16 %v4539, %v4538
        %v4550 = vpack.c.b16 %v4541, %v4540
        %v4551 = vpack.c.b16 %v4543, %v4542
        %v4552 = vpack.c.b16 %v4545, %v4544
        %v4553 = vpack.c.b16 %v4547, %v4546
        %v4561 = vsel %vm1321, %v4516, 0
        %v4564 = vsel %vm1321, %v4517, 0
        %v4567 = vsel %vm1321, %v4518, 0
        %v4570 = vsel %vm1321, %v4519, 0
        %v4573 = vsel %vm1321, %v4520, 0
        %v4576 = vsel %vm1321, %v4521, 0
        %v4579 = vsel %vm1321, %v4522, 0
        %v4582 = vsel %vm1321, %v4523, 0
        %4584 = vmatprep.subr.bf16.mxu0 0
        %4585 = vmatpush1.bf16.msra.mxu0 %v4548
        %4586 = vmatprep.subr.bf16.mxu0 0
        %4587 = vmatpush1.bf16.msra.mxu0 %v4549
        %4588 = vmatprep.subr.bf16.mxu0 0
        %4589 = vmatpush1.bf16.msra.mxu0 %v4550
        %4590 = vmatprep.subr.bf16.mxu0 0
        %4591 = vmatpush1.bf16.msra.mxu0 %v4551
        %4592 = vmatprep.subr.bf16.mxu0 0
        %4593 = vmatpush1.bf16.msra.mxu0 %v4552
        %4594 = vmatprep.subr.bf16.mxu0 0
        %4595 = vmatpush1.bf16.msra.mxu0 %v4553
        %4596 = vmatprep.subr.bf16.mxu0 0
        %4597 = vmatpush1.bf16.msra.mxu0 0
        %4598 = vmatprep.subr.bf16.mxu0 0
        %4599 = vmatpush1.bf16.msra.mxu0 0
        %4600 = vmatprep.subr.bf16.mxu0 0
        %4601 = vmatpush1.bf16.msra.mxu0 0
        %4602 = vmatprep.subr.bf16.mxu0 0
        %4603 = vmatpush1.bf16.msra.mxu0 0
        %4604 = vmatprep.subr.bf16.mxu0 0
        %4605 = vmatpush1.bf16.msra.mxu0 0
        %4606 = vmatprep.subr.bf16.mxu0 0
        %4607 = vmatpush1.bf16.msra.mxu0 0
        %4608 = vmatprep.subr.bf16.mxu0 0
        %4609 = vmatpush1.bf16.msra.mxu0 0
        %4610 = vmatprep.subr.bf16.mxu0 0
        %4611 = vmatpush1.bf16.msra.mxu0 0
        %4612 = vmatprep.subr.bf16.mxu0 0
        %4613 = vmatpush1.bf16.msra.mxu0 0
        %4614 = vmatprep.subr.bf16.mxu0 0
        %4615 = vmatpush1.bf16.msra.mxu0 0
        %4616 = vmatprep.mubr.bf16.mxu0 0
        %4617 = vmatmul.mubr.bf16.gmra.mrb[0].mxu0 %v4561
        %v4618 = vpop.f32.mrb[0].mxu0
        %v4619 = vadd.f32 0.0, %v4618
        %v4620 = vpop.f32.mrb[0].mxu0
        %v4621 = vpop.f32.mrb[0].mxu0
        %v4622 = vadd.f32 0.0, %v4621
        %v4623 = vpop.f32.mrb[0].mxu0
        %4624 = vmatprep.mubr.bf16.mxu0 0
        %4625 = vmatmul.mubr.bf16.gmra.mrb[0].mxu0 %v4564
        %v4626 = vpop.f32.mrb[0].mxu0
        %v4627 = vadd.f32 0.0, %v4626
        %v4628 = vpop.f32.mrb[0].mxu0
        %v4629 = vpop.f32.mrb[0].mxu0
        %v4630 = vadd.f32 0.0, %v4629
        %v4631 = vpop.f32.mrb[0].mxu0
        %4632 = vmatprep.mubr.bf16.mxu0 0
        %4633 = vmatmul.mubr.bf16.gmra.mrb[0].mxu0 %v4567
        %v4634 = vpop.f32.mrb[0].mxu0
        %v4635 = vadd.f32 0.0, %v4634
        %v4636 = vpop.f32.mrb[0].mxu0
        %v4637 = vpop.f32.mrb[0].mxu0
        %v4638 = vadd.f32 0.0, %v4637
        %v4639 = vpop.f32.mrb[0].mxu0
        %4640 = vmatprep.mubr.bf16.mxu0 0
        %4641 = vmatmul.mubr.bf16.gmra.mrb[0].mxu0 %v4570
        %v4642 = vpop.f32.mrb[0].mxu0
        %v4643 = vadd.f32 0.0, %v4642
        %v4644 = vpop.f32.mrb[0].mxu0
        %v4645 = vpop.f32.mrb[0].mxu0
        %v4646 = vadd.f32 0.0, %v4645
        %v4647 = vpop.f32.mrb[0].mxu0
        %4648 = vmatprep.mubr.bf16.mxu0 0
        %4649 = vmatmul.mubr.bf16.gmra.mrb[0].mxu0 %v4573
        %v4650 = vpop.f32.mrb[0].mxu0
        %v4651 = vadd.f32 0.0, %v4650
        %v4652 = vpop.f32.mrb[0].mxu0
        %v4653 = vpop.f32.mrb[0].mxu0
        %v4654 = vadd.f32 0.0, %v4653
        %v4655 = vpop.f32.mrb[0].mxu0
        %4656 = vmatprep.mubr.bf16.mxu0 0
        %4657 = vmatmul.mubr.bf16.gmra.mrb[0].mxu0 %v4576
        %v4658 = vpop.f32.mrb[0].mxu0
        %v4659 = vadd.f32 0.0, %v4658
        %v4660 = vpop.f32.mrb[0].mxu0
        %v4661 = vpop.f32.mrb[0].mxu0
        %v4662 = vadd.f32 0.0, %v4661
        %v4663 = vpop.f32.mrb[0].mxu0
        %4664 = vmatprep.mubr.bf16.mxu0 0
        %4665 = vmatmul.mubr.bf16.gmra.mrb[0].mxu0 %v4579
        %v4666 = vpop.f32.mrb[0].mxu0
        %v4667 = vadd.f32 0.0, %v4666
        %v4668 = vpop.f32.mrb[0].mxu0
        %v4669 = vpop.f32.mrb[0].mxu0
        %v4670 = vadd.f32 0.0, %v4669
        %v4671 = vpop.f32.mrb[0].mxu0
        %4672 = vmatprep.mubr.bf16.mxu0 0
        %4673 = vmatmul.mubr.bf16.gmra.mrb[0].mxu0 %v4582
        %v4674 = vpop.f32.mrb[0].mxu0
        %v4675 = vadd.f32 0.0, %v4674
        %v4676 = vpop.f32.mrb[0].mxu0
        %v4677 = vpop.f32.mrb[0].mxu0
        %v4678 = vadd.f32 0.0, %v4677
        %v4679 = vpop.f32.mrb[0].mxu0
        %4680 = vdwg.mxu0
        %s4681 = scalar_lea.vmem %s6, 6
        %v4682 = vld [vmem:[%s4681] sm:$0x1]
        %v4684 = vlaneseq
        %v4685 = vshrl.u32 %v4684, 7
        %v4686 = vsub.s32 0, %v4685
        %v4687 = vrot.slane %v4682, %v4686
        %v4689 = vmul.f32 %v4619, %v4687
        %v4690 = vmul.f32 %v4622, %v4687
        %v4691 = vmul.f32 %v4627, %v4687
        %v4692 = vmul.f32 %v4630, %v4687
        %v4693 = vmul.f32 %v4635, %v4687
        %v4694 = vmul.f32 %v4638, %v4687
        %v4695 = vmul.f32 %v4643, %v4687
        %v4696 = vmul.f32 %v4646, %v4687
        %v4697 = vmul.f32 %v4651, %v4687
        %v4698 = vmul.f32 %v4654, %v4687
        %v4699 = vmul.f32 %v4659, %v4687
        %v4700 = vmul.f32 %v4662, %v4687
        %v4701 = vmul.f32 %v4667, %v4687
        %v4702 = vmul.f32 %v4670, %v4687
        %v4703 = vmul.f32 %v4675, %v4687
        %v4704 = vmul.f32 %v4678, %v4687
        %s4705 = scalar_lea.vmem %s7, 6
        %v4706 = vld [vmem:[%s4705] sm:$0x1]
        %v4708 = vlaneseq
        %v4709 = vshrl.u32 %v4708, 7
        %v4710 = vsub.s32 0, %v4709
        %v4711 = vrot.slane %v4706, %v4710
        %v4713 = vadd.f32 %v4689, %v4711
        %v4714 = vadd.f32 %v4690, %v4711
        %v4715 = vadd.f32 %v4691, %v4711
        %v4716 = vadd.f32 %v4692, %v4711
        %v4717 = vadd.f32 %v4693, %v4711
        %v4718 = vadd.f32 %v4694, %v4711
        %v4719 = vadd.f32 %v4695, %v4711
        %v4720 = vadd.f32 %v4696, %v4711
        %v4721 = vadd.f32 %v4697, %v4711
        %v4722 = vadd.f32 %v4698, %v4711
        %v4723 = vadd.f32 %v4699, %v4711
        %v4724 = vadd.f32 %v4700, %v4711
        %v4725 = vadd.f32 %v4701, %v4711
        %v4726 = vadd.f32 %v4702, %v4711
        %v4727 = vadd.f32 %v4703, %v4711
        %v4728 = vadd.f32 %v4704, %v4711
        %v4729 = vmax.f32 %v4713, 0.0
        %v4730 = vmax.f32 %v4714, 0.0
        %v4731 = vmax.f32 %v4715, 0.0
        %v4732 = vmax.f32 %v4716, 0.0
        %v4733 = vmax.f32 %v4717, 0.0
        %v4734 = vmax.f32 %v4718, 0.0
        %v4735 = vmax.f32 %v4719, 0.0
        %v4736 = vmax.f32 %v4720, 0.0
        %v4737 = vmax.f32 %v4721, 0.0
        %v4738 = vmax.f32 %v4722, 0.0
        %v4739 = vmax.f32 %v4723, 0.0
        %v4740 = vmax.f32 %v4724, 0.0
        %v4741 = vmax.f32 %v4725, 0.0
        %v4742 = vmax.f32 %v4726, 0.0
        %v4743 = vmax.f32 %v4727, 0.0
        %v4744 = vmax.f32 %v4728, 0.0
        %s4745 = scalar_lea.vmem %s5, 336
        %v4746 = vld [vmem:[%s4745] sm:$0xf]
        %v4747 = vld [vmem:[%s4745 + $0x4] sm:$0xf]
        %v4748 = vld [vmem:[%s4745 + $0x8] sm:$0xf]
        %v4749 = vld [vmem:[%s4745 + $0xc] sm:$0xf]
        %v4750 = vld [vmem:[%s4745 + $0x10] sm:$0xf]
        %v4751 = vld [vmem:[%s4745 + $0x14] sm:$0xf]
        %v4752 = vld [vmem:[%s4745 + $0x18] sm:$0xf]
        %v4753 = vld [vmem:[%s4745 + $0x1c] sm:$0xf]
        %v4754 = vld [vmem:[%s4745 + $0x20] sm:$0xf]
        %v4755 = vld [vmem:[%s4745 + $0x24] sm:$0xf]
        %v4756 = vld [vmem:[%s4745 + $0x28] sm:$0xf]
        %v4757 = vld [vmem:[%s4745 + $0x2c] sm:$0xf]
        %v4759 = vrot.slane %v4744, 7
        %v4776 = vrot.slane %v4729, 7
        %v4777 = vrot.slane %v4730, 7
        %v4778 = vsel %vm375, %v4776, %v4777
        %v4779 = vrot.slane %v4731, 7
        %v4780 = vsel %vm375, %v4777, %v4779
        %v4781 = vrot.slane %v4732, 7
        %v4782 = vsel %vm375, %v4779, %v4781
        %v4783 = vrot.slane %v4733, 7
        %v4784 = vsel %vm375, %v4781, %v4783
        %v4785 = vrot.slane %v4734, 7
        %v4786 = vsel %vm375, %v4783, %v4785
        %v4787 = vrot.slane %v4735, 7
        %v4788 = vsel %vm375, %v4785, %v4787
        %v4789 = vrot.slane %v4736, 7
        %v4790 = vsel %vm375, %v4787, %v4789
        %v4791 = vrot.slane %v4737, 7
        %v4792 = vsel %vm375, %v4789, %v4791
        %v4793 = vrot.slane %v4738, 7
        %v4794 = vsel %vm375, %v4791, %v4793
        %v4795 = vrot.slane %v4739, 7
        %v4796 = vsel %vm375, %v4793, %v4795
        %v4797 = vrot.slane %v4740, 7
        %v4798 = vsel %vm375, %v4795, %v4797
        %v4799 = vrot.slane %v4741, 7
        %v4800 = vsel %vm375, %v4797, %v4799
        %v4801 = vrot.slane %v4742, 7
        %v4802 = vsel %vm375, %v4799, %v4801
        %v4803 = vrot.slane %v4743, 7
        %v4804 = vsel %vm375, %v4801, %v4803
        %v4805 = vsel %vm375, %v4803, %v4759
        %v4822 = vsel %vm375, %v4759, %v4776
        %v4823 = vsel %vm941, 0.0, %v4822
        %v4824 = vsel %vm942, 0.0, %v4778
        %v4825 = vsel %vm943, 0.0, %v4780
        %v4826 = vsel %vm944, 0.0, %v4782
        %v4827 = vsel %vm945, 0.0, %v4784
        %v4828 = vsel %vm946, 0.0, %v4786
        %v4829 = vsel %vm947, 0.0, %v4788
        %v4830 = vsel %vm948, 0.0, %v4790
        %v4831 = vsel %vm949, 0.0, %v4792
        %v4832 = vsel %vm950, 0.0, %v4794
        %v4833 = vsel %vm951, 0.0, %v4796
        %v4834 = vsel %vm952, 0.0, %v4798
        %v4835 = vsel %vm953, 0.0, %v4800
        %v4836 = vsel %vm954, 0.0, %v4802
        %v4837 = vsel %vm955, 0.0, %v4804
        %v4838 = vsel %vm956, 0.0, %v4805
        %v4839 = vrot.slane %v4729, 1
        %v4840 = vrot.slane %v4730, 1
        %v4841 = vsel %vm1066, %v4839, %v4840
        %v4842 = vrot.slane %v4731, 1
        %v4843 = vsel %vm1066, %v4840, %v4842
        %v4844 = vrot.slane %v4732, 1
        %v4845 = vsel %vm1066, %v4842, %v4844
        %v4846 = vrot.slane %v4733, 1
        %v4847 = vsel %vm1066, %v4844, %v4846
        %v4848 = vrot.slane %v4734, 1
        %v4849 = vsel %vm1066, %v4846, %v4848
        %v4850 = vrot.slane %v4735, 1
        %v4851 = vsel %vm1066, %v4848, %v4850
        %v4852 = vrot.slane %v4736, 1
        %v4853 = vsel %vm1066, %v4850, %v4852
        %v4854 = vrot.slane %v4737, 1
        %v4855 = vsel %vm1066, %v4852, %v4854
        %v4856 = vrot.slane %v4738, 1
        %v4857 = vsel %vm1066, %v4854, %v4856
        %v4858 = vrot.slane %v4739, 1
        %v4859 = vsel %vm1066, %v4856, %v4858
        %v4860 = vrot.slane %v4740, 1
        %v4861 = vsel %vm1066, %v4858, %v4860
        %v4862 = vrot.slane %v4741, 1
        %v4863 = vsel %vm1066, %v4860, %v4862
        %v4864 = vrot.slane %v4742, 1
        %v4865 = vsel %vm1066, %v4862, %v4864
        %v4866 = vrot.slane %v4743, 1
        %v4867 = vsel %vm1066, %v4864, %v4866
        %v4868 = vrot.slane %v4744, 1
        %v4869 = vsel %vm1066, %v4866, %v4868
        %v4887 = vsel %vm1066, %v4868, %v4839
        %v4888 = vsel %vm957, 0.0, %v4841
        %v4889 = vsel %vm958, 0.0, %v4843
        %v4890 = vsel %vm959, 0.0, %v4845
        %v4891 = vsel %vm960, 0.0, %v4847
        %v4892 = vsel %vm961, 0.0, %v4849
        %v4893 = vsel %vm962, 0.0, %v4851
        %v4894 = vsel %vm963, 0.0, %v4853
        %v4895 = vsel %vm964, 0.0, %v4855
        %v4896 = vsel %vm965, 0.0, %v4857
        %v4897 = vsel %vm966, 0.0, %v4859
        %v4898 = vsel %vm967, 0.0, %v4861
        %v4899 = vsel %vm968, 0.0, %v4863
        %v4900 = vsel %vm969, 0.0, %v4865
        %v4901 = vsel %vm970, 0.0, %v4867
        %v4902 = vsel %vm971, 0.0, %v4869
        %v4903 = vsel %vm972, 0.0, %v4887
        %4904 = vrot.lane.b32.xlu0 %v4729, 32
        %v4905 = vpop.permute.xlu0 %4904
        %4906 = vrot.lane.b32.xlu0 %v4730, 32
        %v4907 = vpop.permute.xlu0 %4906
        %4908 = vrot.lane.b32.xlu0 %v4731, 32
        %v4909 = vpop.permute.xlu0 %4908
        %4910 = vrot.lane.b32.xlu0 %v4732, 32
        %v4911 = vpop.permute.xlu0 %4910
        %4912 = vrot.lane.b32.xlu0 %v4733, 32
        %v4913 = vpop.permute.xlu0 %4912
        %4914 = vrot.lane.b32.xlu0 %v4734, 32
        %v4915 = vpop.permute.xlu0 %4914
        %4916 = vrot.lane.b32.xlu0 %v4735, 32
        %v4917 = vpop.permute.xlu0 %4916
        %4918 = vrot.lane.b32.xlu0 %v4736, 32
        %v4919 = vpop.permute.xlu0 %4918
        %4920 = vrot.lane.b32.xlu0 %v4737, 32
        %v4921 = vpop.permute.xlu0 %4920
        %4922 = vrot.lane.b32.xlu0 %v4738, 32
        %v4923 = vpop.permute.xlu0 %4922
        %4924 = vrot.lane.b32.xlu0 %v4739, 32
        %v4925 = vpop.permute.xlu0 %4924
        %4926 = vrot.lane.b32.xlu0 %v4740, 32
        %v4927 = vpop.permute.xlu0 %4926
        %4928 = vrot.lane.b32.xlu0 %v4741, 32
        %v4929 = vpop.permute.xlu0 %4928
        %4930 = vrot.lane.b32.xlu0 %v4742, 32
        %v4931 = vpop.permute.xlu0 %4930
        %4932 = vrot.lane.b32.xlu0 %v4743, 32
        %v4933 = vpop.permute.xlu0 %4932
        %4934 = vrot.lane.b32.xlu0 %v4744, 32
        %v4935 = vpop.permute.xlu0 %4934
        %4968 = vrot.lane.b32.xlu0 %v4888, 64
        %v4969 = vpop.permute.xlu0 %4968
        %4970 = vrot.lane.b32.xlu0 %v4889, 64
        %v4971 = vpop.permute.xlu0 %4970
        %4972 = vrot.lane.b32.xlu0 %v4890, 64
        %v4973 = vpop.permute.xlu0 %4972
        %4974 = vrot.lane.b32.xlu0 %v4891, 64
        %v4975 = vpop.permute.xlu0 %4974
        %4976 = vrot.lane.b32.xlu0 %v4892, 64
        %v4977 = vpop.permute.xlu0 %4976
        %4978 = vrot.lane.b32.xlu0 %v4893, 64
        %v4979 = vpop.permute.xlu0 %4978
        %4980 = vrot.lane.b32.xlu0 %v4894, 64
        %v4981 = vpop.permute.xlu0 %4980
        %4982 = vrot.lane.b32.xlu0 %v4895, 64
        %v4983 = vpop.permute.xlu0 %4982
        %4984 = vrot.lane.b32.xlu0 %v4896, 64
        %v4985 = vpop.permute.xlu0 %4984
        %4986 = vrot.lane.b32.xlu0 %v4897, 64
        %v4987 = vpop.permute.xlu0 %4986
        %4988 = vrot.lane.b32.xlu0 %v4898, 64
        %v4989 = vpop.permute.xlu0 %4988
        %4990 = vrot.lane.b32.xlu0 %v4899, 64
        %v4991 = vpop.permute.xlu0 %4990
        %4992 = vrot.lane.b32.xlu0 %v4900, 64
        %v4993 = vpop.permute.xlu0 %4992
        %4994 = vrot.lane.b32.xlu0 %v4901, 64
        %v4995 = vpop.permute.xlu0 %4994
        %4996 = vrot.lane.b32.xlu0 %v4902, 64
        %v4997 = vpop.permute.xlu0 %4996
        %4998 = vrot.lane.b32.xlu0 %v4903, 64
        %v4999 = vpop.permute.xlu0 %4998
        %v5016 = vsel %vm548, %v4823, %v4905
        %v5017 = vsel %vm548, %v4824, %v4907
        %v5018 = vsel %vm548, %v4825, %v4909
        %v5019 = vsel %vm548, %v4826, %v4911
        %v5020 = vsel %vm548, %v4827, %v4913
        %v5021 = vsel %vm548, %v4828, %v4915
        %v5022 = vsel %vm548, %v4829, %v4917
        %v5023 = vsel %vm548, %v4830, %v4919
        %v5024 = vsel %vm548, %v4831, %v4921
        %v5025 = vsel %vm548, %v4832, %v4923
        %v5026 = vsel %vm548, %v4833, %v4925
        %v5027 = vsel %vm548, %v4834, %v4927
        %v5028 = vsel %vm548, %v4835, %v4929
        %v5029 = vsel %vm548, %v4836, %v4931
        %v5030 = vsel %vm548, %v4837, %v4933
        %v5031 = vsel %vm548, %v4838, %v4935
        %v5032 = vsel %vm1260, %v5016, %v4969
        %v5033 = vsel %vm1260, %v5017, %v4971
        %v5034 = vsel %vm1260, %v5018, %v4973
        %v5035 = vsel %vm1260, %v5019, %v4975
        %v5036 = vsel %vm1260, %v5020, %v4977
        %v5037 = vsel %vm1260, %v5021, %v4979
        %v5038 = vsel %vm1260, %v5022, %v4981
        %v5039 = vsel %vm1260, %v5023, %v4983
        %v5040 = vsel %vm1260, %v5024, %v4985
        %v5041 = vsel %vm1260, %v5025, %v4987
        %v5042 = vsel %vm1260, %v5026, %v4989
        %v5043 = vsel %vm1260, %v5027, %v4991
        %v5044 = vsel %vm1260, %v5028, %v4993
        %v5045 = vsel %vm1260, %v5029, %v4995
        %v5046 = vsel %vm1260, %v5030, %v4997
        %v5047 = vsel %vm1260, %v5031, %v4999
        %v5048 = vpack.c.bf16 %v5033, %v5032
        %v5049 = vpack.c.bf16 %v5035, %v5034
        %v5050 = vpack.c.bf16 %v5037, %v5036
        %v5051 = vpack.c.bf16 %v5039, %v5038
        %v5052 = vpack.c.bf16 %v5041, %v5040
        %v5053 = vpack.c.bf16 %v5043, %v5042
        %v5054 = vpack.c.bf16 %v5045, %v5044
        %v5055 = vpack.c.bf16 %v5047, %v5046
        %v5068 = vunpack.c.l.b16 %v4746
        %v5069 = vunpack.c.l.b16 %v4747
        %v5070 = vunpack.c.l.b16 %v4748
        %v5071 = vunpack.c.l.b16 %v4749
        %v5072 = vunpack.c.l.b16 %v4750
        %v5073 = vunpack.c.l.b16 %v4751
        %v5074 = vunpack.c.l.b16 %v4752
        %v5075 = vunpack.c.l.b16 %v4753
        %v5076 = vunpack.c.l.b16 %v4754
        %v5077 = vunpack.c.l.b16 %v4755
        %v5078 = vunpack.c.l.b16 %v4756
        %v5079 = vunpack.c.l.b16 %v4757
        %v5080 = vpack.c.b16 %v5069, %v5068
        %v5081 = vpack.c.b16 %v5071, %v5070
        %v5082 = vpack.c.b16 %v5073, %v5072
        %v5083 = vpack.c.b16 %v5075, %v5074
        %v5084 = vpack.c.b16 %v5077, %v5076
        %v5085 = vpack.c.b16 %v5079, %v5078
        %v5093 = vsel %vm1321, %v5048, 0
        %v5096 = vsel %vm1321, %v5049, 0
        %v5099 = vsel %vm1321, %v5050, 0
        %v5102 = vsel %vm1321, %v5051, 0
        %v5105 = vsel %vm1321, %v5052, 0
        %v5108 = vsel %vm1321, %v5053, 0
        %v5111 = vsel %vm1321, %v5054, 0
        %v5114 = vsel %vm1321, %v5055, 0
        %5116 = vmatprep.subr.bf16.mxu0 0
        %5117 = vmatpush1.bf16.msra.mxu0 %v5080
        %5118 = vmatprep.subr.bf16.mxu0 0
        %5119 = vmatpush1.bf16.msra.mxu0 %v5081
        %5120 = vmatprep.subr.bf16.mxu0 0
        %5121 = vmatpush1.bf16.msra.mxu0 %v5082
        %5122 = vmatprep.subr.bf16.mxu0 0
        %5123 = vmatpush1.bf16.msra.mxu0 %v5083
        %5124 = vmatprep.subr.bf16.mxu0 0
        %5125 = vmatpush1.bf16.msra.mxu0 %v5084
        %5126 = vmatprep.subr.bf16.mxu0 0
        %5127 = vmatpush1.bf16.msra.mxu0 %v5085
        %5128 = vmatprep.subr.bf16.mxu0 0
        %5129 = vmatpush1.bf16.msra.mxu0 0
        %5130 = vmatprep.subr.bf16.mxu0 0
        %5131 = vmatpush1.bf16.msra.mxu0 0
        %5132 = vmatprep.subr.bf16.mxu0 0
        %5133 = vmatpush1.bf16.msra.mxu0 0
        %5134 = vmatprep.subr.bf16.mxu0 0
        %5135 = vmatpush1.bf16.msra.mxu0 0
        %5136 = vmatprep.subr.bf16.mxu0 0
        %5137 = vmatpush1.bf16.msra.mxu0 0
        %5138 = vmatprep.subr.bf16.mxu0 0
        %5139 = vmatpush1.bf16.msra.mxu0 0
        %5140 = vmatprep.subr.bf16.mxu0 0
        %5141 = vmatpush1.bf16.msra.mxu0 0
        %5142 = vmatprep.subr.bf16.mxu0 0
        %5143 = vmatpush1.bf16.msra.mxu0 0
        %5144 = vmatprep.subr.bf16.mxu0 0
        %5145 = vmatpush1.bf16.msra.mxu0 0
        %5146 = vmatprep.subr.bf16.mxu0 0
        %5147 = vmatpush1.bf16.msra.mxu0 0
        %5148 = vmatprep.mubr.bf16.mxu0 0
        %5149 = vmatmul.mubr.bf16.gmra.mrb[0].mxu0 %v5093
        %v5150 = vpop.f32.mrb[0].mxu0
        %v5151 = vadd.f32 0.0, %v5150
        %v5152 = vpop.f32.mrb[0].mxu0
        %v5153 = vpop.f32.mrb[0].mxu0
        %v5154 = vadd.f32 0.0, %v5153
        %v5155 = vpop.f32.mrb[0].mxu0
        %5156 = vmatprep.mubr.bf16.mxu0 0
        %5157 = vmatmul.mubr.bf16.gmra.mrb[0].mxu0 %v5096
        %v5158 = vpop.f32.mrb[0].mxu0
        %v5159 = vadd.f32 0.0, %v5158
        %v5160 = vpop.f32.mrb[0].mxu0
        %v5161 = vpop.f32.mrb[0].mxu0
        %v5162 = vadd.f32 0.0, %v5161
        %v5163 = vpop.f32.mrb[0].mxu0
        %5164 = vmatprep.mubr.bf16.mxu0 0
        %5165 = vmatmul.mubr.bf16.gmra.mrb[0].mxu0 %v5099
        %v5166 = vpop.f32.mrb[0].mxu0
        %v5167 = vadd.f32 0.0, %v5166
        %v5168 = vpop.f32.mrb[0].mxu0
        %v5169 = vpop.f32.mrb[0].mxu0
        %v5170 = vadd.f32 0.0, %v5169
        %v5171 = vpop.f32.mrb[0].mxu0
        %5172 = vmatprep.mubr.bf16.mxu0 0
        %5173 = vmatmul.mubr.bf16.gmra.mrb[0].mxu0 %v5102
        %v5174 = vpop.f32.mrb[0].mxu0
        %v5175 = vadd.f32 0.0, %v5174
        %v5176 = vpop.f32.mrb[0].mxu0
        %v5177 = vpop.f32.mrb[0].mxu0
        %v5178 = vadd.f32 0.0, %v5177
        %v5179 = vpop.f32.mrb[0].mxu0
        %5180 = vmatprep.mubr.bf16.mxu0 0
        %5181 = vmatmul.mubr.bf16.gmra.mrb[0].mxu0 %v5105
        %v5182 = vpop.f32.mrb[0].mxu0
        %v5183 = vadd.f32 0.0, %v5182
        %v5184 = vpop.f32.mrb[0].mxu0
        %v5185 = vpop.f32.mrb[0].mxu0
        %v5186 = vadd.f32 0.0, %v5185
        %v5187 = vpop.f32.mrb[0].mxu0
        %5188 = vmatprep.mubr.bf16.mxu0 0
        %5189 = vmatmul.mubr.bf16.gmra.mrb[0].mxu0 %v5108
        %v5190 = vpop.f32.mrb[0].mxu0
        %v5191 = vadd.f32 0.0, %v5190
        %v5192 = vpop.f32.mrb[0].mxu0
        %v5193 = vpop.f32.mrb[0].mxu0
        %v5194 = vadd.f32 0.0, %v5193
        %v5195 = vpop.f32.mrb[0].mxu0
        %5196 = vmatprep.mubr.bf16.mxu0 0
        %5197 = vmatmul.mubr.bf16.gmra.mrb[0].mxu0 %v5111
        %v5198 = vpop.f32.mrb[0].mxu0
        %v5199 = vadd.f32 0.0, %v5198
        %v5200 = vpop.f32.mrb[0].mxu0
        %v5201 = vpop.f32.mrb[0].mxu0
        %v5202 = vadd.f32 0.0, %v5201
        %v5203 = vpop.f32.mrb[0].mxu0
        %5204 = vmatprep.mubr.bf16.mxu0 0
        %5205 = vmatmul.mubr.bf16.gmra.mrb[0].mxu0 %v5114
        %v5206 = vpop.f32.mrb[0].mxu0
        %v5207 = vadd.f32 0.0, %v5206
        %v5208 = vpop.f32.mrb[0].mxu0
        %v5209 = vpop.f32.mrb[0].mxu0
        %v5210 = vadd.f32 0.0, %v5209
        %v5211 = vpop.f32.mrb[0].mxu0
        %5212 = vdwg.mxu0
        %s5213 = scalar_lea.vmem %s6, 7
        %v5214 = vld [vmem:[%s5213] sm:$0x1]
        %v5216 = vlaneseq
        %v5217 = vshrl.u32 %v5216, 7
        %v5218 = vsub.s32 0, %v5217
        %v5219 = vrot.slane %v5214, %v5218
        %v5221 = vmul.f32 %v5151, %v5219
        %v5222 = vmul.f32 %v5154, %v5219
        %v5223 = vmul.f32 %v5159, %v5219
        %v5224 = vmul.f32 %v5162, %v5219
        %v5225 = vmul.f32 %v5167, %v5219
        %v5226 = vmul.f32 %v5170, %v5219
        %v5227 = vmul.f32 %v5175, %v5219
        %v5228 = vmul.f32 %v5178, %v5219
        %v5229 = vmul.f32 %v5183, %v5219
        %v5230 = vmul.f32 %v5186, %v5219
        %v5231 = vmul.f32 %v5191, %v5219
        %v5232 = vmul.f32 %v5194, %v5219
        %v5233 = vmul.f32 %v5199, %v5219
        %v5234 = vmul.f32 %v5202, %v5219
        %v5235 = vmul.f32 %v5207, %v5219
        %v5236 = vmul.f32 %v5210, %v5219
        %s5237 = scalar_lea.vmem %s7, 7
        %v5238 = vld [vmem:[%s5237] sm:$0x1]
        %v5240 = vlaneseq
        %v5241 = vshrl.u32 %v5240, 7
        %v5242 = vsub.s32 0, %v5241
        %v5243 = vrot.slane %v5238, %v5242
        %v5245 = vadd.f32 %v5221, %v5243
        %v5246 = vadd.f32 %v5222, %v5243
        %v5247 = vadd.f32 %v5223, %v5243
        %v5248 = vadd.f32 %v5224, %v5243
        %v5249 = vadd.f32 %v5225, %v5243
        %v5250 = vadd.f32 %v5226, %v5243
        %v5251 = vadd.f32 %v5227, %v5243
        %v5252 = vadd.f32 %v5228, %v5243
        %v5253 = vadd.f32 %v5229, %v5243
        %v5254 = vadd.f32 %v5230, %v5243
        %v5255 = vadd.f32 %v5231, %v5243
        %v5256 = vadd.f32 %v5232, %v5243
        %v5257 = vadd.f32 %v5233, %v5243
        %v5258 = vadd.f32 %v5234, %v5243
        %v5259 = vadd.f32 %v5235, %v5243
        %v5260 = vadd.f32 %v5236, %v5243
        %v5261 = vadd.f32 %v5245, %v4197
        %v5262 = vadd.f32 %v5246, %v4198
        %v5263 = vadd.f32 %v5247, %v4199
        %v5264 = vadd.f32 %v5248, %v4200
        %v5265 = vadd.f32 %v5249, %v4201
        %v5266 = vadd.f32 %v5250, %v4202
        %v5267 = vadd.f32 %v5251, %v4203
        %v5268 = vadd.f32 %v5252, %v4204
        %v5269 = vadd.f32 %v5253, %v4205
        %v5270 = vadd.f32 %v5254, %v4206
        %v5271 = vadd.f32 %v5255, %v4207
        %v5272 = vadd.f32 %v5256, %v4208
        %v5273 = vadd.f32 %v5257, %v4209
        %v5274 = vadd.f32 %v5258, %v4210
        %v5275 = vadd.f32 %v5259, %v4211
        %v5276 = vadd.f32 %v5260, %v4212
        %v5277 = vmax.f32 %v5261, 0.0
        %v5278 = vmax.f32 %v5262, 0.0
        %v5279 = vmax.f32 %v5263, 0.0
        %v5280 = vmax.f32 %v5264, 0.0
        %v5281 = vmax.f32 %v5265, 0.0
        %v5282 = vmax.f32 %v5266, 0.0
        %v5283 = vmax.f32 %v5267, 0.0
        %v5284 = vmax.f32 %v5268, 0.0
        %v5285 = vmax.f32 %v5269, 0.0
        %v5286 = vmax.f32 %v5270, 0.0
        %v5287 = vmax.f32 %v5271, 0.0
        %v5288 = vmax.f32 %v5272, 0.0
        %v5289 = vmax.f32 %v5273, 0.0
        %v5290 = vmax.f32 %v5274, 0.0
        %v5291 = vmax.f32 %v5275, 0.0
        %v5292 = vmax.f32 %v5276, 0.0
        %s5293 = scalar_lea.vmem %s5, 384
        %v5294 = vld [vmem:[%s5293] sm:$0xf]
        %v5295 = vld [vmem:[%s5293 + $0x4] sm:$0xf]
        %v5296 = vld [vmem:[%s5293 + $0x8] sm:$0xf]
        %v5297 = vld [vmem:[%s5293 + $0xc] sm:$0xf]
        %v5298 = vld [vmem:[%s5293 + $0x10] sm:$0xf]
        %v5299 = vld [vmem:[%s5293 + $0x14] sm:$0xf]
        %v5300 = vld [vmem:[%s5293 + $0x18] sm:$0xf]
        %v5301 = vld [vmem:[%s5293 + $0x1c] sm:$0xf]
        %v5302 = vld [vmem:[%s5293 + $0x20] sm:$0xf]
        %v5303 = vld [vmem:[%s5293 + $0x24] sm:$0xf]
        %v5304 = vld [vmem:[%s5293 + $0x28] sm:$0xf]
        %v5305 = vld [vmem:[%s5293 + $0x2c] sm:$0xf]
        %v5307 = vrot.slane %v5292, 7
        %v5324 = vrot.slane %v5277, 7
        %v5325 = vrot.slane %v5278, 7
        %v5326 = vsel %vm375, %v5324, %v5325
        %v5327 = vrot.slane %v5279, 7
        %v5328 = vsel %vm375, %v5325, %v5327
        %v5329 = vrot.slane %v5280, 7
        %v5330 = vsel %vm375, %v5327, %v5329
        %v5331 = vrot.slane %v5281, 7
        %v5332 = vsel %vm375, %v5329, %v5331
        %v5333 = vrot.slane %v5282, 7
        %v5334 = vsel %vm375, %v5331, %v5333
        %v5335 = vrot.slane %v5283, 7
        %v5336 = vsel %vm375, %v5333, %v5335
        %v5337 = vrot.slane %v5284, 7
        %v5338 = vsel %vm375, %v5335, %v5337
        %v5339 = vrot.slane %v5285, 7
        %v5340 = vsel %vm375, %v5337, %v5339
        %v5341 = vrot.slane %v5286, 7
        %v5342 = vsel %vm375, %v5339, %v5341
        %v5343 = vrot.slane %v5287, 7
        %v5344 = vsel %vm375, %v5341, %v5343
        %v5345 = vrot.slane %v5288, 7
        %v5346 = vsel %vm375, %v5343, %v5345
        %v5347 = vrot.slane %v5289, 7
        %v5348 = vsel %vm375, %v5345, %v5347
        %v5349 = vrot.slane %v5290, 7
        %v5350 = vsel %vm375, %v5347, %v5349
        %v5351 = vrot.slane %v5291, 7
        %v5352 = vsel %vm375, %v5349, %v5351
        %v5353 = vsel %vm375, %v5351, %v5307
        %v5370 = vsel %vm375, %v5307, %v5324
        %v5371 = vsel %vm941, 0.0, %v5370
        %v5372 = vsel %vm942, 0.0, %v5326
        %v5373 = vsel %vm943, 0.0, %v5328
        %v5374 = vsel %vm944, 0.0, %v5330
        %v5375 = vsel %vm945, 0.0, %v5332
        %v5376 = vsel %vm946, 0.0, %v5334
        %v5377 = vsel %vm947, 0.0, %v5336
        %v5378 = vsel %vm948, 0.0, %v5338
        %v5379 = vsel %vm949, 0.0, %v5340
        %v5380 = vsel %vm950, 0.0, %v5342
        %v5381 = vsel %vm951, 0.0, %v5344
        %v5382 = vsel %vm952, 0.0, %v5346
        %v5383 = vsel %vm953, 0.0, %v5348
        %v5384 = vsel %vm954, 0.0, %v5350
        %v5385 = vsel %vm955, 0.0, %v5352
        %v5386 = vsel %vm956, 0.0, %v5353
        %v5387 = vrot.slane %v5277, 1
        %v5388 = vrot.slane %v5278, 1
        %v5389 = vsel %vm1066, %v5387, %v5388
        %v5390 = vrot.slane %v5279, 1
        %v5391 = vsel %vm1066, %v5388, %v5390
        %v5392 = vrot.slane %v5280, 1
        %v5393 = vsel %vm1066, %v5390, %v5392
        %v5394 = vrot.slane %v5281, 1
        %v5395 = vsel %vm1066, %v5392, %v5394
        %v5396 = vrot.slane %v5282, 1
        %v5397 = vsel %vm1066, %v5394, %v5396
        %v5398 = vrot.slane %v5283, 1
        %v5399 = vsel %vm1066, %v5396, %v5398
        %v5400 = vrot.slane %v5284, 1
        %v5401 = vsel %vm1066, %v5398, %v5400
        %v5402 = vrot.slane %v5285, 1
        %v5403 = vsel %vm1066, %v5400, %v5402
        %v5404 = vrot.slane %v5286, 1
        %v5405 = vsel %vm1066, %v5402, %v5404
        %v5406 = vrot.slane %v5287, 1
        %v5407 = vsel %vm1066, %v5404, %v5406
        %v5408 = vrot.slane %v5288, 1
        %v5409 = vsel %vm1066, %v5406, %v5408
        %v5410 = vrot.slane %v5289, 1
        %v5411 = vsel %vm1066, %v5408, %v5410
        %v5412 = vrot.slane %v5290, 1
        %v5413 = vsel %vm1066, %v5410, %v5412
        %v5414 = vrot.slane %v5291, 1
        %v5415 = vsel %vm1066, %v5412, %v5414
        %v5416 = vrot.slane %v5292, 1
        %v5417 = vsel %vm1066, %v5414, %v5416
        %v5435 = vsel %vm1066, %v5416, %v5387
        %v5436 = vsel %vm957, 0.0, %v5389
        %v5437 = vsel %vm958, 0.0, %v5391
        %v5438 = vsel %vm959, 0.0, %v5393
        %v5439 = vsel %vm960, 0.0, %v5395
        %v5440 = vsel %vm961, 0.0, %v5397
        %v5441 = vsel %vm962, 0.0, %v5399
        %v5442 = vsel %vm963, 0.0, %v5401
        %v5443 = vsel %vm964, 0.0, %v5403
        %v5444 = vsel %vm965, 0.0, %v5405
        %v5445 = vsel %vm966, 0.0, %v5407
        %v5446 = vsel %vm967, 0.0, %v5409
        %v5447 = vsel %vm968, 0.0, %v5411
        %v5448 = vsel %vm969, 0.0, %v5413
        %v5449 = vsel %vm970, 0.0, %v5415
        %v5450 = vsel %vm971, 0.0, %v5417
        %v5451 = vsel %vm972, 0.0, %v5435
        %5452 = vrot.lane.b32.xlu0 %v5277, 32
        %v5453 = vpop.permute.xlu0 %5452
        %5454 = vrot.lane.b32.xlu0 %v5278, 32
        %v5455 = vpop.permute.xlu0 %5454
        %5456 = vrot.lane.b32.xlu0 %v5279, 32
        %v5457 = vpop.permute.xlu0 %5456
        %5458 = vrot.lane.b32.xlu0 %v5280, 32
        %v5459 = vpop.permute.xlu0 %5458
        %5460 = vrot.lane.b32.xlu0 %v5281, 32
        %v5461 = vpop.permute.xlu0 %5460
        %5462 = vrot.lane.b32.xlu0 %v5282, 32
        %v5463 = vpop.permute.xlu0 %5462
        %5464 = vrot.lane.b32.xlu0 %v5283, 32
        %v5465 = vpop.permute.xlu0 %5464
        %5466 = vrot.lane.b32.xlu0 %v5284, 32
        %v5467 = vpop.permute.xlu0 %5466
        %5468 = vrot.lane.b32.xlu0 %v5285, 32
        %v5469 = vpop.permute.xlu0 %5468
        %5470 = vrot.lane.b32.xlu0 %v5286, 32
        %v5471 = vpop.permute.xlu0 %5470
        %5472 = vrot.lane.b32.xlu0 %v5287, 32
        %v5473 = vpop.permute.xlu0 %5472
        %5474 = vrot.lane.b32.xlu0 %v5288, 32
        %v5475 = vpop.permute.xlu0 %5474
        %5476 = vrot.lane.b32.xlu0 %v5289, 32
        %v5477 = vpop.permute.xlu0 %5476
        %5478 = vrot.lane.b32.xlu0 %v5290, 32
        %v5479 = vpop.permute.xlu0 %5478
        %5480 = vrot.lane.b32.xlu0 %v5291, 32
        %v5481 = vpop.permute.xlu0 %5480
        %5482 = vrot.lane.b32.xlu0 %v5292, 32
        %v5483 = vpop.permute.xlu0 %5482
        %5516 = vrot.lane.b32.xlu0 %v5436, 64
        %v5517 = vpop.permute.xlu0 %5516
        %5518 = vrot.lane.b32.xlu0 %v5437, 64
        %v5519 = vpop.permute.xlu0 %5518
        %5520 = vrot.lane.b32.xlu0 %v5438, 64
        %v5521 = vpop.permute.xlu0 %5520
        %5522 = vrot.lane.b32.xlu0 %v5439, 64
        %v5523 = vpop.permute.xlu0 %5522
        %5524 = vrot.lane.b32.xlu0 %v5440, 64
        %v5525 = vpop.permute.xlu0 %5524
        %5526 = vrot.lane.b32.xlu0 %v5441, 64
        %v5527 = vpop.permute.xlu0 %5526
        %5528 = vrot.lane.b32.xlu0 %v5442, 64
        %v5529 = vpop.permute.xlu0 %5528
        %5530 = vrot.lane.b32.xlu0 %v5443, 64
        %v5531 = vpop.permute.xlu0 %5530
        %5532 = vrot.lane.b32.xlu0 %v5444, 64
        %v5533 = vpop.permute.xlu0 %5532
        %5534 = vrot.lane.b32.xlu0 %v5445, 64
        %v5535 = vpop.permute.xlu0 %5534
        %5536 = vrot.lane.b32.xlu0 %v5446, 64
        %v5537 = vpop.permute.xlu0 %5536
        %5538 = vrot.lane.b32.xlu0 %v5447, 64
        %v5539 = vpop.permute.xlu0 %5538
        %5540 = vrot.lane.b32.xlu0 %v5448, 64
        %v5541 = vpop.permute.xlu0 %5540
        %5542 = vrot.lane.b32.xlu0 %v5449, 64
        %v5543 = vpop.permute.xlu0 %5542
        %5544 = vrot.lane.b32.xlu0 %v5450, 64
        %v5545 = vpop.permute.xlu0 %5544
        %5546 = vrot.lane.b32.xlu0 %v5451, 64
        %v5547 = vpop.permute.xlu0 %5546
        %v5564 = vsel %vm548, %v5371, %v5453
        %v5565 = vsel %vm548, %v5372, %v5455
        %v5566 = vsel %vm548, %v5373, %v5457
        %v5567 = vsel %vm548, %v5374, %v5459
        %v5568 = vsel %vm548, %v5375, %v5461
        %v5569 = vsel %vm548, %v5376, %v5463
        %v5570 = vsel %vm548, %v5377, %v5465
        %v5571 = vsel %vm548, %v5378, %v5467
        %v5572 = vsel %vm548, %v5379, %v5469
        %v5573 = vsel %vm548, %v5380, %v5471
        %v5574 = vsel %vm548, %v5381, %v5473
        %v5575 = vsel %vm548, %v5382, %v5475
        %v5576 = vsel %vm548, %v5383, %v5477
        %v5577 = vsel %vm548, %v5384, %v5479
        %v5578 = vsel %vm548, %v5385, %v5481
        %v5579 = vsel %vm548, %v5386, %v5483
        %v5580 = vsel %vm1260, %v5564, %v5517
        %v5581 = vsel %vm1260, %v5565, %v5519
        %v5582 = vsel %vm1260, %v5566, %v5521
        %v5583 = vsel %vm1260, %v5567, %v5523
        %v5584 = vsel %vm1260, %v5568, %v5525
        %v5585 = vsel %vm1260, %v5569, %v5527
        %v5586 = vsel %vm1260, %v5570, %v5529
        %v5587 = vsel %vm1260, %v5571, %v5531
        %v5588 = vsel %vm1260, %v5572, %v5533
        %v5589 = vsel %vm1260, %v5573, %v5535
        %v5590 = vsel %vm1260, %v5574, %v5537
        %v5591 = vsel %vm1260, %v5575, %v5539
        %v5592 = vsel %vm1260, %v5576, %v5541
        %v5593 = vsel %vm1260, %v5577, %v5543
        %v5594 = vsel %vm1260, %v5578, %v5545
        %v5595 = vsel %vm1260, %v5579, %v5547
        %v5596 = vpack.c.bf16 %v5581, %v5580
        %v5597 = vpack.c.bf16 %v5583, %v5582
        %v5598 = vpack.c.bf16 %v5585, %v5584
        %v5599 = vpack.c.bf16 %v5587, %v5586
        %v5600 = vpack.c.bf16 %v5589, %v5588
        %v5601 = vpack.c.bf16 %v5591, %v5590
        %v5602 = vpack.c.bf16 %v5593, %v5592
        %v5603 = vpack.c.bf16 %v5595, %v5594
        %v5616 = vunpack.c.l.b16 %v5294
        %v5617 = vunpack.c.l.b16 %v5295
        %v5618 = vunpack.c.l.b16 %v5296
        %v5619 = vunpack.c.l.b16 %v5297
        %v5620 = vunpack.c.l.b16 %v5298
        %v5621 = vunpack.c.l.b16 %v5299
        %v5622 = vunpack.c.l.b16 %v5300
        %v5623 = vunpack.c.l.b16 %v5301
        %v5624 = vunpack.c.l.b16 %v5302
        %v5625 = vunpack.c.l.b16 %v5303
        %v5626 = vunpack.c.l.b16 %v5304
        %v5627 = vunpack.c.l.b16 %v5305
        %v5628 = vpack.c.b16 %v5617, %v5616
        %v5629 = vpack.c.b16 %v5619, %v5618
        %v5630 = vpack.c.b16 %v5621, %v5620
        %v5631 = vpack.c.b16 %v5623, %v5622
        %v5632 = vpack.c.b16 %v5625, %v5624
        %v5633 = vpack.c.b16 %v5627, %v5626
        %v5641 = vsel %vm1321, %v5596, 0
        %v5644 = vsel %vm1321, %v5597, 0
        %v5647 = vsel %vm1321, %v5598, 0
        %v5650 = vsel %vm1321, %v5599, 0
        %v5653 = vsel %vm1321, %v5600, 0
        %v5656 = vsel %vm1321, %v5601, 0
        %v5659 = vsel %vm1321, %v5602, 0
        %v5662 = vsel %vm1321, %v5603, 0
        %5664 = vmatprep.subr.bf16.mxu0 0
        %5665 = vmatpush1.bf16.msra.mxu0 %v5628
        %5666 = vmatprep.subr.bf16.mxu0 0
        %5667 = vmatpush1.bf16.msra.mxu0 %v5629
        %5668 = vmatprep.subr.bf16.mxu0 0
        %5669 = vmatpush1.bf16.msra.mxu0 %v5630
        %5670 = vmatprep.subr.bf16.mxu0 0
        %5671 = vmatpush1.bf16.msra.mxu0 %v5631
        %5672 = vmatprep.subr.bf16.mxu0 0
        %5673 = vmatpush1.bf16.msra.mxu0 %v5632
        %5674 = vmatprep.subr.bf16.mxu0 0
        %5675 = vmatpush1.bf16.msra.mxu0 %v5633
        %5676 = vmatprep.subr.bf16.mxu0 0
        %5677 = vmatpush1.bf16.msra.mxu0 0
        %5678 = vmatprep.subr.bf16.mxu0 0
        %5679 = vmatpush1.bf16.msra.mxu0 0
        %5680 = vmatprep.subr.bf16.mxu0 0
        %5681 = vmatpush1.bf16.msra.mxu0 0
        %5682 = vmatprep.subr.bf16.mxu0 0
        %5683 = vmatpush1.bf16.msra.mxu0 0
        %5684 = vmatprep.subr.bf16.mxu0 0
        %5685 = vmatpush1.bf16.msra.mxu0 0
        %5686 = vmatprep.subr.bf16.mxu0 0
        %5687 = vmatpush1.bf16.msra.mxu0 0
        %5688 = vmatprep.subr.bf16.mxu0 0
        %5689 = vmatpush1.bf16.msra.mxu0 0
        %5690 = vmatprep.subr.bf16.mxu0 0
        %5691 = vmatpush1.bf16.msra.mxu0 0
        %5692 = vmatprep.subr.bf16.mxu0 0
        %5693 = vmatpush1.bf16.msra.mxu0 0
        %5694 = vmatprep.subr.bf16.mxu0 0
        %5695 = vmatpush1.bf16.msra.mxu0 0
        %5696 = vmatprep.mubr.bf16.mxu0 0
        %5697 = vmatmul.mubr.bf16.gmra.mrb[0].mxu0 %v5641
        %v5698 = vpop.f32.mrb[0].mxu0
        %v5699 = vadd.f32 0.0, %v5698
        %v5700 = vpop.f32.mrb[0].mxu0
        %v5701 = vpop.f32.mrb[0].mxu0
        %v5702 = vadd.f32 0.0, %v5701
        %v5703 = vpop.f32.mrb[0].mxu0
        %5704 = vmatprep.mubr.bf16.mxu0 0
        %5705 = vmatmul.mubr.bf16.gmra.mrb[0].mxu0 %v5644
        %v5706 = vpop.f32.mrb[0].mxu0
        %v5707 = vadd.f32 0.0, %v5706
        %v5708 = vpop.f32.mrb[0].mxu0
        %v5709 = vpop.f32.mrb[0].mxu0
        %v5710 = vadd.f32 0.0, %v5709
        %v5711 = vpop.f32.mrb[0].mxu0
        %5712 = vmatprep.mubr.bf16.mxu0 0
        %5713 = vmatmul.mubr.bf16.gmra.mrb[0].mxu0 %v5647
        %v5714 = vpop.f32.mrb[0].mxu0
        %v5715 = vadd.f32 0.0, %v5714
        %v5716 = vpop.f32.mrb[0].mxu0
        %v5717 = vpop.f32.mrb[0].mxu0
        %v5718 = vadd.f32 0.0, %v5717
        %v5719 = vpop.f32.mrb[0].mxu0
        %5720 = vmatprep.mubr.bf16.mxu0 0
        %5721 = vmatmul.mubr.bf16.gmra.mrb[0].mxu0 %v5650
        %v5722 = vpop.f32.mrb[0].mxu0
        %v5723 = vadd.f32 0.0, %v5722
        %v5724 = vpop.f32.mrb[0].mxu0
        %v5725 = vpop.f32.mrb[0].mxu0
        %v5726 = vadd.f32 0.0, %v5725
        %v5727 = vpop.f32.mrb[0].mxu0
        %5728 = vmatprep.mubr.bf16.mxu0 0
        %5729 = vmatmul.mubr.bf16.gmra.mrb[0].mxu0 %v5653
        %v5730 = vpop.f32.mrb[0].mxu0
        %v5731 = vadd.f32 0.0, %v5730
        %v5732 = vpop.f32.mrb[0].mxu0
        %v5733 = vpop.f32.mrb[0].mxu0
        %v5734 = vadd.f32 0.0, %v5733
        %v5735 = vpop.f32.mrb[0].mxu0
        %5736 = vmatprep.mubr.bf16.mxu0 0
        %5737 = vmatmul.mubr.bf16.gmra.mrb[0].mxu0 %v5656
        %v5738 = vpop.f32.mrb[0].mxu0
        %v5739 = vadd.f32 0.0, %v5738
        %v5740 = vpop.f32.mrb[0].mxu0
        %v5741 = vpop.f32.mrb[0].mxu0
        %v5742 = vadd.f32 0.0, %v5741
        %v5743 = vpop.f32.mrb[0].mxu0
        %5744 = vmatprep.mubr.bf16.mxu0 0
        %5745 = vmatmul.mubr.bf16.gmra.mrb[0].mxu0 %v5659
        %v5746 = vpop.f32.mrb[0].mxu0
        %v5747 = vadd.f32 0.0, %v5746
        %v5748 = vpop.f32.mrb[0].mxu0
        %v5749 = vpop.f32.mrb[0].mxu0
        %v5750 = vadd.f32 0.0, %v5749
        %v5751 = vpop.f32.mrb[0].mxu0
        %5752 = vmatprep.mubr.bf16.mxu0 0
        %5753 = vmatmul.mubr.bf16.gmra.mrb[0].mxu0 %v5662
        %v5754 = vpop.f32.mrb[0].mxu0
        %v5755 = vadd.f32 0.0, %v5754
        %v5756 = vpop.f32.mrb[0].mxu0
        %v5757 = vpop.f32.mrb[0].mxu0
        %v5758 = vadd.f32 0.0, %v5757
        %v5759 = vpop.f32.mrb[0].mxu0
        %5760 = vdwg.mxu0
        %s5761 = scalar_lea.vmem %s6, 8
        %v5762 = vld [vmem:[%s5761] sm:$0x1]
        %v5764 = vlaneseq
        %v5765 = vshrl.u32 %v5764, 7
        %v5766 = vsub.s32 0, %v5765
        %v5767 = vrot.slane %v5762, %v5766
        %v5769 = vmul.f32 %v5699, %v5767
        %v5770 = vmul.f32 %v5702, %v5767
        %v5771 = vmul.f32 %v5707, %v5767
        %v5772 = vmul.f32 %v5710, %v5767
        %v5773 = vmul.f32 %v5715, %v5767
        %v5774 = vmul.f32 %v5718, %v5767
        %v5775 = vmul.f32 %v5723, %v5767
        %v5776 = vmul.f32 %v5726, %v5767
        %v5777 = vmul.f32 %v5731, %v5767
        %v5778 = vmul.f32 %v5734, %v5767
        %v5779 = vmul.f32 %v5739, %v5767
        %v5780 = vmul.f32 %v5742, %v5767
        %v5781 = vmul.f32 %v5747, %v5767
        %v5782 = vmul.f32 %v5750, %v5767
        %v5783 = vmul.f32 %v5755, %v5767
        %v5784 = vmul.f32 %v5758, %v5767
        %s5785 = scalar_lea.vmem %s7, 8
        %v5786 = vld [vmem:[%s5785] sm:$0x1]
        %v5788 = vlaneseq
        %v5789 = vshrl.u32 %v5788, 7
        %v5790 = vsub.s32 0, %v5789
        %v5791 = vrot.slane %v5786, %v5790
        %v5793 = vadd.f32 %v5769, %v5791
        %v5794 = vadd.f32 %v5770, %v5791
        %v5795 = vadd.f32 %v5771, %v5791
        %v5796 = vadd.f32 %v5772, %v5791
        %v5797 = vadd.f32 %v5773, %v5791
        %v5798 = vadd.f32 %v5774, %v5791
        %v5799 = vadd.f32 %v5775, %v5791
        %v5800 = vadd.f32 %v5776, %v5791
        %v5801 = vadd.f32 %v5777, %v5791
        %v5802 = vadd.f32 %v5778, %v5791
        %v5803 = vadd.f32 %v5779, %v5791
        %v5804 = vadd.f32 %v5780, %v5791
        %v5805 = vadd.f32 %v5781, %v5791
        %v5806 = vadd.f32 %v5782, %v5791
        %v5807 = vadd.f32 %v5783, %v5791
        %v5808 = vadd.f32 %v5784, %v5791
        %v5809 = vmax.f32 %v5793, 0.0
        %v5810 = vmax.f32 %v5794, 0.0
        %v5811 = vmax.f32 %v5795, 0.0
        %v5812 = vmax.f32 %v5796, 0.0
        %v5813 = vmax.f32 %v5797, 0.0
        %v5814 = vmax.f32 %v5798, 0.0
        %v5815 = vmax.f32 %v5799, 0.0
        %v5816 = vmax.f32 %v5800, 0.0
        %v5817 = vmax.f32 %v5801, 0.0
        %v5818 = vmax.f32 %v5802, 0.0
        %v5819 = vmax.f32 %v5803, 0.0
        %v5820 = vmax.f32 %v5804, 0.0
        %v5821 = vmax.f32 %v5805, 0.0
        %v5822 = vmax.f32 %v5806, 0.0
        %v5823 = vmax.f32 %v5807, 0.0
        %v5824 = vmax.f32 %v5808, 0.0
        %s5825 = scalar_lea.vmem %s5, 432
        %v5826 = vld [vmem:[%s5825] sm:$0xf]
        %v5827 = vld [vmem:[%s5825 + $0x4] sm:$0xf]
        %v5828 = vld [vmem:[%s5825 + $0x8] sm:$0xf]
        %v5829 = vld [vmem:[%s5825 + $0xc] sm:$0xf]
        %v5830 = vld [vmem:[%s5825 + $0x10] sm:$0xf]
        %v5831 = vld [vmem:[%s5825 + $0x14] sm:$0xf]
        %v5832 = vld [vmem:[%s5825 + $0x18] sm:$0xf]
        %v5833 = vld [vmem:[%s5825 + $0x1c] sm:$0xf]
        %v5834 = vld [vmem:[%s5825 + $0x20] sm:$0xf]
        %v5835 = vld [vmem:[%s5825 + $0x24] sm:$0xf]
        %v5836 = vld [vmem:[%s5825 + $0x28] sm:$0xf]
        %v5837 = vld [vmem:[%s5825 + $0x2c] sm:$0xf]
        %v5839 = vrot.slane %v5824, 7
        %v5856 = vrot.slane %v5809, 7
        %v5857 = vrot.slane %v5810, 7
        %v5858 = vsel %vm375, %v5856, %v5857
        %v5859 = vrot.slane %v5811, 7
        %v5860 = vsel %vm375, %v5857, %v5859
        %v5861 = vrot.slane %v5812, 7
        %v5862 = vsel %vm375, %v5859, %v5861
        %v5863 = vrot.slane %v5813, 7
        %v5864 = vsel %vm375, %v5861, %v5863
        %v5865 = vrot.slane %v5814, 7
        %v5866 = vsel %vm375, %v5863, %v5865
        %v5867 = vrot.slane %v5815, 7
        %v5868 = vsel %vm375, %v5865, %v5867
        %v5869 = vrot.slane %v5816, 7
        %v5870 = vsel %vm375, %v5867, %v5869
        %v5871 = vrot.slane %v5817, 7
        %v5872 = vsel %vm375, %v5869, %v5871
        %v5873 = vrot.slane %v5818, 7
        %v5874 = vsel %vm375, %v5871, %v5873
        %v5875 = vrot.slane %v5819, 7
        %v5876 = vsel %vm375, %v5873, %v5875
        %v5877 = vrot.slane %v5820, 7
        %v5878 = vsel %vm375, %v5875, %v5877
        %v5879 = vrot.slane %v5821, 7
        %v5880 = vsel %vm375, %v5877, %v5879
        %v5881 = vrot.slane %v5822, 7
        %v5882 = vsel %vm375, %v5879, %v5881
        %v5883 = vrot.slane %v5823, 7
        %v5884 = vsel %vm375, %v5881, %v5883
        %v5885 = vsel %vm375, %v5883, %v5839
        %v5902 = vsel %vm375, %v5839, %v5856
        %v5903 = vsel %vm941, 0.0, %v5902
        %v5904 = vsel %vm942, 0.0, %v5858
        %v5905 = vsel %vm943, 0.0, %v5860
        %v5906 = vsel %vm944, 0.0, %v5862
        %v5907 = vsel %vm945, 0.0, %v5864
        %v5908 = vsel %vm946, 0.0, %v5866
        %v5909 = vsel %vm947, 0.0, %v5868
        %v5910 = vsel %vm948, 0.0, %v5870
        %v5911 = vsel %vm949, 0.0, %v5872
        %v5912 = vsel %vm950, 0.0, %v5874
        %v5913 = vsel %vm951, 0.0, %v5876
        %v5914 = vsel %vm952, 0.0, %v5878
        %v5915 = vsel %vm953, 0.0, %v5880
        %v5916 = vsel %vm954, 0.0, %v5882
        %v5917 = vsel %vm955, 0.0, %v5884
        %v5918 = vsel %vm956, 0.0, %v5885
        %v5919 = vrot.slane %v5809, 1
        %v5920 = vrot.slane %v5810, 1
        %v5921 = vsel %vm1066, %v5919, %v5920
        %v5922 = vrot.slane %v5811, 1
        %v5923 = vsel %vm1066, %v5920, %v5922
        %v5924 = vrot.slane %v5812, 1
        %v5925 = vsel %vm1066, %v5922, %v5924
        %v5926 = vrot.slane %v5813, 1
        %v5927 = vsel %vm1066, %v5924, %v5926
        %v5928 = vrot.slane %v5814, 1
        %v5929 = vsel %vm1066, %v5926, %v5928
        %v5930 = vrot.slane %v5815, 1
        %v5931 = vsel %vm1066, %v5928, %v5930
        %v5932 = vrot.slane %v5816, 1
        %v5933 = vsel %vm1066, %v5930, %v5932
        %v5934 = vrot.slane %v5817, 1
        %v5935 = vsel %vm1066, %v5932, %v5934
        %v5936 = vrot.slane %v5818, 1
        %v5937 = vsel %vm1066, %v5934, %v5936
        %v5938 = vrot.slane %v5819, 1
        %v5939 = vsel %vm1066, %v5936, %v5938
        %v5940 = vrot.slane %v5820, 1
        %v5941 = vsel %vm1066, %v5938, %v5940
        %v5942 = vrot.slane %v5821, 1
        %v5943 = vsel %vm1066, %v5940, %v5942
        %v5944 = vrot.slane %v5822, 1
        %v5945 = vsel %vm1066, %v5942, %v5944
        %v5946 = vrot.slane %v5823, 1
        %v5947 = vsel %vm1066, %v5944, %v5946
        %v5948 = vrot.slane %v5824, 1
        %v5949 = vsel %vm1066, %v5946, %v5948
        %v5967 = vsel %vm1066, %v5948, %v5919
        %v5968 = vsel %vm957, 0.0, %v5921
        %v5969 = vsel %vm958, 0.0, %v5923
        %v5970 = vsel %vm959, 0.0, %v5925
        %v5971 = vsel %vm960, 0.0, %v5927
        %v5972 = vsel %vm961, 0.0, %v5929
        %v5973 = vsel %vm962, 0.0, %v5931
        %v5974 = vsel %vm963, 0.0, %v5933
        %v5975 = vsel %vm964, 0.0, %v5935
        %v5976 = vsel %vm965, 0.0, %v5937
        %v5977 = vsel %vm966, 0.0, %v5939
        %v5978 = vsel %vm967, 0.0, %v5941
        %v5979 = vsel %vm968, 0.0, %v5943
        %v5980 = vsel %vm969, 0.0, %v5945
        %v5981 = vsel %vm970, 0.0, %v5947
        %v5982 = vsel %vm971, 0.0, %v5949
        %v5983 = vsel %vm972, 0.0, %v5967
        %5984 = vrot.lane.b32.xlu0 %v5809, 32
        %v5985 = vpop.permute.xlu0 %5984
        %5986 = vrot.lane.b32.xlu0 %v5810, 32
        %v5987 = vpop.permute.xlu0 %5986
        %5988 = vrot.lane.b32.xlu0 %v5811, 32
        %v5989 = vpop.permute.xlu0 %5988
        %5990 = vrot.lane.b32.xlu0 %v5812, 32
        %v5991 = vpop.permute.xlu0 %5990
        %5992 = vrot.lane.b32.xlu0 %v5813, 32
        %v5993 = vpop.permute.xlu0 %5992
        %5994 = vrot.lane.b32.xlu0 %v5814, 32
        %v5995 = vpop.permute.xlu0 %5994
        %5996 = vrot.lane.b32.xlu0 %v5815, 32
        %v5997 = vpop.permute.xlu0 %5996
        %5998 = vrot.lane.b32.xlu0 %v5816, 32
        %v5999 = vpop.permute.xlu0 %5998
        %6000 = vrot.lane.b32.xlu0 %v5817, 32
        %v6001 = vpop.permute.xlu0 %6000
        %6002 = vrot.lane.b32.xlu0 %v5818, 32
        %v6003 = vpop.permute.xlu0 %6002
        %6004 = vrot.lane.b32.xlu0 %v5819, 32
        %v6005 = vpop.permute.xlu0 %6004
        %6006 = vrot.lane.b32.xlu0 %v5820, 32
        %v6007 = vpop.permute.xlu0 %6006
        %6008 = vrot.lane.b32.xlu0 %v5821, 32
        %v6009 = vpop.permute.xlu0 %6008
        %6010 = vrot.lane.b32.xlu0 %v5822, 32
        %v6011 = vpop.permute.xlu0 %6010
        %6012 = vrot.lane.b32.xlu0 %v5823, 32
        %v6013 = vpop.permute.xlu0 %6012
        %6014 = vrot.lane.b32.xlu0 %v5824, 32
        %v6015 = vpop.permute.xlu0 %6014
        %6048 = vrot.lane.b32.xlu0 %v5968, 64
        %v6049 = vpop.permute.xlu0 %6048
        %6050 = vrot.lane.b32.xlu0 %v5969, 64
        %v6051 = vpop.permute.xlu0 %6050
        %6052 = vrot.lane.b32.xlu0 %v5970, 64
        %v6053 = vpop.permute.xlu0 %6052
        %6054 = vrot.lane.b32.xlu0 %v5971, 64
        %v6055 = vpop.permute.xlu0 %6054
        %6056 = vrot.lane.b32.xlu0 %v5972, 64
        %v6057 = vpop.permute.xlu0 %6056
        %6058 = vrot.lane.b32.xlu0 %v5973, 64
        %v6059 = vpop.permute.xlu0 %6058
        %6060 = vrot.lane.b32.xlu0 %v5974, 64
        %v6061 = vpop.permute.xlu0 %6060
        %6062 = vrot.lane.b32.xlu0 %v5975, 64
        %v6063 = vpop.permute.xlu0 %6062
        %6064 = vrot.lane.b32.xlu0 %v5976, 64
        %v6065 = vpop.permute.xlu0 %6064
        %6066 = vrot.lane.b32.xlu0 %v5977, 64
        %v6067 = vpop.permute.xlu0 %6066
        %6068 = vrot.lane.b32.xlu0 %v5978, 64
        %v6069 = vpop.permute.xlu0 %6068
        %6070 = vrot.lane.b32.xlu0 %v5979, 64
        %v6071 = vpop.permute.xlu0 %6070
        %6072 = vrot.lane.b32.xlu0 %v5980, 64
        %v6073 = vpop.permute.xlu0 %6072
        %6074 = vrot.lane.b32.xlu0 %v5981, 64
        %v6075 = vpop.permute.xlu0 %6074
        %6076 = vrot.lane.b32.xlu0 %v5982, 64
        %v6077 = vpop.permute.xlu0 %6076
        %6078 = vrot.lane.b32.xlu0 %v5983, 64
        %v6079 = vpop.permute.xlu0 %6078
        %v6096 = vsel %vm548, %v5903, %v5985
        %v6097 = vsel %vm548, %v5904, %v5987
        %v6098 = vsel %vm548, %v5905, %v5989
        %v6099 = vsel %vm548, %v5906, %v5991
        %v6100 = vsel %vm548, %v5907, %v5993
        %v6101 = vsel %vm548, %v5908, %v5995
        %v6102 = vsel %vm548, %v5909, %v5997
        %v6103 = vsel %vm548, %v5910, %v5999
        %v6104 = vsel %vm548, %v5911, %v6001
        %v6105 = vsel %vm548, %v5912, %v6003
        %v6106 = vsel %vm548, %v5913, %v6005
        %v6107 = vsel %vm548, %v5914, %v6007
        %v6108 = vsel %vm548, %v5915, %v6009
        %v6109 = vsel %vm548, %v5916, %v6011
        %v6110 = vsel %vm548, %v5917, %v6013
        %v6111 = vsel %vm548, %v5918, %v6015
        %v6112 = vsel %vm1260, %v6096, %v6049
        %v6113 = vsel %vm1260, %v6097, %v6051
        %v6114 = vsel %vm1260, %v6098, %v6053
        %v6115 = vsel %vm1260, %v6099, %v6055
        %v6116 = vsel %vm1260, %v6100, %v6057
        %v6117 = vsel %vm1260, %v6101, %v6059
        %v6118 = vsel %vm1260, %v6102, %v6061
        %v6119 = vsel %vm1260, %v6103, %v6063
        %v6120 = vsel %vm1260, %v6104, %v6065
        %v6121 = vsel %vm1260, %v6105, %v6067
        %v6122 = vsel %vm1260, %v6106, %v6069
        %v6123 = vsel %vm1260, %v6107, %v6071
        %v6124 = vsel %vm1260, %v6108, %v6073
        %v6125 = vsel %vm1260, %v6109, %v6075
        %v6126 = vsel %vm1260, %v6110, %v6077
        %v6127 = vsel %vm1260, %v6111, %v6079
        %v6128 = vpack.c.bf16 %v6113, %v6112
        %v6129 = vpack.c.bf16 %v6115, %v6114
        %v6130 = vpack.c.bf16 %v6117, %v6116
        %v6131 = vpack.c.bf16 %v6119, %v6118
        %v6132 = vpack.c.bf16 %v6121, %v6120
        %v6133 = vpack.c.bf16 %v6123, %v6122
        %v6134 = vpack.c.bf16 %v6125, %v6124
        %v6135 = vpack.c.bf16 %v6127, %v6126
        %v6148 = vunpack.c.l.b16 %v5826
        %v6149 = vunpack.c.l.b16 %v5827
        %v6150 = vunpack.c.l.b16 %v5828
        %v6151 = vunpack.c.l.b16 %v5829
        %v6152 = vunpack.c.l.b16 %v5830
        %v6153 = vunpack.c.l.b16 %v5831
        %v6154 = vunpack.c.l.b16 %v5832
        %v6155 = vunpack.c.l.b16 %v5833
        %v6156 = vunpack.c.l.b16 %v5834
        %v6157 = vunpack.c.l.b16 %v5835
        %v6158 = vunpack.c.l.b16 %v5836
        %v6159 = vunpack.c.l.b16 %v5837
        %v6160 = vpack.c.b16 %v6149, %v6148
        %v6161 = vpack.c.b16 %v6151, %v6150
        %v6162 = vpack.c.b16 %v6153, %v6152
        %v6163 = vpack.c.b16 %v6155, %v6154
        %v6164 = vpack.c.b16 %v6157, %v6156
        %v6165 = vpack.c.b16 %v6159, %v6158
        %v6173 = vsel %vm1321, %v6128, 0
        %v6176 = vsel %vm1321, %v6129, 0
        %v6179 = vsel %vm1321, %v6130, 0
        %v6182 = vsel %vm1321, %v6131, 0
        %v6185 = vsel %vm1321, %v6132, 0
        %v6188 = vsel %vm1321, %v6133, 0
        %v6191 = vsel %vm1321, %v6134, 0
        %v6194 = vsel %vm1321, %v6135, 0
        %6196 = vmatprep.subr.bf16.mxu0 0
        %6197 = vmatpush1.bf16.msra.mxu0 %v6160
        %6198 = vmatprep.subr.bf16.mxu0 0
        %6199 = vmatpush1.bf16.msra.mxu0 %v6161
        %6200 = vmatprep.subr.bf16.mxu0 0
        %6201 = vmatpush1.bf16.msra.mxu0 %v6162
        %6202 = vmatprep.subr.bf16.mxu0 0
        %6203 = vmatpush1.bf16.msra.mxu0 %v6163
        %6204 = vmatprep.subr.bf16.mxu0 0
        %6205 = vmatpush1.bf16.msra.mxu0 %v6164
        %6206 = vmatprep.subr.bf16.mxu0 0
        %6207 = vmatpush1.bf16.msra.mxu0 %v6165
        %6208 = vmatprep.subr.bf16.mxu0 0
        %6209 = vmatpush1.bf16.msra.mxu0 0
        %6210 = vmatprep.subr.bf16.mxu0 0
        %6211 = vmatpush1.bf16.msra.mxu0 0
        %6212 = vmatprep.subr.bf16.mxu0 0
        %6213 = vmatpush1.bf16.msra.mxu0 0
        %6214 = vmatprep.subr.bf16.mxu0 0
        %6215 = vmatpush1.bf16.msra.mxu0 0
        %6216 = vmatprep.subr.bf16.mxu0 0
        %6217 = vmatpush1.bf16.msra.mxu0 0
        %6218 = vmatprep.subr.bf16.mxu0 0
        %6219 = vmatpush1.bf16.msra.mxu0 0
        %6220 = vmatprep.subr.bf16.mxu0 0
        %6221 = vmatpush1.bf16.msra.mxu0 0
        %6222 = vmatprep.subr.bf16.mxu0 0
        %6223 = vmatpush1.bf16.msra.mxu0 0
        %6224 = vmatprep.subr.bf16.mxu0 0
        %6225 = vmatpush1.bf16.msra.mxu0 0
        %6226 = vmatprep.subr.bf16.mxu0 0
        %6227 = vmatpush1.bf16.msra.mxu0 0
        %6228 = vmatprep.mubr.bf16.mxu0 0
        %6229 = vmatmul.mubr.bf16.gmra.mrb[0].mxu0 %v6173
        %v6230 = vpop.f32.mrb[0].mxu0
        %v6231 = vadd.f32 0.0, %v6230
        %v6232 = vpop.f32.mrb[0].mxu0
        %v6233 = vpop.f32.mrb[0].mxu0
        %v6234 = vadd.f32 0.0, %v6233
        %v6235 = vpop.f32.mrb[0].mxu0
        %6236 = vmatprep.mubr.bf16.mxu0 0
        %6237 = vmatmul.mubr.bf16.gmra.mrb[0].mxu0 %v6176
        %v6238 = vpop.f32.mrb[0].mxu0
        %v6239 = vadd.f32 0.0, %v6238
        %v6240 = vpop.f32.mrb[0].mxu0
        %v6241 = vpop.f32.mrb[0].mxu0
        %v6242 = vadd.f32 0.0, %v6241
        %v6243 = vpop.f32.mrb[0].mxu0
        %6244 = vmatprep.mubr.bf16.mxu0 0
        %6245 = vmatmul.mubr.bf16.gmra.mrb[0].mxu0 %v6179
        %v6246 = vpop.f32.mrb[0].mxu0
        %v6247 = vadd.f32 0.0, %v6246
        %v6248 = vpop.f32.mrb[0].mxu0
        %v6249 = vpop.f32.mrb[0].mxu0
        %v6250 = vadd.f32 0.0, %v6249
        %v6251 = vpop.f32.mrb[0].mxu0
        %6252 = vmatprep.mubr.bf16.mxu0 0
        %6253 = vmatmul.mubr.bf16.gmra.mrb[0].mxu0 %v6182
        %v6254 = vpop.f32.mrb[0].mxu0
        %v6255 = vadd.f32 0.0, %v6254
        %v6256 = vpop.f32.mrb[0].mxu0
        %v6257 = vpop.f32.mrb[0].mxu0
        %v6258 = vadd.f32 0.0, %v6257
        %v6259 = vpop.f32.mrb[0].mxu0
        %6260 = vmatprep.mubr.bf16.mxu0 0
        %6261 = vmatmul.mubr.bf16.gmra.mrb[0].mxu0 %v6185
        %v6262 = vpop.f32.mrb[0].mxu0
        %v6263 = vadd.f32 0.0, %v6262
        %v6264 = vpop.f32.mrb[0].mxu0
        %v6265 = vpop.f32.mrb[0].mxu0
        %v6266 = vadd.f32 0.0, %v6265
        %v6267 = vpop.f32.mrb[0].mxu0
        %6268 = vmatprep.mubr.bf16.mxu0 0
        %6269 = vmatmul.mubr.bf16.gmra.mrb[0].mxu0 %v6188
        %v6270 = vpop.f32.mrb[0].mxu0
        %v6271 = vadd.f32 0.0, %v6270
        %v6272 = vpop.f32.mrb[0].mxu0
        %v6273 = vpop.f32.mrb[0].mxu0
        %v6274 = vadd.f32 0.0, %v6273
        %v6275 = vpop.f32.mrb[0].mxu0
        %6276 = vmatprep.mubr.bf16.mxu0 0
        %6277 = vmatmul.mubr.bf16.gmra.mrb[0].mxu0 %v6191
        %v6278 = vpop.f32.mrb[0].mxu0
        %v6279 = vadd.f32 0.0, %v6278
        %v6280 = vpop.f32.mrb[0].mxu0
        %v6281 = vpop.f32.mrb[0].mxu0
        %v6282 = vadd.f32 0.0, %v6281
        %v6283 = vpop.f32.mrb[0].mxu0
        %6284 = vmatprep.mubr.bf16.mxu0 0
        %6285 = vmatmul.mubr.bf16.gmra.mrb[0].mxu0 %v6194
        %v6286 = vpop.f32.mrb[0].mxu0
        %v6287 = vadd.f32 0.0, %v6286
        %v6288 = vpop.f32.mrb[0].mxu0
        %v6289 = vpop.f32.mrb[0].mxu0
        %v6290 = vadd.f32 0.0, %v6289
        %v6291 = vpop.f32.mrb[0].mxu0
        %6292 = vdwg.mxu0
        %s6293 = scalar_lea.vmem %s6, 9
        %v6294 = vld [vmem:[%s6293] sm:$0x1]
        %v6296 = vlaneseq
        %v6297 = vshrl.u32 %v6296, 7
        %v6298 = vsub.s32 0, %v6297
        %v6299 = vrot.slane %v6294, %v6298
        %v6301 = vmul.f32 %v6231, %v6299
        %v6302 = vmul.f32 %v6234, %v6299
        %v6303 = vmul.f32 %v6239, %v6299
        %v6304 = vmul.f32 %v6242, %v6299
        %v6305 = vmul.f32 %v6247, %v6299
        %v6306 = vmul.f32 %v6250, %v6299
        %v6307 = vmul.f32 %v6255, %v6299
        %v6308 = vmul.f32 %v6258, %v6299
        %v6309 = vmul.f32 %v6263, %v6299
        %v6310 = vmul.f32 %v6266, %v6299
        %v6311 = vmul.f32 %v6271, %v6299
        %v6312 = vmul.f32 %v6274, %v6299
        %v6313 = vmul.f32 %v6279, %v6299
        %v6314 = vmul.f32 %v6282, %v6299
        %v6315 = vmul.f32 %v6287, %v6299
        %v6316 = vmul.f32 %v6290, %v6299
        %s6317 = scalar_lea.vmem %s7, 9
        %v6318 = vld [vmem:[%s6317] sm:$0x1]
        %v6320 = vlaneseq
        %v6321 = vshrl.u32 %v6320, 7
        %v6322 = vsub.s32 0, %v6321
        %v6323 = vrot.slane %v6318, %v6322
        %v6325 = vadd.f32 %v6301, %v6323
        %v6326 = vadd.f32 %v6302, %v6323
        %v6327 = vadd.f32 %v6303, %v6323
        %v6328 = vadd.f32 %v6304, %v6323
        %v6329 = vadd.f32 %v6305, %v6323
        %v6330 = vadd.f32 %v6306, %v6323
        %v6331 = vadd.f32 %v6307, %v6323
        %v6332 = vadd.f32 %v6308, %v6323
        %v6333 = vadd.f32 %v6309, %v6323
        %v6334 = vadd.f32 %v6310, %v6323
        %v6335 = vadd.f32 %v6311, %v6323
        %v6336 = vadd.f32 %v6312, %v6323
        %v6337 = vadd.f32 %v6313, %v6323
        %v6338 = vadd.f32 %v6314, %v6323
        %v6339 = vadd.f32 %v6315, %v6323
        %v6340 = vadd.f32 %v6316, %v6323
        %v6341 = vadd.f32 %v6325, %v5277
        %v6342 = vadd.f32 %v6326, %v5278
        %v6343 = vadd.f32 %v6327, %v5279
        %v6344 = vadd.f32 %v6328, %v5280
        %v6345 = vadd.f32 %v6329, %v5281
        %v6346 = vadd.f32 %v6330, %v5282
        %v6347 = vadd.f32 %v6331, %v5283
        %v6348 = vadd.f32 %v6332, %v5284
        %v6349 = vadd.f32 %v6333, %v5285
        %v6350 = vadd.f32 %v6334, %v5286
        %v6351 = vadd.f32 %v6335, %v5287
        %v6352 = vadd.f32 %v6336, %v5288
        %v6353 = vadd.f32 %v6337, %v5289
        %v6354 = vadd.f32 %v6338, %v5290
        %v6355 = vadd.f32 %v6339, %v5291
        %v6356 = vadd.f32 %v6340, %v5292
        %v6357 = vmax.f32 %v6341, 0.0
        %v6358 = vmax.f32 %v6342, 0.0
        %v6359 = vmax.f32 %v6343, 0.0
        %v6360 = vmax.f32 %v6344, 0.0
        %v6361 = vmax.f32 %v6345, 0.0
        %v6362 = vmax.f32 %v6346, 0.0
        %v6363 = vmax.f32 %v6347, 0.0
        %v6364 = vmax.f32 %v6348, 0.0
        %v6365 = vmax.f32 %v6349, 0.0
        %v6366 = vmax.f32 %v6350, 0.0
        %v6367 = vmax.f32 %v6351, 0.0
        %v6368 = vmax.f32 %v6352, 0.0
        %v6369 = vmax.f32 %v6353, 0.0
        %v6370 = vmax.f32 %v6354, 0.0
        %v6371 = vmax.f32 %v6355, 0.0
        %v6372 = vmax.f32 %v6356, 0.0
        %s6373 = scalar_lea.vmem %s5, 480
        %v6374 = vld [vmem:[%s6373] sm:$0xf]
        %v6375 = vld [vmem:[%s6373 + $0x4] sm:$0xf]
        %v6376 = vld [vmem:[%s6373 + $0x8] sm:$0xf]
        %v6377 = vld [vmem:[%s6373 + $0xc] sm:$0xf]
        %v6378 = vld [vmem:[%s6373 + $0x10] sm:$0xf]
        %v6379 = vld [vmem:[%s6373 + $0x14] sm:$0xf]
        %v6380 = vld [vmem:[%s6373 + $0x18] sm:$0xf]
        %v6381 = vld [vmem:[%s6373 + $0x1c] sm:$0xf]
        %v6382 = vld [vmem:[%s6373 + $0x20] sm:$0xf]
        %v6383 = vld [vmem:[%s6373 + $0x24] sm:$0xf]
        %v6384 = vld [vmem:[%s6373 + $0x28] sm:$0xf]
        %v6385 = vld [vmem:[%s6373 + $0x2c] sm:$0xf]
        %v6387 = vrot.slane %v6372, 7
        %v6404 = vrot.slane %v6357, 7
        %v6405 = vrot.slane %v6358, 7
        %v6406 = vsel %vm375, %v6404, %v6405
        %v6407 = vrot.slane %v6359, 7
        %v6408 = vsel %vm375, %v6405, %v6407
        %v6409 = vrot.slane %v6360, 7
        %v6410 = vsel %vm375, %v6407, %v6409
        %v6411 = vrot.slane %v6361, 7
        %v6412 = vsel %vm375, %v6409, %v6411
        %v6413 = vrot.slane %v6362, 7
        %v6414 = vsel %vm375, %v6411, %v6413
        %v6415 = vrot.slane %v6363, 7
        %v6416 = vsel %vm375, %v6413, %v6415
        %v6417 = vrot.slane %v6364, 7
        %v6418 = vsel %vm375, %v6415, %v6417
        %v6419 = vrot.slane %v6365, 7
        %v6420 = vsel %vm375, %v6417, %v6419
        %v6421 = vrot.slane %v6366, 7
        %v6422 = vsel %vm375, %v6419, %v6421
        %v6423 = vrot.slane %v6367, 7
        %v6424 = vsel %vm375, %v6421, %v6423
        %v6425 = vrot.slane %v6368, 7
        %v6426 = vsel %vm375, %v6423, %v6425
        %v6427 = vrot.slane %v6369, 7
        %v6428 = vsel %vm375, %v6425, %v6427
        %v6429 = vrot.slane %v6370, 7
        %v6430 = vsel %vm375, %v6427, %v6429
        %v6431 = vrot.slane %v6371, 7
        %v6432 = vsel %vm375, %v6429, %v6431
        %v6433 = vsel %vm375, %v6431, %v6387
        %v6450 = vsel %vm375, %v6387, %v6404
        %v6451 = vsel %vm941, 0.0, %v6450
        %v6452 = vsel %vm942, 0.0, %v6406
        %v6453 = vsel %vm943, 0.0, %v6408
        %v6454 = vsel %vm944, 0.0, %v6410
        %v6455 = vsel %vm945, 0.0, %v6412
        %v6456 = vsel %vm946, 0.0, %v6414
        %v6457 = vsel %vm947, 0.0, %v6416
        %v6458 = vsel %vm948, 0.0, %v6418
        %v6459 = vsel %vm949, 0.0, %v6420
        %v6460 = vsel %vm950, 0.0, %v6422
        %v6461 = vsel %vm951, 0.0, %v6424
        %v6462 = vsel %vm952, 0.0, %v6426
        %v6463 = vsel %vm953, 0.0, %v6428
        %v6464 = vsel %vm954, 0.0, %v6430
        %v6465 = vsel %vm955, 0.0, %v6432
        %v6466 = vsel %vm956, 0.0, %v6433
        %v6467 = vrot.slane %v6357, 1
        %v6468 = vrot.slane %v6358, 1
        %v6469 = vsel %vm1066, %v6467, %v6468
        %v6470 = vrot.slane %v6359, 1
        %v6471 = vsel %vm1066, %v6468, %v6470
        %v6472 = vrot.slane %v6360, 1
        %v6473 = vsel %vm1066, %v6470, %v6472
        %v6474 = vrot.slane %v6361, 1
        %v6475 = vsel %vm1066, %v6472, %v6474
        %v6476 = vrot.slane %v6362, 1
        %v6477 = vsel %vm1066, %v6474, %v6476
        %v6478 = vrot.slane %v6363, 1
        %v6479 = vsel %vm1066, %v6476, %v6478
        %v6480 = vrot.slane %v6364, 1
        %v6481 = vsel %vm1066, %v6478, %v6480
        %v6482 = vrot.slane %v6365, 1
        %v6483 = vsel %vm1066, %v6480, %v6482
        %v6484 = vrot.slane %v6366, 1
        %v6485 = vsel %vm1066, %v6482, %v6484
        %v6486 = vrot.slane %v6367, 1
        %v6487 = vsel %vm1066, %v6484, %v6486
        %v6488 = vrot.slane %v6368, 1
        %v6489 = vsel %vm1066, %v6486, %v6488
        %v6490 = vrot.slane %v6369, 1
        %v6491 = vsel %vm1066, %v6488, %v6490
        %v6492 = vrot.slane %v6370, 1
        %v6493 = vsel %vm1066, %v6490, %v6492
        %v6494 = vrot.slane %v6371, 1
        %v6495 = vsel %vm1066, %v6492, %v6494
        %v6496 = vrot.slane %v6372, 1
        %v6497 = vsel %vm1066, %v6494, %v6496
        %v6515 = vsel %vm1066, %v6496, %v6467
        %v6516 = vsel %vm957, 0.0, %v6469
        %v6517 = vsel %vm958, 0.0, %v6471
        %v6518 = vsel %vm959, 0.0, %v6473
        %v6519 = vsel %vm960, 0.0, %v6475
        %v6520 = vsel %vm961, 0.0, %v6477
        %v6521 = vsel %vm962, 0.0, %v6479
        %v6522 = vsel %vm963, 0.0, %v6481
        %v6523 = vsel %vm964, 0.0, %v6483
        %v6524 = vsel %vm965, 0.0, %v6485
        %v6525 = vsel %vm966, 0.0, %v6487
        %v6526 = vsel %vm967, 0.0, %v6489
        %v6527 = vsel %vm968, 0.0, %v6491
        %v6528 = vsel %vm969, 0.0, %v6493
        %v6529 = vsel %vm970, 0.0, %v6495
        %v6530 = vsel %vm971, 0.0, %v6497
        %v6531 = vsel %vm972, 0.0, %v6515
        %6532 = vrot.lane.b32.xlu0 %v6357, 32
        %v6533 = vpop.permute.xlu0 %6532
        %6534 = vrot.lane.b32.xlu0 %v6358, 32
        %v6535 = vpop.permute.xlu0 %6534
        %6536 = vrot.lane.b32.xlu0 %v6359, 32
        %v6537 = vpop.permute.xlu0 %6536
        %6538 = vrot.lane.b32.xlu0 %v6360, 32
        %v6539 = vpop.permute.xlu0 %6538
        %6540 = vrot.lane.b32.xlu0 %v6361, 32
        %v6541 = vpop.permute.xlu0 %6540
        %6542 = vrot.lane.b32.xlu0 %v6362, 32
        %v6543 = vpop.permute.xlu0 %6542
        %6544 = vrot.lane.b32.xlu0 %v6363, 32
        %v6545 = vpop.permute.xlu0 %6544
        %6546 = vrot.lane.b32.xlu0 %v6364, 32
        %v6547 = vpop.permute.xlu0 %6546
        %6548 = vrot.lane.b32.xlu0 %v6365, 32
        %v6549 = vpop.permute.xlu0 %6548
        %6550 = vrot.lane.b32.xlu0 %v6366, 32
        %v6551 = vpop.permute.xlu0 %6550
        %6552 = vrot.lane.b32.xlu0 %v6367, 32
        %v6553 = vpop.permute.xlu0 %6552
        %6554 = vrot.lane.b32.xlu0 %v6368, 32
        %v6555 = vpop.permute.xlu0 %6554
        %6556 = vrot.lane.b32.xlu0 %v6369, 32
        %v6557 = vpop.permute.xlu0 %6556
        %6558 = vrot.lane.b32.xlu0 %v6370, 32
        %v6559 = vpop.permute.xlu0 %6558
        %6560 = vrot.lane.b32.xlu0 %v6371, 32
        %v6561 = vpop.permute.xlu0 %6560
        %6562 = vrot.lane.b32.xlu0 %v6372, 32
        %v6563 = vpop.permute.xlu0 %6562
        %6596 = vrot.lane.b32.xlu0 %v6516, 64
        %v6597 = vpop.permute.xlu0 %6596
        %6598 = vrot.lane.b32.xlu0 %v6517, 64
        %v6599 = vpop.permute.xlu0 %6598
        %6600 = vrot.lane.b32.xlu0 %v6518, 64
        %v6601 = vpop.permute.xlu0 %6600
        %6602 = vrot.lane.b32.xlu0 %v6519, 64
        %v6603 = vpop.permute.xlu0 %6602
        %6604 = vrot.lane.b32.xlu0 %v6520, 64
        %v6605 = vpop.permute.xlu0 %6604
        %6606 = vrot.lane.b32.xlu0 %v6521, 64
        %v6607 = vpop.permute.xlu0 %6606
        %6608 = vrot.lane.b32.xlu0 %v6522, 64
        %v6609 = vpop.permute.xlu0 %6608
        %6610 = vrot.lane.b32.xlu0 %v6523, 64
        %v6611 = vpop.permute.xlu0 %6610
        %6612 = vrot.lane.b32.xlu0 %v6524, 64
        %v6613 = vpop.permute.xlu0 %6612
        %6614 = vrot.lane.b32.xlu0 %v6525, 64
        %v6615 = vpop.permute.xlu0 %6614
        %6616 = vrot.lane.b32.xlu0 %v6526, 64
        %v6617 = vpop.permute.xlu0 %6616
        %6618 = vrot.lane.b32.xlu0 %v6527, 64
        %v6619 = vpop.permute.xlu0 %6618
        %6620 = vrot.lane.b32.xlu0 %v6528, 64
        %v6621 = vpop.permute.xlu0 %6620
        %6622 = vrot.lane.b32.xlu0 %v6529, 64
        %v6623 = vpop.permute.xlu0 %6622
        %6624 = vrot.lane.b32.xlu0 %v6530, 64
        %v6625 = vpop.permute.xlu0 %6624
        %6626 = vrot.lane.b32.xlu0 %v6531, 64
        %v6627 = vpop.permute.xlu0 %6626
        %v6644 = vsel %vm548, %v6451, %v6533
        %v6645 = vsel %vm548, %v6452, %v6535
        %v6646 = vsel %vm548, %v6453, %v6537
        %v6647 = vsel %vm548, %v6454, %v6539
        %v6648 = vsel %vm548, %v6455, %v6541
        %v6649 = vsel %vm548, %v6456, %v6543
        %v6650 = vsel %vm548, %v6457, %v6545
        %v6651 = vsel %vm548, %v6458, %v6547
        %v6652 = vsel %vm548, %v6459, %v6549
        %v6653 = vsel %vm548, %v6460, %v6551
        %v6654 = vsel %vm548, %v6461, %v6553
        %v6655 = vsel %vm548, %v6462, %v6555
        %v6656 = vsel %vm548, %v6463, %v6557
        %v6657 = vsel %vm548, %v6464, %v6559
        %v6658 = vsel %vm548, %v6465, %v6561
        %v6659 = vsel %vm548, %v6466, %v6563
        %v6660 = vsel %vm1260, %v6644, %v6597
        %v6661 = vsel %vm1260, %v6645, %v6599
        %v6662 = vsel %vm1260, %v6646, %v6601
        %v6663 = vsel %vm1260, %v6647, %v6603
        %v6664 = vsel %vm1260, %v6648, %v6605
        %v6665 = vsel %vm1260, %v6649, %v6607
        %v6666 = vsel %vm1260, %v6650, %v6609
        %v6667 = vsel %vm1260, %v6651, %v6611
        %v6668 = vsel %vm1260, %v6652, %v6613
        %v6669 = vsel %vm1260, %v6653, %v6615
        %v6670 = vsel %vm1260, %v6654, %v6617
        %v6671 = vsel %vm1260, %v6655, %v6619
        %v6672 = vsel %vm1260, %v6656, %v6621
        %v6673 = vsel %vm1260, %v6657, %v6623
        %v6674 = vsel %vm1260, %v6658, %v6625
        %v6675 = vsel %vm1260, %v6659, %v6627
        %v6676 = vpack.c.bf16 %v6661, %v6660
        %v6677 = vpack.c.bf16 %v6663, %v6662
        %v6678 = vpack.c.bf16 %v6665, %v6664
        %v6679 = vpack.c.bf16 %v6667, %v6666
        %v6680 = vpack.c.bf16 %v6669, %v6668
        %v6681 = vpack.c.bf16 %v6671, %v6670
        %v6682 = vpack.c.bf16 %v6673, %v6672
        %v6683 = vpack.c.bf16 %v6675, %v6674
        %v6696 = vunpack.c.l.b16 %v6374
        %v6697 = vunpack.c.l.b16 %v6375
        %v6698 = vunpack.c.l.b16 %v6376
        %v6699 = vunpack.c.l.b16 %v6377
        %v6700 = vunpack.c.l.b16 %v6378
        %v6701 = vunpack.c.l.b16 %v6379
        %v6702 = vunpack.c.l.b16 %v6380
        %v6703 = vunpack.c.l.b16 %v6381
        %v6704 = vunpack.c.l.b16 %v6382
        %v6705 = vunpack.c.l.b16 %v6383
        %v6706 = vunpack.c.l.b16 %v6384
        %v6707 = vunpack.c.l.b16 %v6385
        %v6708 = vpack.c.b16 %v6697, %v6696
        %v6709 = vpack.c.b16 %v6699, %v6698
        %v6710 = vpack.c.b16 %v6701, %v6700
        %v6711 = vpack.c.b16 %v6703, %v6702
        %v6712 = vpack.c.b16 %v6705, %v6704
        %v6713 = vpack.c.b16 %v6707, %v6706
        %v6721 = vsel %vm1321, %v6676, 0
        %v6724 = vsel %vm1321, %v6677, 0
        %v6727 = vsel %vm1321, %v6678, 0
        %v6730 = vsel %vm1321, %v6679, 0
        %v6733 = vsel %vm1321, %v6680, 0
        %v6736 = vsel %vm1321, %v6681, 0
        %v6739 = vsel %vm1321, %v6682, 0
        %v6742 = vsel %vm1321, %v6683, 0
        %6744 = vmatprep.subr.bf16.mxu0 0
        %6745 = vmatpush1.bf16.msra.mxu0 %v6708
        %6746 = vmatprep.subr.bf16.mxu0 0
        %6747 = vmatpush1.bf16.msra.mxu0 %v6709
        %6748 = vmatprep.subr.bf16.mxu0 0
        %6749 = vmatpush1.bf16.msra.mxu0 %v6710
        %6750 = vmatprep.subr.bf16.mxu0 0
        %6751 = vmatpush1.bf16.msra.mxu0 %v6711
        %6752 = vmatprep.subr.bf16.mxu0 0
        %6753 = vmatpush1.bf16.msra.mxu0 %v6712
        %6754 = vmatprep.subr.bf16.mxu0 0
        %6755 = vmatpush1.bf16.msra.mxu0 %v6713
        %6756 = vmatprep.subr.bf16.mxu0 0
        %6757 = vmatpush1.bf16.msra.mxu0 0
        %6758 = vmatprep.subr.bf16.mxu0 0
        %6759 = vmatpush1.bf16.msra.mxu0 0
        %6760 = vmatprep.subr.bf16.mxu0 0
        %6761 = vmatpush1.bf16.msra.mxu0 0
        %6762 = vmatprep.subr.bf16.mxu0 0
        %6763 = vmatpush1.bf16.msra.mxu0 0
        %6764 = vmatprep.subr.bf16.mxu0 0
        %6765 = vmatpush1.bf16.msra.mxu0 0
        %6766 = vmatprep.subr.bf16.mxu0 0
        %6767 = vmatpush1.bf16.msra.mxu0 0
        %6768 = vmatprep.subr.bf16.mxu0 0
        %6769 = vmatpush1.bf16.msra.mxu0 0
        %6770 = vmatprep.subr.bf16.mxu0 0
        %6771 = vmatpush1.bf16.msra.mxu0 0
        %6772 = vmatprep.subr.bf16.mxu0 0
        %6773 = vmatpush1.bf16.msra.mxu0 0
        %6774 = vmatprep.subr.bf16.mxu0 0
        %6775 = vmatpush1.bf16.msra.mxu0 0
        %6776 = vmatprep.mubr.bf16.mxu0 0
        %6777 = vmatmul.mubr.bf16.gmra.mrb[0].mxu0 %v6721
        %v6778 = vpop.f32.mrb[0].mxu0
        %v6779 = vadd.f32 0.0, %v6778
        %v6780 = vpop.f32.mrb[0].mxu0
        %v6781 = vpop.f32.mrb[0].mxu0
        %v6782 = vadd.f32 0.0, %v6781
        %v6783 = vpop.f32.mrb[0].mxu0
        %6784 = vmatprep.mubr.bf16.mxu0 0
        %6785 = vmatmul.mubr.bf16.gmra.mrb[0].mxu0 %v6724
        %v6786 = vpop.f32.mrb[0].mxu0
        %v6787 = vadd.f32 0.0, %v6786
        %v6788 = vpop.f32.mrb[0].mxu0
        %v6789 = vpop.f32.mrb[0].mxu0
        %v6790 = vadd.f32 0.0, %v6789
        %v6791 = vpop.f32.mrb[0].mxu0
        %6792 = vmatprep.mubr.bf16.mxu0 0
        %6793 = vmatmul.mubr.bf16.gmra.mrb[0].mxu0 %v6727
        %v6794 = vpop.f32.mrb[0].mxu0
        %v6795 = vadd.f32 0.0, %v6794
        %v6796 = vpop.f32.mrb[0].mxu0
        %v6797 = vpop.f32.mrb[0].mxu0
        %v6798 = vadd.f32 0.0, %v6797
        %v6799 = vpop.f32.mrb[0].mxu0
        %6800 = vmatprep.mubr.bf16.mxu0 0
        %6801 = vmatmul.mubr.bf16.gmra.mrb[0].mxu0 %v6730
        %v6802 = vpop.f32.mrb[0].mxu0
        %v6803 = vadd.f32 0.0, %v6802
        %v6804 = vpop.f32.mrb[0].mxu0
        %v6805 = vpop.f32.mrb[0].mxu0
        %v6806 = vadd.f32 0.0, %v6805
        %v6807 = vpop.f32.mrb[0].mxu0
        %6808 = vmatprep.mubr.bf16.mxu0 0
        %6809 = vmatmul.mubr.bf16.gmra.mrb[0].mxu0 %v6733
        %v6810 = vpop.f32.mrb[0].mxu0
        %v6811 = vadd.f32 0.0, %v6810
        %v6812 = vpop.f32.mrb[0].mxu0
        %v6813 = vpop.f32.mrb[0].mxu0
        %v6814 = vadd.f32 0.0, %v6813
        %v6815 = vpop.f32.mrb[0].mxu0
        %6816 = vmatprep.mubr.bf16.mxu0 0
        %6817 = vmatmul.mubr.bf16.gmra.mrb[0].mxu0 %v6736
        %v6818 = vpop.f32.mrb[0].mxu0
        %v6819 = vadd.f32 0.0, %v6818
        %v6820 = vpop.f32.mrb[0].mxu0
        %v6821 = vpop.f32.mrb[0].mxu0
        %v6822 = vadd.f32 0.0, %v6821
        %v6823 = vpop.f32.mrb[0].mxu0
        %6824 = vmatprep.mubr.bf16.mxu0 0
        %6825 = vmatmul.mubr.bf16.gmra.mrb[0].mxu0 %v6739
        %v6826 = vpop.f32.mrb[0].mxu0
        %v6827 = vadd.f32 0.0, %v6826
        %v6828 = vpop.f32.mrb[0].mxu0
        %v6829 = vpop.f32.mrb[0].mxu0
        %v6830 = vadd.f32 0.0, %v6829
        %v6831 = vpop.f32.mrb[0].mxu0
        %6832 = vmatprep.mubr.bf16.mxu0 0
        %6833 = vmatmul.mubr.bf16.gmra.mrb[0].mxu0 %v6742
        %v6834 = vpop.f32.mrb[0].mxu0
        %v6835 = vadd.f32 0.0, %v6834
        %v6836 = vpop.f32.mrb[0].mxu0
        %v6837 = vpop.f32.mrb[0].mxu0
        %v6838 = vadd.f32 0.0, %v6837
        %v6839 = vpop.f32.mrb[0].mxu0
        %6840 = vdwg.mxu0
        %s6841 = scalar_lea.vmem %s6, 10
        %v6842 = vld [vmem:[%s6841] sm:$0x1]
        %v6844 = vlaneseq
        %v6845 = vshrl.u32 %v6844, 7
        %v6846 = vsub.s32 0, %v6845
        %v6847 = vrot.slane %v6842, %v6846
        %v6849 = vmul.f32 %v6779, %v6847
        %v6850 = vmul.f32 %v6782, %v6847
        %v6851 = vmul.f32 %v6787, %v6847
        %v6852 = vmul.f32 %v6790, %v6847
        %v6853 = vmul.f32 %v6795, %v6847
        %v6854 = vmul.f32 %v6798, %v6847
        %v6855 = vmul.f32 %v6803, %v6847
        %v6856 = vmul.f32 %v6806, %v6847
        %v6857 = vmul.f32 %v6811, %v6847
        %v6858 = vmul.f32 %v6814, %v6847
        %v6859 = vmul.f32 %v6819, %v6847
        %v6860 = vmul.f32 %v6822, %v6847
        %v6861 = vmul.f32 %v6827, %v6847
        %v6862 = vmul.f32 %v6830, %v6847
        %v6863 = vmul.f32 %v6835, %v6847
        %v6864 = vmul.f32 %v6838, %v6847
        %s6865 = scalar_lea.vmem %s7, 10
        %v6866 = vld [vmem:[%s6865] sm:$0x1]
        %v6868 = vlaneseq
        %v6869 = vshrl.u32 %v6868, 7
        %v6870 = vsub.s32 0, %v6869
        %v6871 = vrot.slane %v6866, %v6870
        %v6873 = vadd.f32 %v6849, %v6871
        %v6874 = vadd.f32 %v6850, %v6871
        %v6875 = vadd.f32 %v6851, %v6871
        %v6876 = vadd.f32 %v6852, %v6871
        %v6877 = vadd.f32 %v6853, %v6871
        %v6878 = vadd.f32 %v6854, %v6871
        %v6879 = vadd.f32 %v6855, %v6871
        %v6880 = vadd.f32 %v6856, %v6871
        %v6881 = vadd.f32 %v6857, %v6871
        %v6882 = vadd.f32 %v6858, %v6871
        %v6883 = vadd.f32 %v6859, %v6871
        %v6884 = vadd.f32 %v6860, %v6871
        %v6885 = vadd.f32 %v6861, %v6871
        %v6886 = vadd.f32 %v6862, %v6871
        %v6887 = vadd.f32 %v6863, %v6871
        %v6888 = vadd.f32 %v6864, %v6871
        %v6889 = vmax.f32 %v6873, 0.0
        %v6890 = vmax.f32 %v6874, 0.0
        %v6891 = vmax.f32 %v6875, 0.0
        %v6892 = vmax.f32 %v6876, 0.0
        %v6893 = vmax.f32 %v6877, 0.0
        %v6894 = vmax.f32 %v6878, 0.0
        %v6895 = vmax.f32 %v6879, 0.0
        %v6896 = vmax.f32 %v6880, 0.0
        %v6897 = vmax.f32 %v6881, 0.0
        %v6898 = vmax.f32 %v6882, 0.0
        %v6899 = vmax.f32 %v6883, 0.0
        %v6900 = vmax.f32 %v6884, 0.0
        %v6901 = vmax.f32 %v6885, 0.0
        %v6902 = vmax.f32 %v6886, 0.0
        %v6903 = vmax.f32 %v6887, 0.0
        %v6904 = vmax.f32 %v6888, 0.0
        %s6905 = scalar_lea.vmem %s5, 528
        %v6906 = vld [vmem:[%s6905] sm:$0xf]
        %v6907 = vld [vmem:[%s6905 + $0x4] sm:$0xf]
        %v6908 = vld [vmem:[%s6905 + $0x8] sm:$0xf]
        %v6909 = vld [vmem:[%s6905 + $0xc] sm:$0xf]
        %v6910 = vld [vmem:[%s6905 + $0x10] sm:$0xf]
        %v6911 = vld [vmem:[%s6905 + $0x14] sm:$0xf]
        %v6912 = vld [vmem:[%s6905 + $0x18] sm:$0xf]
        %v6913 = vld [vmem:[%s6905 + $0x1c] sm:$0xf]
        %v6914 = vld [vmem:[%s6905 + $0x20] sm:$0xf]
        %v6915 = vld [vmem:[%s6905 + $0x24] sm:$0xf]
        %v6916 = vld [vmem:[%s6905 + $0x28] sm:$0xf]
        %v6917 = vld [vmem:[%s6905 + $0x2c] sm:$0xf]
        %v6919 = vrot.slane %v6904, 7
        %v6936 = vrot.slane %v6889, 7
        %v6937 = vrot.slane %v6890, 7
        %v6938 = vsel %vm375, %v6936, %v6937
        %v6939 = vrot.slane %v6891, 7
        %v6940 = vsel %vm375, %v6937, %v6939
        %v6941 = vrot.slane %v6892, 7
        %v6942 = vsel %vm375, %v6939, %v6941
        %v6943 = vrot.slane %v6893, 7
        %v6944 = vsel %vm375, %v6941, %v6943
        %v6945 = vrot.slane %v6894, 7
        %v6946 = vsel %vm375, %v6943, %v6945
        %v6947 = vrot.slane %v6895, 7
        %v6948 = vsel %vm375, %v6945, %v6947
        %v6949 = vrot.slane %v6896, 7
        %v6950 = vsel %vm375, %v6947, %v6949
        %v6951 = vrot.slane %v6897, 7
        %v6952 = vsel %vm375, %v6949, %v6951
        %v6953 = vrot.slane %v6898, 7
        %v6954 = vsel %vm375, %v6951, %v6953
        %v6955 = vrot.slane %v6899, 7
        %v6956 = vsel %vm375, %v6953, %v6955
        %v6957 = vrot.slane %v6900, 7
        %v6958 = vsel %vm375, %v6955, %v6957
        %v6959 = vrot.slane %v6901, 7
        %v6960 = vsel %vm375, %v6957, %v6959
        %v6961 = vrot.slane %v6902, 7
        %v6962 = vsel %vm375, %v6959, %v6961
        %v6963 = vrot.slane %v6903, 7
        %v6964 = vsel %vm375, %v6961, %v6963
        %v6965 = vsel %vm375, %v6963, %v6919
        %v6982 = vsel %vm375, %v6919, %v6936
        %v6983 = vsel %vm941, 0.0, %v6982
        %v6984 = vsel %vm942, 0.0, %v6938
        %v6985 = vsel %vm943, 0.0, %v6940
        %v6986 = vsel %vm944, 0.0, %v6942
        %v6987 = vsel %vm945, 0.0, %v6944
        %v6988 = vsel %vm946, 0.0, %v6946
        %v6989 = vsel %vm947, 0.0, %v6948
        %v6990 = vsel %vm948, 0.0, %v6950
        %v6991 = vsel %vm949, 0.0, %v6952
        %v6992 = vsel %vm950, 0.0, %v6954
        %v6993 = vsel %vm951, 0.0, %v6956
        %v6994 = vsel %vm952, 0.0, %v6958
        %v6995 = vsel %vm953, 0.0, %v6960
        %v6996 = vsel %vm954, 0.0, %v6962
        %v6997 = vsel %vm955, 0.0, %v6964
        %v6998 = vsel %vm956, 0.0, %v6965
        %v6999 = vrot.slane %v6889, 1
        %v7000 = vrot.slane %v6890, 1
        %v7001 = vsel %vm1066, %v6999, %v7000
        %v7002 = vrot.slane %v6891, 1
        %v7003 = vsel %vm1066, %v7000, %v7002
        %v7004 = vrot.slane %v6892, 1
        %v7005 = vsel %vm1066, %v7002, %v7004
        %v7006 = vrot.slane %v6893, 1
        %v7007 = vsel %vm1066, %v7004, %v7006
        %v7008 = vrot.slane %v6894, 1
        %v7009 = vsel %vm1066, %v7006, %v7008
        %v7010 = vrot.slane %v6895, 1
        %v7011 = vsel %vm1066, %v7008, %v7010
        %v7012 = vrot.slane %v6896, 1
        %v7013 = vsel %vm1066, %v7010, %v7012
        %v7014 = vrot.slane %v6897, 1
        %v7015 = vsel %vm1066, %v7012, %v7014
        %v7016 = vrot.slane %v6898, 1
        %v7017 = vsel %vm1066, %v7014, %v7016
        %v7018 = vrot.slane %v6899, 1
        %v7019 = vsel %vm1066, %v7016, %v7018
        %v7020 = vrot.slane %v6900, 1
        %v7021 = vsel %vm1066, %v7018, %v7020
        %v7022 = vrot.slane %v6901, 1
        %v7023 = vsel %vm1066, %v7020, %v7022
        %v7024 = vrot.slane %v6902, 1
        %v7025 = vsel %vm1066, %v7022, %v7024
        %v7026 = vrot.slane %v6903, 1
        %v7027 = vsel %vm1066, %v7024, %v7026
        %v7028 = vrot.slane %v6904, 1
        %v7029 = vsel %vm1066, %v7026, %v7028
        %v7047 = vsel %vm1066, %v7028, %v6999
        %v7048 = vsel %vm957, 0.0, %v7001
        %v7049 = vsel %vm958, 0.0, %v7003
        %v7050 = vsel %vm959, 0.0, %v7005
        %v7051 = vsel %vm960, 0.0, %v7007
        %v7052 = vsel %vm961, 0.0, %v7009
        %v7053 = vsel %vm962, 0.0, %v7011
        %v7054 = vsel %vm963, 0.0, %v7013
        %v7055 = vsel %vm964, 0.0, %v7015
        %v7056 = vsel %vm965, 0.0, %v7017
        %v7057 = vsel %vm966, 0.0, %v7019
        %v7058 = vsel %vm967, 0.0, %v7021
        %v7059 = vsel %vm968, 0.0, %v7023
        %v7060 = vsel %vm969, 0.0, %v7025
        %v7061 = vsel %vm970, 0.0, %v7027
        %v7062 = vsel %vm971, 0.0, %v7029
        %v7063 = vsel %vm972, 0.0, %v7047
        %7064 = vrot.lane.b32.xlu0 %v6889, 32
        %v7065 = vpop.permute.xlu0 %7064
        %7066 = vrot.lane.b32.xlu0 %v6890, 32
        %v7067 = vpop.permute.xlu0 %7066
        %7068 = vrot.lane.b32.xlu0 %v6891, 32
        %v7069 = vpop.permute.xlu0 %7068
        %7070 = vrot.lane.b32.xlu0 %v6892, 32
        %v7071 = vpop.permute.xlu0 %7070
        %7072 = vrot.lane.b32.xlu0 %v6893, 32
        %v7073 = vpop.permute.xlu0 %7072
        %7074 = vrot.lane.b32.xlu0 %v6894, 32
        %v7075 = vpop.permute.xlu0 %7074
        %7076 = vrot.lane.b32.xlu0 %v6895, 32
        %v7077 = vpop.permute.xlu0 %7076
        %7078 = vrot.lane.b32.xlu0 %v6896, 32
        %v7079 = vpop.permute.xlu0 %7078
        %7080 = vrot.lane.b32.xlu0 %v6897, 32
        %v7081 = vpop.permute.xlu0 %7080
        %7082 = vrot.lane.b32.xlu0 %v6898, 32
        %v7083 = vpop.permute.xlu0 %7082
        %7084 = vrot.lane.b32.xlu0 %v6899, 32
        %v7085 = vpop.permute.xlu0 %7084
        %7086 = vrot.lane.b32.xlu0 %v6900, 32
        %v7087 = vpop.permute.xlu0 %7086
        %7088 = vrot.lane.b32.xlu0 %v6901, 32
        %v7089 = vpop.permute.xlu0 %7088
        %7090 = vrot.lane.b32.xlu0 %v6902, 32
        %v7091 = vpop.permute.xlu0 %7090
        %7092 = vrot.lane.b32.xlu0 %v6903, 32
        %v7093 = vpop.permute.xlu0 %7092
        %7094 = vrot.lane.b32.xlu0 %v6904, 32
        %v7095 = vpop.permute.xlu0 %7094
        %7128 = vrot.lane.b32.xlu0 %v7048, 64
        %v7129 = vpop.permute.xlu0 %7128
        %7130 = vrot.lane.b32.xlu0 %v7049, 64
        %v7131 = vpop.permute.xlu0 %7130
        %7132 = vrot.lane.b32.xlu0 %v7050, 64
        %v7133 = vpop.permute.xlu0 %7132
        %7134 = vrot.lane.b32.xlu0 %v7051, 64
        %v7135 = vpop.permute.xlu0 %7134
        %7136 = vrot.lane.b32.xlu0 %v7052, 64
        %v7137 = vpop.permute.xlu0 %7136
        %7138 = vrot.lane.b32.xlu0 %v7053, 64
        %v7139 = vpop.permute.xlu0 %7138
        %7140 = vrot.lane.b32.xlu0 %v7054, 64
        %v7141 = vpop.permute.xlu0 %7140
        %7142 = vrot.lane.b32.xlu0 %v7055, 64
        %v7143 = vpop.permute.xlu0 %7142
        %7144 = vrot.lane.b32.xlu0 %v7056, 64
        %v7145 = vpop.permute.xlu0 %7144
        %7146 = vrot.lane.b32.xlu0 %v7057, 64
        %v7147 = vpop.permute.xlu0 %7146
        %7148 = vrot.lane.b32.xlu0 %v7058, 64
        %v7149 = vpop.permute.xlu0 %7148
        %7150 = vrot.lane.b32.xlu0 %v7059, 64
        %v7151 = vpop.permute.xlu0 %7150
        %7152 = vrot.lane.b32.xlu0 %v7060, 64
        %v7153 = vpop.permute.xlu0 %7152
        %7154 = vrot.lane.b32.xlu0 %v7061, 64
        %v7155 = vpop.permute.xlu0 %7154
        %7156 = vrot.lane.b32.xlu0 %v7062, 64
        %v7157 = vpop.permute.xlu0 %7156
        %7158 = vrot.lane.b32.xlu0 %v7063, 64
        %v7159 = vpop.permute.xlu0 %7158
        %v7176 = vsel %vm548, %v6983, %v7065
        %v7177 = vsel %vm548, %v6984, %v7067
        %v7178 = vsel %vm548, %v6985, %v7069
        %v7179 = vsel %vm548, %v6986, %v7071
        %v7180 = vsel %vm548, %v6987, %v7073
        %v7181 = vsel %vm548, %v6988, %v7075
        %v7182 = vsel %vm548, %v6989, %v7077
        %v7183 = vsel %vm548, %v6990, %v7079
        %v7184 = vsel %vm548, %v6991, %v7081
        %v7185 = vsel %vm548, %v6992, %v7083
        %v7186 = vsel %vm548, %v6993, %v7085
        %v7187 = vsel %vm548, %v6994, %v7087
        %v7188 = vsel %vm548, %v6995, %v7089
        %v7189 = vsel %vm548, %v6996, %v7091
        %v7190 = vsel %vm548, %v6997, %v7093
        %v7191 = vsel %vm548, %v6998, %v7095
        %v7192 = vsel %vm1260, %v7176, %v7129
        %v7193 = vsel %vm1260, %v7177, %v7131
        %v7194 = vsel %vm1260, %v7178, %v7133
        %v7195 = vsel %vm1260, %v7179, %v7135
        %v7196 = vsel %vm1260, %v7180, %v7137
        %v7197 = vsel %vm1260, %v7181, %v7139
        %v7198 = vsel %vm1260, %v7182, %v7141
        %v7199 = vsel %vm1260, %v7183, %v7143
        %v7200 = vsel %vm1260, %v7184, %v7145
        %v7201 = vsel %vm1260, %v7185, %v7147
        %v7202 = vsel %vm1260, %v7186, %v7149
        %v7203 = vsel %vm1260, %v7187, %v7151
        %v7204 = vsel %vm1260, %v7188, %v7153
        %v7205 = vsel %vm1260, %v7189, %v7155
        %v7206 = vsel %vm1260, %v7190, %v7157
        %v7207 = vsel %vm1260, %v7191, %v7159
        %v7208 = vpack.c.bf16 %v7193, %v7192
        %v7209 = vpack.c.bf16 %v7195, %v7194
        %v7210 = vpack.c.bf16 %v7197, %v7196
        %v7211 = vpack.c.bf16 %v7199, %v7198
        %v7212 = vpack.c.bf16 %v7201, %v7200
        %v7213 = vpack.c.bf16 %v7203, %v7202
        %v7214 = vpack.c.bf16 %v7205, %v7204
        %v7215 = vpack.c.bf16 %v7207, %v7206
        %v7228 = vunpack.c.l.b16 %v6906
        %v7229 = vunpack.c.l.b16 %v6907
        %v7230 = vunpack.c.l.b16 %v6908
        %v7231 = vunpack.c.l.b16 %v6909
        %v7232 = vunpack.c.l.b16 %v6910
        %v7233 = vunpack.c.l.b16 %v6911
        %v7234 = vunpack.c.l.b16 %v6912
        %v7235 = vunpack.c.l.b16 %v6913
        %v7236 = vunpack.c.l.b16 %v6914
        %v7237 = vunpack.c.l.b16 %v6915
        %v7238 = vunpack.c.l.b16 %v6916
        %v7239 = vunpack.c.l.b16 %v6917
        %v7240 = vpack.c.b16 %v7229, %v7228
        %v7241 = vpack.c.b16 %v7231, %v7230
        %v7242 = vpack.c.b16 %v7233, %v7232
        %v7243 = vpack.c.b16 %v7235, %v7234
        %v7244 = vpack.c.b16 %v7237, %v7236
        %v7245 = vpack.c.b16 %v7239, %v7238
        %v7253 = vsel %vm1321, %v7208, 0
        %v7256 = vsel %vm1321, %v7209, 0
        %v7259 = vsel %vm1321, %v7210, 0
        %v7262 = vsel %vm1321, %v7211, 0
        %v7265 = vsel %vm1321, %v7212, 0
        %v7268 = vsel %vm1321, %v7213, 0
        %v7271 = vsel %vm1321, %v7214, 0
        %v7274 = vsel %vm1321, %v7215, 0
        %7276 = vmatprep.subr.bf16.mxu0 0
        %7277 = vmatpush1.bf16.msra.mxu0 %v7240
        %7278 = vmatprep.subr.bf16.mxu0 0
        %7279 = vmatpush1.bf16.msra.mxu0 %v7241
        %7280 = vmatprep.subr.bf16.mxu0 0
        %7281 = vmatpush1.bf16.msra.mxu0 %v7242
        %7282 = vmatprep.subr.bf16.mxu0 0
        %7283 = vmatpush1.bf16.msra.mxu0 %v7243
        %7284 = vmatprep.subr.bf16.mxu0 0
        %7285 = vmatpush1.bf16.msra.mxu0 %v7244
        %7286 = vmatprep.subr.bf16.mxu0 0
        %7287 = vmatpush1.bf16.msra.mxu0 %v7245
        %7288 = vmatprep.subr.bf16.mxu0 0
        %7289 = vmatpush1.bf16.msra.mxu0 0
        %7290 = vmatprep.subr.bf16.mxu0 0
        %7291 = vmatpush1.bf16.msra.mxu0 0
        %7292 = vmatprep.subr.bf16.mxu0 0
        %7293 = vmatpush1.bf16.msra.mxu0 0
        %7294 = vmatprep.subr.bf16.mxu0 0
        %7295 = vmatpush1.bf16.msra.mxu0 0
        %7296 = vmatprep.subr.bf16.mxu0 0
        %7297 = vmatpush1.bf16.msra.mxu0 0
        %7298 = vmatprep.subr.bf16.mxu0 0
        %7299 = vmatpush1.bf16.msra.mxu0 0
        %7300 = vmatprep.subr.bf16.mxu0 0
        %7301 = vmatpush1.bf16.msra.mxu0 0
        %7302 = vmatprep.subr.bf16.mxu0 0
        %7303 = vmatpush1.bf16.msra.mxu0 0
        %7304 = vmatprep.subr.bf16.mxu0 0
        %7305 = vmatpush1.bf16.msra.mxu0 0
        %7306 = vmatprep.subr.bf16.mxu0 0
        %7307 = vmatpush1.bf16.msra.mxu0 0
        %7308 = vmatprep.mubr.bf16.mxu0 0
        %7309 = vmatmul.mubr.bf16.gmra.mrb[0].mxu0 %v7253
        %v7310 = vpop.f32.mrb[0].mxu0
        %v7311 = vadd.f32 0.0, %v7310
        %v7312 = vpop.f32.mrb[0].mxu0
        %v7313 = vpop.f32.mrb[0].mxu0
        %v7314 = vadd.f32 0.0, %v7313
        %v7315 = vpop.f32.mrb[0].mxu0
        %7316 = vmatprep.mubr.bf16.mxu0 0
        %7317 = vmatmul.mubr.bf16.gmra.mrb[0].mxu0 %v7256
        %v7318 = vpop.f32.mrb[0].mxu0
        %v7319 = vadd.f32 0.0, %v7318
        %v7320 = vpop.f32.mrb[0].mxu0
        %v7321 = vpop.f32.mrb[0].mxu0
        %v7322 = vadd.f32 0.0, %v7321
        %v7323 = vpop.f32.mrb[0].mxu0
        %7324 = vmatprep.mubr.bf16.mxu0 0
        %7325 = vmatmul.mubr.bf16.gmra.mrb[0].mxu0 %v7259
        %v7326 = vpop.f32.mrb[0].mxu0
        %v7327 = vadd.f32 0.0, %v7326
        %v7328 = vpop.f32.mrb[0].mxu0
        %v7329 = vpop.f32.mrb[0].mxu0
        %v7330 = vadd.f32 0.0, %v7329
        %v7331 = vpop.f32.mrb[0].mxu0
        %7332 = vmatprep.mubr.bf16.mxu0 0
        %7333 = vmatmul.mubr.bf16.gmra.mrb[0].mxu0 %v7262
        %v7334 = vpop.f32.mrb[0].mxu0
        %v7335 = vadd.f32 0.0, %v7334
        %v7336 = vpop.f32.mrb[0].mxu0
        %v7337 = vpop.f32.mrb[0].mxu0
        %v7338 = vadd.f32 0.0, %v7337
        %v7339 = vpop.f32.mrb[0].mxu0
        %7340 = vmatprep.mubr.bf16.mxu0 0
        %7341 = vmatmul.mubr.bf16.gmra.mrb[0].mxu0 %v7265
        %v7342 = vpop.f32.mrb[0].mxu0
        %v7343 = vadd.f32 0.0, %v7342
        %v7344 = vpop.f32.mrb[0].mxu0
        %v7345 = vpop.f32.mrb[0].mxu0
        %v7346 = vadd.f32 0.0, %v7345
        %v7347 = vpop.f32.mrb[0].mxu0
        %7348 = vmatprep.mubr.bf16.mxu0 0
        %7349 = vmatmul.mubr.bf16.gmra.mrb[0].mxu0 %v7268
        %v7350 = vpop.f32.mrb[0].mxu0
        %v7351 = vadd.f32 0.0, %v7350
        %v7352 = vpop.f32.mrb[0].mxu0
        %v7353 = vpop.f32.mrb[0].mxu0
        %v7354 = vadd.f32 0.0, %v7353
        %v7355 = vpop.f32.mrb[0].mxu0
        %7356 = vmatprep.mubr.bf16.mxu0 0
        %7357 = vmatmul.mubr.bf16.gmra.mrb[0].mxu0 %v7271
        %v7358 = vpop.f32.mrb[0].mxu0
        %v7359 = vadd.f32 0.0, %v7358
        %v7360 = vpop.f32.mrb[0].mxu0
        %v7361 = vpop.f32.mrb[0].mxu0
        %v7362 = vadd.f32 0.0, %v7361
        %v7363 = vpop.f32.mrb[0].mxu0
        %7364 = vmatprep.mubr.bf16.mxu0 0
        %7365 = vmatmul.mubr.bf16.gmra.mrb[0].mxu0 %v7274
        %v7366 = vpop.f32.mrb[0].mxu0
        %v7367 = vadd.f32 0.0, %v7366
        %v7368 = vpop.f32.mrb[0].mxu0
        %v7369 = vpop.f32.mrb[0].mxu0
        %v7370 = vadd.f32 0.0, %v7369
        %v7371 = vpop.f32.mrb[0].mxu0
        %7372 = vdwg.mxu0
        %s7373 = scalar_lea.vmem %s6, 11
        %v7374 = vld [vmem:[%s7373] sm:$0x1]
        %v7376 = vlaneseq
        %v7377 = vshrl.u32 %v7376, 7
        %v7378 = vsub.s32 0, %v7377
        %v7379 = vrot.slane %v7374, %v7378
        %v7381 = vmul.f32 %v7311, %v7379
        %v7382 = vmul.f32 %v7314, %v7379
        %v7383 = vmul.f32 %v7319, %v7379
        %v7384 = vmul.f32 %v7322, %v7379
        %v7385 = vmul.f32 %v7327, %v7379
        %v7386 = vmul.f32 %v7330, %v7379
        %v7387 = vmul.f32 %v7335, %v7379
        %v7388 = vmul.f32 %v7338, %v7379
        %v7389 = vmul.f32 %v7343, %v7379
        %v7390 = vmul.f32 %v7346, %v7379
        %v7391 = vmul.f32 %v7351, %v7379
        %v7392 = vmul.f32 %v7354, %v7379
        %v7393 = vmul.f32 %v7359, %v7379
        %v7394 = vmul.f32 %v7362, %v7379
        %v7395 = vmul.f32 %v7367, %v7379
        %v7396 = vmul.f32 %v7370, %v7379
        %s7397 = scalar_lea.vmem %s7, 11
        %v7398 = vld [vmem:[%s7397] sm:$0x1]
        %v7400 = vlaneseq
        %v7401 = vshrl.u32 %v7400, 7
        %v7402 = vsub.s32 0, %v7401
        %v7403 = vrot.slane %v7398, %v7402
        %v7405 = vadd.f32 %v7381, %v7403
        %v7406 = vadd.f32 %v7382, %v7403
        %v7407 = vadd.f32 %v7383, %v7403
        %v7408 = vadd.f32 %v7384, %v7403
        %v7409 = vadd.f32 %v7385, %v7403
        %v7410 = vadd.f32 %v7386, %v7403
        %v7411 = vadd.f32 %v7387, %v7403
        %v7412 = vadd.f32 %v7388, %v7403
        %v7413 = vadd.f32 %v7389, %v7403
        %v7414 = vadd.f32 %v7390, %v7403
        %v7415 = vadd.f32 %v7391, %v7403
        %v7416 = vadd.f32 %v7392, %v7403
        %v7417 = vadd.f32 %v7393, %v7403
        %v7418 = vadd.f32 %v7394, %v7403
        %v7419 = vadd.f32 %v7395, %v7403
        %v7420 = vadd.f32 %v7396, %v7403
        %v7421 = vadd.f32 %v7405, %v6357
        %v7422 = vadd.f32 %v7406, %v6358
        %v7423 = vadd.f32 %v7407, %v6359
        %v7424 = vadd.f32 %v7408, %v6360
        %v7425 = vadd.f32 %v7409, %v6361
        %v7426 = vadd.f32 %v7410, %v6362
        %v7427 = vadd.f32 %v7411, %v6363
        %v7428 = vadd.f32 %v7412, %v6364
        %v7429 = vadd.f32 %v7413, %v6365
        %v7430 = vadd.f32 %v7414, %v6366
        %v7431 = vadd.f32 %v7415, %v6367
        %v7432 = vadd.f32 %v7416, %v6368
        %v7433 = vadd.f32 %v7417, %v6369
        %v7434 = vadd.f32 %v7418, %v6370
        %v7435 = vadd.f32 %v7419, %v6371
        %v7436 = vadd.f32 %v7420, %v6372
        %v7437 = vmax.f32 %v7421, 0.0
        %v7438 = vmax.f32 %v7422, 0.0
        %v7439 = vmax.f32 %v7423, 0.0
        %v7440 = vmax.f32 %v7424, 0.0
        %v7441 = vmax.f32 %v7425, 0.0
        %v7442 = vmax.f32 %v7426, 0.0
        %v7443 = vmax.f32 %v7427, 0.0
        %v7444 = vmax.f32 %v7428, 0.0
        %v7445 = vmax.f32 %v7429, 0.0
        %v7446 = vmax.f32 %v7430, 0.0
        %v7447 = vmax.f32 %v7431, 0.0
        %v7448 = vmax.f32 %v7432, 0.0
        %v7449 = vmax.f32 %v7433, 0.0
        %v7450 = vmax.f32 %v7434, 0.0
        %v7451 = vmax.f32 %v7435, 0.0
        %v7452 = vmax.f32 %v7436, 0.0
        %v7453 = vsel %vm548, %v7437, -inf
        %v7454 = vsel %vm548, %v7438, -inf
        %v7455 = vmax.f32 %v7453, %v7454
        %v7456 = vrot.slane %v7455, 4
        %v7457 = vmax.f32 %v7455, %v7456
        %v7458 = vrot.slane %v7457, 2
        %v7459 = vmax.f32 %v7457, %v7458
        %v7460 = vrot.slane %v7459, 1
        %v7461 = vmax.f32 %v7459, %v7460
        %v7462 = vsel %vm548, %v7439, -inf
        %v7463 = vsel %vm548, %v7440, -inf
        %v7464 = vmax.f32 %v7462, %v7463
        %v7465 = vrot.slane %v7464, 4
        %v7466 = vmax.f32 %v7464, %v7465
        %v7467 = vrot.slane %v7466, 2
        %v7468 = vmax.f32 %v7466, %v7467
        %v7469 = vrot.slane %v7468, 1
        %v7470 = vmax.f32 %v7468, %v7469
        %v7471 = vsel %vm548, %v7441, -inf
        %v7472 = vsel %vm548, %v7442, -inf
        %v7473 = vmax.f32 %v7471, %v7472
        %v7474 = vrot.slane %v7473, 4
        %v7475 = vmax.f32 %v7473, %v7474
        %v7476 = vrot.slane %v7475, 2
        %v7477 = vmax.f32 %v7475, %v7476
        %v7478 = vrot.slane %v7477, 1
        %v7479 = vmax.f32 %v7477, %v7478
        %v7480 = vsel %vm548, %v7443, -inf
        %v7481 = vsel %vm548, %v7444, -inf
        %v7482 = vmax.f32 %v7480, %v7481
        %v7483 = vrot.slane %v7482, 4
        %v7484 = vmax.f32 %v7482, %v7483
        %v7485 = vrot.slane %v7484, 2
        %v7486 = vmax.f32 %v7484, %v7485
        %v7487 = vrot.slane %v7486, 1
        %v7488 = vmax.f32 %v7486, %v7487
        %v7489 = vsel %vm548, %v7445, -inf
        %v7490 = vsel %vm548, %v7446, -inf
        %v7491 = vmax.f32 %v7489, %v7490
        %v7492 = vrot.slane %v7491, 4
        %v7493 = vmax.f32 %v7491, %v7492
        %v7494 = vrot.slane %v7493, 2
        %v7495 = vmax.f32 %v7493, %v7494
        %v7496 = vrot.slane %v7495, 1
        %v7497 = vmax.f32 %v7495, %v7496
        %v7498 = vsel %vm548, %v7447, -inf
        %v7499 = vsel %vm548, %v7448, -inf
        %v7500 = vmax.f32 %v7498, %v7499
        %v7501 = vrot.slane %v7500, 4
        %v7502 = vmax.f32 %v7500, %v7501
        %v7503 = vrot.slane %v7502, 2
        %v7504 = vmax.f32 %v7502, %v7503
        %v7505 = vrot.slane %v7504, 1
        %v7506 = vmax.f32 %v7504, %v7505
        %v7507 = vsel %vm548, %v7449, -inf
        %v7508 = vsel %vm548, %v7450, -inf
        %v7509 = vmax.f32 %v7507, %v7508
        %v7510 = vrot.slane %v7509, 4
        %v7511 = vmax.f32 %v7509, %v7510
        %v7512 = vrot.slane %v7511, 2
        %v7513 = vmax.f32 %v7511, %v7512
        %v7514 = vrot.slane %v7513, 1
        %v7515 = vmax.f32 %v7513, %v7514
        %v7516 = vsel %vm548, %v7451, -inf
        %v7517 = vsel %vm548, %v7452, -inf
        %v7518 = vmax.f32 %v7516, %v7517
        %v7519 = vrot.slane %v7518, 4
        %v7520 = vmax.f32 %v7518, %v7519
        %v7521 = vrot.slane %v7520, 2
        %v7522 = vmax.f32 %v7520, %v7521
        %v7523 = vrot.slane %v7522, 1
        %v7524 = vmax.f32 %v7522, %v7523
        %v7525 = vsel %vm375, %v7461, %v7470
        %vm7526 = vcmask 1041408
        %v7527 = vsel %vm7526, %v7525, %v7479
        %vm7528 = vcmask 1042432
        %v7529 = vsel %vm7528, %v7527, %v7488
        %vm7530 = vcmask 1043456
        %v7531 = vsel %vm7530, %v7529, %v7497
        %vm7532 = vcmask 1044480
        %v7533 = vsel %vm7532, %v7531, %v7506
        %vm7534 = vcmask 1045504
        %v7535 = vsel %vm7534, %v7533, %v7515
        %v7536 = vsel %vm1066, %v7535, %v7524
        %7537 = vst.msk [vmem:[%s299] sm:$0xff] %vm548, %v7536
        %s7538 = sand.u32 %s203, 1
        %s7539 = scalar_lea.sflag [#allocation3], %s7538
        %s7540 = sand.u32 %s203, 1
        %s7541 = smul.addr %s7540, 8
        %s7542 = scalar_lea.vmem [#allocation2], %s7541
        // Predicated region
        $region53: #{gmm_resnet_path.1} parent=51 // pred_check
          %p7543 = pneg %p213
        $region54: #{gmm_resnet_path.1} parent=51 // pred_check_branch
          %7545 = sbr.rel (%p7543) target = $region56
        $region55: #{gmm_resnet_path.1} parent=51 // pred_region
          %s7547 = ssub.s32 128, 128
          %7548 = vsyncadd %s7539, %s7547
          %s7549 = smul.addr %s22, 128
          %s7550 = scalar_lea.hbm %s8, %s7549
          %s7552 = sshll.u32 %s7542, 4
          %s7553 = int_to_ptr.vmem [resolvable:$true] %s7552
          %7555 = dma.vmem_to_hbm [thread:$0]  %s7553, 128, %s7550, %s7539
        $region56: #{gmm_resnet_path.1} parent=51 // pred_fallthru
          _
      $region52: #{gmm_resnet_path.1} parent=5 // pred_fallthru
        _
      %p7556 = scmp.le.s32.totalorder 2, %s17
      // Predicated region
      $region57: #{gmm_resnet_path.1} parent=5 // pred_check
        %p7557 = pneg %p7556
      $region58: #{gmm_resnet_path.1} parent=5 // pred_check_branch
        %7559 = sbr.rel (%p7557) target = $region60
      $region59: #{gmm_resnet_path.1} parent=5 // pred_region
        %s7560 = ssub.s32 %s17, 2
        // Predicated region
        $region61: #{gmm_resnet_path.1} parent=59 // pred_check
          %p7561 = pneg %p219
        $region62: #{gmm_resnet_path.1} parent=59 // pred_check_branch
          %7563 = sbr.rel (%p7561) target = $region64
        $region63: #{gmm_resnet_path.1} parent=59 // pred_region
          %s7564 = sand.u32 %s204, 1
          %s7565 = scalar_lea.sflag [#allocation3], %s7564
          %s7566 = sand.u32 %s204, 1
          %s7567 = smul.addr %s7566, 8
          %s7568 = scalar_lea.vmem [#allocation2], %s7567
          %7569 = dma.done %s7565, 128
        $region64: #{gmm_resnet_path.1} parent=59 // pred_fallthru
          _
      $region60: #{gmm_resnet_path.1} parent=5 // pred_fallthru
        _
    $region6: #{gmm_resnet_path.1} parent=1 // loop_footer
      %s21 = sadd.s32 1, %s17
    $region7: #{gmm_resnet_path.1} parent=1 // loop_footer_branch
      %16 = sbr.rel target = $region3
    $region8: #{gmm_resnet_path.1} parent=1 // loop_exit
      _
    %7570 = vsyncpa [#allocation3], 1
    %s7571 = scalar_lea.sflag [#allocation3], 1
    %7572 = vsyncpa %s7571, 1

</llo_original>
